<compile_context>
chip_gen: v7x
topology: tpu7x:2x2x1
jax: 0.10.0
libtpu: 0.0.40
codegen_flags: <defaults>
</compile_context>

<pallas_src>
import functools
import math

import jax
import jax.numpy as jnp
from jax import lax
from jax.experimental import pallas as pl
from jax.experimental.pallas import tpu as pltpu  # noqa: F401  (TPU backend)

# ----------------------------------------------------------------------------
# Scaled-down config (reference uses n_layers=6, n_head=27, d_model=27,
# d_inner=256, seq=50, batch=200; same structure, smaller tile-aligned sizes).
# ----------------------------------------------------------------------------
N_LAYERS = 2
N_HEAD = 4
D_MODEL = 32
D_INNER = 64
D_K = 16
D_V = 16
SEQ = 8
BATCH = 4
N_CLASSES = 3
LN_EPS = 1e-3


# ----------------------------------------------------------------------------
# In-kernel helpers
# ----------------------------------------------------------------------------
def _layer_norm(y, a, b, eps):
    """torch-style LayerNormalization: unbiased std, (x-mu)/(std+eps)*a + b."""
    d = y.shape[-1]
    mu = jnp.mean(y, axis=-1, keepdims=True)
    diff = y - mu
    var = jnp.sum(diff * diff, axis=-1, keepdims=True) * (1.0 / (d - 1))
    return diff / (jnp.sqrt(var) + eps) * a + b          # exact (tiny op count)


# ----------------------------------------------------------------------------
# Single fused kernel: all encoder layers + classification head
# ----------------------------------------------------------------------------
def fused_forward_kernel(x_ref, wqkv_ref, wp_ref, w1_ref, w2_ref, vecs_ref,
                         whall_ref, m2_ref, rmat_ref, sel2_ref, hb_ref, o_ref,
                         *, n_layers, n_head, d_k, d_v, d_model, batch, seq,
                         eps):
    bs = batch * seq
    d_inner = w1_ref.shape[2]
    k_off = n_head * d_k
    v_off = 2 * n_head * d_k

    x = x_ref[...]                                # (B*S, D) — whole batch

    for l in range(n_layers):
        wqkvl = wqkv_ref[l]                       # (D, 3*H*dk), scale in wq
        wpl = wp_ref[l]                           # (H*dv, D)
        vl = vecs_ref[l]                          # (8, 128) packed vectors
        bp = vl[0:1, 0:d_model]
        b1 = vl[1:2, 0:d_inner]
        b2 = vl[2:3, 0:d_model]
        ln1a = vl[3:4, 0:d_model]
        ln1b = vl[4:5, 0:d_model]
        ln2a = vl[5:6, 0:d_model]
        ln2b = vl[6:7, 0:d_model]

        # ------------------- multi-head self-attention ---------------------
        # Fused QKV projection: one MXU pass for all heads' Q, K and V.
        qkv = jnp.dot(x, wqkvl, preferred_element_type=jnp.float32)  # (B*S, 3*H*dk)
        qkv3 = qkv.reshape(batch, seq, 3 * n_head * d_k)             # free split

        attn = jnp.zeros((bs, d_model), jnp.float32)
        for h in range(n_head):
            qh = qkv3[:, :, h * d_k:(h + 1) * d_k]                   # (B,S,dk)
            kh = qkv3[:, :, k_off + h * d_k:k_off + (h + 1) * d_k]
            vh = qkv3[:, :, v_off + h * d_v:v_off + (h + 1) * d_v]
            # scores: batched over B, contract d_k (scale baked into wq)
            s = lax.dot_general(qh, kh, (((2,), (2,)), ((0,), (0,))),
                                preferred_element_type=jnp.float32)  # (B,S,S)
            s = s - jnp.max(s, axis=-1, keepdims=True)
            p = jnp.exp(s)
            p = p / jnp.sum(p, axis=-1, keepdims=True)               # softmax
            oh = lax.dot_general(p, vh, (((2,), (1,)), ((0,), (0,))),
                                 preferred_element_type=jnp.float32)  # (B,S,dv)
            # accumulate projection directly (no lane concat of heads);
            # wp sublane slices at multiples of d_v=16 are tile-aligned.
            attn = attn + jnp.dot(oh.reshape(bs, d_v),
                                  wpl[h * d_v:(h + 1) * d_v, :],
                                  preferred_element_type=jnp.float32)

        x = _layer_norm(attn + bp + x, ln1a, ln1b, eps)              # + residual

        # ------------------- position-wise FFN -----------------------------
        h1 = jnp.dot(x, w1_ref[l], preferred_element_type=jnp.float32) + b1
        h1 = jnp.maximum(h1, 0.0)                                     # ReLU
        ffn = jnp.dot(h1, w2_ref[l], preferred_element_type=jnp.float32) + b2
        x = _layer_norm(ffn + x, ln2a, ln2b, eps)                     # + residual

    # ------------------- classification head -------------------------------
    # out = flatten(x, (B, S*D)) @ head_w + head_b, computed without any
    # in-kernel relayout/reshape of the lane structure:
    #   y[r, s*C + c]  = x[r, :] . wh[s, :, c]            (one matmul)
    #   z[r, c]        = y[r, (r mod S)*C + c]            (mask * small matmul)
    #   out[b, c]      = sum_{r: r div S == b} z[r, c]    (one segment-sum matmul)
    y = jnp.dot(x, whall_ref[...], preferred_element_type=jnp.float32)   # (B*S, S*C)
    z = jnp.dot(y * m2_ref[...], rmat_ref[...],
                preferred_element_type=jnp.float32)                      # (B*S, C)
    o_ref[...] = jnp.dot(sel2_ref[...], z,
                         preferred_element_type=jnp.float32) + hb_ref[...]


# ----------------------------------------------------------------------------
# Wrapper: weight re-packing (pure JAX, outside the kernel) + one pallas_call
# ----------------------------------------------------------------------------
def attention_is_all_you_need(x, params):
    B, S, D = x.shape
    layers = params["layers"]
    L = len(layers)
    scale = 1.0 / math.sqrt(D)                    # temper = sqrt(d_model)

    def cat_heads(w):                             # (H, D, dk) -> (D, H*dk)
        return w.transpose(1, 0, 2).reshape(D, -1)

    # Fused QKV weight; attention scale folded into the Q part (free).
    wqkv = jnp.stack([jnp.concatenate(
        [cat_heads(p["wq"]) * scale, cat_heads(p["wk"]), cat_heads(p["wv"])],
        axis=1) for p in layers])                                 # (L, D, 3*H*dk)
    wp = jnp.stack([p["wp"] for p in layers])                     # (L, H*dv, D)
    w1 = jnp.stack([p["w1"] for p in layers])                     # (L, D, D_in)
    w2 = jnp.stack([p["w2"] for p in layers])                     # (L, D_in, D)

    # Pack all tiny per-layer vectors into one (L, 8, 128) operand.
    def pack_vecs(p):
        def row(v, width=128):
            v = v.reshape(-1)
            return jnp.pad(v, (0, width - v.shape[0]))
        return jnp.stack([row(p["bp"]), row(p["b1"]), row(p["b2"]),
                          row(p["ln1_a"]), row(p["ln1_b"]),
                          row(p["ln2_a"]), row(p["ln2_b"]),
                          jnp.zeros((128,), jnp.float32)])
    vecs = jnp.stack([pack_vecs(p) for p in layers])              # (L, 8, 128)

    # Classification-head weight in (D, S*C) order: whall[d, s*C+c] = wh[s,d,c]
    wh = params["head_w"].reshape(S, D, N_CLASSES)
    whall = wh.transpose(1, 0, 2).reshape(D, S * N_CLASSES)
    hb = params["head_b"]                                          # (1, C)

    # Constant index masks for the head (built once in the wrapper).
    r = jnp.arange(B * S)
    j = jnp.arange(S * N_CLASSES)
    m2 = (j[None, :] // N_CLASSES == r[:, None] % S).astype(jnp.float32)   # (B*S, S*C)
    rmat = (j[:, None] % N_CLASSES ==
            jnp.arange(N_CLASSES)[None, :]).astype(jnp.float32)            # (S*C, C)
    sel2 = (r[None, :] // S == jnp.arange(B)[:, None]).astype(jnp.float32)  # (B, B*S)

    x2 = x.reshape(B * S, D)                       # fold batch into matmul rows

    kernel = functools.partial(
        fused_forward_kernel, n_layers=L, n_head=N_HEAD, d_k=D_K, d_v=D_V,
        d_model=D, batch=B, seq=S, eps=LN_EPS)

    # No grid: single kernel invocation; every operand lives fully in VMEM.
    # (On v7x a batch-parallel grid would use the second TensorCore once the
    # real batch=200/seq=50 config is used.)
    return pl.pallas_call(
        kernel,
        out_shape=jax.ShapeDtypeStruct((B, N_CLASSES), jnp.float32),
    )(x2, wqkv, wp, w1, w2, vecs, whall, m2, rmat, sel2, hb)


# ----------------------------------------------------------------------------
# Deterministic parameter initialization (synthetic; shapes per __init__)
# ----------------------------------------------------------------------------
def _xavier(key, shape, fan_in, fan_out):
    std = math.sqrt(2.0 / (fan_in + fan_out))
    return std * jax.random.normal(key, shape, dtype=jnp.float32)


def init_params(key):
    layers = []
    for l in range(N_LAYERS):
        ks = jax.random.split(jax.random.fold_in(key, l), 8)
        layer = dict(
            wq=_xavier(ks[0], (N_HEAD, D_MODEL, D_K), D_MODEL, D_K),
            wk=_xavier(ks[1], (N_HEAD, D_MODEL, D_K), D_MODEL, D_K),
            wv=_xavier(ks[2], (N_HEAD, D_MODEL, D_V), D_MODEL, D_V),
            wp=_xavier(ks[3], (N_HEAD * D_V, D_MODEL), N_HEAD * D_V, D_MODEL),
            bp=jnp.zeros((1, D_MODEL), jnp.float32),
            ln1_a=jnp.ones((1, D_MODEL), jnp.float32),
            ln1_b=jnp.zeros((1, D_MODEL), jnp.float32),
            w1=_xavier(ks[4], (D_MODEL, D_INNER), D_MODEL, D_INNER),
            b1=0.01 * jax.random.normal(ks[5], (1, D_INNER), dtype=jnp.float32),
            w2=_xavier(ks[6], (D_INNER, D_MODEL), D_INNER, D_MODEL),
            b2=0.01 * jax.random.normal(ks[7], (1, D_MODEL), dtype=jnp.float32),
            ln2_a=jnp.ones((1, D_MODEL), jnp.float32),
            ln2_b=jnp.zeros((1, D_MODEL), jnp.float32),
        )
        layers.append(layer)
    kh = jax.random.fold_in(key, 10_000)
    head_w = _xavier(kh, (SEQ * D_MODEL, N_CLASSES), SEQ * D_MODEL, N_CLASSES)
    head_b = jnp.zeros((1, N_CLASSES), jnp.float32)
    return dict(layers=layers, head_w=head_w, head_b=head_b)


# ----------------------------------------------------------------------------
# Pure-JAX reference for correctness check
# ----------------------------------------------------------------------------
def _ref_layer_norm(y, a, b):
    d = y.shape[-1]
    mu = jnp.mean(y, axis=-1, keepdims=True)
    var = jnp.sum((y - mu) ** 2, axis=-1, keepdims=True) / (d - 1)
    return (y - mu) / (jnp.sqrt(var) + LN_EPS) * a[0] + b[0]


def reference_forward(x, params):
    for p in params["layers"]:
        B, S, D = x.shape
        scale = 1.0 / math.sqrt(D)
        q = jnp.einsum("bsd,hdk->bhsk", x, p["wq"])
        k = jnp.einsum("bsd,hdk->bhsk", x, p["wk"])
        v = jnp.einsum("bsd,hdk->bhsk", x, p["wv"])
        attn = jnp.einsum("bhqk,bhmk->bhqm", q, k) * scale
        attn = jax.nn.softmax(attn, axis=-1)
        out = jnp.einsum("bhqm,bhmv->bhqv", attn, v)
        out = out.transpose(0, 2, 1, 3).reshape(B, S, -1)     # concat heads
        out = out @ p["wp"] + p["bp"][0]
        x = _ref_layer_norm(out + x, p["ln1_a"], p["ln1_b"])
        h = jnp.maximum(x @ p["w1"] + p["b1"][0], 0.0)
        out = h @ p["w2"] + p["b2"][0]
        x = _ref_layer_norm(out + x, p["ln2_a"], p["ln2_b"])
    x_flat = x.reshape(x.shape[0], -1)
    return x_flat @ params["head_w"] + params["head_b"][0]


# ----------------------------------------------------------------------------
if __name__ == "__main__":
    key = jax.random.PRNGKey(0)
    k_inp, k_par = jax.random.split(key)
    inp = jax.random.normal(k_inp, (BATCH, SEQ, D_MODEL), dtype=jnp.float32)
    params = init_params(k_par)

    out = attention_is_all_you_need(inp, params)
    out = jax.block_until_ready(out)
    assert out.shape == (BATCH, N_CLASSES), out.shape

    ref = jax.block_until_ready(reference_forward(inp, params))
    assert jnp.allclose(out, ref, atol=1e-2, rtol=1e-2), (
        "mismatch vs reference", out, ref)

    print("KERNEL_OK")
</pallas_src>

<mosaic_0001>
module attributes {stable_mosaic.version = 11 : i64} {
  func.func @fused_forward_kernel(%arg0: memref<32x32xf32, #tpu.memory_space<vmem>>, %arg1: memref<2x32x192xf32, #tpu.memory_space<vmem>>, %arg2: memref<2x64x32xf32, #tpu.memory_space<vmem>>, %arg3: memref<2x32x64xf32, #tpu.memory_space<vmem>>, %arg4: memref<2x64x32xf32, #tpu.memory_space<vmem>>, %arg5: memref<2x8x128xf32, #tpu.memory_space<vmem>>, %arg6: memref<32x24xf32, #tpu.memory_space<vmem>>, %arg7: memref<32x24xf32, #tpu.memory_space<vmem>>, %arg8: memref<24x3xf32, #tpu.memory_space<vmem>>, %arg9: memref<4x32xf32, #tpu.memory_space<vmem>>, %arg10: memref<1x3xf32, #tpu.memory_space<vmem>>, %arg11: memref<4x3xf32, #tpu.memory_space<vmem>>) attributes {dimension_semantics = [], scalar_prefetch = 0 : i64, scratch_operands = 0 : i64, tpu.core_type = #tpu.core_type<tc>} {
    %c0 = arith.constant 0 : index
    %c0_0 = arith.constant 0 : index
    %0 = vector.load %arg0[%c0, %c0_0] : memref<32x32xf32, #tpu.memory_space<vmem>>, vector<32x32xf32>
    %c0_1 = arith.constant 0 : index
    %c0_2 = arith.constant 0 : index
    %c0_3 = arith.constant 0 : index
    %1 = vector.load %arg1[%c0_1, %c0_2, %c0_3] : memref<2x32x192xf32, #tpu.memory_space<vmem>>, vector<1x32x192xf32>
    %2 = vector.shape_cast %1 : vector<1x32x192xf32> to vector<32x192xf32>
    %c0_4 = arith.constant 0 : index
    %c0_5 = arith.constant 0 : index
    %c0_6 = arith.constant 0 : index
    %3 = vector.load %arg2[%c0_4, %c0_5, %c0_6] : memref<2x64x32xf32, #tpu.memory_space<vmem>>, vector<1x64x32xf32>
    %4 = vector.shape_cast %3 : vector<1x64x32xf32> to vector<64x32xf32>
    %c0_7 = arith.constant 0 : index
    %c0_8 = arith.constant 0 : index
    %c0_9 = arith.constant 0 : index
    %5 = vector.load %arg5[%c0_7, %c0_8, %c0_9] : memref<2x8x128xf32, #tpu.memory_space<vmem>>, vector<1x8x128xf32>
    %6 = vector.shape_cast %5 : vector<1x8x128xf32> to vector<8x128xf32>
    %7 = vector.extract_strided_slice %6 {offsets = [0, 0], sizes = [1, 32], strides = [1, 1]} : vector<8x128xf32> to vector<1x32xf32>
    %8 = vector.extract_strided_slice %6 {offsets = [1, 0], sizes = [1, 64], strides = [1, 1]} : vector<8x128xf32> to vector<1x64xf32>
    %9 = vector.extract_strided_slice %6 {offsets = [2, 0], sizes = [1, 32], strides = [1, 1]} : vector<8x128xf32> to vector<1x32xf32>
    %10 = vector.extract_strided_slice %6 {offsets = [3, 0], sizes = [1, 32], strides = [1, 1]} : vector<8x128xf32> to vector<1x32xf32>
    %11 = vector.extract_strided_slice %6 {offsets = [4, 0], sizes = [1, 32], strides = [1, 1]} : vector<8x128xf32> to vector<1x32xf32>
    %12 = vector.extract_strided_slice %6 {offsets = [5, 0], sizes = [1, 32], strides = [1, 1]} : vector<8x128xf32> to vector<1x32xf32>
    %13 = vector.extract_strided_slice %6 {offsets = [6, 0], sizes = [1, 32], strides = [1, 1]} : vector<8x128xf32> to vector<1x32xf32>
    %cst = arith.constant dense<0.000000e+00> : vector<32x192xf32>
    %14 = tpu.matmul %0, %2, %cst {dimension_numbers = #tpu.dot_dimension_numbers<[1], [0], [0], [1], [0, 0, 1, 1], [], []>} : vector<32x32xf32>, vector<32x192xf32>, vector<32x192xf32> -> vector<32x192xf32>
    %15 = vector.shape_cast %14 : vector<32x192xf32> to vector<4x8x192xf32>
    %cst_10 = arith.constant 0.000000e+00 : f32
    %16 = vector.broadcast %cst_10 : f32 to vector<32x32xf32>
    %17 = vector.extract_strided_slice %15 {offsets = [0, 0, 0], sizes = [4, 8, 16], strides = [1, 1, 1]} : vector<4x8x192xf32> to vector<4x8x16xf32>
    %18 = vector.extract_strided_slice %15 {offsets = [0, 0, 64], sizes = [4, 8, 16], strides = [1, 1, 1]} : vector<4x8x192xf32> to vector<4x8x16xf32>
    %19 = vector.extract_strided_slice %15 {offsets = [0, 0, 128], sizes = [4, 8, 16], strides = [1, 1, 1]} : vector<4x8x192xf32> to vector<4x8x16xf32>
    %cst_11 = arith.constant dense<0.000000e+00> : vector<4x8x8xf32>
    %20 = tpu.matmul %17, %18, %cst_11 {dimension_numbers = #tpu.dot_dimension_numbers<[2], [2], [1], [1], [0, 0, 0, 1, 1, 1], [0], [0]>} : vector<4x8x16xf32>, vector<4x8x16xf32>, vector<4x8x8xf32> -> vector<4x8x8xf32>
    %cst_12 = arith.constant dense<0xFF800000> : vector<4x8xf32>
    %21 = vector.multi_reduction <maximumf>, %20, %cst_12 [2] : vector<4x8x8xf32> to vector<4x8xf32>
    %22 = vector.shape_cast %21 : vector<4x8xf32> to vector<4x8x1xf32>
    %23 = vector.broadcast %22 : vector<4x8x1xf32> to vector<4x8x8xf32>
    %24 = arith.subf %20, %23 : vector<4x8x8xf32>
    %25 = math.exp %24 : vector<4x8x8xf32>
    %cst_13 = arith.constant dense<0.000000e+00> : vector<4x8xf32>
    %26 = vector.multi_reduction <add>, %25, %cst_13 [2] : vector<4x8x8xf32> to vector<4x8xf32>
    %27 = vector.shape_cast %26 : vector<4x8xf32> to vector<4x8x1xf32>
    %28 = vector.broadcast %27 : vector<4x8x1xf32> to vector<4x8x8xf32>
    %29 = arith.divf %25, %28 : vector<4x8x8xf32>
    %cst_14 = arith.constant dense<0.000000e+00> : vector<4x8x16xf32>
    %30 = tpu.matmul %29, %19, %cst_14 {dimension_numbers = #tpu.dot_dimension_numbers<[2], [1], [1], [2], [0, 0, 0, 1, 1, 2], [0], [0]>} : vector<4x8x8xf32>, vector<4x8x16xf32>, vector<4x8x16xf32> -> vector<4x8x16xf32>
    %31 = vector.shape_cast %30 : vector<4x8x16xf32> to vector<32x16xf32>
    %32 = vector.extract_strided_slice %4 {offsets = [0, 0], sizes = [16, 32], strides = [1, 1]} : vector<64x32xf32> to vector<16x32xf32>
    %cst_15 = arith.constant dense<0.000000e+00> : vector<32x32xf32>
    %33 = tpu.matmul %31, %32, %cst_15 {dimension_numbers = #tpu.dot_dimension_numbers<[1], [0], [0], [1], [0, 0, 1, 1], [], []>} : vector<32x16xf32>, vector<16x32xf32>, vector<32x32xf32> -> vector<32x32xf32>
    %34 = arith.addf %16, %33 : vector<32x32xf32>
    %35 = vector.extract_strided_slice %15 {offsets = [0, 0, 16], sizes = [4, 8, 16], strides = [1, 1, 1]} : vector<4x8x192xf32> to vector<4x8x16xf32>
    %36 = vector.extract_strided_slice %15 {offsets = [0, 0, 80], sizes = [4, 8, 16], strides = [1, 1, 1]} : vector<4x8x192xf32> to vector<4x8x16xf32>
    %37 = vector.extract_strided_slice %15 {offsets = [0, 0, 144], sizes = [4, 8, 16], strides = [1, 1, 1]} : vector<4x8x192xf32> to vector<4x8x16xf32>
    %cst_16 = arith.constant dense<0.000000e+00> : vector<4x8x8xf32>
    %38 = tpu.matmul %35, %36, %cst_16 {dimension_numbers = #tpu.dot_dimension_numbers<[2], [2], [1], [1], [0, 0, 0, 1, 1, 1], [0], [0]>} : vector<4x8x16xf32>, vector<4x8x16xf32>, vector<4x8x8xf32> -> vector<4x8x8xf32>
    %cst_17 = arith.constant dense<0xFF800000> : vector<4x8xf32>
    %39 = vector.multi_reduction <maximumf>, %38, %cst_17 [2] : vector<4x8x8xf32> to vector<4x8xf32>
    %40 = vector.shape_cast %39 : vector<4x8xf32> to vector<4x8x1xf32>
    %41 = vector.broadcast %40 : vector<4x8x1xf32> to vector<4x8x8xf32>
    %42 = arith.subf %38, %41 : vector<4x8x8xf32>
    %43 = math.exp %42 : vector<4x8x8xf32>
    %cst_18 = arith.constant dense<0.000000e+00> : vector<4x8xf32>
    %44 = vector.multi_reduction <add>, %43, %cst_18 [2] : vector<4x8x8xf32> to vector<4x8xf32>
    %45 = vector.shape_cast %44 : vector<4x8xf32> to vector<4x8x1xf32>
    %46 = vector.broadcast %45 : vector<4x8x1xf32> to vector<4x8x8xf32>
    %47 = arith.divf %43, %46 : vector<4x8x8xf32>
    %cst_19 = arith.constant dense<0.000000e+00> : vector<4x8x16xf32>
    %48 = tpu.matmul %47, %37, %cst_19 {dimension_numbers = #tpu.dot_dimension_numbers<[2], [1], [1], [2], [0, 0, 0, 1, 1, 2], [0], [0]>} : vector<4x8x8xf32>, vector<4x8x16xf32>, vector<4x8x16xf32> -> vector<4x8x16xf32>
    %49 = vector.shape_cast %48 : vector<4x8x16xf32> to vector<32x16xf32>
    %50 = vector.extract_strided_slice %4 {offsets = [16, 0], sizes = [16, 32], strides = [1, 1]} : vector<64x32xf32> to vector<16x32xf32>
    %cst_20 = arith.constant dense<0.000000e+00> : vector<32x32xf32>
    %51 = tpu.matmul %49, %50, %cst_20 {dimension_numbers = #tpu.dot_dimension_numbers<[1], [0], [0], [1], [0, 0, 1, 1], [], []>} : vector<32x16xf32>, vector<16x32xf32>, vector<32x32xf32> -> vector<32x32xf32>
    %52 = arith.addf %34, %51 : vector<32x32xf32>
    %53 = vector.extract_strided_slice %15 {offsets = [0, 0, 32], sizes = [4, 8, 16], strides = [1, 1, 1]} : vector<4x8x192xf32> to vector<4x8x16xf32>
    %54 = vector.extract_strided_slice %15 {offsets = [0, 0, 96], sizes = [4, 8, 16], strides = [1, 1, 1]} : vector<4x8x192xf32> to vector<4x8x16xf32>
    %55 = vector.extract_strided_slice %15 {offsets = [0, 0, 160], sizes = [4, 8, 16], strides = [1, 1, 1]} : vector<4x8x192xf32> to vector<4x8x16xf32>
    %cst_21 = arith.constant dense<0.000000e+00> : vector<4x8x8xf32>
    %56 = tpu.matmul %53, %54, %cst_21 {dimension_numbers = #tpu.dot_dimension_numbers<[2], [2], [1], [1], [0, 0, 0, 1, 1, 1], [0], [0]>} : vector<4x8x16xf32>, vector<4x8x16xf32>, vector<4x8x8xf32> -> vector<4x8x8xf32>
    %cst_22 = arith.constant dense<0xFF800000> : vector<4x8xf32>
    %57 = vector.multi_reduction <maximumf>, %56, %cst_22 [2] : vector<4x8x8xf32> to vector<4x8xf32>
    %58 = vector.shape_cast %57 : vector<4x8xf32> to vector<4x8x1xf32>
    %59 = vector.broadcast %58 : vector<4x8x1xf32> to vector<4x8x8xf32>
    %60 = arith.subf %56, %59 : vector<4x8x8xf32>
    %61 = math.exp %60 : vector<4x8x8xf32>
    %cst_23 = arith.constant dense<0.000000e+00> : vector<4x8xf32>
    %62 = vector.multi_reduction <add>, %61, %cst_23 [2] : vector<4x8x8xf32> to vector<4x8xf32>
    %63 = vector.shape_cast %62 : vector<4x8xf32> to vector<4x8x1xf32>
    %64 = vector.broadcast %63 : vector<4x8x1xf32> to vector<4x8x8xf32>
    %65 = arith.divf %61, %64 : vector<4x8x8xf32>
    %cst_24 = arith.constant dense<0.000000e+00> : vector<4x8x16xf32>
    %66 = tpu.matmul %65, %55, %cst_24 {dimension_numbers = #tpu.dot_dimension_numbers<[2], [1], [1], [2], [0, 0, 0, 1, 1, 2], [0], [0]>} : vector<4x8x8xf32>, vector<4x8x16xf32>, vector<4x8x16xf32> -> vector<4x8x16xf32>
    %67 = vector.shape_cast %66 : vector<4x8x16xf32> to vector<32x16xf32>
    %68 = vector.extract_strided_slice %4 {offsets = [32, 0], sizes = [16, 32], strides = [1, 1]} : vector<64x32xf32> to vector<16x32xf32>
    %cst_25 = arith.constant dense<0.000000e+00> : vector<32x32xf32>
    %69 = tpu.matmul %67, %68, %cst_25 {dimension_numbers = #tpu.dot_dimension_numbers<[1], [0], [0], [1], [0, 0, 1, 1], [], []>} : vector<32x16xf32>, vector<16x32xf32>, vector<32x32xf32> -> vector<32x32xf32>
    %70 = arith.addf %52, %69 : vector<32x32xf32>
    %71 = vector.extract_strided_slice %15 {offsets = [0, 0, 48], sizes = [4, 8, 16], strides = [1, 1, 1]} : vector<4x8x192xf32> to vector<4x8x16xf32>
    %72 = vector.extract_strided_slice %15 {offsets = [0, 0, 112], sizes = [4, 8, 16], strides = [1, 1, 1]} : vector<4x8x192xf32> to vector<4x8x16xf32>
    %73 = vector.extract_strided_slice %15 {offsets = [0, 0, 176], sizes = [4, 8, 16], strides = [1, 1, 1]} : vector<4x8x192xf32> to vector<4x8x16xf32>
    %cst_26 = arith.constant dense<0.000000e+00> : vector<4x8x8xf32>
    %74 = tpu.matmul %71, %72, %cst_26 {dimension_numbers = #tpu.dot_dimension_numbers<[2], [2], [1], [1], [0, 0, 0, 1, 1, 1], [0], [0]>} : vector<4x8x16xf32>, vector<4x8x16xf32>, vector<4x8x8xf32> -> vector<4x8x8xf32>
    %cst_27 = arith.constant dense<0xFF800000> : vector<4x8xf32>
    %75 = vector.multi_reduction <maximumf>, %74, %cst_27 [2] : vector<4x8x8xf32> to vector<4x8xf32>
    %76 = vector.shape_cast %75 : vector<4x8xf32> to vector<4x8x1xf32>
    %77 = vector.broadcast %76 : vector<4x8x1xf32> to vector<4x8x8xf32>
    %78 = arith.subf %74, %77 : vector<4x8x8xf32>
    %79 = math.exp %78 : vector<4x8x8xf32>
    %cst_28 = arith.constant dense<0.000000e+00> : vector<4x8xf32>
    %80 = vector.multi_reduction <add>, %79, %cst_28 [2] : vector<4x8x8xf32> to vector<4x8xf32>
    %81 = vector.shape_cast %80 : vector<4x8xf32> to vector<4x8x1xf32>
    %82 = vector.broadcast %81 : vector<4x8x1xf32> to vector<4x8x8xf32>
    %83 = arith.divf %79, %82 : vector<4x8x8xf32>
    %cst_29 = arith.constant dense<0.000000e+00> : vector<4x8x16xf32>
    %84 = tpu.matmul %83, %73, %cst_29 {dimension_numbers = #tpu.dot_dimension_numbers<[2], [1], [1], [2], [0, 0, 0, 1, 1, 2], [0], [0]>} : vector<4x8x8xf32>, vector<4x8x16xf32>, vector<4x8x16xf32> -> vector<4x8x16xf32>
    %85 = vector.shape_cast %84 : vector<4x8x16xf32> to vector<32x16xf32>
    %86 = vector.extract_strided_slice %4 {offsets = [48, 0], sizes = [16, 32], strides = [1, 1]} : vector<64x32xf32> to vector<16x32xf32>
    %cst_30 = arith.constant dense<0.000000e+00> : vector<32x32xf32>
    %87 = tpu.matmul %85, %86, %cst_30 {dimension_numbers = #tpu.dot_dimension_numbers<[1], [0], [0], [1], [0, 0, 1, 1], [], []>} : vector<32x16xf32>, vector<16x32xf32>, vector<32x32xf32> -> vector<32x32xf32>
    %88 = arith.addf %70, %87 : vector<32x32xf32>
    %89 = vector.broadcast %7 : vector<1x32xf32> to vector<32x32xf32>
    %90 = arith.addf %88, %89 : vector<32x32xf32>
    %91 = arith.addf %90, %0 : vector<32x32xf32>
    %cst_31 = arith.constant dense<0.000000e+00> : vector<32xf32>
    %92 = vector.multi_reduction <add>, %91, %cst_31 [1] : vector<32x32xf32> to vector<32xf32>
    %93 = vector.shape_cast %92 : vector<32xf32> to vector<32x1xf32>
    %cst_32 = arith.constant 3.200000e+01 : f32
    %94 = vector.broadcast %cst_32 : f32 to vector<32x1xf32>
    %95 = arith.divf %93, %94 : vector<32x1xf32>
    %96 = vector.broadcast %95 : vector<32x1xf32> to vector<32x32xf32>
    %97 = arith.subf %91, %96 : vector<32x32xf32>
    %98 = arith.mulf %97, %97 : vector<32x32xf32>
    %cst_33 = arith.constant dense<0.000000e+00> : vector<32xf32>
    %99 = vector.multi_reduction <add>, %98, %cst_33 [1] : vector<32x32xf32> to vector<32xf32>
    %100 = vector.shape_cast %99 : vector<32xf32> to vector<32x1xf32>
    %cst_34 = arith.constant 0.0322580636 : f32
    %101 = vector.broadcast %cst_34 : f32 to vector<32x1xf32>
    %102 = arith.mulf %100, %101 : vector<32x1xf32>
    %103 = math.sqrt %102 : vector<32x1xf32>
    %cst_35 = arith.constant 1.000000e-03 : f32
    %104 = vector.broadcast %cst_35 : f32 to vector<32x1xf32>
    %105 = arith.addf %103, %104 : vector<32x1xf32>
    %106 = vector.broadcast %105 : vector<32x1xf32> to vector<32x32xf32>
    %107 = arith.divf %97, %106 : vector<32x32xf32>
    %108 = vector.broadcast %10 : vector<1x32xf32> to vector<32x32xf32>
    %109 = arith.mulf %107, %108 : vector<32x32xf32>
    %110 = vector.broadcast %11 : vector<1x32xf32> to vector<32x32xf32>
    %111 = arith.addf %109, %110 : vector<32x32xf32>
    %c0_36 = arith.constant 0 : index
    %c0_37 = arith.constant 0 : index
    %c0_38 = arith.constant 0 : index
    %112 = vector.load %arg3[%c0_36, %c0_37, %c0_38] : memref<2x32x64xf32, #tpu.memory_space<vmem>>, vector<1x32x64xf32>
    %113 = vector.shape_cast %112 : vector<1x32x64xf32> to vector<32x64xf32>
    %cst_39 = arith.constant dense<0.000000e+00> : vector<32x64xf32>
    %114 = tpu.matmul %111, %113, %cst_39 {dimension_numbers = #tpu.dot_dimension_numbers<[1], [0], [0], [1], [0, 0, 1, 1], [], []>} : vector<32x32xf32>, vector<32x64xf32>, vector<32x64xf32> -> vector<32x64xf32>
    %115 = vector.broadcast %8 : vector<1x64xf32> to vector<32x64xf32>
    %116 = arith.addf %114, %115 : vector<32x64xf32>
    %cst_40 = arith.constant 0.000000e+00 : f32
    %117 = vector.broadcast %cst_40 : f32 to vector<32x64xf32>
    %118 = arith.maximumf %116, %117 : vector<32x64xf32>
    %c0_41 = arith.constant 0 : index
    %c0_42 = arith.constant 0 : index
    %c0_43 = arith.constant 0 : index
    %119 = vector.load %arg4[%c0_41, %c0_42, %c0_43] : memref<2x64x32xf32, #tpu.memory_space<vmem>>, vector<1x64x32xf32>
    %120 = vector.shape_cast %119 : vector<1x64x32xf32> to vector<64x32xf32>
    %cst_44 = arith.constant dense<0.000000e+00> : vector<32x32xf32>
    %121 = tpu.matmul %118, %120, %cst_44 {dimension_numbers = #tpu.dot_dimension_numbers<[1], [0], [0], [1], [0, 0, 1, 1], [], []>} : vector<32x64xf32>, vector<64x32xf32>, vector<32x32xf32> -> vector<32x32xf32>
    %122 = vector.broadcast %9 : vector<1x32xf32> to vector<32x32xf32>
    %123 = arith.addf %121, %122 : vector<32x32xf32>
    %124 = arith.addf %123, %111 : vector<32x32xf32>
    %cst_45 = arith.constant dense<0.000000e+00> : vector<32xf32>
    %125 = vector.multi_reduction <add>, %124, %cst_45 [1] : vector<32x32xf32> to vector<32xf32>
    %126 = vector.shape_cast %125 : vector<32xf32> to vector<32x1xf32>
    %cst_46 = arith.constant 3.200000e+01 : f32
    %127 = vector.broadcast %cst_46 : f32 to vector<32x1xf32>
    %128 = arith.divf %126, %127 : vector<32x1xf32>
    %129 = vector.broadcast %128 : vector<32x1xf32> to vector<32x32xf32>
    %130 = arith.subf %124, %129 : vector<32x32xf32>
    %131 = arith.mulf %130, %130 : vector<32x32xf32>
    %cst_47 = arith.constant dense<0.000000e+00> : vector<32xf32>
    %132 = vector.multi_reduction <add>, %131, %cst_47 [1] : vector<32x32xf32> to vector<32xf32>
    %133 = vector.shape_cast %132 : vector<32xf32> to vector<32x1xf32>
    %cst_48 = arith.constant 0.0322580636 : f32
    %134 = vector.broadcast %cst_48 : f32 to vector<32x1xf32>
    %135 = arith.mulf %133, %134 : vector<32x1xf32>
    %136 = math.sqrt %135 : vector<32x1xf32>
    %cst_49 = arith.constant 1.000000e-03 : f32
    %137 = vector.broadcast %cst_49 : f32 to vector<32x1xf32>
    %138 = arith.addf %136, %137 : vector<32x1xf32>
    %139 = vector.broadcast %138 : vector<32x1xf32> to vector<32x32xf32>
    %140 = arith.divf %130, %139 : vector<32x32xf32>
    %141 = vector.broadcast %12 : vector<1x32xf32> to vector<32x32xf32>
    %142 = arith.mulf %140, %141 : vector<32x32xf32>
    %143 = vector.broadcast %13 : vector<1x32xf32> to vector<32x32xf32>
    %144 = arith.addf %142, %143 : vector<32x32xf32>
    %c1 = arith.constant 1 : index
    %c0_50 = arith.constant 0 : index
    %c0_51 = arith.constant 0 : index
    %145 = vector.load %arg1[%c1, %c0_50, %c0_51] : memref<2x32x192xf32, #tpu.memory_space<vmem>>, vector<1x32x192xf32>
    %146 = vector.shape_cast %145 : vector<1x32x192xf32> to vector<32x192xf32>
    %c1_52 = arith.constant 1 : index
    %c0_53 = arith.constant 0 : index
    %c0_54 = arith.constant 0 : index
    %147 = vector.load %arg2[%c1_52, %c0_53, %c0_54] : memref<2x64x32xf32, #tpu.memory_space<vmem>>, vector<1x64x32xf32>
    %148 = vector.shape_cast %147 : vector<1x64x32xf32> to vector<64x32xf32>
    %c1_55 = arith.constant 1 : index
    %c0_56 = arith.constant 0 : index
    %c0_57 = arith.constant 0 : index
    %149 = vector.load %arg5[%c1_55, %c0_56, %c0_57] : memref<2x8x128xf32, #tpu.memory_space<vmem>>, vector<1x8x128xf32>
    %150 = vector.shape_cast %149 : vector<1x8x128xf32> to vector<8x128xf32>
    %151 = vector.extract_strided_slice %150 {offsets = [0, 0], sizes = [1, 32], strides = [1, 1]} : vector<8x128xf32> to vector<1x32xf32>
    %152 = vector.extract_strided_slice %150 {offsets = [1, 0], sizes = [1, 64], strides = [1, 1]} : vector<8x128xf32> to vector<1x64xf32>
    %153 = vector.extract_strided_slice %150 {offsets = [2, 0], sizes = [1, 32], strides = [1, 1]} : vector<8x128xf32> to vector<1x32xf32>
    %154 = vector.extract_strided_slice %150 {offsets = [3, 0], sizes = [1, 32], strides = [1, 1]} : vector<8x128xf32> to vector<1x32xf32>
    %155 = vector.extract_strided_slice %150 {offsets = [4, 0], sizes = [1, 32], strides = [1, 1]} : vector<8x128xf32> to vector<1x32xf32>
    %156 = vector.extract_strided_slice %150 {offsets = [5, 0], sizes = [1, 32], strides = [1, 1]} : vector<8x128xf32> to vector<1x32xf32>
    %157 = vector.extract_strided_slice %150 {offsets = [6, 0], sizes = [1, 32], strides = [1, 1]} : vector<8x128xf32> to vector<1x32xf32>
    %cst_58 = arith.constant dense<0.000000e+00> : vector<32x192xf32>
    %158 = tpu.matmul %144, %146, %cst_58 {dimension_numbers = #tpu.dot_dimension_numbers<[1], [0], [0], [1], [0, 0, 1, 1], [], []>} : vector<32x32xf32>, vector<32x192xf32>, vector<32x192xf32> -> vector<32x192xf32>
    %159 = vector.shape_cast %158 : vector<32x192xf32> to vector<4x8x192xf32>
    %cst_59 = arith.constant 0.000000e+00 : f32
    %160 = vector.broadcast %cst_59 : f32 to vector<32x32xf32>
    %161 = vector.extract_strided_slice %159 {offsets = [0, 0, 0], sizes = [4, 8, 16], strides = [1, 1, 1]} : vector<4x8x192xf32> to vector<4x8x16xf32>
    %162 = vector.extract_strided_slice %159 {offsets = [0, 0, 64], sizes = [4, 8, 16], strides = [1, 1, 1]} : vector<4x8x192xf32> to vector<4x8x16xf32>
    %163 = vector.extract_strided_slice %159 {offsets = [0, 0, 128], sizes = [4, 8, 16], strides = [1, 1, 1]} : vector<4x8x192xf32> to vector<4x8x16xf32>
    %cst_60 = arith.constant dense<0.000000e+00> : vector<4x8x8xf32>
    %164 = tpu.matmul %161, %162, %cst_60 {dimension_numbers = #tpu.dot_dimension_numbers<[2], [2], [1], [1], [0, 0, 0, 1, 1, 1], [0], [0]>} : vector<4x8x16xf32>, vector<4x8x16xf32>, vector<4x8x8xf32> -> vector<4x8x8xf32>
    %cst_61 = arith.constant dense<0xFF800000> : vector<4x8xf32>
    %165 = vector.multi_reduction <maximumf>, %164, %cst_61 [2] : vector<4x8x8xf32> to vector<4x8xf32>
    %166 = vector.shape_cast %165 : vector<4x8xf32> to vector<4x8x1xf32>
    %167 = vector.broadcast %166 : vector<4x8x1xf32> to vector<4x8x8xf32>
    %168 = arith.subf %164, %167 : vector<4x8x8xf32>
    %169 = math.exp %168 : vector<4x8x8xf32>
    %cst_62 = arith.constant dense<0.000000e+00> : vector<4x8xf32>
    %170 = vector.multi_reduction <add>, %169, %cst_62 [2] : vector<4x8x8xf32> to vector<4x8xf32>
    %171 = vector.shape_cast %170 : vector<4x8xf32> to vector<4x8x1xf32>
    %172 = vector.broadcast %171 : vector<4x8x1xf32> to vector<4x8x8xf32>
    %173 = arith.divf %169, %172 : vector<4x8x8xf32>
    %cst_63 = arith.constant dense<0.000000e+00> : vector<4x8x16xf32>
    %174 = tpu.matmul %173, %163, %cst_63 {dimension_numbers = #tpu.dot_dimension_numbers<[2], [1], [1], [2], [0, 0, 0, 1, 1, 2], [0], [0]>} : vector<4x8x8xf32>, vector<4x8x16xf32>, vector<4x8x16xf32> -> vector<4x8x16xf32>
    %175 = vector.shape_cast %174 : vector<4x8x16xf32> to vector<32x16xf32>
    %176 = vector.extract_strided_slice %148 {offsets = [0, 0], sizes = [16, 32], strides = [1, 1]} : vector<64x32xf32> to vector<16x32xf32>
    %cst_64 = arith.constant dense<0.000000e+00> : vector<32x32xf32>
    %177 = tpu.matmul %175, %176, %cst_64 {dimension_numbers = #tpu.dot_dimension_numbers<[1], [0], [0], [1], [0, 0, 1, 1], [], []>} : vector<32x16xf32>, vector<16x32xf32>, vector<32x32xf32> -> vector<32x32xf32>
    %178 = arith.addf %160, %177 : vector<32x32xf32>
    %179 = vector.extract_strided_slice %159 {offsets = [0, 0, 16], sizes = [4, 8, 16], strides = [1, 1, 1]} : vector<4x8x192xf32> to vector<4x8x16xf32>
    %180 = vector.extract_strided_slice %159 {offsets = [0, 0, 80], sizes = [4, 8, 16], strides = [1, 1, 1]} : vector<4x8x192xf32> to vector<4x8x16xf32>
    %181 = vector.extract_strided_slice %159 {offsets = [0, 0, 144], sizes = [4, 8, 16], strides = [1, 1, 1]} : vector<4x8x192xf32> to vector<4x8x16xf32>
    %cst_65 = arith.constant dense<0.000000e+00> : vector<4x8x8xf32>
    %182 = tpu.matmul %179, %180, %cst_65 {dimension_numbers = #tpu.dot_dimension_numbers<[2], [2], [1], [1], [0, 0, 0, 1, 1, 1], [0], [0]>} : vector<4x8x16xf32>, vector<4x8x16xf32>, vector<4x8x8xf32> -> vector<4x8x8xf32>
    %cst_66 = arith.constant dense<0xFF800000> : vector<4x8xf32>
    %183 = vector.multi_reduction <maximumf>, %182, %cst_66 [2] : vector<4x8x8xf32> to vector<4x8xf32>
    %184 = vector.shape_cast %183 : vector<4x8xf32> to vector<4x8x1xf32>
    %185 = vector.broadcast %184 : vector<4x8x1xf32> to vector<4x8x8xf32>
    %186 = arith.subf %182, %185 : vector<4x8x8xf32>
    %187 = math.exp %186 : vector<4x8x8xf32>
    %cst_67 = arith.constant dense<0.000000e+00> : vector<4x8xf32>
    %188 = vector.multi_reduction <add>, %187, %cst_67 [2] : vector<4x8x8xf32> to vector<4x8xf32>
    %189 = vector.shape_cast %188 : vector<4x8xf32> to vector<4x8x1xf32>
    %190 = vector.broadcast %189 : vector<4x8x1xf32> to vector<4x8x8xf32>
    %191 = arith.divf %187, %190 : vector<4x8x8xf32>
    %cst_68 = arith.constant dense<0.000000e+00> : vector<4x8x16xf32>
    %192 = tpu.matmul %191, %181, %cst_68 {dimension_numbers = #tpu.dot_dimension_numbers<[2], [1], [1], [2], [0, 0, 0, 1, 1, 2], [0], [0]>} : vector<4x8x8xf32>, vector<4x8x16xf32>, vector<4x8x16xf32> -> vector<4x8x16xf32>
    %193 = vector.shape_cast %192 : vector<4x8x16xf32> to vector<32x16xf32>
    %194 = vector.extract_strided_slice %148 {offsets = [16, 0], sizes = [16, 32], strides = [1, 1]} : vector<64x32xf32> to vector<16x32xf32>
    %cst_69 = arith.constant dense<0.000000e+00> : vector<32x32xf32>
    %195 = tpu.matmul %193, %194, %cst_69 {dimension_numbers = #tpu.dot_dimension_numbers<[1], [0], [0], [1], [0, 0, 1, 1], [], []>} : vector<32x16xf32>, vector<16x32xf32>, vector<32x32xf32> -> vector<32x32xf32>
    %196 = arith.addf %178, %195 : vector<32x32xf32>
    %197 = vector.extract_strided_slice %159 {offsets = [0, 0, 32], sizes = [4, 8, 16], strides = [1, 1, 1]} : vector<4x8x192xf32> to vector<4x8x16xf32>
    %198 = vector.extract_strided_slice %159 {offsets = [0, 0, 96], sizes = [4, 8, 16], strides = [1, 1, 1]} : vector<4x8x192xf32> to vector<4x8x16xf32>
    %199 = vector.extract_strided_slice %159 {offsets = [0, 0, 160], sizes = [4, 8, 16], strides = [1, 1, 1]} : vector<4x8x192xf32> to vector<4x8x16xf32>
    %cst_70 = arith.constant dense<0.000000e+00> : vector<4x8x8xf32>
    %200 = tpu.matmul %197, %198, %cst_70 {dimension_numbers = #tpu.dot_dimension_numbers<[2], [2], [1], [1], [0, 0, 0, 1, 1, 1], [0], [0]>} : vector<4x8x16xf32>, vector<4x8x16xf32>, vector<4x8x8xf32> -> vector<4x8x8xf32>
    %cst_71 = arith.constant dense<0xFF800000> : vector<4x8xf32>
    %201 = vector.multi_reduction <maximumf>, %200, %cst_71 [2] : vector<4x8x8xf32> to vector<4x8xf32>
    %202 = vector.shape_cast %201 : vector<4x8xf32> to vector<4x8x1xf32>
    %203 = vector.broadcast %202 : vector<4x8x1xf32> to vector<4x8x8xf32>
    %204 = arith.subf %200, %203 : vector<4x8x8xf32>
    %205 = math.exp %204 : vector<4x8x8xf32>
    %cst_72 = arith.constant dense<0.000000e+00> : vector<4x8xf32>
    %206 = vector.multi_reduction <add>, %205, %cst_72 [2] : vector<4x8x8xf32> to vector<4x8xf32>
    %207 = vector.shape_cast %206 : vector<4x8xf32> to vector<4x8x1xf32>
    %208 = vector.broadcast %207 : vector<4x8x1xf32> to vector<4x8x8xf32>
    %209 = arith.divf %205, %208 : vector<4x8x8xf32>
    %cst_73 = arith.constant dense<0.000000e+00> : vector<4x8x16xf32>
    %210 = tpu.matmul %209, %199, %cst_73 {dimension_numbers = #tpu.dot_dimension_numbers<[2], [1], [1], [2], [0, 0, 0, 1, 1, 2], [0], [0]>} : vector<4x8x8xf32>, vector<4x8x16xf32>, vector<4x8x16xf32> -> vector<4x8x16xf32>
    %211 = vector.shape_cast %210 : vector<4x8x16xf32> to vector<32x16xf32>
    %212 = vector.extract_strided_slice %148 {offsets = [32, 0], sizes = [16, 32], strides = [1, 1]} : vector<64x32xf32> to vector<16x32xf32>
    %cst_74 = arith.constant dense<0.000000e+00> : vector<32x32xf32>
    %213 = tpu.matmul %211, %212, %cst_74 {dimension_numbers = #tpu.dot_dimension_numbers<[1], [0], [0], [1], [0, 0, 1, 1], [], []>} : vector<32x16xf32>, vector<16x32xf32>, vector<32x32xf32> -> vector<32x32xf32>
    %214 = arith.addf %196, %213 : vector<32x32xf32>
    %215 = vector.extract_strided_slice %159 {offsets = [0, 0, 48], sizes = [4, 8, 16], strides = [1, 1, 1]} : vector<4x8x192xf32> to vector<4x8x16xf32>
    %216 = vector.extract_strided_slice %159 {offsets = [0, 0, 112], sizes = [4, 8, 16], strides = [1, 1, 1]} : vector<4x8x192xf32> to vector<4x8x16xf32>
    %217 = vector.extract_strided_slice %159 {offsets = [0, 0, 176], sizes = [4, 8, 16], strides = [1, 1, 1]} : vector<4x8x192xf32> to vector<4x8x16xf32>
    %cst_75 = arith.constant dense<0.000000e+00> : vector<4x8x8xf32>
    %218 = tpu.matmul %215, %216, %cst_75 {dimension_numbers = #tpu.dot_dimension_numbers<[2], [2], [1], [1], [0, 0, 0, 1, 1, 1], [0], [0]>} : vector<4x8x16xf32>, vector<4x8x16xf32>, vector<4x8x8xf32> -> vector<4x8x8xf32>
    %cst_76 = arith.constant dense<0xFF800000> : vector<4x8xf32>
    %219 = vector.multi_reduction <maximumf>, %218, %cst_76 [2] : vector<4x8x8xf32> to vector<4x8xf32>
    %220 = vector.shape_cast %219 : vector<4x8xf32> to vector<4x8x1xf32>
    %221 = vector.broadcast %220 : vector<4x8x1xf32> to vector<4x8x8xf32>
    %222 = arith.subf %218, %221 : vector<4x8x8xf32>
    %223 = math.exp %222 : vector<4x8x8xf32>
    %cst_77 = arith.constant dense<0.000000e+00> : vector<4x8xf32>
    %224 = vector.multi_reduction <add>, %223, %cst_77 [2] : vector<4x8x8xf32> to vector<4x8xf32>
    %225 = vector.shape_cast %224 : vector<4x8xf32> to vector<4x8x1xf32>
    %226 = vector.broadcast %225 : vector<4x8x1xf32> to vector<4x8x8xf32>
    %227 = arith.divf %223, %226 : vector<4x8x8xf32>
    %cst_78 = arith.constant dense<0.000000e+00> : vector<4x8x16xf32>
    %228 = tpu.matmul %227, %217, %cst_78 {dimension_numbers = #tpu.dot_dimension_numbers<[2], [1], [1], [2], [0, 0, 0, 1, 1, 2], [0], [0]>} : vector<4x8x8xf32>, vector<4x8x16xf32>, vector<4x8x16xf32> -> vector<4x8x16xf32>
    %229 = vector.shape_cast %228 : vector<4x8x16xf32> to vector<32x16xf32>
    %230 = vector.extract_strided_slice %148 {offsets = [48, 0], sizes = [16, 32], strides = [1, 1]} : vector<64x32xf32> to vector<16x32xf32>
    %cst_79 = arith.constant dense<0.000000e+00> : vector<32x32xf32>
    %231 = tpu.matmul %229, %230, %cst_79 {dimension_numbers = #tpu.dot_dimension_numbers<[1], [0], [0], [1], [0, 0, 1, 1], [], []>} : vector<32x16xf32>, vector<16x32xf32>, vector<32x32xf32> -> vector<32x32xf32>
    %232 = arith.addf %214, %231 : vector<32x32xf32>
    %233 = vector.broadcast %151 : vector<1x32xf32> to vector<32x32xf32>
    %234 = arith.addf %232, %233 : vector<32x32xf32>
    %235 = arith.addf %234, %144 : vector<32x32xf32>
    %cst_80 = arith.constant dense<0.000000e+00> : vector<32xf32>
    %236 = vector.multi_reduction <add>, %235, %cst_80 [1] : vector<32x32xf32> to vector<32xf32>
    %237 = vector.shape_cast %236 : vector<32xf32> to vector<32x1xf32>
    %cst_81 = arith.constant 3.200000e+01 : f32
    %238 = vector.broadcast %cst_81 : f32 to vector<32x1xf32>
    %239 = arith.divf %237, %238 : vector<32x1xf32>
    %240 = vector.broadcast %239 : vector<32x1xf32> to vector<32x32xf32>
    %241 = arith.subf %235, %240 : vector<32x32xf32>
    %242 = arith.mulf %241, %241 : vector<32x32xf32>
    %cst_82 = arith.constant dense<0.000000e+00> : vector<32xf32>
    %243 = vector.multi_reduction <add>, %242, %cst_82 [1] : vector<32x32xf32> to vector<32xf32>
    %244 = vector.shape_cast %243 : vector<32xf32> to vector<32x1xf32>
    %cst_83 = arith.constant 0.0322580636 : f32
    %245 = vector.broadcast %cst_83 : f32 to vector<32x1xf32>
    %246 = arith.mulf %244, %245 : vector<32x1xf32>
    %247 = math.sqrt %246 : vector<32x1xf32>
    %cst_84 = arith.constant 1.000000e-03 : f32
    %248 = vector.broadcast %cst_84 : f32 to vector<32x1xf32>
    %249 = arith.addf %247, %248 : vector<32x1xf32>
    %250 = vector.broadcast %249 : vector<32x1xf32> to vector<32x32xf32>
    %251 = arith.divf %241, %250 : vector<32x32xf32>
    %252 = vector.broadcast %154 : vector<1x32xf32> to vector<32x32xf32>
    %253 = arith.mulf %251, %252 : vector<32x32xf32>
    %254 = vector.broadcast %155 : vector<1x32xf32> to vector<32x32xf32>
    %255 = arith.addf %253, %254 : vector<32x32xf32>
    %c1_85 = arith.constant 1 : index
    %c0_86 = arith.constant 0 : index
    %c0_87 = arith.constant 0 : index
    %256 = vector.load %arg3[%c1_85, %c0_86, %c0_87] : memref<2x32x64xf32, #tpu.memory_space<vmem>>, vector<1x32x64xf32>
    %257 = vector.shape_cast %256 : vector<1x32x64xf32> to vector<32x64xf32>
    %cst_88 = arith.constant dense<0.000000e+00> : vector<32x64xf32>
    %258 = tpu.matmul %255, %257, %cst_88 {dimension_numbers = #tpu.dot_dimension_numbers<[1], [0], [0], [1], [0, 0, 1, 1], [], []>} : vector<32x32xf32>, vector<32x64xf32>, vector<32x64xf32> -> vector<32x64xf32>
    %259 = vector.broadcast %152 : vector<1x64xf32> to vector<32x64xf32>
    %260 = arith.addf %258, %259 : vector<32x64xf32>
    %cst_89 = arith.constant 0.000000e+00 : f32
    %261 = vector.broadcast %cst_89 : f32 to vector<32x64xf32>
    %262 = arith.maximumf %260, %261 : vector<32x64xf32>
    %c1_90 = arith.constant 1 : index
    %c0_91 = arith.constant 0 : index
    %c0_92 = arith.constant 0 : index
    %263 = vector.load %arg4[%c1_90, %c0_91, %c0_92] : memref<2x64x32xf32, #tpu.memory_space<vmem>>, vector<1x64x32xf32>
    %264 = vector.shape_cast %263 : vector<1x64x32xf32> to vector<64x32xf32>
    %cst_93 = arith.constant dense<0.000000e+00> : vector<32x32xf32>
    %265 = tpu.matmul %262, %264, %cst_93 {dimension_numbers = #tpu.dot_dimension_numbers<[1], [0], [0], [1], [0, 0, 1, 1], [], []>} : vector<32x64xf32>, vector<64x32xf32>, vector<32x32xf32> -> vector<32x32xf32>
    %266 = vector.broadcast %153 : vector<1x32xf32> to vector<32x32xf32>
    %267 = arith.addf %265, %266 : vector<32x32xf32>
    %268 = arith.addf %267, %255 : vector<32x32xf32>
    %cst_94 = arith.constant dense<0.000000e+00> : vector<32xf32>
    %269 = vector.multi_reduction <add>, %268, %cst_94 [1] : vector<32x32xf32> to vector<32xf32>
    %270 = vector.shape_cast %269 : vector<32xf32> to vector<32x1xf32>
    %cst_95 = arith.constant 3.200000e+01 : f32
    %271 = vector.broadcast %cst_95 : f32 to vector<32x1xf32>
    %272 = arith.divf %270, %271 : vector<32x1xf32>
    %273 = vector.broadcast %272 : vector<32x1xf32> to vector<32x32xf32>
    %274 = arith.subf %268, %273 : vector<32x32xf32>
    %275 = arith.mulf %274, %274 : vector<32x32xf32>
    %cst_96 = arith.constant dense<0.000000e+00> : vector<32xf32>
    %276 = vector.multi_reduction <add>, %275, %cst_96 [1] : vector<32x32xf32> to vector<32xf32>
    %277 = vector.shape_cast %276 : vector<32xf32> to vector<32x1xf32>
    %cst_97 = arith.constant 0.0322580636 : f32
    %278 = vector.broadcast %cst_97 : f32 to vector<32x1xf32>
    %279 = arith.mulf %277, %278 : vector<32x1xf32>
    %280 = math.sqrt %279 : vector<32x1xf32>
    %cst_98 = arith.constant 1.000000e-03 : f32
    %281 = vector.broadcast %cst_98 : f32 to vector<32x1xf32>
    %282 = arith.addf %280, %281 : vector<32x1xf32>
    %283 = vector.broadcast %282 : vector<32x1xf32> to vector<32x32xf32>
    %284 = arith.divf %274, %283 : vector<32x32xf32>
    %285 = vector.broadcast %156 : vector<1x32xf32> to vector<32x32xf32>
    %286 = arith.mulf %284, %285 : vector<32x32xf32>
    %287 = vector.broadcast %157 : vector<1x32xf32> to vector<32x32xf32>
    %288 = arith.addf %286, %287 : vector<32x32xf32>
    %c0_99 = arith.constant 0 : index
    %c0_100 = arith.constant 0 : index
    %289 = vector.load %arg6[%c0_99, %c0_100] : memref<32x24xf32, #tpu.memory_space<vmem>>, vector<32x24xf32>
    %cst_101 = arith.constant dense<0.000000e+00> : vector<32x24xf32>
    %290 = tpu.matmul %288, %289, %cst_101 {dimension_numbers = #tpu.dot_dimension_numbers<[1], [0], [0], [1], [0, 0, 1, 1], [], []>} : vector<32x32xf32>, vector<32x24xf32>, vector<32x24xf32> -> vector<32x24xf32>
    %c0_102 = arith.constant 0 : index
    %c0_103 = arith.constant 0 : index
    %291 = vector.load %arg7[%c0_102, %c0_103] : memref<32x24xf32, #tpu.memory_space<vmem>>, vector<32x24xf32>
    %292 = arith.mulf %290, %291 : vector<32x24xf32>
    %c0_104 = arith.constant 0 : index
    %c0_105 = arith.constant 0 : index
    %293 = vector.load %arg8[%c0_104, %c0_105] : memref<24x3xf32, #tpu.memory_space<vmem>>, vector<24x3xf32>
    %cst_106 = arith.constant dense<0.000000e+00> : vector<32x3xf32>
    %294 = tpu.matmul %292, %293, %cst_106 {dimension_numbers = #tpu.dot_dimension_numbers<[1], [0], [0], [1], [0, 0, 1, 1], [], []>} : vector<32x24xf32>, vector<24x3xf32>, vector<32x3xf32> -> vector<32x3xf32>
    %c0_107 = arith.constant 0 : index
    %c0_108 = arith.constant 0 : index
    %295 = vector.load %arg9[%c0_107, %c0_108] : memref<4x32xf32, #tpu.memory_space<vmem>>, vector<4x32xf32>
    %cst_109 = arith.constant dense<0.000000e+00> : vector<4x3xf32>
    %296 = tpu.matmul %295, %294, %cst_109 {dimension_numbers = #tpu.dot_dimension_numbers<[1], [0], [0], [1], [0, 0, 1, 1], [], []>} : vector<4x32xf32>, vector<32x3xf32>, vector<4x3xf32> -> vector<4x3xf32>
    %c0_110 = arith.constant 0 : index
    %c0_111 = arith.constant 0 : index
    %297 = vector.load %arg10[%c0_110, %c0_111] : memref<1x3xf32, #tpu.memory_space<vmem>>, vector<1x3xf32>
    %298 = vector.broadcast %297 : vector<1x3xf32> to vector<4x3xf32>
    %299 = arith.addf %296, %298 : vector<4x3xf32>
    %c0_112 = arith.constant 0 : index
    %c0_113 = arith.constant 0 : index
    %300 = vector.load %arg11[%c0_112, %c0_113] : memref<4x3xf32, #tpu.memory_space<vmem>>, vector<4x3xf32>
    tpu.vector_store %arg11[%c0_112, %c0_113], %299 {strides = array<i32>} : memref<4x3xf32, #tpu.memory_space<vmem>>, vector<4x3xf32>,
    return
  }
}

</mosaic_0001>

<llo_original>
// kernel: tpu_custom_call.1
$region0: #{tpu_custom_call.1}
  #allocation0 [shape = 'u32[]', space=smem, size = 0x4, offset = 0x4, fixed_abs, tag = 'smem constant byte address 0x4 - core index']
  #allocation1 [shape = 'u32[144,128]{1,0:T(1,128)}', space=vmem, size = 0x12000, scoped, tag = 'internal scratch']
  %s0 = inlined_call_operand.vmem [shape: f32[32,32], index: 0, kind: input, shape index: {}]
  %s1 = inlined_call_operand.vmem [shape: f32[2,32,192], index: 1, kind: input, shape index: {}]
  %s2 = inlined_call_operand.vmem [shape: f32[2,64,32], index: 2, kind: input, shape index: {}]
  %s3 = inlined_call_operand.vmem [shape: f32[2,32,64], index: 3, kind: input, shape index: {}]
  %s4 = inlined_call_operand.vmem [shape: f32[2,64,32], index: 4, kind: input, shape index: {}]
  %s5 = inlined_call_operand.vmem [shape: f32[2,8,128], index: 5, kind: input, shape index: {}]
  %s6 = inlined_call_operand.vmem [shape: f32[32,24], index: 6, kind: input, shape index: {}]
  %s7 = inlined_call_operand.vmem [shape: f32[32,24], index: 7, kind: input, shape index: {}]
  %s8 = inlined_call_operand.vmem [shape: f32[24,3], index: 8, kind: input, shape index: {}]
  %s9 = inlined_call_operand.vmem [shape: f32[4,32], index: 9, kind: input, shape index: {}]
  %s10 = inlined_call_operand.vmem [shape: f32[1,3], index: 10, kind: input, shape index: {}]
  %s11 = inlined_call_operand.hbm [shape: f32[4,3], index: 11, kind: output, shape index: {}]
  %s12 = sld [smem:[#allocation0]]
  $region54: #{tpu_custom_call.1} parent=0
    _
  %s14 = ssub.s32 1, %s12
  %s15 = scalar_select 0, %s14, %s12
  $region1: #{tpu_custom_call.1} parent=0
    #allocation2 [shape = 'u8[2048]{0}', space=vmem, size = 0x800, scoped, tag = 'output window, operand 0, single buffered']
    #allocation3 [shape = 's32[1]{0}', space=sflag, size = 0x4, scoped, tag = 'scoped memory for tpu_custom_call.1']
    %16 = vsyncpa [#allocation3], 0
    // Predicated region
    $region2: #{tpu_custom_call.1} parent=1 // pred_check
      _
    $region3: #{tpu_custom_call.1} parent=1 // pred_check_branch
      %18 = sbr.rel (0) target = $region5
    $region4: #{tpu_custom_call.1} parent=1 // pred_region
      _
    $region5: #{tpu_custom_call.1} parent=1 // pred_fallthru
      _
    // Predicated region
    $region6: #{tpu_custom_call.1} parent=1 // pred_check
      _
    $region7: #{tpu_custom_call.1} parent=1 // pred_check_branch
      %20 = sbr.rel (0) target = $region9
    $region8: #{tpu_custom_call.1} parent=1 // pred_region
      _
    $region9: #{tpu_custom_call.1} parent=1 // pred_fallthru
      _
    // Predicated region
    $region10: #{tpu_custom_call.1} parent=1 // pred_check
      _
    $region11: #{tpu_custom_call.1} parent=1 // pred_check_branch
      %22 = sbr.rel (0) target = $region13
    $region12: #{tpu_custom_call.1} parent=1 // pred_region
      _
    $region13: #{tpu_custom_call.1} parent=1 // pred_fallthru
      _
    // Predicated region
    $region14: #{tpu_custom_call.1} parent=1 // pred_check
      _
    $region15: #{tpu_custom_call.1} parent=1 // pred_check_branch
      %24 = sbr.rel (0) target = $region17
    $region16: #{tpu_custom_call.1} parent=1 // pred_region
      _
    $region17: #{tpu_custom_call.1} parent=1 // pred_fallthru
      _
    // Predicated region
    $region18: #{tpu_custom_call.1} parent=1 // pred_check
      _
    $region19: #{tpu_custom_call.1} parent=1 // pred_check_branch
      %26 = sbr.rel (0) target = $region21
    $region20: #{tpu_custom_call.1} parent=1 // pred_region
      _
    $region21: #{tpu_custom_call.1} parent=1 // pred_fallthru
      _
    // Predicated region
    $region22: #{tpu_custom_call.1} parent=1 // pred_check
      _
    $region23: #{tpu_custom_call.1} parent=1 // pred_check_branch
      %28 = sbr.rel (0) target = $region25
    $region24: #{tpu_custom_call.1} parent=1 // pred_region
      _
    $region25: #{tpu_custom_call.1} parent=1 // pred_fallthru
      _
    // Predicated region
    $region26: #{tpu_custom_call.1} parent=1 // pred_check
      _
    $region27: #{tpu_custom_call.1} parent=1 // pred_check_branch
      %30 = sbr.rel (0) target = $region29
    $region28: #{tpu_custom_call.1} parent=1 // pred_region
      _
    $region29: #{tpu_custom_call.1} parent=1 // pred_fallthru
      _
    // Predicated region
    $region30: #{tpu_custom_call.1} parent=1 // pred_check
      _
    $region31: #{tpu_custom_call.1} parent=1 // pred_check_branch
      %32 = sbr.rel (0) target = $region33
    $region32: #{tpu_custom_call.1} parent=1 // pred_region
      _
    $region33: #{tpu_custom_call.1} parent=1 // pred_fallthru
      _
    // Predicated region
    $region34: #{tpu_custom_call.1} parent=1 // pred_check
      _
    $region35: #{tpu_custom_call.1} parent=1 // pred_check_branch
      %34 = sbr.rel (0) target = $region37
    $region36: #{tpu_custom_call.1} parent=1 // pred_region
      _
    $region37: #{tpu_custom_call.1} parent=1 // pred_fallthru
      _
    // Predicated region
    $region38: #{tpu_custom_call.1} parent=1 // pred_check
      _
    $region39: #{tpu_custom_call.1} parent=1 // pred_check_branch
      %36 = sbr.rel (0) target = $region41
    $region40: #{tpu_custom_call.1} parent=1 // pred_region
      _
    $region41: #{tpu_custom_call.1} parent=1 // pred_fallthru
      _
    // Predicated region
    $region42: #{tpu_custom_call.1} parent=1 // pred_check
      _
    $region43: #{tpu_custom_call.1} parent=1 // pred_check_branch
      %38 = sbr.rel (0) target = $region45
    $region44: #{tpu_custom_call.1} parent=1 // pred_region
      _
    $region45: #{tpu_custom_call.1} parent=1 // pred_fallthru
      _
    %v39 = vld [vmem:[%s0] sm:$0xff]
    %v40 = vld [vmem:[%s0 + $0x8] sm:$0xff]
    %v41 = vld [vmem:[%s0 + $0x10] sm:$0xff]
    %v42 = vld [vmem:[%s0 + $0x18] sm:$0xff]
    %v43 = vld [vmem:[%s1] sm:$0xff]
    %v44 = vld [vmem:[%s1 + $0x8] sm:$0xff]
    %v45 = vld [vmem:[%s1 + $0x10] sm:$0xff]
    %v46 = vld [vmem:[%s1 + $0x18] sm:$0xff]
    %v47 = vld [vmem:[%s1 + $0x20] sm:$0xff]
    %v48 = vld [vmem:[%s1 + $0x28] sm:$0xff]
    %v49 = vld [vmem:[%s1 + $0x30] sm:$0xff]
    %v50 = vld [vmem:[%s1 + $0x38] sm:$0xff]
    %v51 = vld [vmem:[%s2] sm:$0xff]
    %v52 = vld [vmem:[%s2 + $0x8] sm:$0xff]
    %v53 = vld [vmem:[%s2 + $0x10] sm:$0xff]
    %v54 = vld [vmem:[%s2 + $0x18] sm:$0xff]
    %v55 = vld [vmem:[%s2 + $0x20] sm:$0xff]
    %v56 = vld [vmem:[%s2 + $0x28] sm:$0xff]
    %v57 = vld [vmem:[%s2 + $0x30] sm:$0xff]
    %v58 = vld [vmem:[%s2 + $0x38] sm:$0xff]
    %v59 = vld [vmem:[%s5] sm:$0xff]
    %vm60 = vcmask 261120
    %v62 = vsel %vm60, %v39, 0
    %v65 = vsel %vm60, %v40, 0
    %v68 = vsel %vm60, %v41, 0
    %v71 = vsel %vm60, %v42, 0
    %73 = vmatprep.subr.mxu0 %v44
    %74 = vmatpush1.msra.mxu0 %v43
    %75 = vmatprep.subr.mxu0 %v46
    %76 = vmatpush1.msra.mxu0 %v45
    %77 = vmatprep.subr.mxu0 %v48
    %78 = vmatpush1.msra.mxu0 %v47
    %79 = vmatprep.subr.mxu0 %v50
    %80 = vmatpush1.msra.mxu0 %v49
    %81 = vmatprep.subr.mxu0 0.0
    %82 = vmatpush1.msra.mxu0 0.0
    %83 = vmatprep.subr.mxu0 0.0
    %84 = vmatpush1.msra.mxu0 0.0
    %85 = vmatprep.subr.mxu0 0.0
    %86 = vmatpush1.msra.mxu0 0.0
    %87 = vmatprep.subr.mxu0 0.0
    %88 = vmatpush1.msra.mxu0 0.0
    %89 = vmatprep.subr.mxu0 0.0
    %90 = vmatpush1.msra.mxu0 0.0
    %91 = vmatprep.subr.mxu0 0.0
    %92 = vmatpush1.msra.mxu0 0.0
    %93 = vmatprep.subr.mxu0 0.0
    %94 = vmatpush1.msra.mxu0 0.0
    %95 = vmatprep.subr.mxu0 0.0
    %96 = vmatpush1.msra.mxu0 0.0
    %97 = vmatprep.subr.mxu0 0.0
    %98 = vmatpush1.msra.mxu0 0.0
    %99 = vmatprep.subr.mxu0 0.0
    %100 = vmatpush1.msra.mxu0 0.0
    %101 = vmatprep.subr.mxu0 0.0
    %102 = vmatpush1.msra.mxu0 0.0
    %103 = vmatprep.subr.mxu0 0.0
    %104 = vmatpush1.msra.mxu0 0.0
    %105 = vmatprep.subr.mxu0 0.0
    %106 = vmatpush1.msra.mxu0 0.0
    %107 = vmatprep.subr.mxu0 0.0
    %108 = vmatpush1.msra.mxu0 0.0
    %109 = vmatprep.subr.mxu0 0.0
    %110 = vmatpush1.msra.mxu0 0.0
    %111 = vmatprep.subr.mxu0 0.0
    %112 = vmatpush1.msra.mxu0 0.0
    %113 = vmatprep.subr.mxu0 0.0
    %114 = vmatpush1.msra.mxu0 0.0
    %115 = vmatprep.subr.mxu0 0.0
    %116 = vmatpush1.msra.mxu0 0.0
    %117 = vmatprep.subr.mxu0 0.0
    %118 = vmatpush1.msra.mxu0 0.0
    %119 = vmatprep.subr.mxu0 0.0
    %120 = vmatpush1.msra.mxu0 0.0
    %121 = vmatprep.subr.mxu0 0.0
    %122 = vmatpush1.msra.mxu0 0.0
    %123 = vmatprep.subr.mxu0 0.0
    %124 = vmatpush1.msra.mxu0 0.0
    %125 = vmatprep.subr.mxu0 0.0
    %126 = vmatpush1.msra.mxu0 0.0
    %127 = vmatprep.subr.mxu0 0.0
    %128 = vmatpush1.msra.mxu0 0.0
    %129 = vmatprep.subr.mxu0 0.0
    %130 = vmatpush1.msra.mxu0 0.0
    %131 = vmatprep.subr.mxu0 0.0
    %132 = vmatpush1.msra.mxu0 0.0
    %133 = vmatprep.subr.mxu0 0.0
    %134 = vmatpush1.msra.mxu0 0.0
    %135 = vmatprep.subr.mxu0 0.0
    %136 = vmatpush1.msra.mxu0 0.0
    %137 = vmatprep.mubr.f32.mxu0 0.0
    %138 = vmatmul.mubr.f32.gmra.mrb[0].mxu0 %v62
    %v139 = vpop.f32.mrb[0].mxu0
    %v140 = vadd.f32 0.0, %v139
    %v141 = vpop.f32.mrb[0].mxu0
    %v142 = vadd.f32 0.0, %v141
    %143 = vmatprep.mubr.f32.mxu0 0.0
    %144 = vmatmul.mubr.f32.gmra.mrb[0].mxu0 %v65
    %v145 = vpop.f32.mrb[0].mxu0
    %v146 = vadd.f32 0.0, %v145
    %v147 = vpop.f32.mrb[0].mxu0
    %v148 = vadd.f32 0.0, %v147
    %149 = vmatprep.mubr.f32.mxu0 0.0
    %150 = vmatmul.mubr.f32.gmra.mrb[0].mxu0 %v68
    %v151 = vpop.f32.mrb[0].mxu0
    %v152 = vadd.f32 0.0, %v151
    %v153 = vpop.f32.mrb[0].mxu0
    %v154 = vadd.f32 0.0, %v153
    %155 = vmatprep.mubr.f32.mxu0 0.0
    %156 = vmatmul.mubr.f32.gmra.mrb[0].mxu0 %v71
    %v157 = vpop.f32.mrb[0].mxu0
    %v158 = vadd.f32 0.0, %v157
    %v159 = vpop.f32.mrb[0].mxu0
    %v160 = vadd.f32 0.0, %v159
    %161 = vdwg.mxu0
    %163 = vrot.lane.b32.xlu0 %v140, 64
    %v164 = vpop.permute.xlu0 %163
    %vm165 = vcmask 130048
    %v166 = vsel %vm165, %v140, 0
    %v168 = vsel %vm165, %v164, 0
    %170 = vmatprep.subr.mxu0 0.0
    %171 = vmatpush1.xpose.msra.mxu0 %v168
    %172 = vmatprep.subr.mxu0 0.0
    %173 = vmatpush1.xpose.msra.mxu0 0.0
    %174 = vmatprep.subr.mxu0 0.0
    %175 = vmatpush1.xpose.msra.mxu0 0.0
    %176 = vmatprep.subr.mxu0 0.0
    %177 = vmatpush1.xpose.msra.mxu0 0.0
    %178 = vmatprep.subr.mxu0 0.0
    %179 = vmatpush1.xpose.msra.mxu0 0.0
    %180 = vmatprep.subr.mxu0 0.0
    %181 = vmatpush1.xpose.msra.mxu0 0.0
    %182 = vmatprep.subr.mxu0 0.0
    %183 = vmatpush1.xpose.msra.mxu0 0.0
    %184 = vmatprep.subr.mxu0 0.0
    %185 = vmatpush1.xpose.msra.mxu0 0.0
    %186 = vmatprep.subr.mxu0 0.0
    %187 = vmatpush1.xpose.msra.mxu0 0.0
    %188 = vmatprep.subr.mxu0 0.0
    %189 = vmatpush1.xpose.msra.mxu0 0.0
    %190 = vmatprep.subr.mxu0 0.0
    %191 = vmatpush1.xpose.msra.mxu0 0.0
    %192 = vmatprep.subr.mxu0 0.0
    %193 = vmatpush1.xpose.msra.mxu0 0.0
    %194 = vmatprep.subr.mxu0 0.0
    %195 = vmatpush1.xpose.msra.mxu0 0.0
    %196 = vmatprep.subr.mxu0 0.0
    %197 = vmatpush1.xpose.msra.mxu0 0.0
    %198 = vmatprep.subr.mxu0 0.0
    %199 = vmatpush1.xpose.msra.mxu0 0.0
    %200 = vmatprep.subr.mxu0 0.0
    %201 = vmatpush1.xpose.msra.mxu0 0.0
    %202 = vmatprep.subr.mxu0 0.0
    %203 = vmatpush1.xpose.msra.mxu0 0.0
    %204 = vmatprep.subr.mxu0 0.0
    %205 = vmatpush1.xpose.msra.mxu0 0.0
    %206 = vmatprep.subr.mxu0 0.0
    %207 = vmatpush1.xpose.msra.mxu0 0.0
    %208 = vmatprep.subr.mxu0 0.0
    %209 = vmatpush1.xpose.msra.mxu0 0.0
    %210 = vmatprep.subr.mxu0 0.0
    %211 = vmatpush1.xpose.msra.mxu0 0.0
    %212 = vmatprep.subr.mxu0 0.0
    %213 = vmatpush1.xpose.msra.mxu0 0.0
    %214 = vmatprep.subr.mxu0 0.0
    %215 = vmatpush1.xpose.msra.mxu0 0.0
    %216 = vmatprep.subr.mxu0 0.0
    %217 = vmatpush1.xpose.msra.mxu0 0.0
    %218 = vmatprep.subr.mxu0 0.0
    %219 = vmatpush1.xpose.msra.mxu0 0.0
    %220 = vmatprep.subr.mxu0 0.0
    %221 = vmatpush1.xpose.msra.mxu0 0.0
    %222 = vmatprep.subr.mxu0 0.0
    %223 = vmatpush1.xpose.msra.mxu0 0.0
    %224 = vmatprep.subr.mxu0 0.0
    %225 = vmatpush1.xpose.msra.mxu0 0.0
    %226 = vmatprep.subr.mxu0 0.0
    %227 = vmatpush1.xpose.msra.mxu0 0.0
    %228 = vmatprep.subr.mxu0 0.0
    %229 = vmatpush1.xpose.msra.mxu0 0.0
    %230 = vmatprep.subr.mxu0 0.0
    %231 = vmatpush1.xpose.msra.mxu0 0.0
    %232 = vmatprep.subr.mxu0 0.0
    %233 = vmatpush1.xpose.msra.mxu0 0.0
    %234 = vmatprep.mubr.f32.mxu0 0.0
    %235 = vmatmul.mubr.f32.gmra.mrb[0].mxu0 %v166
    %v236 = vpop.f32.mrb[0].mxu0
    %v237 = vadd.f32 0.0, %v236
    %v238 = vpop.f32.mrb[0].mxu0
    %239 = vdwg.mxu0
    %241 = vrot.lane.b32.xlu0 %v146, 64
    %v242 = vpop.permute.xlu0 %241
    %v243 = vsel %vm165, %v146, 0
    %v245 = vsel %vm165, %v242, 0
    %247 = vmatprep.subr.mxu0 0.0
    %248 = vmatpush1.xpose.msra.mxu0 %v245
    %249 = vmatprep.subr.mxu0 0.0
    %250 = vmatpush1.xpose.msra.mxu0 0.0
    %251 = vmatprep.subr.mxu0 0.0
    %252 = vmatpush1.xpose.msra.mxu0 0.0
    %253 = vmatprep.subr.mxu0 0.0
    %254 = vmatpush1.xpose.msra.mxu0 0.0
    %255 = vmatprep.subr.mxu0 0.0
    %256 = vmatpush1.xpose.msra.mxu0 0.0
    %257 = vmatprep.subr.mxu0 0.0
    %258 = vmatpush1.xpose.msra.mxu0 0.0
    %259 = vmatprep.subr.mxu0 0.0
    %260 = vmatpush1.xpose.msra.mxu0 0.0
    %261 = vmatprep.subr.mxu0 0.0
    %262 = vmatpush1.xpose.msra.mxu0 0.0
    %263 = vmatprep.subr.mxu0 0.0
    %264 = vmatpush1.xpose.msra.mxu0 0.0
    %265 = vmatprep.subr.mxu0 0.0
    %266 = vmatpush1.xpose.msra.mxu0 0.0
    %267 = vmatprep.subr.mxu0 0.0
    %268 = vmatpush1.xpose.msra.mxu0 0.0
    %269 = vmatprep.subr.mxu0 0.0
    %270 = vmatpush1.xpose.msra.mxu0 0.0
    %271 = vmatprep.subr.mxu0 0.0
    %272 = vmatpush1.xpose.msra.mxu0 0.0
    %273 = vmatprep.subr.mxu0 0.0
    %274 = vmatpush1.xpose.msra.mxu0 0.0
    %275 = vmatprep.subr.mxu0 0.0
    %276 = vmatpush1.xpose.msra.mxu0 0.0
    %277 = vmatprep.subr.mxu0 0.0
    %278 = vmatpush1.xpose.msra.mxu0 0.0
    %279 = vmatprep.subr.mxu0 0.0
    %280 = vmatpush1.xpose.msra.mxu0 0.0
    %281 = vmatprep.subr.mxu0 0.0
    %282 = vmatpush1.xpose.msra.mxu0 0.0
    %283 = vmatprep.subr.mxu0 0.0
    %284 = vmatpush1.xpose.msra.mxu0 0.0
    %285 = vmatprep.subr.mxu0 0.0
    %286 = vmatpush1.xpose.msra.mxu0 0.0
    %287 = vmatprep.subr.mxu0 0.0
    %288 = vmatpush1.xpose.msra.mxu0 0.0
    %289 = vmatprep.subr.mxu0 0.0
    %290 = vmatpush1.xpose.msra.mxu0 0.0
    %291 = vmatprep.subr.mxu0 0.0
    %292 = vmatpush1.xpose.msra.mxu0 0.0
    %293 = vmatprep.subr.mxu0 0.0
    %294 = vmatpush1.xpose.msra.mxu0 0.0
    %295 = vmatprep.subr.mxu0 0.0
    %296 = vmatpush1.xpose.msra.mxu0 0.0
    %297 = vmatprep.subr.mxu0 0.0
    %298 = vmatpush1.xpose.msra.mxu0 0.0
    %299 = vmatprep.subr.mxu0 0.0
    %300 = vmatpush1.xpose.msra.mxu0 0.0
    %301 = vmatprep.subr.mxu0 0.0
    %302 = vmatpush1.xpose.msra.mxu0 0.0
    %303 = vmatprep.subr.mxu0 0.0
    %304 = vmatpush1.xpose.msra.mxu0 0.0
    %305 = vmatprep.subr.mxu0 0.0
    %306 = vmatpush1.xpose.msra.mxu0 0.0
    %307 = vmatprep.subr.mxu0 0.0
    %308 = vmatpush1.xpose.msra.mxu0 0.0
    %309 = vmatprep.subr.mxu0 0.0
    %310 = vmatpush1.xpose.msra.mxu0 0.0
    %311 = vmatprep.mubr.f32.mxu0 0.0
    %312 = vmatmul.mubr.f32.gmra.mrb[0].mxu0 %v243
    %v313 = vpop.f32.mrb[0].mxu0
    %v314 = vadd.f32 0.0, %v313
    %v315 = vpop.f32.mrb[0].mxu0
    %316 = vdwg.mxu0
    %318 = vrot.lane.b32.xlu0 %v152, 64
    %v319 = vpop.permute.xlu0 %318
    %v320 = vsel %vm165, %v152, 0
    %v322 = vsel %vm165, %v319, 0
    %324 = vmatprep.subr.mxu0 0.0
    %325 = vmatpush1.xpose.msra.mxu0 %v322
    %326 = vmatprep.subr.mxu0 0.0
    %327 = vmatpush1.xpose.msra.mxu0 0.0
    %328 = vmatprep.subr.mxu0 0.0
    %329 = vmatpush1.xpose.msra.mxu0 0.0
    %330 = vmatprep.subr.mxu0 0.0
    %331 = vmatpush1.xpose.msra.mxu0 0.0
    %332 = vmatprep.subr.mxu0 0.0
    %333 = vmatpush1.xpose.msra.mxu0 0.0
    %334 = vmatprep.subr.mxu0 0.0
    %335 = vmatpush1.xpose.msra.mxu0 0.0
    %336 = vmatprep.subr.mxu0 0.0
    %337 = vmatpush1.xpose.msra.mxu0 0.0
    %338 = vmatprep.subr.mxu0 0.0
    %339 = vmatpush1.xpose.msra.mxu0 0.0
    %340 = vmatprep.subr.mxu0 0.0
    %341 = vmatpush1.xpose.msra.mxu0 0.0
    %342 = vmatprep.subr.mxu0 0.0
    %343 = vmatpush1.xpose.msra.mxu0 0.0
    %344 = vmatprep.subr.mxu0 0.0
    %345 = vmatpush1.xpose.msra.mxu0 0.0
    %346 = vmatprep.subr.mxu0 0.0
    %347 = vmatpush1.xpose.msra.mxu0 0.0
    %348 = vmatprep.subr.mxu0 0.0
    %349 = vmatpush1.xpose.msra.mxu0 0.0
    %350 = vmatprep.subr.mxu0 0.0
    %351 = vmatpush1.xpose.msra.mxu0 0.0
    %352 = vmatprep.subr.mxu0 0.0
    %353 = vmatpush1.xpose.msra.mxu0 0.0
    %354 = vmatprep.subr.mxu0 0.0
    %355 = vmatpush1.xpose.msra.mxu0 0.0
    %356 = vmatprep.subr.mxu0 0.0
    %357 = vmatpush1.xpose.msra.mxu0 0.0
    %358 = vmatprep.subr.mxu0 0.0
    %359 = vmatpush1.xpose.msra.mxu0 0.0
    %360 = vmatprep.subr.mxu0 0.0
    %361 = vmatpush1.xpose.msra.mxu0 0.0
    %362 = vmatprep.subr.mxu0 0.0
    %363 = vmatpush1.xpose.msra.mxu0 0.0
    %364 = vmatprep.subr.mxu0 0.0
    %365 = vmatpush1.xpose.msra.mxu0 0.0
    %366 = vmatprep.subr.mxu0 0.0
    %367 = vmatpush1.xpose.msra.mxu0 0.0
    %368 = vmatprep.subr.mxu0 0.0
    %369 = vmatpush1.xpose.msra.mxu0 0.0
    %370 = vmatprep.subr.mxu0 0.0
    %371 = vmatpush1.xpose.msra.mxu0 0.0
    %372 = vmatprep.subr.mxu0 0.0
    %373 = vmatpush1.xpose.msra.mxu0 0.0
    %374 = vmatprep.subr.mxu0 0.0
    %375 = vmatpush1.xpose.msra.mxu0 0.0
    %376 = vmatprep.subr.mxu0 0.0
    %377 = vmatpush1.xpose.msra.mxu0 0.0
    %378 = vmatprep.subr.mxu0 0.0
    %379 = vmatpush1.xpose.msra.mxu0 0.0
    %380 = vmatprep.subr.mxu0 0.0
    %381 = vmatpush1.xpose.msra.mxu0 0.0
    %382 = vmatprep.subr.mxu0 0.0
    %383 = vmatpush1.xpose.msra.mxu0 0.0
    %384 = vmatprep.subr.mxu0 0.0
    %385 = vmatpush1.xpose.msra.mxu0 0.0
    %386 = vmatprep.subr.mxu0 0.0
    %387 = vmatpush1.xpose.msra.mxu0 0.0
    %388 = vmatprep.mubr.f32.mxu0 0.0
    %389 = vmatmul.mubr.f32.gmra.mrb[0].mxu0 %v320
    %v390 = vpop.f32.mrb[0].mxu0
    %v391 = vadd.f32 0.0, %v390
    %v392 = vpop.f32.mrb[0].mxu0
    %393 = vdwg.mxu0
    %395 = vrot.lane.b32.xlu0 %v158, 64
    %v396 = vpop.permute.xlu0 %395
    %v397 = vsel %vm165, %v158, 0
    %v399 = vsel %vm165, %v396, 0
    %401 = vmatprep.subr.mxu0 0.0
    %402 = vmatpush1.xpose.msra.mxu0 %v399
    %403 = vmatprep.subr.mxu0 0.0
    %404 = vmatpush1.xpose.msra.mxu0 0.0
    %405 = vmatprep.subr.mxu0 0.0
    %406 = vmatpush1.xpose.msra.mxu0 0.0
    %407 = vmatprep.subr.mxu0 0.0
    %408 = vmatpush1.xpose.msra.mxu0 0.0
    %409 = vmatprep.subr.mxu0 0.0
    %410 = vmatpush1.xpose.msra.mxu0 0.0
    %411 = vmatprep.subr.mxu0 0.0
    %412 = vmatpush1.xpose.msra.mxu0 0.0
    %413 = vmatprep.subr.mxu0 0.0
    %414 = vmatpush1.xpose.msra.mxu0 0.0
    %415 = vmatprep.subr.mxu0 0.0
    %416 = vmatpush1.xpose.msra.mxu0 0.0
    %417 = vmatprep.subr.mxu0 0.0
    %418 = vmatpush1.xpose.msra.mxu0 0.0
    %419 = vmatprep.subr.mxu0 0.0
    %420 = vmatpush1.xpose.msra.mxu0 0.0
    %421 = vmatprep.subr.mxu0 0.0
    %422 = vmatpush1.xpose.msra.mxu0 0.0
    %423 = vmatprep.subr.mxu0 0.0
    %424 = vmatpush1.xpose.msra.mxu0 0.0
    %425 = vmatprep.subr.mxu0 0.0
    %426 = vmatpush1.xpose.msra.mxu0 0.0
    %427 = vmatprep.subr.mxu0 0.0
    %428 = vmatpush1.xpose.msra.mxu0 0.0
    %429 = vmatprep.subr.mxu0 0.0
    %430 = vmatpush1.xpose.msra.mxu0 0.0
    %431 = vmatprep.subr.mxu0 0.0
    %432 = vmatpush1.xpose.msra.mxu0 0.0
    %433 = vmatprep.subr.mxu0 0.0
    %434 = vmatpush1.xpose.msra.mxu0 0.0
    %435 = vmatprep.subr.mxu0 0.0
    %436 = vmatpush1.xpose.msra.mxu0 0.0
    %437 = vmatprep.subr.mxu0 0.0
    %438 = vmatpush1.xpose.msra.mxu0 0.0
    %439 = vmatprep.subr.mxu0 0.0
    %440 = vmatpush1.xpose.msra.mxu0 0.0
    %441 = vmatprep.subr.mxu0 0.0
    %442 = vmatpush1.xpose.msra.mxu0 0.0
    %443 = vmatprep.subr.mxu0 0.0
    %444 = vmatpush1.xpose.msra.mxu0 0.0
    %445 = vmatprep.subr.mxu0 0.0
    %446 = vmatpush1.xpose.msra.mxu0 0.0
    %447 = vmatprep.subr.mxu0 0.0
    %448 = vmatpush1.xpose.msra.mxu0 0.0
    %449 = vmatprep.subr.mxu0 0.0
    %450 = vmatpush1.xpose.msra.mxu0 0.0
    %451 = vmatprep.subr.mxu0 0.0
    %452 = vmatpush1.xpose.msra.mxu0 0.0
    %453 = vmatprep.subr.mxu0 0.0
    %454 = vmatpush1.xpose.msra.mxu0 0.0
    %455 = vmatprep.subr.mxu0 0.0
    %456 = vmatpush1.xpose.msra.mxu0 0.0
    %457 = vmatprep.subr.mxu0 0.0
    %458 = vmatpush1.xpose.msra.mxu0 0.0
    %459 = vmatprep.subr.mxu0 0.0
    %460 = vmatpush1.xpose.msra.mxu0 0.0
    %461 = vmatprep.subr.mxu0 0.0
    %462 = vmatpush1.xpose.msra.mxu0 0.0
    %463 = vmatprep.subr.mxu0 0.0
    %464 = vmatpush1.xpose.msra.mxu0 0.0
    %465 = vmatprep.mubr.f32.mxu0 0.0
    %466 = vmatmul.mubr.f32.gmra.mrb[0].mxu0 %v397
    %v467 = vpop.f32.mrb[0].mxu0
    %v468 = vadd.f32 0.0, %v467
    %v469 = vpop.f32.mrb[0].mxu0
    %470 = vdwg.mxu0
    %vm471 = vcmask 64512
    %v472 = vsel %vm471, %v237, -inf
    %473 = vmax.xlane.f32.xlu0 %v472
    %v474 = vpop.xlane.xlu0 %473
    %v475 = vsel %vm471, %v314, -inf
    %476 = vmax.xlane.f32.xlu0 %v475
    %v477 = vpop.xlane.xlu0 %476
    %v478 = vsel %vm471, %v391, -inf
    %479 = vmax.xlane.f32.xlu0 %v478
    %v480 = vpop.xlane.xlu0 %479
    %v481 = vsel %vm471, %v468, -inf
    %482 = vmax.xlane.f32.xlu0 %v481
    %v483 = vpop.xlane.xlu0 %482
    %v484 = vsub.f32 %v237, %v474
    %v485 = vsub.f32 %v314, %v477
    %v486 = vsub.f32 %v391, %v480
    %v487 = vsub.f32 %v468, %v483
    %v488 = vmul.f32 %v484, 1.442695
    %v489 = vpow.pop %v488
    %v490 = vmul.f32 %v485, 1.442695
    %v491 = vpow.pop %v490
    %v492 = vmul.f32 %v486, 1.442695
    %v493 = vpow.pop %v492
    %v494 = vmul.f32 %v487, 1.442695
    %v495 = vpow.pop %v494
    %v496 = vsel %vm471, %v489, 0.0
    %497 = vadd.xlane.f32.xlu0 %v496
    %v498 = vpop.xlane.xlu0 %497
    %v499 = vsel %vm471, %v491, 0.0
    %500 = vadd.xlane.f32.xlu0 %v499
    %v501 = vpop.xlane.xlu0 %500
    %v502 = vsel %vm471, %v493, 0.0
    %503 = vadd.xlane.f32.xlu0 %v502
    %v504 = vpop.xlane.xlu0 %503
    %v505 = vsel %vm471, %v495, 0.0
    %506 = vadd.xlane.f32.xlu0 %v505
    %v507 = vpop.xlane.xlu0 %506
    %v508 = vrcp.pop %v498
    %v509 = vmul.f32 %v489, %v508
    %v510 = vrcp.pop %v501
    %v511 = vmul.f32 %v491, %v510
    %v512 = vrcp.pop %v504
    %v513 = vmul.f32 %v493, %v512
    %v514 = vrcp.pop %v507
    %v515 = vmul.f32 %v495, %v514
    %v517 = vsel %vm471, %v509, 0
    %519 = vmatprep.subr.mxu0 0.0
    %520 = vmatpush1.msra.mxu0 %v142
    %521 = vmatprep.subr.mxu0 0.0
    %522 = vmatpush1.msra.mxu0 0.0
    %523 = vmatprep.subr.mxu0 0.0
    %524 = vmatpush1.msra.mxu0 0.0
    %525 = vmatprep.subr.mxu0 0.0
    %526 = vmatpush1.msra.mxu0 0.0
    %527 = vmatprep.subr.mxu0 0.0
    %528 = vmatpush1.msra.mxu0 0.0
    %529 = vmatprep.subr.mxu0 0.0
    %530 = vmatpush1.msra.mxu0 0.0
    %531 = vmatprep.subr.mxu0 0.0
    %532 = vmatpush1.msra.mxu0 0.0
    %533 = vmatprep.subr.mxu0 0.0
    %534 = vmatpush1.msra.mxu0 0.0
    %535 = vmatprep.subr.mxu0 0.0
    %536 = vmatpush1.msra.mxu0 0.0
    %537 = vmatprep.subr.mxu0 0.0
    %538 = vmatpush1.msra.mxu0 0.0
    %539 = vmatprep.subr.mxu0 0.0
    %540 = vmatpush1.msra.mxu0 0.0
    %541 = vmatprep.subr.mxu0 0.0
    %542 = vmatpush1.msra.mxu0 0.0
    %543 = vmatprep.subr.mxu0 0.0
    %544 = vmatpush1.msra.mxu0 0.0
    %545 = vmatprep.subr.mxu0 0.0
    %546 = vmatpush1.msra.mxu0 0.0
    %547 = vmatprep.subr.mxu0 0.0
    %548 = vmatpush1.msra.mxu0 0.0
    %549 = vmatprep.subr.mxu0 0.0
    %550 = vmatpush1.msra.mxu0 0.0
    %551 = vmatprep.subr.mxu0 0.0
    %552 = vmatpush1.msra.mxu0 0.0
    %553 = vmatprep.subr.mxu0 0.0
    %554 = vmatpush1.msra.mxu0 0.0
    %555 = vmatprep.subr.mxu0 0.0
    %556 = vmatpush1.msra.mxu0 0.0
    %557 = vmatprep.subr.mxu0 0.0
    %558 = vmatpush1.msra.mxu0 0.0
    %559 = vmatprep.subr.mxu0 0.0
    %560 = vmatpush1.msra.mxu0 0.0
    %561 = vmatprep.subr.mxu0 0.0
    %562 = vmatpush1.msra.mxu0 0.0
    %563 = vmatprep.subr.mxu0 0.0
    %564 = vmatpush1.msra.mxu0 0.0
    %565 = vmatprep.subr.mxu0 0.0
    %566 = vmatpush1.msra.mxu0 0.0
    %567 = vmatprep.subr.mxu0 0.0
    %568 = vmatpush1.msra.mxu0 0.0
    %569 = vmatprep.subr.mxu0 0.0
    %570 = vmatpush1.msra.mxu0 0.0
    %571 = vmatprep.subr.mxu0 0.0
    %572 = vmatpush1.msra.mxu0 0.0
    %573 = vmatprep.subr.mxu0 0.0
    %574 = vmatpush1.msra.mxu0 0.0
    %575 = vmatprep.subr.mxu0 0.0
    %576 = vmatpush1.msra.mxu0 0.0
    %577 = vmatprep.subr.mxu0 0.0
    %578 = vmatpush1.msra.mxu0 0.0
    %579 = vmatprep.subr.mxu0 0.0
    %580 = vmatpush1.msra.mxu0 0.0
    %581 = vmatprep.subr.mxu0 0.0
    %582 = vmatpush1.msra.mxu0 0.0
    %583 = vmatprep.mubr.f32.mxu0 0.0
    %584 = vmatmul.mubr.f32.gmra.mrb[0].mxu0 %v517
    %v585 = vpop.f32.mrb[0].mxu0
    %v586 = vadd.f32 0.0, %v585
    %v587 = vpop.f32.mrb[0].mxu0
    %588 = vdwg.mxu0
    %v590 = vsel %vm471, %v511, 0
    %592 = vmatprep.subr.mxu0 0.0
    %593 = vmatpush1.msra.mxu0 %v148
    %594 = vmatprep.subr.mxu0 0.0
    %595 = vmatpush1.msra.mxu0 0.0
    %596 = vmatprep.subr.mxu0 0.0
    %597 = vmatpush1.msra.mxu0 0.0
    %598 = vmatprep.subr.mxu0 0.0
    %599 = vmatpush1.msra.mxu0 0.0
    %600 = vmatprep.subr.mxu0 0.0
    %601 = vmatpush1.msra.mxu0 0.0
    %602 = vmatprep.subr.mxu0 0.0
    %603 = vmatpush1.msra.mxu0 0.0
    %604 = vmatprep.subr.mxu0 0.0
    %605 = vmatpush1.msra.mxu0 0.0
    %606 = vmatprep.subr.mxu0 0.0
    %607 = vmatpush1.msra.mxu0 0.0
    %608 = vmatprep.subr.mxu0 0.0
    %609 = vmatpush1.msra.mxu0 0.0
    %610 = vmatprep.subr.mxu0 0.0
    %611 = vmatpush1.msra.mxu0 0.0
    %612 = vmatprep.subr.mxu0 0.0
    %613 = vmatpush1.msra.mxu0 0.0
    %614 = vmatprep.subr.mxu0 0.0
    %615 = vmatpush1.msra.mxu0 0.0
    %616 = vmatprep.subr.mxu0 0.0
    %617 = vmatpush1.msra.mxu0 0.0
    %618 = vmatprep.subr.mxu0 0.0
    %619 = vmatpush1.msra.mxu0 0.0
    %620 = vmatprep.subr.mxu0 0.0
    %621 = vmatpush1.msra.mxu0 0.0
    %622 = vmatprep.subr.mxu0 0.0
    %623 = vmatpush1.msra.mxu0 0.0
    %624 = vmatprep.subr.mxu0 0.0
    %625 = vmatpush1.msra.mxu0 0.0
    %626 = vmatprep.subr.mxu0 0.0
    %627 = vmatpush1.msra.mxu0 0.0
    %628 = vmatprep.subr.mxu0 0.0
    %629 = vmatpush1.msra.mxu0 0.0
    %630 = vmatprep.subr.mxu0 0.0
    %631 = vmatpush1.msra.mxu0 0.0
    %632 = vmatprep.subr.mxu0 0.0
    %633 = vmatpush1.msra.mxu0 0.0
    %634 = vmatprep.subr.mxu0 0.0
    %635 = vmatpush1.msra.mxu0 0.0
    %636 = vmatprep.subr.mxu0 0.0
    %637 = vmatpush1.msra.mxu0 0.0
    %638 = vmatprep.subr.mxu0 0.0
    %639 = vmatpush1.msra.mxu0 0.0
    %640 = vmatprep.subr.mxu0 0.0
    %641 = vmatpush1.msra.mxu0 0.0
    %642 = vmatprep.subr.mxu0 0.0
    %643 = vmatpush1.msra.mxu0 0.0
    %644 = vmatprep.subr.mxu0 0.0
    %645 = vmatpush1.msra.mxu0 0.0
    %646 = vmatprep.subr.mxu0 0.0
    %647 = vmatpush1.msra.mxu0 0.0
    %648 = vmatprep.subr.mxu0 0.0
    %649 = vmatpush1.msra.mxu0 0.0
    %650 = vmatprep.subr.mxu0 0.0
    %651 = vmatpush1.msra.mxu0 0.0
    %652 = vmatprep.subr.mxu0 0.0
    %653 = vmatpush1.msra.mxu0 0.0
    %654 = vmatprep.subr.mxu0 0.0
    %655 = vmatpush1.msra.mxu0 0.0
    %656 = vmatprep.mubr.f32.mxu0 0.0
    %657 = vmatmul.mubr.f32.gmra.mrb[0].mxu0 %v590
    %v658 = vpop.f32.mrb[0].mxu0
    %v659 = vadd.f32 0.0, %v658
    %v660 = vpop.f32.mrb[0].mxu0
    %661 = vdwg.mxu0
    %v663 = vsel %vm471, %v513, 0
    %665 = vmatprep.subr.mxu0 0.0
    %666 = vmatpush1.msra.mxu0 %v154
    %667 = vmatprep.subr.mxu0 0.0
    %668 = vmatpush1.msra.mxu0 0.0
    %669 = vmatprep.subr.mxu0 0.0
    %670 = vmatpush1.msra.mxu0 0.0
    %671 = vmatprep.subr.mxu0 0.0
    %672 = vmatpush1.msra.mxu0 0.0
    %673 = vmatprep.subr.mxu0 0.0
    %674 = vmatpush1.msra.mxu0 0.0
    %675 = vmatprep.subr.mxu0 0.0
    %676 = vmatpush1.msra.mxu0 0.0
    %677 = vmatprep.subr.mxu0 0.0
    %678 = vmatpush1.msra.mxu0 0.0
    %679 = vmatprep.subr.mxu0 0.0
    %680 = vmatpush1.msra.mxu0 0.0
    %681 = vmatprep.subr.mxu0 0.0
    %682 = vmatpush1.msra.mxu0 0.0
    %683 = vmatprep.subr.mxu0 0.0
    %684 = vmatpush1.msra.mxu0 0.0
    %685 = vmatprep.subr.mxu0 0.0
    %686 = vmatpush1.msra.mxu0 0.0
    %687 = vmatprep.subr.mxu0 0.0
    %688 = vmatpush1.msra.mxu0 0.0
    %689 = vmatprep.subr.mxu0 0.0
    %690 = vmatpush1.msra.mxu0 0.0
    %691 = vmatprep.subr.mxu0 0.0
    %692 = vmatpush1.msra.mxu0 0.0
    %693 = vmatprep.subr.mxu0 0.0
    %694 = vmatpush1.msra.mxu0 0.0
    %695 = vmatprep.subr.mxu0 0.0
    %696 = vmatpush1.msra.mxu0 0.0
    %697 = vmatprep.subr.mxu0 0.0
    %698 = vmatpush1.msra.mxu0 0.0
    %699 = vmatprep.subr.mxu0 0.0
    %700 = vmatpush1.msra.mxu0 0.0
    %701 = vmatprep.subr.mxu0 0.0
    %702 = vmatpush1.msra.mxu0 0.0
    %703 = vmatprep.subr.mxu0 0.0
    %704 = vmatpush1.msra.mxu0 0.0
    %705 = vmatprep.subr.mxu0 0.0
    %706 = vmatpush1.msra.mxu0 0.0
    %707 = vmatprep.subr.mxu0 0.0
    %708 = vmatpush1.msra.mxu0 0.0
    %709 = vmatprep.subr.mxu0 0.0
    %710 = vmatpush1.msra.mxu0 0.0
    %711 = vmatprep.subr.mxu0 0.0
    %712 = vmatpush1.msra.mxu0 0.0
    %713 = vmatprep.subr.mxu0 0.0
    %714 = vmatpush1.msra.mxu0 0.0
    %715 = vmatprep.subr.mxu0 0.0
    %716 = vmatpush1.msra.mxu0 0.0
    %717 = vmatprep.subr.mxu0 0.0
    %718 = vmatpush1.msra.mxu0 0.0
    %719 = vmatprep.subr.mxu0 0.0
    %720 = vmatpush1.msra.mxu0 0.0
    %721 = vmatprep.subr.mxu0 0.0
    %722 = vmatpush1.msra.mxu0 0.0
    %723 = vmatprep.subr.mxu0 0.0
    %724 = vmatpush1.msra.mxu0 0.0
    %725 = vmatprep.subr.mxu0 0.0
    %726 = vmatpush1.msra.mxu0 0.0
    %727 = vmatprep.subr.mxu0 0.0
    %728 = vmatpush1.msra.mxu0 0.0
    %729 = vmatprep.mubr.f32.mxu0 0.0
    %730 = vmatmul.mubr.f32.gmra.mrb[0].mxu0 %v663
    %v731 = vpop.f32.mrb[0].mxu0
    %v732 = vadd.f32 0.0, %v731
    %v733 = vpop.f32.mrb[0].mxu0
    %734 = vdwg.mxu0
    %v736 = vsel %vm471, %v515, 0
    %738 = vmatprep.subr.mxu0 0.0
    %739 = vmatpush1.msra.mxu0 %v160
    %740 = vmatprep.subr.mxu0 0.0
    %741 = vmatpush1.msra.mxu0 0.0
    %742 = vmatprep.subr.mxu0 0.0
    %743 = vmatpush1.msra.mxu0 0.0
    %744 = vmatprep.subr.mxu0 0.0
    %745 = vmatpush1.msra.mxu0 0.0
    %746 = vmatprep.subr.mxu0 0.0
    %747 = vmatpush1.msra.mxu0 0.0
    %748 = vmatprep.subr.mxu0 0.0
    %749 = vmatpush1.msra.mxu0 0.0
    %750 = vmatprep.subr.mxu0 0.0
    %751 = vmatpush1.msra.mxu0 0.0
    %752 = vmatprep.subr.mxu0 0.0
    %753 = vmatpush1.msra.mxu0 0.0
    %754 = vmatprep.subr.mxu0 0.0
    %755 = vmatpush1.msra.mxu0 0.0
    %756 = vmatprep.subr.mxu0 0.0
    %757 = vmatpush1.msra.mxu0 0.0
    %758 = vmatprep.subr.mxu0 0.0
    %759 = vmatpush1.msra.mxu0 0.0
    %760 = vmatprep.subr.mxu0 0.0
    %761 = vmatpush1.msra.mxu0 0.0
    %762 = vmatprep.subr.mxu0 0.0
    %763 = vmatpush1.msra.mxu0 0.0
    %764 = vmatprep.subr.mxu0 0.0
    %765 = vmatpush1.msra.mxu0 0.0
    %766 = vmatprep.subr.mxu0 0.0
    %767 = vmatpush1.msra.mxu0 0.0
    %768 = vmatprep.subr.mxu0 0.0
    %769 = vmatpush1.msra.mxu0 0.0
    %770 = vmatprep.subr.mxu0 0.0
    %771 = vmatpush1.msra.mxu0 0.0
    %772 = vmatprep.subr.mxu0 0.0
    %773 = vmatpush1.msra.mxu0 0.0
    %774 = vmatprep.subr.mxu0 0.0
    %775 = vmatpush1.msra.mxu0 0.0
    %776 = vmatprep.subr.mxu0 0.0
    %777 = vmatpush1.msra.mxu0 0.0
    %778 = vmatprep.subr.mxu0 0.0
    %779 = vmatpush1.msra.mxu0 0.0
    %780 = vmatprep.subr.mxu0 0.0
    %781 = vmatpush1.msra.mxu0 0.0
    %782 = vmatprep.subr.mxu0 0.0
    %783 = vmatpush1.msra.mxu0 0.0
    %784 = vmatprep.subr.mxu0 0.0
    %785 = vmatpush1.msra.mxu0 0.0
    %786 = vmatprep.subr.mxu0 0.0
    %787 = vmatpush1.msra.mxu0 0.0
    %788 = vmatprep.subr.mxu0 0.0
    %789 = vmatpush1.msra.mxu0 0.0
    %790 = vmatprep.subr.mxu0 0.0
    %791 = vmatpush1.msra.mxu0 0.0
    %792 = vmatprep.subr.mxu0 0.0
    %793 = vmatpush1.msra.mxu0 0.0
    %794 = vmatprep.subr.mxu0 0.0
    %795 = vmatpush1.msra.mxu0 0.0
    %796 = vmatprep.subr.mxu0 0.0
    %797 = vmatpush1.msra.mxu0 0.0
    %798 = vmatprep.subr.mxu0 0.0
    %799 = vmatpush1.msra.mxu0 0.0
    %800 = vmatprep.subr.mxu0 0.0
    %801 = vmatpush1.msra.mxu0 0.0
    %802 = vmatprep.mubr.f32.mxu0 0.0
    %803 = vmatmul.mubr.f32.gmra.mrb[0].mxu0 %v736
    %v804 = vpop.f32.mrb[0].mxu0
    %v805 = vadd.f32 0.0, %v804
    %v806 = vpop.f32.mrb[0].mxu0
    %807 = vdwg.mxu0
    %808 = vrot.lane.b32.xlu0 %v140, 112
    %v809 = vpop.permute.xlu0 %808
    %810 = vrot.lane.b32.xlu0 %v140, 48
    %v811 = vpop.permute.xlu0 %810
    %v812 = vsel %vm165, %v809, 0
    %v814 = vsel %vm165, %v811, 0
    %816 = vmatprep.subr.mxu0 0.0
    %817 = vmatpush1.xpose.msra.mxu0 %v814
    %818 = vmatprep.subr.mxu0 0.0
    %819 = vmatpush1.xpose.msra.mxu0 0.0
    %820 = vmatprep.subr.mxu0 0.0
    %821 = vmatpush1.xpose.msra.mxu0 0.0
    %822 = vmatprep.subr.mxu0 0.0
    %823 = vmatpush1.xpose.msra.mxu0 0.0
    %824 = vmatprep.subr.mxu0 0.0
    %825 = vmatpush1.xpose.msra.mxu0 0.0
    %826 = vmatprep.subr.mxu0 0.0
    %827 = vmatpush1.xpose.msra.mxu0 0.0
    %828 = vmatprep.subr.mxu0 0.0
    %829 = vmatpush1.xpose.msra.mxu0 0.0
    %830 = vmatprep.subr.mxu0 0.0
    %831 = vmatpush1.xpose.msra.mxu0 0.0
    %832 = vmatprep.subr.mxu0 0.0
    %833 = vmatpush1.xpose.msra.mxu0 0.0
    %834 = vmatprep.subr.mxu0 0.0
    %835 = vmatpush1.xpose.msra.mxu0 0.0
    %836 = vmatprep.subr.mxu0 0.0
    %837 = vmatpush1.xpose.msra.mxu0 0.0
    %838 = vmatprep.subr.mxu0 0.0
    %839 = vmatpush1.xpose.msra.mxu0 0.0
    %840 = vmatprep.subr.mxu0 0.0
    %841 = vmatpush1.xpose.msra.mxu0 0.0
    %842 = vmatprep.subr.mxu0 0.0
    %843 = vmatpush1.xpose.msra.mxu0 0.0
    %844 = vmatprep.subr.mxu0 0.0
    %845 = vmatpush1.xpose.msra.mxu0 0.0
    %846 = vmatprep.subr.mxu0 0.0
    %847 = vmatpush1.xpose.msra.mxu0 0.0
    %848 = vmatprep.subr.mxu0 0.0
    %849 = vmatpush1.xpose.msra.mxu0 0.0
    %850 = vmatprep.subr.mxu0 0.0
    %851 = vmatpush1.xpose.msra.mxu0 0.0
    %852 = vmatprep.subr.mxu0 0.0
    %853 = vmatpush1.xpose.msra.mxu0 0.0
    %854 = vmatprep.subr.mxu0 0.0
    %855 = vmatpush1.xpose.msra.mxu0 0.0
    %856 = vmatprep.subr.mxu0 0.0
    %857 = vmatpush1.xpose.msra.mxu0 0.0
    %858 = vmatprep.subr.mxu0 0.0
    %859 = vmatpush1.xpose.msra.mxu0 0.0
    %860 = vmatprep.subr.mxu0 0.0
    %861 = vmatpush1.xpose.msra.mxu0 0.0
    %862 = vmatprep.subr.mxu0 0.0
    %863 = vmatpush1.xpose.msra.mxu0 0.0
    %864 = vmatprep.subr.mxu0 0.0
    %865 = vmatpush1.xpose.msra.mxu0 0.0
    %866 = vmatprep.subr.mxu0 0.0
    %867 = vmatpush1.xpose.msra.mxu0 0.0
    %868 = vmatprep.subr.mxu0 0.0
    %869 = vmatpush1.xpose.msra.mxu0 0.0
    %870 = vmatprep.subr.mxu0 0.0
    %871 = vmatpush1.xpose.msra.mxu0 0.0
    %872 = vmatprep.subr.mxu0 0.0
    %873 = vmatpush1.xpose.msra.mxu0 0.0
    %874 = vmatprep.subr.mxu0 0.0
    %875 = vmatpush1.xpose.msra.mxu0 0.0
    %876 = vmatprep.subr.mxu0 0.0
    %877 = vmatpush1.xpose.msra.mxu0 0.0
    %878 = vmatprep.subr.mxu0 0.0
    %879 = vmatpush1.xpose.msra.mxu0 0.0
    %880 = vmatprep.mubr.f32.mxu0 0.0
    %881 = vmatmul.mubr.f32.gmra.mrb[0].mxu0 %v812
    %v882 = vpop.f32.mrb[0].mxu0
    %v883 = vadd.f32 0.0, %v882
    %v884 = vpop.f32.mrb[0].mxu0
    %885 = vdwg.mxu0
    %886 = vrot.lane.b32.xlu0 %v146, 112
    %v887 = vpop.permute.xlu0 %886
    %888 = vrot.lane.b32.xlu0 %v146, 48
    %v889 = vpop.permute.xlu0 %888
    %v890 = vsel %vm165, %v887, 0
    %v892 = vsel %vm165, %v889, 0
    %894 = vmatprep.subr.mxu0 0.0
    %895 = vmatpush1.xpose.msra.mxu0 %v892
    %896 = vmatprep.subr.mxu0 0.0
    %897 = vmatpush1.xpose.msra.mxu0 0.0
    %898 = vmatprep.subr.mxu0 0.0
    %899 = vmatpush1.xpose.msra.mxu0 0.0
    %900 = vmatprep.subr.mxu0 0.0
    %901 = vmatpush1.xpose.msra.mxu0 0.0
    %902 = vmatprep.subr.mxu0 0.0
    %903 = vmatpush1.xpose.msra.mxu0 0.0
    %904 = vmatprep.subr.mxu0 0.0
    %905 = vmatpush1.xpose.msra.mxu0 0.0
    %906 = vmatprep.subr.mxu0 0.0
    %907 = vmatpush1.xpose.msra.mxu0 0.0
    %908 = vmatprep.subr.mxu0 0.0
    %909 = vmatpush1.xpose.msra.mxu0 0.0
    %910 = vmatprep.subr.mxu0 0.0
    %911 = vmatpush1.xpose.msra.mxu0 0.0
    %912 = vmatprep.subr.mxu0 0.0
    %913 = vmatpush1.xpose.msra.mxu0 0.0
    %914 = vmatprep.subr.mxu0 0.0
    %915 = vmatpush1.xpose.msra.mxu0 0.0
    %916 = vmatprep.subr.mxu0 0.0
    %917 = vmatpush1.xpose.msra.mxu0 0.0
    %918 = vmatprep.subr.mxu0 0.0
    %919 = vmatpush1.xpose.msra.mxu0 0.0
    %920 = vmatprep.subr.mxu0 0.0
    %921 = vmatpush1.xpose.msra.mxu0 0.0
    %922 = vmatprep.subr.mxu0 0.0
    %923 = vmatpush1.xpose.msra.mxu0 0.0
    %924 = vmatprep.subr.mxu0 0.0
    %925 = vmatpush1.xpose.msra.mxu0 0.0
    %926 = vmatprep.subr.mxu0 0.0
    %927 = vmatpush1.xpose.msra.mxu0 0.0
    %928 = vmatprep.subr.mxu0 0.0
    %929 = vmatpush1.xpose.msra.mxu0 0.0
    %930 = vmatprep.subr.mxu0 0.0
    %931 = vmatpush1.xpose.msra.mxu0 0.0
    %932 = vmatprep.subr.mxu0 0.0
    %933 = vmatpush1.xpose.msra.mxu0 0.0
    %934 = vmatprep.subr.mxu0 0.0
    %935 = vmatpush1.xpose.msra.mxu0 0.0
    %936 = vmatprep.subr.mxu0 0.0
    %937 = vmatpush1.xpose.msra.mxu0 0.0
    %938 = vmatprep.subr.mxu0 0.0
    %939 = vmatpush1.xpose.msra.mxu0 0.0
    %940 = vmatprep.subr.mxu0 0.0
    %941 = vmatpush1.xpose.msra.mxu0 0.0
    %942 = vmatprep.subr.mxu0 0.0
    %943 = vmatpush1.xpose.msra.mxu0 0.0
    %944 = vmatprep.subr.mxu0 0.0
    %945 = vmatpush1.xpose.msra.mxu0 0.0
    %946 = vmatprep.subr.mxu0 0.0
    %947 = vmatpush1.xpose.msra.mxu0 0.0
    %948 = vmatprep.subr.mxu0 0.0
    %949 = vmatpush1.xpose.msra.mxu0 0.0
    %950 = vmatprep.subr.mxu0 0.0
    %951 = vmatpush1.xpose.msra.mxu0 0.0
    %952 = vmatprep.subr.mxu0 0.0
    %953 = vmatpush1.xpose.msra.mxu0 0.0
    %954 = vmatprep.subr.mxu0 0.0
    %955 = vmatpush1.xpose.msra.mxu0 0.0
    %956 = vmatprep.subr.mxu0 0.0
    %957 = vmatpush1.xpose.msra.mxu0 0.0
    %958 = vmatprep.mubr.f32.mxu0 0.0
    %959 = vmatmul.mubr.f32.gmra.mrb[0].mxu0 %v890
    %v960 = vpop.f32.mrb[0].mxu0
    %v961 = vadd.f32 0.0, %v960
    %v962 = vpop.f32.mrb[0].mxu0
    %963 = vdwg.mxu0
    %964 = vrot.lane.b32.xlu0 %v152, 112
    %v965 = vpop.permute.xlu0 %964
    %966 = vrot.lane.b32.xlu0 %v152, 48
    %v967 = vpop.permute.xlu0 %966
    %v968 = vsel %vm165, %v965, 0
    %v970 = vsel %vm165, %v967, 0
    %972 = vmatprep.subr.mxu0 0.0
    %973 = vmatpush1.xpose.msra.mxu0 %v970
    %974 = vmatprep.subr.mxu0 0.0
    %975 = vmatpush1.xpose.msra.mxu0 0.0
    %976 = vmatprep.subr.mxu0 0.0
    %977 = vmatpush1.xpose.msra.mxu0 0.0
    %978 = vmatprep.subr.mxu0 0.0
    %979 = vmatpush1.xpose.msra.mxu0 0.0
    %980 = vmatprep.subr.mxu0 0.0
    %981 = vmatpush1.xpose.msra.mxu0 0.0
    %982 = vmatprep.subr.mxu0 0.0
    %983 = vmatpush1.xpose.msra.mxu0 0.0
    %984 = vmatprep.subr.mxu0 0.0
    %985 = vmatpush1.xpose.msra.mxu0 0.0
    %986 = vmatprep.subr.mxu0 0.0
    %987 = vmatpush1.xpose.msra.mxu0 0.0
    %988 = vmatprep.subr.mxu0 0.0
    %989 = vmatpush1.xpose.msra.mxu0 0.0
    %990 = vmatprep.subr.mxu0 0.0
    %991 = vmatpush1.xpose.msra.mxu0 0.0
    %992 = vmatprep.subr.mxu0 0.0
    %993 = vmatpush1.xpose.msra.mxu0 0.0
    %994 = vmatprep.subr.mxu0 0.0
    %995 = vmatpush1.xpose.msra.mxu0 0.0
    %996 = vmatprep.subr.mxu0 0.0
    %997 = vmatpush1.xpose.msra.mxu0 0.0
    %998 = vmatprep.subr.mxu0 0.0
    %999 = vmatpush1.xpose.msra.mxu0 0.0
    %1000 = vmatprep.subr.mxu0 0.0
    %1001 = vmatpush1.xpose.msra.mxu0 0.0
    %1002 = vmatprep.subr.mxu0 0.0
    %1003 = vmatpush1.xpose.msra.mxu0 0.0
    %1004 = vmatprep.subr.mxu0 0.0
    %1005 = vmatpush1.xpose.msra.mxu0 0.0
    %1006 = vmatprep.subr.mxu0 0.0
    %1007 = vmatpush1.xpose.msra.mxu0 0.0
    %1008 = vmatprep.subr.mxu0 0.0
    %1009 = vmatpush1.xpose.msra.mxu0 0.0
    %1010 = vmatprep.subr.mxu0 0.0
    %1011 = vmatpush1.xpose.msra.mxu0 0.0
    %1012 = vmatprep.subr.mxu0 0.0
    %1013 = vmatpush1.xpose.msra.mxu0 0.0
    %1014 = vmatprep.subr.mxu0 0.0
    %1015 = vmatpush1.xpose.msra.mxu0 0.0
    %1016 = vmatprep.subr.mxu0 0.0
    %1017 = vmatpush1.xpose.msra.mxu0 0.0
    %1018 = vmatprep.subr.mxu0 0.0
    %1019 = vmatpush1.xpose.msra.mxu0 0.0
    %1020 = vmatprep.subr.mxu0 0.0
    %1021 = vmatpush1.xpose.msra.mxu0 0.0
    %1022 = vmatprep.subr.mxu0 0.0
    %1023 = vmatpush1.xpose.msra.mxu0 0.0
    %1024 = vmatprep.subr.mxu0 0.0
    %1025 = vmatpush1.xpose.msra.mxu0 0.0
    %1026 = vmatprep.subr.mxu0 0.0
    %1027 = vmatpush1.xpose.msra.mxu0 0.0
    %1028 = vmatprep.subr.mxu0 0.0
    %1029 = vmatpush1.xpose.msra.mxu0 0.0
    %1030 = vmatprep.subr.mxu0 0.0
    %1031 = vmatpush1.xpose.msra.mxu0 0.0
    %1032 = vmatprep.subr.mxu0 0.0
    %1033 = vmatpush1.xpose.msra.mxu0 0.0
    %1034 = vmatprep.subr.mxu0 0.0
    %1035 = vmatpush1.xpose.msra.mxu0 0.0
    %1036 = vmatprep.mubr.f32.mxu0 0.0
    %1037 = vmatmul.mubr.f32.gmra.mrb[0].mxu0 %v968
    %v1038 = vpop.f32.mrb[0].mxu0
    %v1039 = vadd.f32 0.0, %v1038
    %v1040 = vpop.f32.mrb[0].mxu0
    %1041 = vdwg.mxu0
    %1042 = vrot.lane.b32.xlu0 %v158, 112
    %v1043 = vpop.permute.xlu0 %1042
    %1044 = vrot.lane.b32.xlu0 %v158, 48
    %v1045 = vpop.permute.xlu0 %1044
    %v1046 = vsel %vm165, %v1043, 0
    %v1048 = vsel %vm165, %v1045, 0
    %1050 = vmatprep.subr.mxu0 0.0
    %1051 = vmatpush1.xpose.msra.mxu0 %v1048
    %1052 = vmatprep.subr.mxu0 0.0
    %1053 = vmatpush1.xpose.msra.mxu0 0.0
    %1054 = vmatprep.subr.mxu0 0.0
    %1055 = vmatpush1.xpose.msra.mxu0 0.0
    %1056 = vmatprep.subr.mxu0 0.0
    %1057 = vmatpush1.xpose.msra.mxu0 0.0
    %1058 = vmatprep.subr.mxu0 0.0
    %1059 = vmatpush1.xpose.msra.mxu0 0.0
    %1060 = vmatprep.subr.mxu0 0.0
    %1061 = vmatpush1.xpose.msra.mxu0 0.0
    %1062 = vmatprep.subr.mxu0 0.0
    %1063 = vmatpush1.xpose.msra.mxu0 0.0
    %1064 = vmatprep.subr.mxu0 0.0
    %1065 = vmatpush1.xpose.msra.mxu0 0.0
    %1066 = vmatprep.subr.mxu0 0.0
    %1067 = vmatpush1.xpose.msra.mxu0 0.0
    %1068 = vmatprep.subr.mxu0 0.0
    %1069 = vmatpush1.xpose.msra.mxu0 0.0
    %1070 = vmatprep.subr.mxu0 0.0
    %1071 = vmatpush1.xpose.msra.mxu0 0.0
    %1072 = vmatprep.subr.mxu0 0.0
    %1073 = vmatpush1.xpose.msra.mxu0 0.0
    %1074 = vmatprep.subr.mxu0 0.0
    %1075 = vmatpush1.xpose.msra.mxu0 0.0
    %1076 = vmatprep.subr.mxu0 0.0
    %1077 = vmatpush1.xpose.msra.mxu0 0.0
    %1078 = vmatprep.subr.mxu0 0.0
    %1079 = vmatpush1.xpose.msra.mxu0 0.0
    %1080 = vmatprep.subr.mxu0 0.0
    %1081 = vmatpush1.xpose.msra.mxu0 0.0
    %1082 = vmatprep.subr.mxu0 0.0
    %1083 = vmatpush1.xpose.msra.mxu0 0.0
    %1084 = vmatprep.subr.mxu0 0.0
    %1085 = vmatpush1.xpose.msra.mxu0 0.0
    %1086 = vmatprep.subr.mxu0 0.0
    %1087 = vmatpush1.xpose.msra.mxu0 0.0
    %1088 = vmatprep.subr.mxu0 0.0
    %1089 = vmatpush1.xpose.msra.mxu0 0.0
    %1090 = vmatprep.subr.mxu0 0.0
    %1091 = vmatpush1.xpose.msra.mxu0 0.0
    %1092 = vmatprep.subr.mxu0 0.0
    %1093 = vmatpush1.xpose.msra.mxu0 0.0
    %1094 = vmatprep.subr.mxu0 0.0
    %1095 = vmatpush1.xpose.msra.mxu0 0.0
    %1096 = vmatprep.subr.mxu0 0.0
    %1097 = vmatpush1.xpose.msra.mxu0 0.0
    %1098 = vmatprep.subr.mxu0 0.0
    %1099 = vmatpush1.xpose.msra.mxu0 0.0
    %1100 = vmatprep.subr.mxu0 0.0
    %1101 = vmatpush1.xpose.msra.mxu0 0.0
    %1102 = vmatprep.subr.mxu0 0.0
    %1103 = vmatpush1.xpose.msra.mxu0 0.0
    %1104 = vmatprep.subr.mxu0 0.0
    %1105 = vmatpush1.xpose.msra.mxu0 0.0
    %1106 = vmatprep.subr.mxu0 0.0
    %1107 = vmatpush1.xpose.msra.mxu0 0.0
    %1108 = vmatprep.subr.mxu0 0.0
    %1109 = vmatpush1.xpose.msra.mxu0 0.0
    %1110 = vmatprep.subr.mxu0 0.0
    %1111 = vmatpush1.xpose.msra.mxu0 0.0
    %1112 = vmatprep.subr.mxu0 0.0
    %1113 = vmatpush1.xpose.msra.mxu0 0.0
    %1114 = vmatprep.mubr.f32.mxu0 0.0
    %1115 = vmatmul.mubr.f32.gmra.mrb[0].mxu0 %v1046
    %v1116 = vpop.f32.mrb[0].mxu0
    %v1117 = vadd.f32 0.0, %v1116
    %v1118 = vpop.f32.mrb[0].mxu0
    %1119 = vdwg.mxu0
    %v1120 = vsel %vm471, %v883, -inf
    %1121 = vmax.xlane.f32.xlu0 %v1120
    %v1122 = vpop.xlane.xlu0 %1121
    %v1123 = vsel %vm471, %v961, -inf
    %1124 = vmax.xlane.f32.xlu0 %v1123
    %v1125 = vpop.xlane.xlu0 %1124
    %v1126 = vsel %vm471, %v1039, -inf
    %1127 = vmax.xlane.f32.xlu0 %v1126
    %v1128 = vpop.xlane.xlu0 %1127
    %v1129 = vsel %vm471, %v1117, -inf
    %1130 = vmax.xlane.f32.xlu0 %v1129
    %v1131 = vpop.xlane.xlu0 %1130
    %v1132 = vsub.f32 %v883, %v1122
    %v1133 = vsub.f32 %v961, %v1125
    %v1134 = vsub.f32 %v1039, %v1128
    %v1135 = vsub.f32 %v1117, %v1131
    %v1136 = vmul.f32 %v1132, 1.442695
    %v1137 = vpow.pop %v1136
    %v1138 = vmul.f32 %v1133, 1.442695
    %v1139 = vpow.pop %v1138
    %v1140 = vmul.f32 %v1134, 1.442695
    %v1141 = vpow.pop %v1140
    %v1142 = vmul.f32 %v1135, 1.442695
    %v1143 = vpow.pop %v1142
    %v1144 = vsel %vm471, %v1137, 0.0
    %1145 = vadd.xlane.f32.xlu0 %v1144
    %v1146 = vpop.xlane.xlu0 %1145
    %v1147 = vsel %vm471, %v1139, 0.0
    %1148 = vadd.xlane.f32.xlu0 %v1147
    %v1149 = vpop.xlane.xlu0 %1148
    %v1150 = vsel %vm471, %v1141, 0.0
    %1151 = vadd.xlane.f32.xlu0 %v1150
    %v1152 = vpop.xlane.xlu0 %1151
    %v1153 = vsel %vm471, %v1143, 0.0
    %1154 = vadd.xlane.f32.xlu0 %v1153
    %v1155 = vpop.xlane.xlu0 %1154
    %v1156 = vrcp.pop %v1146
    %v1157 = vmul.f32 %v1137, %v1156
    %v1158 = vrcp.pop %v1149
    %v1159 = vmul.f32 %v1139, %v1158
    %v1160 = vrcp.pop %v1152
    %v1161 = vmul.f32 %v1141, %v1160
    %v1162 = vrcp.pop %v1155
    %v1163 = vmul.f32 %v1143, %v1162
    %1165 = vrot.lane.b32.xlu0 %v142, 112
    %v1166 = vpop.permute.xlu0 %1165
    %v1169 = vsel %vm471, %v1157, 0
    %1171 = vmatprep.subr.mxu0 0.0
    %1172 = vmatpush1.msra.mxu0 %v1166
    %1173 = vmatprep.subr.mxu0 0.0
    %1174 = vmatpush1.msra.mxu0 0.0
    %1175 = vmatprep.subr.mxu0 0.0
    %1176 = vmatpush1.msra.mxu0 0.0
    %1177 = vmatprep.subr.mxu0 0.0
    %1178 = vmatpush1.msra.mxu0 0.0
    %1179 = vmatprep.subr.mxu0 0.0
    %1180 = vmatpush1.msra.mxu0 0.0
    %1181 = vmatprep.subr.mxu0 0.0
    %1182 = vmatpush1.msra.mxu0 0.0
    %1183 = vmatprep.subr.mxu0 0.0
    %1184 = vmatpush1.msra.mxu0 0.0
    %1185 = vmatprep.subr.mxu0 0.0
    %1186 = vmatpush1.msra.mxu0 0.0
    %1187 = vmatprep.subr.mxu0 0.0
    %1188 = vmatpush1.msra.mxu0 0.0
    %1189 = vmatprep.subr.mxu0 0.0
    %1190 = vmatpush1.msra.mxu0 0.0
    %1191 = vmatprep.subr.mxu0 0.0
    %1192 = vmatpush1.msra.mxu0 0.0
    %1193 = vmatprep.subr.mxu0 0.0
    %1194 = vmatpush1.msra.mxu0 0.0
    %1195 = vmatprep.subr.mxu0 0.0
    %1196 = vmatpush1.msra.mxu0 0.0
    %1197 = vmatprep.subr.mxu0 0.0
    %1198 = vmatpush1.msra.mxu0 0.0
    %1199 = vmatprep.subr.mxu0 0.0
    %1200 = vmatpush1.msra.mxu0 0.0
    %1201 = vmatprep.subr.mxu0 0.0
    %1202 = vmatpush1.msra.mxu0 0.0
    %1203 = vmatprep.subr.mxu0 0.0
    %1204 = vmatpush1.msra.mxu0 0.0
    %1205 = vmatprep.subr.mxu0 0.0
    %1206 = vmatpush1.msra.mxu0 0.0
    %1207 = vmatprep.subr.mxu0 0.0
    %1208 = vmatpush1.msra.mxu0 0.0
    %1209 = vmatprep.subr.mxu0 0.0
    %1210 = vmatpush1.msra.mxu0 0.0
    %1211 = vmatprep.subr.mxu0 0.0
    %1212 = vmatpush1.msra.mxu0 0.0
    %1213 = vmatprep.subr.mxu0 0.0
    %1214 = vmatpush1.msra.mxu0 0.0
    %1215 = vmatprep.subr.mxu0 0.0
    %1216 = vmatpush1.msra.mxu0 0.0
    %1217 = vmatprep.subr.mxu0 0.0
    %1218 = vmatpush1.msra.mxu0 0.0
    %1219 = vmatprep.subr.mxu0 0.0
    %1220 = vmatpush1.msra.mxu0 0.0
    %1221 = vmatprep.subr.mxu0 0.0
    %1222 = vmatpush1.msra.mxu0 0.0
    %1223 = vmatprep.subr.mxu0 0.0
    %1224 = vmatpush1.msra.mxu0 0.0
    %1225 = vmatprep.subr.mxu0 0.0
    %1226 = vmatpush1.msra.mxu0 0.0
    %1227 = vmatprep.subr.mxu0 0.0
    %1228 = vmatpush1.msra.mxu0 0.0
    %1229 = vmatprep.subr.mxu0 0.0
    %1230 = vmatpush1.msra.mxu0 0.0
    %1231 = vmatprep.subr.mxu0 0.0
    %1232 = vmatpush1.msra.mxu0 0.0
    %1233 = vmatprep.subr.mxu0 0.0
    %1234 = vmatpush1.msra.mxu0 0.0
    %1235 = vmatprep.mubr.f32.mxu0 0.0
    %1236 = vmatmul.mubr.f32.gmra.mrb[0].mxu0 %v1169
    %v1237 = vpop.f32.mrb[0].mxu0
    %v1238 = vadd.f32 0.0, %v1237
    %v1239 = vpop.f32.mrb[0].mxu0
    %1240 = vdwg.mxu0
    %1242 = vrot.lane.b32.xlu0 %v148, 112
    %v1243 = vpop.permute.xlu0 %1242
    %v1246 = vsel %vm471, %v1159, 0
    %1248 = vmatprep.subr.mxu0 0.0
    %1249 = vmatpush1.msra.mxu0 %v1243
    %1250 = vmatprep.subr.mxu0 0.0
    %1251 = vmatpush1.msra.mxu0 0.0
    %1252 = vmatprep.subr.mxu0 0.0
    %1253 = vmatpush1.msra.mxu0 0.0
    %1254 = vmatprep.subr.mxu0 0.0
    %1255 = vmatpush1.msra.mxu0 0.0
    %1256 = vmatprep.subr.mxu0 0.0
    %1257 = vmatpush1.msra.mxu0 0.0
    %1258 = vmatprep.subr.mxu0 0.0
    %1259 = vmatpush1.msra.mxu0 0.0
    %1260 = vmatprep.subr.mxu0 0.0
    %1261 = vmatpush1.msra.mxu0 0.0
    %1262 = vmatprep.subr.mxu0 0.0
    %1263 = vmatpush1.msra.mxu0 0.0
    %1264 = vmatprep.subr.mxu0 0.0
    %1265 = vmatpush1.msra.mxu0 0.0
    %1266 = vmatprep.subr.mxu0 0.0
    %1267 = vmatpush1.msra.mxu0 0.0
    %1268 = vmatprep.subr.mxu0 0.0
    %1269 = vmatpush1.msra.mxu0 0.0
    %1270 = vmatprep.subr.mxu0 0.0
    %1271 = vmatpush1.msra.mxu0 0.0
    %1272 = vmatprep.subr.mxu0 0.0
    %1273 = vmatpush1.msra.mxu0 0.0
    %1274 = vmatprep.subr.mxu0 0.0
    %1275 = vmatpush1.msra.mxu0 0.0
    %1276 = vmatprep.subr.mxu0 0.0
    %1277 = vmatpush1.msra.mxu0 0.0
    %1278 = vmatprep.subr.mxu0 0.0
    %1279 = vmatpush1.msra.mxu0 0.0
    %1280 = vmatprep.subr.mxu0 0.0
    %1281 = vmatpush1.msra.mxu0 0.0
    %1282 = vmatprep.subr.mxu0 0.0
    %1283 = vmatpush1.msra.mxu0 0.0
    %1284 = vmatprep.subr.mxu0 0.0
    %1285 = vmatpush1.msra.mxu0 0.0
    %1286 = vmatprep.subr.mxu0 0.0
    %1287 = vmatpush1.msra.mxu0 0.0
    %1288 = vmatprep.subr.mxu0 0.0
    %1289 = vmatpush1.msra.mxu0 0.0
    %1290 = vmatprep.subr.mxu0 0.0
    %1291 = vmatpush1.msra.mxu0 0.0
    %1292 = vmatprep.subr.mxu0 0.0
    %1293 = vmatpush1.msra.mxu0 0.0
    %1294 = vmatprep.subr.mxu0 0.0
    %1295 = vmatpush1.msra.mxu0 0.0
    %1296 = vmatprep.subr.mxu0 0.0
    %1297 = vmatpush1.msra.mxu0 0.0
    %1298 = vmatprep.subr.mxu0 0.0
    %1299 = vmatpush1.msra.mxu0 0.0
    %1300 = vmatprep.subr.mxu0 0.0
    %1301 = vmatpush1.msra.mxu0 0.0
    %1302 = vmatprep.subr.mxu0 0.0
    %1303 = vmatpush1.msra.mxu0 0.0
    %1304 = vmatprep.subr.mxu0 0.0
    %1305 = vmatpush1.msra.mxu0 0.0
    %1306 = vmatprep.subr.mxu0 0.0
    %1307 = vmatpush1.msra.mxu0 0.0
    %1308 = vmatprep.subr.mxu0 0.0
    %1309 = vmatpush1.msra.mxu0 0.0
    %1310 = vmatprep.subr.mxu0 0.0
    %1311 = vmatpush1.msra.mxu0 0.0
    %1312 = vmatprep.mubr.f32.mxu0 0.0
    %1313 = vmatmul.mubr.f32.gmra.mrb[0].mxu0 %v1246
    %v1314 = vpop.f32.mrb[0].mxu0
    %v1315 = vadd.f32 0.0, %v1314
    %v1316 = vpop.f32.mrb[0].mxu0
    %1317 = vdwg.mxu0
    %1319 = vrot.lane.b32.xlu0 %v154, 112
    %v1320 = vpop.permute.xlu0 %1319
    %v1323 = vsel %vm471, %v1161, 0
    %1325 = vmatprep.subr.mxu0 0.0
    %1326 = vmatpush1.msra.mxu0 %v1320
    %1327 = vmatprep.subr.mxu0 0.0
    %1328 = vmatpush1.msra.mxu0 0.0
    %1329 = vmatprep.subr.mxu0 0.0
    %1330 = vmatpush1.msra.mxu0 0.0
    %1331 = vmatprep.subr.mxu0 0.0
    %1332 = vmatpush1.msra.mxu0 0.0
    %1333 = vmatprep.subr.mxu0 0.0
    %1334 = vmatpush1.msra.mxu0 0.0
    %1335 = vmatprep.subr.mxu0 0.0
    %1336 = vmatpush1.msra.mxu0 0.0
    %1337 = vmatprep.subr.mxu0 0.0
    %1338 = vmatpush1.msra.mxu0 0.0
    %1339 = vmatprep.subr.mxu0 0.0
    %1340 = vmatpush1.msra.mxu0 0.0
    %1341 = vmatprep.subr.mxu0 0.0
    %1342 = vmatpush1.msra.mxu0 0.0
    %1343 = vmatprep.subr.mxu0 0.0
    %1344 = vmatpush1.msra.mxu0 0.0
    %1345 = vmatprep.subr.mxu0 0.0
    %1346 = vmatpush1.msra.mxu0 0.0
    %1347 = vmatprep.subr.mxu0 0.0
    %1348 = vmatpush1.msra.mxu0 0.0
    %1349 = vmatprep.subr.mxu0 0.0
    %1350 = vmatpush1.msra.mxu0 0.0
    %1351 = vmatprep.subr.mxu0 0.0
    %1352 = vmatpush1.msra.mxu0 0.0
    %1353 = vmatprep.subr.mxu0 0.0
    %1354 = vmatpush1.msra.mxu0 0.0
    %1355 = vmatprep.subr.mxu0 0.0
    %1356 = vmatpush1.msra.mxu0 0.0
    %1357 = vmatprep.subr.mxu0 0.0
    %1358 = vmatpush1.msra.mxu0 0.0
    %1359 = vmatprep.subr.mxu0 0.0
    %1360 = vmatpush1.msra.mxu0 0.0
    %1361 = vmatprep.subr.mxu0 0.0
    %1362 = vmatpush1.msra.mxu0 0.0
    %1363 = vmatprep.subr.mxu0 0.0
    %1364 = vmatpush1.msra.mxu0 0.0
    %1365 = vmatprep.subr.mxu0 0.0
    %1366 = vmatpush1.msra.mxu0 0.0
    %1367 = vmatprep.subr.mxu0 0.0
    %1368 = vmatpush1.msra.mxu0 0.0
    %1369 = vmatprep.subr.mxu0 0.0
    %1370 = vmatpush1.msra.mxu0 0.0
    %1371 = vmatprep.subr.mxu0 0.0
    %1372 = vmatpush1.msra.mxu0 0.0
    %1373 = vmatprep.subr.mxu0 0.0
    %1374 = vmatpush1.msra.mxu0 0.0
    %1375 = vmatprep.subr.mxu0 0.0
    %1376 = vmatpush1.msra.mxu0 0.0
    %1377 = vmatprep.subr.mxu0 0.0
    %1378 = vmatpush1.msra.mxu0 0.0
    %1379 = vmatprep.subr.mxu0 0.0
    %1380 = vmatpush1.msra.mxu0 0.0
    %1381 = vmatprep.subr.mxu0 0.0
    %1382 = vmatpush1.msra.mxu0 0.0
    %1383 = vmatprep.subr.mxu0 0.0
    %1384 = vmatpush1.msra.mxu0 0.0
    %1385 = vmatprep.subr.mxu0 0.0
    %1386 = vmatpush1.msra.mxu0 0.0
    %1387 = vmatprep.subr.mxu0 0.0
    %1388 = vmatpush1.msra.mxu0 0.0
    %1389 = vmatprep.mubr.f32.mxu0 0.0
    %1390 = vmatmul.mubr.f32.gmra.mrb[0].mxu0 %v1323
    %v1391 = vpop.f32.mrb[0].mxu0
    %v1392 = vadd.f32 0.0, %v1391
    %v1393 = vpop.f32.mrb[0].mxu0
    %1394 = vdwg.mxu0
    %1396 = vrot.lane.b32.xlu0 %v160, 112
    %v1397 = vpop.permute.xlu0 %1396
    %v1400 = vsel %vm471, %v1163, 0
    %1402 = vmatprep.subr.mxu0 0.0
    %1403 = vmatpush1.msra.mxu0 %v1397
    %1404 = vmatprep.subr.mxu0 0.0
    %1405 = vmatpush1.msra.mxu0 0.0
    %1406 = vmatprep.subr.mxu0 0.0
    %1407 = vmatpush1.msra.mxu0 0.0
    %1408 = vmatprep.subr.mxu0 0.0
    %1409 = vmatpush1.msra.mxu0 0.0
    %1410 = vmatprep.subr.mxu0 0.0
    %1411 = vmatpush1.msra.mxu0 0.0
    %1412 = vmatprep.subr.mxu0 0.0
    %1413 = vmatpush1.msra.mxu0 0.0
    %1414 = vmatprep.subr.mxu0 0.0
    %1415 = vmatpush1.msra.mxu0 0.0
    %1416 = vmatprep.subr.mxu0 0.0
    %1417 = vmatpush1.msra.mxu0 0.0
    %1418 = vmatprep.subr.mxu0 0.0
    %1419 = vmatpush1.msra.mxu0 0.0
    %1420 = vmatprep.subr.mxu0 0.0
    %1421 = vmatpush1.msra.mxu0 0.0
    %1422 = vmatprep.subr.mxu0 0.0
    %1423 = vmatpush1.msra.mxu0 0.0
    %1424 = vmatprep.subr.mxu0 0.0
    %1425 = vmatpush1.msra.mxu0 0.0
    %1426 = vmatprep.subr.mxu0 0.0
    %1427 = vmatpush1.msra.mxu0 0.0
    %1428 = vmatprep.subr.mxu0 0.0
    %1429 = vmatpush1.msra.mxu0 0.0
    %1430 = vmatprep.subr.mxu0 0.0
    %1431 = vmatpush1.msra.mxu0 0.0
    %1432 = vmatprep.subr.mxu0 0.0
    %1433 = vmatpush1.msra.mxu0 0.0
    %1434 = vmatprep.subr.mxu0 0.0
    %1435 = vmatpush1.msra.mxu0 0.0
    %1436 = vmatprep.subr.mxu0 0.0
    %1437 = vmatpush1.msra.mxu0 0.0
    %1438 = vmatprep.subr.mxu0 0.0
    %1439 = vmatpush1.msra.mxu0 0.0
    %1440 = vmatprep.subr.mxu0 0.0
    %1441 = vmatpush1.msra.mxu0 0.0
    %1442 = vmatprep.subr.mxu0 0.0
    %1443 = vmatpush1.msra.mxu0 0.0
    %1444 = vmatprep.subr.mxu0 0.0
    %1445 = vmatpush1.msra.mxu0 0.0
    %1446 = vmatprep.subr.mxu0 0.0
    %1447 = vmatpush1.msra.mxu0 0.0
    %1448 = vmatprep.subr.mxu0 0.0
    %1449 = vmatpush1.msra.mxu0 0.0
    %1450 = vmatprep.subr.mxu0 0.0
    %1451 = vmatpush1.msra.mxu0 0.0
    %1452 = vmatprep.subr.mxu0 0.0
    %1453 = vmatpush1.msra.mxu0 0.0
    %1454 = vmatprep.subr.mxu0 0.0
    %1455 = vmatpush1.msra.mxu0 0.0
    %1456 = vmatprep.subr.mxu0 0.0
    %1457 = vmatpush1.msra.mxu0 0.0
    %1458 = vmatprep.subr.mxu0 0.0
    %1459 = vmatpush1.msra.mxu0 0.0
    %1460 = vmatprep.subr.mxu0 0.0
    %1461 = vmatpush1.msra.mxu0 0.0
    %1462 = vmatprep.subr.mxu0 0.0
    %1463 = vmatpush1.msra.mxu0 0.0
    %1464 = vmatprep.subr.mxu0 0.0
    %1465 = vmatpush1.msra.mxu0 0.0
    %1466 = vmatprep.mubr.f32.mxu0 0.0
    %1467 = vmatmul.mubr.f32.gmra.mrb[0].mxu0 %v1400
    %v1468 = vpop.f32.mrb[0].mxu0
    %v1469 = vadd.f32 0.0, %v1468
    %v1470 = vpop.f32.mrb[0].mxu0
    %1471 = vdwg.mxu0
    %v1473 = vsel %vm165, %v1238, 0
    %v1476 = vsel %vm165, %v1315, 0
    %v1479 = vsel %vm165, %v1392, 0
    %v1482 = vsel %vm165, %v1469, 0
    %1484 = vmatprep.subr.mxu0 0.0
    %1485 = vmatpush1.msra.mxu0 %v53
    %1486 = vmatprep.subr.mxu0 0.0
    %1487 = vmatpush1.msra.mxu0 %v54
    %1488 = vmatprep.subr.mxu0 0.0
    %1489 = vmatpush1.msra.mxu0 0.0
    %1490 = vmatprep.subr.mxu0 0.0
    %1491 = vmatpush1.msra.mxu0 0.0
    %1492 = vmatprep.subr.mxu0 0.0
    %1493 = vmatpush1.msra.mxu0 0.0
    %1494 = vmatprep.subr.mxu0 0.0
    %1495 = vmatpush1.msra.mxu0 0.0
    %1496 = vmatprep.subr.mxu0 0.0
    %1497 = vmatpush1.msra.mxu0 0.0
    %1498 = vmatprep.subr.mxu0 0.0
    %1499 = vmatpush1.msra.mxu0 0.0
    %1500 = vmatprep.subr.mxu0 0.0
    %1501 = vmatpush1.msra.mxu0 0.0
    %1502 = vmatprep.subr.mxu0 0.0
    %1503 = vmatpush1.msra.mxu0 0.0
    %1504 = vmatprep.subr.mxu0 0.0
    %1505 = vmatpush1.msra.mxu0 0.0
    %1506 = vmatprep.subr.mxu0 0.0
    %1507 = vmatpush1.msra.mxu0 0.0
    %1508 = vmatprep.subr.mxu0 0.0
    %1509 = vmatpush1.msra.mxu0 0.0
    %1510 = vmatprep.subr.mxu0 0.0
    %1511 = vmatpush1.msra.mxu0 0.0
    %1512 = vmatprep.subr.mxu0 0.0
    %1513 = vmatpush1.msra.mxu0 0.0
    %1514 = vmatprep.subr.mxu0 0.0
    %1515 = vmatpush1.msra.mxu0 0.0
    %1516 = vmatprep.subr.mxu0 0.0
    %1517 = vmatpush1.msra.mxu0 0.0
    %1518 = vmatprep.subr.mxu0 0.0
    %1519 = vmatpush1.msra.mxu0 0.0
    %1520 = vmatprep.subr.mxu0 0.0
    %1521 = vmatpush1.msra.mxu0 0.0
    %1522 = vmatprep.subr.mxu0 0.0
    %1523 = vmatpush1.msra.mxu0 0.0
    %1524 = vmatprep.subr.mxu0 0.0
    %1525 = vmatpush1.msra.mxu0 0.0
    %1526 = vmatprep.subr.mxu0 0.0
    %1527 = vmatpush1.msra.mxu0 0.0
    %1528 = vmatprep.subr.mxu0 0.0
    %1529 = vmatpush1.msra.mxu0 0.0
    %1530 = vmatprep.subr.mxu0 0.0
    %1531 = vmatpush1.msra.mxu0 0.0
    %1532 = vmatprep.subr.mxu0 0.0
    %1533 = vmatpush1.msra.mxu0 0.0
    %1534 = vmatprep.subr.mxu0 0.0
    %1535 = vmatpush1.msra.mxu0 0.0
    %1536 = vmatprep.subr.mxu0 0.0
    %1537 = vmatpush1.msra.mxu0 0.0
    %1538 = vmatprep.subr.mxu0 0.0
    %1539 = vmatpush1.msra.mxu0 0.0
    %1540 = vmatprep.subr.mxu0 0.0
    %1541 = vmatpush1.msra.mxu0 0.0
    %1542 = vmatprep.subr.mxu0 0.0
    %1543 = vmatpush1.msra.mxu0 0.0
    %1544 = vmatprep.subr.mxu0 0.0
    %1545 = vmatpush1.msra.mxu0 0.0
    %1546 = vmatprep.subr.mxu0 0.0
    %1547 = vmatpush1.msra.mxu0 0.0
    %1548 = vmatprep.mubr.f32.mxu0 0.0
    %1549 = vmatmul.mubr.f32.gmra.mrb[0].mxu0 %v1473
    %v1550 = vpop.f32.mrb[0].mxu0
    %v1551 = vadd.f32 0.0, %v1550
    %v1552 = vpop.f32.mrb[0].mxu0
    %1553 = vmatprep.mubr.f32.mxu0 0.0
    %1554 = vmatmul.mubr.f32.gmra.mrb[0].mxu0 %v1476
    %v1555 = vpop.f32.mrb[0].mxu0
    %v1556 = vadd.f32 0.0, %v1555
    %v1557 = vpop.f32.mrb[0].mxu0
    %1558 = vmatprep.mubr.f32.mxu0 0.0
    %1559 = vmatmul.mubr.f32.gmra.mrb[0].mxu0 %v1479
    %v1560 = vpop.f32.mrb[0].mxu0
    %v1561 = vadd.f32 0.0, %v1560
    %v1562 = vpop.f32.mrb[0].mxu0
    %1563 = vmatprep.mubr.f32.mxu0 0.0
    %1564 = vmatmul.mubr.f32.gmra.mrb[0].mxu0 %v1482
    %v1565 = vpop.f32.mrb[0].mxu0
    %v1566 = vadd.f32 0.0, %v1565
    %v1567 = vpop.f32.mrb[0].mxu0
    %1568 = vdwg.mxu0
    %v1570 = vsel %vm165, %v586, 0
    %v1573 = vsel %vm165, %v659, 0
    %v1576 = vsel %vm165, %v732, 0
    %v1579 = vsel %vm165, %v805, 0
    %1581 = vmatprep.subr.mxu0 0.0
    %1582 = vmatpush1.msra.mxu0 %v51
    %1583 = vmatprep.subr.mxu0 0.0
    %1584 = vmatpush1.msra.mxu0 %v52
    %1585 = vmatprep.subr.mxu0 0.0
    %1586 = vmatpush1.msra.mxu0 0.0
    %1587 = vmatprep.subr.mxu0 0.0
    %1588 = vmatpush1.msra.mxu0 0.0
    %1589 = vmatprep.subr.mxu0 0.0
    %1590 = vmatpush1.msra.mxu0 0.0
    %1591 = vmatprep.subr.mxu0 0.0
    %1592 = vmatpush1.msra.mxu0 0.0
    %1593 = vmatprep.subr.mxu0 0.0
    %1594 = vmatpush1.msra.mxu0 0.0
    %1595 = vmatprep.subr.mxu0 0.0
    %1596 = vmatpush1.msra.mxu0 0.0
    %1597 = vmatprep.subr.mxu0 0.0
    %1598 = vmatpush1.msra.mxu0 0.0
    %1599 = vmatprep.subr.mxu0 0.0
    %1600 = vmatpush1.msra.mxu0 0.0
    %1601 = vmatprep.subr.mxu0 0.0
    %1602 = vmatpush1.msra.mxu0 0.0
    %1603 = vmatprep.subr.mxu0 0.0
    %1604 = vmatpush1.msra.mxu0 0.0
    %1605 = vmatprep.subr.mxu0 0.0
    %1606 = vmatpush1.msra.mxu0 0.0
    %1607 = vmatprep.subr.mxu0 0.0
    %1608 = vmatpush1.msra.mxu0 0.0
    %1609 = vmatprep.subr.mxu0 0.0
    %1610 = vmatpush1.msra.mxu0 0.0
    %1611 = vmatprep.subr.mxu0 0.0
    %1612 = vmatpush1.msra.mxu0 0.0
    %1613 = vmatprep.subr.mxu0 0.0
    %1614 = vmatpush1.msra.mxu0 0.0
    %1615 = vmatprep.subr.mxu0 0.0
    %1616 = vmatpush1.msra.mxu0 0.0
    %1617 = vmatprep.subr.mxu0 0.0
    %1618 = vmatpush1.msra.mxu0 0.0
    %1619 = vmatprep.subr.mxu0 0.0
    %1620 = vmatpush1.msra.mxu0 0.0
    %1621 = vmatprep.subr.mxu0 0.0
    %1622 = vmatpush1.msra.mxu0 0.0
    %1623 = vmatprep.subr.mxu0 0.0
    %1624 = vmatpush1.msra.mxu0 0.0
    %1625 = vmatprep.subr.mxu0 0.0
    %1626 = vmatpush1.msra.mxu0 0.0
    %1627 = vmatprep.subr.mxu0 0.0
    %1628 = vmatpush1.msra.mxu0 0.0
    %1629 = vmatprep.subr.mxu0 0.0
    %1630 = vmatpush1.msra.mxu0 0.0
    %1631 = vmatprep.subr.mxu0 0.0
    %1632 = vmatpush1.msra.mxu0 0.0
    %1633 = vmatprep.subr.mxu0 0.0
    %1634 = vmatpush1.msra.mxu0 0.0
    %1635 = vmatprep.subr.mxu0 0.0
    %1636 = vmatpush1.msra.mxu0 0.0
    %1637 = vmatprep.subr.mxu0 0.0
    %1638 = vmatpush1.msra.mxu0 0.0
    %1639 = vmatprep.subr.mxu0 0.0
    %1640 = vmatpush1.msra.mxu0 0.0
    %1641 = vmatprep.subr.mxu0 0.0
    %1642 = vmatpush1.msra.mxu0 0.0
    %1643 = vmatprep.subr.mxu0 0.0
    %1644 = vmatpush1.msra.mxu0 0.0
    %1645 = vmatprep.mubr.f32.mxu0 0.0
    %1646 = vmatmul.mubr.f32.gmra.mrb[0].mxu0 %v1570
    %v1647 = vpop.f32.mrb[0].mxu0
    %v1648 = vadd.f32 %v1551, %v1647
    %v1649 = vpop.f32.mrb[0].mxu0
    %1650 = vmatprep.mubr.f32.mxu0 0.0
    %1651 = vmatmul.mubr.f32.gmra.mrb[0].mxu0 %v1573
    %v1652 = vpop.f32.mrb[0].mxu0
    %v1653 = vadd.f32 %v1556, %v1652
    %v1654 = vpop.f32.mrb[0].mxu0
    %1655 = vmatprep.mubr.f32.mxu0 0.0
    %1656 = vmatmul.mubr.f32.gmra.mrb[0].mxu0 %v1576
    %v1657 = vpop.f32.mrb[0].mxu0
    %v1658 = vadd.f32 %v1561, %v1657
    %v1659 = vpop.f32.mrb[0].mxu0
    %1660 = vmatprep.mubr.f32.mxu0 0.0
    %1661 = vmatmul.mubr.f32.gmra.mrb[0].mxu0 %v1579
    %v1662 = vpop.f32.mrb[0].mxu0
    %v1663 = vadd.f32 %v1566, %v1662
    %v1664 = vpop.f32.mrb[0].mxu0
    %1665 = vdwg.mxu0
    %1666 = vrot.lane.b32.xlu0 %v140, 96
    %v1667 = vpop.permute.xlu0 %1666
    %1668 = vrot.lane.b32.xlu0 %v140, 32
    %v1669 = vpop.permute.xlu0 %1668
    %v1670 = vsel %vm165, %v1667, 0
    %v1672 = vsel %vm165, %v1669, 0
    %1674 = vmatprep.subr.mxu0 0.0
    %1675 = vmatpush1.xpose.msra.mxu0 %v1672
    %1676 = vmatprep.subr.mxu0 0.0
    %1677 = vmatpush1.xpose.msra.mxu0 0.0
    %1678 = vmatprep.subr.mxu0 0.0
    %1679 = vmatpush1.xpose.msra.mxu0 0.0
    %1680 = vmatprep.subr.mxu0 0.0
    %1681 = vmatpush1.xpose.msra.mxu0 0.0
    %1682 = vmatprep.subr.mxu0 0.0
    %1683 = vmatpush1.xpose.msra.mxu0 0.0
    %1684 = vmatprep.subr.mxu0 0.0
    %1685 = vmatpush1.xpose.msra.mxu0 0.0
    %1686 = vmatprep.subr.mxu0 0.0
    %1687 = vmatpush1.xpose.msra.mxu0 0.0
    %1688 = vmatprep.subr.mxu0 0.0
    %1689 = vmatpush1.xpose.msra.mxu0 0.0
    %1690 = vmatprep.subr.mxu0 0.0
    %1691 = vmatpush1.xpose.msra.mxu0 0.0
    %1692 = vmatprep.subr.mxu0 0.0
    %1693 = vmatpush1.xpose.msra.mxu0 0.0
    %1694 = vmatprep.subr.mxu0 0.0
    %1695 = vmatpush1.xpose.msra.mxu0 0.0
    %1696 = vmatprep.subr.mxu0 0.0
    %1697 = vmatpush1.xpose.msra.mxu0 0.0
    %1698 = vmatprep.subr.mxu0 0.0
    %1699 = vmatpush1.xpose.msra.mxu0 0.0
    %1700 = vmatprep.subr.mxu0 0.0
    %1701 = vmatpush1.xpose.msra.mxu0 0.0
    %1702 = vmatprep.subr.mxu0 0.0
    %1703 = vmatpush1.xpose.msra.mxu0 0.0
    %1704 = vmatprep.subr.mxu0 0.0
    %1705 = vmatpush1.xpose.msra.mxu0 0.0
    %1706 = vmatprep.subr.mxu0 0.0
    %1707 = vmatpush1.xpose.msra.mxu0 0.0
    %1708 = vmatprep.subr.mxu0 0.0
    %1709 = vmatpush1.xpose.msra.mxu0 0.0
    %1710 = vmatprep.subr.mxu0 0.0
    %1711 = vmatpush1.xpose.msra.mxu0 0.0
    %1712 = vmatprep.subr.mxu0 0.0
    %1713 = vmatpush1.xpose.msra.mxu0 0.0
    %1714 = vmatprep.subr.mxu0 0.0
    %1715 = vmatpush1.xpose.msra.mxu0 0.0
    %1716 = vmatprep.subr.mxu0 0.0
    %1717 = vmatpush1.xpose.msra.mxu0 0.0
    %1718 = vmatprep.subr.mxu0 0.0
    %1719 = vmatpush1.xpose.msra.mxu0 0.0
    %1720 = vmatprep.subr.mxu0 0.0
    %1721 = vmatpush1.xpose.msra.mxu0 0.0
    %1722 = vmatprep.subr.mxu0 0.0
    %1723 = vmatpush1.xpose.msra.mxu0 0.0
    %1724 = vmatprep.subr.mxu0 0.0
    %1725 = vmatpush1.xpose.msra.mxu0 0.0
    %1726 = vmatprep.subr.mxu0 0.0
    %1727 = vmatpush1.xpose.msra.mxu0 0.0
    %1728 = vmatprep.subr.mxu0 0.0
    %1729 = vmatpush1.xpose.msra.mxu0 0.0
    %1730 = vmatprep.subr.mxu0 0.0
    %1731 = vmatpush1.xpose.msra.mxu0 0.0
    %1732 = vmatprep.subr.mxu0 0.0
    %1733 = vmatpush1.xpose.msra.mxu0 0.0
    %1734 = vmatprep.subr.mxu0 0.0
    %1735 = vmatpush1.xpose.msra.mxu0 0.0
    %1736 = vmatprep.subr.mxu0 0.0
    %1737 = vmatpush1.xpose.msra.mxu0 0.0
    %1738 = vmatprep.mubr.f32.mxu0 0.0
    %1739 = vmatmul.mubr.f32.gmra.mrb[0].mxu0 %v1670
    %v1740 = vpop.f32.mrb[0].mxu0
    %v1741 = vadd.f32 0.0, %v1740
    %v1742 = vpop.f32.mrb[0].mxu0
    %1743 = vdwg.mxu0
    %1744 = vrot.lane.b32.xlu0 %v146, 96
    %v1745 = vpop.permute.xlu0 %1744
    %1746 = vrot.lane.b32.xlu0 %v146, 32
    %v1747 = vpop.permute.xlu0 %1746
    %v1748 = vsel %vm165, %v1745, 0
    %v1750 = vsel %vm165, %v1747, 0
    %1752 = vmatprep.subr.mxu0 0.0
    %1753 = vmatpush1.xpose.msra.mxu0 %v1750
    %1754 = vmatprep.subr.mxu0 0.0
    %1755 = vmatpush1.xpose.msra.mxu0 0.0
    %1756 = vmatprep.subr.mxu0 0.0
    %1757 = vmatpush1.xpose.msra.mxu0 0.0
    %1758 = vmatprep.subr.mxu0 0.0
    %1759 = vmatpush1.xpose.msra.mxu0 0.0
    %1760 = vmatprep.subr.mxu0 0.0
    %1761 = vmatpush1.xpose.msra.mxu0 0.0
    %1762 = vmatprep.subr.mxu0 0.0
    %1763 = vmatpush1.xpose.msra.mxu0 0.0
    %1764 = vmatprep.subr.mxu0 0.0
    %1765 = vmatpush1.xpose.msra.mxu0 0.0
    %1766 = vmatprep.subr.mxu0 0.0
    %1767 = vmatpush1.xpose.msra.mxu0 0.0
    %1768 = vmatprep.subr.mxu0 0.0
    %1769 = vmatpush1.xpose.msra.mxu0 0.0
    %1770 = vmatprep.subr.mxu0 0.0
    %1771 = vmatpush1.xpose.msra.mxu0 0.0
    %1772 = vmatprep.subr.mxu0 0.0
    %1773 = vmatpush1.xpose.msra.mxu0 0.0
    %1774 = vmatprep.subr.mxu0 0.0
    %1775 = vmatpush1.xpose.msra.mxu0 0.0
    %1776 = vmatprep.subr.mxu0 0.0
    %1777 = vmatpush1.xpose.msra.mxu0 0.0
    %1778 = vmatprep.subr.mxu0 0.0
    %1779 = vmatpush1.xpose.msra.mxu0 0.0
    %1780 = vmatprep.subr.mxu0 0.0
    %1781 = vmatpush1.xpose.msra.mxu0 0.0
    %1782 = vmatprep.subr.mxu0 0.0
    %1783 = vmatpush1.xpose.msra.mxu0 0.0
    %1784 = vmatprep.subr.mxu0 0.0
    %1785 = vmatpush1.xpose.msra.mxu0 0.0
    %1786 = vmatprep.subr.mxu0 0.0
    %1787 = vmatpush1.xpose.msra.mxu0 0.0
    %1788 = vmatprep.subr.mxu0 0.0
    %1789 = vmatpush1.xpose.msra.mxu0 0.0
    %1790 = vmatprep.subr.mxu0 0.0
    %1791 = vmatpush1.xpose.msra.mxu0 0.0
    %1792 = vmatprep.subr.mxu0 0.0
    %1793 = vmatpush1.xpose.msra.mxu0 0.0
    %1794 = vmatprep.subr.mxu0 0.0
    %1795 = vmatpush1.xpose.msra.mxu0 0.0
    %1796 = vmatprep.subr.mxu0 0.0
    %1797 = vmatpush1.xpose.msra.mxu0 0.0
    %1798 = vmatprep.subr.mxu0 0.0
    %1799 = vmatpush1.xpose.msra.mxu0 0.0
    %1800 = vmatprep.subr.mxu0 0.0
    %1801 = vmatpush1.xpose.msra.mxu0 0.0
    %1802 = vmatprep.subr.mxu0 0.0
    %1803 = vmatpush1.xpose.msra.mxu0 0.0
    %1804 = vmatprep.subr.mxu0 0.0
    %1805 = vmatpush1.xpose.msra.mxu0 0.0
    %1806 = vmatprep.subr.mxu0 0.0
    %1807 = vmatpush1.xpose.msra.mxu0 0.0
    %1808 = vmatprep.subr.mxu0 0.0
    %1809 = vmatpush1.xpose.msra.mxu0 0.0
    %1810 = vmatprep.subr.mxu0 0.0
    %1811 = vmatpush1.xpose.msra.mxu0 0.0
    %1812 = vmatprep.subr.mxu0 0.0
    %1813 = vmatpush1.xpose.msra.mxu0 0.0
    %1814 = vmatprep.subr.mxu0 0.0
    %1815 = vmatpush1.xpose.msra.mxu0 0.0
    %1816 = vmatprep.mubr.f32.mxu0 0.0
    %1817 = vmatmul.mubr.f32.gmra.mrb[0].mxu0 %v1748
    %v1818 = vpop.f32.mrb[0].mxu0
    %v1819 = vadd.f32 0.0, %v1818
    %v1820 = vpop.f32.mrb[0].mxu0
    %1821 = vdwg.mxu0
    %1822 = vrot.lane.b32.xlu0 %v152, 96
    %v1823 = vpop.permute.xlu0 %1822
    %1824 = vrot.lane.b32.xlu0 %v152, 32
    %v1825 = vpop.permute.xlu0 %1824
    %v1826 = vsel %vm165, %v1823, 0
    %v1828 = vsel %vm165, %v1825, 0
    %1830 = vmatprep.subr.mxu0 0.0
    %1831 = vmatpush1.xpose.msra.mxu0 %v1828
    %1832 = vmatprep.subr.mxu0 0.0
    %1833 = vmatpush1.xpose.msra.mxu0 0.0
    %1834 = vmatprep.subr.mxu0 0.0
    %1835 = vmatpush1.xpose.msra.mxu0 0.0
    %1836 = vmatprep.subr.mxu0 0.0
    %1837 = vmatpush1.xpose.msra.mxu0 0.0
    %1838 = vmatprep.subr.mxu0 0.0
    %1839 = vmatpush1.xpose.msra.mxu0 0.0
    %1840 = vmatprep.subr.mxu0 0.0
    %1841 = vmatpush1.xpose.msra.mxu0 0.0
    %1842 = vmatprep.subr.mxu0 0.0
    %1843 = vmatpush1.xpose.msra.mxu0 0.0
    %1844 = vmatprep.subr.mxu0 0.0
    %1845 = vmatpush1.xpose.msra.mxu0 0.0
    %1846 = vmatprep.subr.mxu0 0.0
    %1847 = vmatpush1.xpose.msra.mxu0 0.0
    %1848 = vmatprep.subr.mxu0 0.0
    %1849 = vmatpush1.xpose.msra.mxu0 0.0
    %1850 = vmatprep.subr.mxu0 0.0
    %1851 = vmatpush1.xpose.msra.mxu0 0.0
    %1852 = vmatprep.subr.mxu0 0.0
    %1853 = vmatpush1.xpose.msra.mxu0 0.0
    %1854 = vmatprep.subr.mxu0 0.0
    %1855 = vmatpush1.xpose.msra.mxu0 0.0
    %1856 = vmatprep.subr.mxu0 0.0
    %1857 = vmatpush1.xpose.msra.mxu0 0.0
    %1858 = vmatprep.subr.mxu0 0.0
    %1859 = vmatpush1.xpose.msra.mxu0 0.0
    %1860 = vmatprep.subr.mxu0 0.0
    %1861 = vmatpush1.xpose.msra.mxu0 0.0
    %1862 = vmatprep.subr.mxu0 0.0
    %1863 = vmatpush1.xpose.msra.mxu0 0.0
    %1864 = vmatprep.subr.mxu0 0.0
    %1865 = vmatpush1.xpose.msra.mxu0 0.0
    %1866 = vmatprep.subr.mxu0 0.0
    %1867 = vmatpush1.xpose.msra.mxu0 0.0
    %1868 = vmatprep.subr.mxu0 0.0
    %1869 = vmatpush1.xpose.msra.mxu0 0.0
    %1870 = vmatprep.subr.mxu0 0.0
    %1871 = vmatpush1.xpose.msra.mxu0 0.0
    %1872 = vmatprep.subr.mxu0 0.0
    %1873 = vmatpush1.xpose.msra.mxu0 0.0
    %1874 = vmatprep.subr.mxu0 0.0
    %1875 = vmatpush1.xpose.msra.mxu0 0.0
    %1876 = vmatprep.subr.mxu0 0.0
    %1877 = vmatpush1.xpose.msra.mxu0 0.0
    %1878 = vmatprep.subr.mxu0 0.0
    %1879 = vmatpush1.xpose.msra.mxu0 0.0
    %1880 = vmatprep.subr.mxu0 0.0
    %1881 = vmatpush1.xpose.msra.mxu0 0.0
    %1882 = vmatprep.subr.mxu0 0.0
    %1883 = vmatpush1.xpose.msra.mxu0 0.0
    %1884 = vmatprep.subr.mxu0 0.0
    %1885 = vmatpush1.xpose.msra.mxu0 0.0
    %1886 = vmatprep.subr.mxu0 0.0
    %1887 = vmatpush1.xpose.msra.mxu0 0.0
    %1888 = vmatprep.subr.mxu0 0.0
    %1889 = vmatpush1.xpose.msra.mxu0 0.0
    %1890 = vmatprep.subr.mxu0 0.0
    %1891 = vmatpush1.xpose.msra.mxu0 0.0
    %1892 = vmatprep.subr.mxu0 0.0
    %1893 = vmatpush1.xpose.msra.mxu0 0.0
    %1894 = vmatprep.mubr.f32.mxu0 0.0
    %1895 = vmatmul.mubr.f32.gmra.mrb[0].mxu0 %v1826
    %v1896 = vpop.f32.mrb[0].mxu0
    %v1897 = vadd.f32 0.0, %v1896
    %v1898 = vpop.f32.mrb[0].mxu0
    %1899 = vdwg.mxu0
    %1900 = vrot.lane.b32.xlu0 %v158, 96
    %v1901 = vpop.permute.xlu0 %1900
    %1902 = vrot.lane.b32.xlu0 %v158, 32
    %v1903 = vpop.permute.xlu0 %1902
    %v1904 = vsel %vm165, %v1901, 0
    %v1906 = vsel %vm165, %v1903, 0
    %1908 = vmatprep.subr.mxu0 0.0
    %1909 = vmatpush1.xpose.msra.mxu0 %v1906
    %1910 = vmatprep.subr.mxu0 0.0
    %1911 = vmatpush1.xpose.msra.mxu0 0.0
    %1912 = vmatprep.subr.mxu0 0.0
    %1913 = vmatpush1.xpose.msra.mxu0 0.0
    %1914 = vmatprep.subr.mxu0 0.0
    %1915 = vmatpush1.xpose.msra.mxu0 0.0
    %1916 = vmatprep.subr.mxu0 0.0
    %1917 = vmatpush1.xpose.msra.mxu0 0.0
    %1918 = vmatprep.subr.mxu0 0.0
    %1919 = vmatpush1.xpose.msra.mxu0 0.0
    %1920 = vmatprep.subr.mxu0 0.0
    %1921 = vmatpush1.xpose.msra.mxu0 0.0
    %1922 = vmatprep.subr.mxu0 0.0
    %1923 = vmatpush1.xpose.msra.mxu0 0.0
    %1924 = vmatprep.subr.mxu0 0.0
    %1925 = vmatpush1.xpose.msra.mxu0 0.0
    %1926 = vmatprep.subr.mxu0 0.0
    %1927 = vmatpush1.xpose.msra.mxu0 0.0
    %1928 = vmatprep.subr.mxu0 0.0
    %1929 = vmatpush1.xpose.msra.mxu0 0.0
    %1930 = vmatprep.subr.mxu0 0.0
    %1931 = vmatpush1.xpose.msra.mxu0 0.0
    %1932 = vmatprep.subr.mxu0 0.0
    %1933 = vmatpush1.xpose.msra.mxu0 0.0
    %1934 = vmatprep.subr.mxu0 0.0
    %1935 = vmatpush1.xpose.msra.mxu0 0.0
    %1936 = vmatprep.subr.mxu0 0.0
    %1937 = vmatpush1.xpose.msra.mxu0 0.0
    %1938 = vmatprep.subr.mxu0 0.0
    %1939 = vmatpush1.xpose.msra.mxu0 0.0
    %1940 = vmatprep.subr.mxu0 0.0
    %1941 = vmatpush1.xpose.msra.mxu0 0.0
    %1942 = vmatprep.subr.mxu0 0.0
    %1943 = vmatpush1.xpose.msra.mxu0 0.0
    %1944 = vmatprep.subr.mxu0 0.0
    %1945 = vmatpush1.xpose.msra.mxu0 0.0
    %1946 = vmatprep.subr.mxu0 0.0
    %1947 = vmatpush1.xpose.msra.mxu0 0.0
    %1948 = vmatprep.subr.mxu0 0.0
    %1949 = vmatpush1.xpose.msra.mxu0 0.0
    %1950 = vmatprep.subr.mxu0 0.0
    %1951 = vmatpush1.xpose.msra.mxu0 0.0
    %1952 = vmatprep.subr.mxu0 0.0
    %1953 = vmatpush1.xpose.msra.mxu0 0.0
    %1954 = vmatprep.subr.mxu0 0.0
    %1955 = vmatpush1.xpose.msra.mxu0 0.0
    %1956 = vmatprep.subr.mxu0 0.0
    %1957 = vmatpush1.xpose.msra.mxu0 0.0
    %1958 = vmatprep.subr.mxu0 0.0
    %1959 = vmatpush1.xpose.msra.mxu0 0.0
    %1960 = vmatprep.subr.mxu0 0.0
    %1961 = vmatpush1.xpose.msra.mxu0 0.0
    %1962 = vmatprep.subr.mxu0 0.0
    %1963 = vmatpush1.xpose.msra.mxu0 0.0
    %1964 = vmatprep.subr.mxu0 0.0
    %1965 = vmatpush1.xpose.msra.mxu0 0.0
    %1966 = vmatprep.subr.mxu0 0.0
    %1967 = vmatpush1.xpose.msra.mxu0 0.0
    %1968 = vmatprep.subr.mxu0 0.0
    %1969 = vmatpush1.xpose.msra.mxu0 0.0
    %1970 = vmatprep.subr.mxu0 0.0
    %1971 = vmatpush1.xpose.msra.mxu0 0.0
    %1972 = vmatprep.mubr.f32.mxu0 0.0
    %1973 = vmatmul.mubr.f32.gmra.mrb[0].mxu0 %v1904
    %v1974 = vpop.f32.mrb[0].mxu0
    %v1975 = vadd.f32 0.0, %v1974
    %v1976 = vpop.f32.mrb[0].mxu0
    %1977 = vdwg.mxu0
    %v1978 = vsel %vm471, %v1741, -inf
    %1979 = vmax.xlane.f32.xlu0 %v1978
    %v1980 = vpop.xlane.xlu0 %1979
    %v1981 = vsel %vm471, %v1819, -inf
    %1982 = vmax.xlane.f32.xlu0 %v1981
    %v1983 = vpop.xlane.xlu0 %1982
    %v1984 = vsel %vm471, %v1897, -inf
    %1985 = vmax.xlane.f32.xlu0 %v1984
    %v1986 = vpop.xlane.xlu0 %1985
    %v1987 = vsel %vm471, %v1975, -inf
    %1988 = vmax.xlane.f32.xlu0 %v1987
    %v1989 = vpop.xlane.xlu0 %1988
    %v1990 = vsub.f32 %v1741, %v1980
    %v1991 = vsub.f32 %v1819, %v1983
    %v1992 = vsub.f32 %v1897, %v1986
    %v1993 = vsub.f32 %v1975, %v1989
    %v1994 = vmul.f32 %v1990, 1.442695
    %v1995 = vpow.pop %v1994
    %v1996 = vmul.f32 %v1991, 1.442695
    %v1997 = vpow.pop %v1996
    %v1998 = vmul.f32 %v1992, 1.442695
    %v1999 = vpow.pop %v1998
    %v2000 = vmul.f32 %v1993, 1.442695
    %v2001 = vpow.pop %v2000
    %v2002 = vsel %vm471, %v1995, 0.0
    %2003 = vadd.xlane.f32.xlu0 %v2002
    %v2004 = vpop.xlane.xlu0 %2003
    %v2005 = vsel %vm471, %v1997, 0.0
    %2006 = vadd.xlane.f32.xlu0 %v2005
    %v2007 = vpop.xlane.xlu0 %2006
    %v2008 = vsel %vm471, %v1999, 0.0
    %2009 = vadd.xlane.f32.xlu0 %v2008
    %v2010 = vpop.xlane.xlu0 %2009
    %v2011 = vsel %vm471, %v2001, 0.0
    %2012 = vadd.xlane.f32.xlu0 %v2011
    %v2013 = vpop.xlane.xlu0 %2012
    %v2014 = vrcp.pop %v2004
    %v2015 = vmul.f32 %v1995, %v2014
    %v2016 = vrcp.pop %v2007
    %v2017 = vmul.f32 %v1997, %v2016
    %v2018 = vrcp.pop %v2010
    %v2019 = vmul.f32 %v1999, %v2018
    %v2020 = vrcp.pop %v2013
    %v2021 = vmul.f32 %v2001, %v2020
    %2022 = vrot.lane.b32.xlu0 %v142, 96
    %v2023 = vpop.permute.xlu0 %2022
    %v2026 = vsel %vm471, %v2015, 0
    %2028 = vmatprep.subr.mxu0 0.0
    %2029 = vmatpush1.msra.mxu0 %v2023
    %2030 = vmatprep.subr.mxu0 0.0
    %2031 = vmatpush1.msra.mxu0 0.0
    %2032 = vmatprep.subr.mxu0 0.0
    %2033 = vmatpush1.msra.mxu0 0.0
    %2034 = vmatprep.subr.mxu0 0.0
    %2035 = vmatpush1.msra.mxu0 0.0
    %2036 = vmatprep.subr.mxu0 0.0
    %2037 = vmatpush1.msra.mxu0 0.0
    %2038 = vmatprep.subr.mxu0 0.0
    %2039 = vmatpush1.msra.mxu0 0.0
    %2040 = vmatprep.subr.mxu0 0.0
    %2041 = vmatpush1.msra.mxu0 0.0
    %2042 = vmatprep.subr.mxu0 0.0
    %2043 = vmatpush1.msra.mxu0 0.0
    %2044 = vmatprep.subr.mxu0 0.0
    %2045 = vmatpush1.msra.mxu0 0.0
    %2046 = vmatprep.subr.mxu0 0.0
    %2047 = vmatpush1.msra.mxu0 0.0
    %2048 = vmatprep.subr.mxu0 0.0
    %2049 = vmatpush1.msra.mxu0 0.0
    %2050 = vmatprep.subr.mxu0 0.0
    %2051 = vmatpush1.msra.mxu0 0.0
    %2052 = vmatprep.subr.mxu0 0.0
    %2053 = vmatpush1.msra.mxu0 0.0
    %2054 = vmatprep.subr.mxu0 0.0
    %2055 = vmatpush1.msra.mxu0 0.0
    %2056 = vmatprep.subr.mxu0 0.0
    %2057 = vmatpush1.msra.mxu0 0.0
    %2058 = vmatprep.subr.mxu0 0.0
    %2059 = vmatpush1.msra.mxu0 0.0
    %2060 = vmatprep.subr.mxu0 0.0
    %2061 = vmatpush1.msra.mxu0 0.0
    %2062 = vmatprep.subr.mxu0 0.0
    %2063 = vmatpush1.msra.mxu0 0.0
    %2064 = vmatprep.subr.mxu0 0.0
    %2065 = vmatpush1.msra.mxu0 0.0
    %2066 = vmatprep.subr.mxu0 0.0
    %2067 = vmatpush1.msra.mxu0 0.0
    %2068 = vmatprep.subr.mxu0 0.0
    %2069 = vmatpush1.msra.mxu0 0.0
    %2070 = vmatprep.subr.mxu0 0.0
    %2071 = vmatpush1.msra.mxu0 0.0
    %2072 = vmatprep.subr.mxu0 0.0
    %2073 = vmatpush1.msra.mxu0 0.0
    %2074 = vmatprep.subr.mxu0 0.0
    %2075 = vmatpush1.msra.mxu0 0.0
    %2076 = vmatprep.subr.mxu0 0.0
    %2077 = vmatpush1.msra.mxu0 0.0
    %2078 = vmatprep.subr.mxu0 0.0
    %2079 = vmatpush1.msra.mxu0 0.0
    %2080 = vmatprep.subr.mxu0 0.0
    %2081 = vmatpush1.msra.mxu0 0.0
    %2082 = vmatprep.subr.mxu0 0.0
    %2083 = vmatpush1.msra.mxu0 0.0
    %2084 = vmatprep.subr.mxu0 0.0
    %2085 = vmatpush1.msra.mxu0 0.0
    %2086 = vmatprep.subr.mxu0 0.0
    %2087 = vmatpush1.msra.mxu0 0.0
    %2088 = vmatprep.subr.mxu0 0.0
    %2089 = vmatpush1.msra.mxu0 0.0
    %2090 = vmatprep.subr.mxu0 0.0
    %2091 = vmatpush1.msra.mxu0 0.0
    %2092 = vmatprep.mubr.f32.mxu0 0.0
    %2093 = vmatmul.mubr.f32.gmra.mrb[0].mxu0 %v2026
    %v2094 = vpop.f32.mrb[0].mxu0
    %v2095 = vadd.f32 0.0, %v2094
    %v2096 = vpop.f32.mrb[0].mxu0
    %2097 = vdwg.mxu0
    %2098 = vrot.lane.b32.xlu0 %v148, 96
    %v2099 = vpop.permute.xlu0 %2098
    %v2102 = vsel %vm471, %v2017, 0
    %2104 = vmatprep.subr.mxu0 0.0
    %2105 = vmatpush1.msra.mxu0 %v2099
    %2106 = vmatprep.subr.mxu0 0.0
    %2107 = vmatpush1.msra.mxu0 0.0
    %2108 = vmatprep.subr.mxu0 0.0
    %2109 = vmatpush1.msra.mxu0 0.0
    %2110 = vmatprep.subr.mxu0 0.0
    %2111 = vmatpush1.msra.mxu0 0.0
    %2112 = vmatprep.subr.mxu0 0.0
    %2113 = vmatpush1.msra.mxu0 0.0
    %2114 = vmatprep.subr.mxu0 0.0
    %2115 = vmatpush1.msra.mxu0 0.0
    %2116 = vmatprep.subr.mxu0 0.0
    %2117 = vmatpush1.msra.mxu0 0.0
    %2118 = vmatprep.subr.mxu0 0.0
    %2119 = vmatpush1.msra.mxu0 0.0
    %2120 = vmatprep.subr.mxu0 0.0
    %2121 = vmatpush1.msra.mxu0 0.0
    %2122 = vmatprep.subr.mxu0 0.0
    %2123 = vmatpush1.msra.mxu0 0.0
    %2124 = vmatprep.subr.mxu0 0.0
    %2125 = vmatpush1.msra.mxu0 0.0
    %2126 = vmatprep.subr.mxu0 0.0
    %2127 = vmatpush1.msra.mxu0 0.0
    %2128 = vmatprep.subr.mxu0 0.0
    %2129 = vmatpush1.msra.mxu0 0.0
    %2130 = vmatprep.subr.mxu0 0.0
    %2131 = vmatpush1.msra.mxu0 0.0
    %2132 = vmatprep.subr.mxu0 0.0
    %2133 = vmatpush1.msra.mxu0 0.0
    %2134 = vmatprep.subr.mxu0 0.0
    %2135 = vmatpush1.msra.mxu0 0.0
    %2136 = vmatprep.subr.mxu0 0.0
    %2137 = vmatpush1.msra.mxu0 0.0
    %2138 = vmatprep.subr.mxu0 0.0
    %2139 = vmatpush1.msra.mxu0 0.0
    %2140 = vmatprep.subr.mxu0 0.0
    %2141 = vmatpush1.msra.mxu0 0.0
    %2142 = vmatprep.subr.mxu0 0.0
    %2143 = vmatpush1.msra.mxu0 0.0
    %2144 = vmatprep.subr.mxu0 0.0
    %2145 = vmatpush1.msra.mxu0 0.0
    %2146 = vmatprep.subr.mxu0 0.0
    %2147 = vmatpush1.msra.mxu0 0.0
    %2148 = vmatprep.subr.mxu0 0.0
    %2149 = vmatpush1.msra.mxu0 0.0
    %2150 = vmatprep.subr.mxu0 0.0
    %2151 = vmatpush1.msra.mxu0 0.0
    %2152 = vmatprep.subr.mxu0 0.0
    %2153 = vmatpush1.msra.mxu0 0.0
    %2154 = vmatprep.subr.mxu0 0.0
    %2155 = vmatpush1.msra.mxu0 0.0
    %2156 = vmatprep.subr.mxu0 0.0
    %2157 = vmatpush1.msra.mxu0 0.0
    %2158 = vmatprep.subr.mxu0 0.0
    %2159 = vmatpush1.msra.mxu0 0.0
    %2160 = vmatprep.subr.mxu0 0.0
    %2161 = vmatpush1.msra.mxu0 0.0
    %2162 = vmatprep.subr.mxu0 0.0
    %2163 = vmatpush1.msra.mxu0 0.0
    %2164 = vmatprep.subr.mxu0 0.0
    %2165 = vmatpush1.msra.mxu0 0.0
    %2166 = vmatprep.subr.mxu0 0.0
    %2167 = vmatpush1.msra.mxu0 0.0
    %2168 = vmatprep.mubr.f32.mxu0 0.0
    %2169 = vmatmul.mubr.f32.gmra.mrb[0].mxu0 %v2102
    %v2170 = vpop.f32.mrb[0].mxu0
    %v2171 = vadd.f32 0.0, %v2170
    %v2172 = vpop.f32.mrb[0].mxu0
    %2173 = vdwg.mxu0
    %2174 = vrot.lane.b32.xlu0 %v154, 96
    %v2175 = vpop.permute.xlu0 %2174
    %v2178 = vsel %vm471, %v2019, 0
    %2180 = vmatprep.subr.mxu0 0.0
    %2181 = vmatpush1.msra.mxu0 %v2175
    %2182 = vmatprep.subr.mxu0 0.0
    %2183 = vmatpush1.msra.mxu0 0.0
    %2184 = vmatprep.subr.mxu0 0.0
    %2185 = vmatpush1.msra.mxu0 0.0
    %2186 = vmatprep.subr.mxu0 0.0
    %2187 = vmatpush1.msra.mxu0 0.0
    %2188 = vmatprep.subr.mxu0 0.0
    %2189 = vmatpush1.msra.mxu0 0.0
    %2190 = vmatprep.subr.mxu0 0.0
    %2191 = vmatpush1.msra.mxu0 0.0
    %2192 = vmatprep.subr.mxu0 0.0
    %2193 = vmatpush1.msra.mxu0 0.0
    %2194 = vmatprep.subr.mxu0 0.0
    %2195 = vmatpush1.msra.mxu0 0.0
    %2196 = vmatprep.subr.mxu0 0.0
    %2197 = vmatpush1.msra.mxu0 0.0
    %2198 = vmatprep.subr.mxu0 0.0
    %2199 = vmatpush1.msra.mxu0 0.0
    %2200 = vmatprep.subr.mxu0 0.0
    %2201 = vmatpush1.msra.mxu0 0.0
    %2202 = vmatprep.subr.mxu0 0.0
    %2203 = vmatpush1.msra.mxu0 0.0
    %2204 = vmatprep.subr.mxu0 0.0
    %2205 = vmatpush1.msra.mxu0 0.0
    %2206 = vmatprep.subr.mxu0 0.0
    %2207 = vmatpush1.msra.mxu0 0.0
    %2208 = vmatprep.subr.mxu0 0.0
    %2209 = vmatpush1.msra.mxu0 0.0
    %2210 = vmatprep.subr.mxu0 0.0
    %2211 = vmatpush1.msra.mxu0 0.0
    %2212 = vmatprep.subr.mxu0 0.0
    %2213 = vmatpush1.msra.mxu0 0.0
    %2214 = vmatprep.subr.mxu0 0.0
    %2215 = vmatpush1.msra.mxu0 0.0
    %2216 = vmatprep.subr.mxu0 0.0
    %2217 = vmatpush1.msra.mxu0 0.0
    %2218 = vmatprep.subr.mxu0 0.0
    %2219 = vmatpush1.msra.mxu0 0.0
    %2220 = vmatprep.subr.mxu0 0.0
    %2221 = vmatpush1.msra.mxu0 0.0
    %2222 = vmatprep.subr.mxu0 0.0
    %2223 = vmatpush1.msra.mxu0 0.0
    %2224 = vmatprep.subr.mxu0 0.0
    %2225 = vmatpush1.msra.mxu0 0.0
    %2226 = vmatprep.subr.mxu0 0.0
    %2227 = vmatpush1.msra.mxu0 0.0
    %2228 = vmatprep.subr.mxu0 0.0
    %2229 = vmatpush1.msra.mxu0 0.0
    %2230 = vmatprep.subr.mxu0 0.0
    %2231 = vmatpush1.msra.mxu0 0.0
    %2232 = vmatprep.subr.mxu0 0.0
    %2233 = vmatpush1.msra.mxu0 0.0
    %2234 = vmatprep.subr.mxu0 0.0
    %2235 = vmatpush1.msra.mxu0 0.0
    %2236 = vmatprep.subr.mxu0 0.0
    %2237 = vmatpush1.msra.mxu0 0.0
    %2238 = vmatprep.subr.mxu0 0.0
    %2239 = vmatpush1.msra.mxu0 0.0
    %2240 = vmatprep.subr.mxu0 0.0
    %2241 = vmatpush1.msra.mxu0 0.0
    %2242 = vmatprep.subr.mxu0 0.0
    %2243 = vmatpush1.msra.mxu0 0.0
    %2244 = vmatprep.mubr.f32.mxu0 0.0
    %2245 = vmatmul.mubr.f32.gmra.mrb[0].mxu0 %v2178
    %v2246 = vpop.f32.mrb[0].mxu0
    %v2247 = vadd.f32 0.0, %v2246
    %v2248 = vpop.f32.mrb[0].mxu0
    %2249 = vdwg.mxu0
    %2250 = vrot.lane.b32.xlu0 %v160, 96
    %v2251 = vpop.permute.xlu0 %2250
    %v2254 = vsel %vm471, %v2021, 0
    %2256 = vmatprep.subr.mxu0 0.0
    %2257 = vmatpush1.msra.mxu0 %v2251
    %2258 = vmatprep.subr.mxu0 0.0
    %2259 = vmatpush1.msra.mxu0 0.0
    %2260 = vmatprep.subr.mxu0 0.0
    %2261 = vmatpush1.msra.mxu0 0.0
    %2262 = vmatprep.subr.mxu0 0.0
    %2263 = vmatpush1.msra.mxu0 0.0
    %2264 = vmatprep.subr.mxu0 0.0
    %2265 = vmatpush1.msra.mxu0 0.0
    %2266 = vmatprep.subr.mxu0 0.0
    %2267 = vmatpush1.msra.mxu0 0.0
    %2268 = vmatprep.subr.mxu0 0.0
    %2269 = vmatpush1.msra.mxu0 0.0
    %2270 = vmatprep.subr.mxu0 0.0
    %2271 = vmatpush1.msra.mxu0 0.0
    %2272 = vmatprep.subr.mxu0 0.0
    %2273 = vmatpush1.msra.mxu0 0.0
    %2274 = vmatprep.subr.mxu0 0.0
    %2275 = vmatpush1.msra.mxu0 0.0
    %2276 = vmatprep.subr.mxu0 0.0
    %2277 = vmatpush1.msra.mxu0 0.0
    %2278 = vmatprep.subr.mxu0 0.0
    %2279 = vmatpush1.msra.mxu0 0.0
    %2280 = vmatprep.subr.mxu0 0.0
    %2281 = vmatpush1.msra.mxu0 0.0
    %2282 = vmatprep.subr.mxu0 0.0
    %2283 = vmatpush1.msra.mxu0 0.0
    %2284 = vmatprep.subr.mxu0 0.0
    %2285 = vmatpush1.msra.mxu0 0.0
    %2286 = vmatprep.subr.mxu0 0.0
    %2287 = vmatpush1.msra.mxu0 0.0
    %2288 = vmatprep.subr.mxu0 0.0
    %2289 = vmatpush1.msra.mxu0 0.0
    %2290 = vmatprep.subr.mxu0 0.0
    %2291 = vmatpush1.msra.mxu0 0.0
    %2292 = vmatprep.subr.mxu0 0.0
    %2293 = vmatpush1.msra.mxu0 0.0
    %2294 = vmatprep.subr.mxu0 0.0
    %2295 = vmatpush1.msra.mxu0 0.0
    %2296 = vmatprep.subr.mxu0 0.0
    %2297 = vmatpush1.msra.mxu0 0.0
    %2298 = vmatprep.subr.mxu0 0.0
    %2299 = vmatpush1.msra.mxu0 0.0
    %2300 = vmatprep.subr.mxu0 0.0
    %2301 = vmatpush1.msra.mxu0 0.0
    %2302 = vmatprep.subr.mxu0 0.0
    %2303 = vmatpush1.msra.mxu0 0.0
    %2304 = vmatprep.subr.mxu0 0.0
    %2305 = vmatpush1.msra.mxu0 0.0
    %2306 = vmatprep.subr.mxu0 0.0
    %2307 = vmatpush1.msra.mxu0 0.0
    %2308 = vmatprep.subr.mxu0 0.0
    %2309 = vmatpush1.msra.mxu0 0.0
    %2310 = vmatprep.subr.mxu0 0.0
    %2311 = vmatpush1.msra.mxu0 0.0
    %2312 = vmatprep.subr.mxu0 0.0
    %2313 = vmatpush1.msra.mxu0 0.0
    %2314 = vmatprep.subr.mxu0 0.0
    %2315 = vmatpush1.msra.mxu0 0.0
    %2316 = vmatprep.subr.mxu0 0.0
    %2317 = vmatpush1.msra.mxu0 0.0
    %2318 = vmatprep.subr.mxu0 0.0
    %2319 = vmatpush1.msra.mxu0 0.0
    %2320 = vmatprep.mubr.f32.mxu0 0.0
    %2321 = vmatmul.mubr.f32.gmra.mrb[0].mxu0 %v2254
    %v2322 = vpop.f32.mrb[0].mxu0
    %v2323 = vadd.f32 0.0, %v2322
    %v2324 = vpop.f32.mrb[0].mxu0
    %2325 = vdwg.mxu0
    %v2327 = vsel %vm165, %v2095, 0
    %v2330 = vsel %vm165, %v2171, 0
    %v2333 = vsel %vm165, %v2247, 0
    %v2336 = vsel %vm165, %v2323, 0
    %2338 = vmatprep.subr.mxu0 0.0
    %2339 = vmatpush1.msra.mxu0 %v55
    %2340 = vmatprep.subr.mxu0 0.0
    %2341 = vmatpush1.msra.mxu0 %v56
    %2342 = vmatprep.subr.mxu0 0.0
    %2343 = vmatpush1.msra.mxu0 0.0
    %2344 = vmatprep.subr.mxu0 0.0
    %2345 = vmatpush1.msra.mxu0 0.0
    %2346 = vmatprep.subr.mxu0 0.0
    %2347 = vmatpush1.msra.mxu0 0.0
    %2348 = vmatprep.subr.mxu0 0.0
    %2349 = vmatpush1.msra.mxu0 0.0
    %2350 = vmatprep.subr.mxu0 0.0
    %2351 = vmatpush1.msra.mxu0 0.0
    %2352 = vmatprep.subr.mxu0 0.0
    %2353 = vmatpush1.msra.mxu0 0.0
    %2354 = vmatprep.subr.mxu0 0.0
    %2355 = vmatpush1.msra.mxu0 0.0
    %2356 = vmatprep.subr.mxu0 0.0
    %2357 = vmatpush1.msra.mxu0 0.0
    %2358 = vmatprep.subr.mxu0 0.0
    %2359 = vmatpush1.msra.mxu0 0.0
    %2360 = vmatprep.subr.mxu0 0.0
    %2361 = vmatpush1.msra.mxu0 0.0
    %2362 = vmatprep.subr.mxu0 0.0
    %2363 = vmatpush1.msra.mxu0 0.0
    %2364 = vmatprep.subr.mxu0 0.0
    %2365 = vmatpush1.msra.mxu0 0.0
    %2366 = vmatprep.subr.mxu0 0.0
    %2367 = vmatpush1.msra.mxu0 0.0
    %2368 = vmatprep.subr.mxu0 0.0
    %2369 = vmatpush1.msra.mxu0 0.0
    %2370 = vmatprep.subr.mxu0 0.0
    %2371 = vmatpush1.msra.mxu0 0.0
    %2372 = vmatprep.subr.mxu0 0.0
    %2373 = vmatpush1.msra.mxu0 0.0
    %2374 = vmatprep.subr.mxu0 0.0
    %2375 = vmatpush1.msra.mxu0 0.0
    %2376 = vmatprep.subr.mxu0 0.0
    %2377 = vmatpush1.msra.mxu0 0.0
    %2378 = vmatprep.subr.mxu0 0.0
    %2379 = vmatpush1.msra.mxu0 0.0
    %2380 = vmatprep.subr.mxu0 0.0
    %2381 = vmatpush1.msra.mxu0 0.0
    %2382 = vmatprep.subr.mxu0 0.0
    %2383 = vmatpush1.msra.mxu0 0.0
    %2384 = vmatprep.subr.mxu0 0.0
    %2385 = vmatpush1.msra.mxu0 0.0
    %2386 = vmatprep.subr.mxu0 0.0
    %2387 = vmatpush1.msra.mxu0 0.0
    %2388 = vmatprep.subr.mxu0 0.0
    %2389 = vmatpush1.msra.mxu0 0.0
    %2390 = vmatprep.subr.mxu0 0.0
    %2391 = vmatpush1.msra.mxu0 0.0
    %2392 = vmatprep.subr.mxu0 0.0
    %2393 = vmatpush1.msra.mxu0 0.0
    %2394 = vmatprep.subr.mxu0 0.0
    %2395 = vmatpush1.msra.mxu0 0.0
    %2396 = vmatprep.subr.mxu0 0.0
    %2397 = vmatpush1.msra.mxu0 0.0
    %2398 = vmatprep.subr.mxu0 0.0
    %2399 = vmatpush1.msra.mxu0 0.0
    %2400 = vmatprep.subr.mxu0 0.0
    %2401 = vmatpush1.msra.mxu0 0.0
    %2402 = vmatprep.mubr.f32.mxu0 0.0
    %2403 = vmatmul.mubr.f32.gmra.mrb[0].mxu0 %v2327
    %v2404 = vpop.f32.mrb[0].mxu0
    %v2405 = vadd.f32 0.0, %v2404
    %v2406 = vpop.f32.mrb[0].mxu0
    %2407 = vmatprep.mubr.f32.mxu0 0.0
    %2408 = vmatmul.mubr.f32.gmra.mrb[0].mxu0 %v2330
    %v2409 = vpop.f32.mrb[0].mxu0
    %v2410 = vadd.f32 0.0, %v2409
    %v2411 = vpop.f32.mrb[0].mxu0
    %2412 = vmatprep.mubr.f32.mxu0 0.0
    %2413 = vmatmul.mubr.f32.gmra.mrb[0].mxu0 %v2333
    %v2414 = vpop.f32.mrb[0].mxu0
    %v2415 = vadd.f32 0.0, %v2414
    %v2416 = vpop.f32.mrb[0].mxu0
    %2417 = vmatprep.mubr.f32.mxu0 0.0
    %2418 = vmatmul.mubr.f32.gmra.mrb[0].mxu0 %v2336
    %v2419 = vpop.f32.mrb[0].mxu0
    %v2420 = vadd.f32 0.0, %v2419
    %v2421 = vpop.f32.mrb[0].mxu0
    %2422 = vdwg.mxu0
    %v2423 = vadd.f32 %v1648, %v2405
    %v2424 = vadd.f32 %v1653, %v2410
    %v2425 = vadd.f32 %v1658, %v2415
    %v2426 = vadd.f32 %v1663, %v2420
    %2427 = vrot.lane.b32.xlu0 %v140, 80
    %v2428 = vpop.permute.xlu0 %2427
    %2429 = vrot.lane.b32.xlu0 %v140, 16
    %v2430 = vpop.permute.xlu0 %2429
    %v2431 = vsel %vm165, %v2428, 0
    %v2433 = vsel %vm165, %v2430, 0
    %2435 = vmatprep.subr.mxu0 0.0
    %2436 = vmatpush1.xpose.msra.mxu0 %v2433
    %2437 = vmatprep.subr.mxu0 0.0
    %2438 = vmatpush1.xpose.msra.mxu0 0.0
    %2439 = vmatprep.subr.mxu0 0.0
    %2440 = vmatpush1.xpose.msra.mxu0 0.0
    %2441 = vmatprep.subr.mxu0 0.0
    %2442 = vmatpush1.xpose.msra.mxu0 0.0
    %2443 = vmatprep.subr.mxu0 0.0
    %2444 = vmatpush1.xpose.msra.mxu0 0.0
    %2445 = vmatprep.subr.mxu0 0.0
    %2446 = vmatpush1.xpose.msra.mxu0 0.0
    %2447 = vmatprep.subr.mxu0 0.0
    %2448 = vmatpush1.xpose.msra.mxu0 0.0
    %2449 = vmatprep.subr.mxu0 0.0
    %2450 = vmatpush1.xpose.msra.mxu0 0.0
    %2451 = vmatprep.subr.mxu0 0.0
    %2452 = vmatpush1.xpose.msra.mxu0 0.0
    %2453 = vmatprep.subr.mxu0 0.0
    %2454 = vmatpush1.xpose.msra.mxu0 0.0
    %2455 = vmatprep.subr.mxu0 0.0
    %2456 = vmatpush1.xpose.msra.mxu0 0.0
    %2457 = vmatprep.subr.mxu0 0.0
    %2458 = vmatpush1.xpose.msra.mxu0 0.0
    %2459 = vmatprep.subr.mxu0 0.0
    %2460 = vmatpush1.xpose.msra.mxu0 0.0
    %2461 = vmatprep.subr.mxu0 0.0
    %2462 = vmatpush1.xpose.msra.mxu0 0.0
    %2463 = vmatprep.subr.mxu0 0.0
    %2464 = vmatpush1.xpose.msra.mxu0 0.0
    %2465 = vmatprep.subr.mxu0 0.0
    %2466 = vmatpush1.xpose.msra.mxu0 0.0
    %2467 = vmatprep.subr.mxu0 0.0
    %2468 = vmatpush1.xpose.msra.mxu0 0.0
    %2469 = vmatprep.subr.mxu0 0.0
    %2470 = vmatpush1.xpose.msra.mxu0 0.0
    %2471 = vmatprep.subr.mxu0 0.0
    %2472 = vmatpush1.xpose.msra.mxu0 0.0
    %2473 = vmatprep.subr.mxu0 0.0
    %2474 = vmatpush1.xpose.msra.mxu0 0.0
    %2475 = vmatprep.subr.mxu0 0.0
    %2476 = vmatpush1.xpose.msra.mxu0 0.0
    %2477 = vmatprep.subr.mxu0 0.0
    %2478 = vmatpush1.xpose.msra.mxu0 0.0
    %2479 = vmatprep.subr.mxu0 0.0
    %2480 = vmatpush1.xpose.msra.mxu0 0.0
    %2481 = vmatprep.subr.mxu0 0.0
    %2482 = vmatpush1.xpose.msra.mxu0 0.0
    %2483 = vmatprep.subr.mxu0 0.0
    %2484 = vmatpush1.xpose.msra.mxu0 0.0
    %2485 = vmatprep.subr.mxu0 0.0
    %2486 = vmatpush1.xpose.msra.mxu0 0.0
    %2487 = vmatprep.subr.mxu0 0.0
    %2488 = vmatpush1.xpose.msra.mxu0 0.0
    %2489 = vmatprep.subr.mxu0 0.0
    %2490 = vmatpush1.xpose.msra.mxu0 0.0
    %2491 = vmatprep.subr.mxu0 0.0
    %2492 = vmatpush1.xpose.msra.mxu0 0.0
    %2493 = vmatprep.subr.mxu0 0.0
    %2494 = vmatpush1.xpose.msra.mxu0 0.0
    %2495 = vmatprep.subr.mxu0 0.0
    %2496 = vmatpush1.xpose.msra.mxu0 0.0
    %2497 = vmatprep.subr.mxu0 0.0
    %2498 = vmatpush1.xpose.msra.mxu0 0.0
    %2499 = vmatprep.mubr.f32.mxu0 0.0
    %2500 = vmatmul.mubr.f32.gmra.mrb[0].mxu0 %v2431
    %v2501 = vpop.f32.mrb[0].mxu0
    %v2502 = vadd.f32 0.0, %v2501
    %v2503 = vpop.f32.mrb[0].mxu0
    %2504 = vdwg.mxu0
    %2505 = vrot.lane.b32.xlu0 %v146, 80
    %v2506 = vpop.permute.xlu0 %2505
    %2507 = vrot.lane.b32.xlu0 %v146, 16
    %v2508 = vpop.permute.xlu0 %2507
    %v2509 = vsel %vm165, %v2506, 0
    %v2511 = vsel %vm165, %v2508, 0
    %2513 = vmatprep.subr.mxu0 0.0
    %2514 = vmatpush1.xpose.msra.mxu0 %v2511
    %2515 = vmatprep.subr.mxu0 0.0
    %2516 = vmatpush1.xpose.msra.mxu0 0.0
    %2517 = vmatprep.subr.mxu0 0.0
    %2518 = vmatpush1.xpose.msra.mxu0 0.0
    %2519 = vmatprep.subr.mxu0 0.0
    %2520 = vmatpush1.xpose.msra.mxu0 0.0
    %2521 = vmatprep.subr.mxu0 0.0
    %2522 = vmatpush1.xpose.msra.mxu0 0.0
    %2523 = vmatprep.subr.mxu0 0.0
    %2524 = vmatpush1.xpose.msra.mxu0 0.0
    %2525 = vmatprep.subr.mxu0 0.0
    %2526 = vmatpush1.xpose.msra.mxu0 0.0
    %2527 = vmatprep.subr.mxu0 0.0
    %2528 = vmatpush1.xpose.msra.mxu0 0.0
    %2529 = vmatprep.subr.mxu0 0.0
    %2530 = vmatpush1.xpose.msra.mxu0 0.0
    %2531 = vmatprep.subr.mxu0 0.0
    %2532 = vmatpush1.xpose.msra.mxu0 0.0
    %2533 = vmatprep.subr.mxu0 0.0
    %2534 = vmatpush1.xpose.msra.mxu0 0.0
    %2535 = vmatprep.subr.mxu0 0.0
    %2536 = vmatpush1.xpose.msra.mxu0 0.0
    %2537 = vmatprep.subr.mxu0 0.0
    %2538 = vmatpush1.xpose.msra.mxu0 0.0
    %2539 = vmatprep.subr.mxu0 0.0
    %2540 = vmatpush1.xpose.msra.mxu0 0.0
    %2541 = vmatprep.subr.mxu0 0.0
    %2542 = vmatpush1.xpose.msra.mxu0 0.0
    %2543 = vmatprep.subr.mxu0 0.0
    %2544 = vmatpush1.xpose.msra.mxu0 0.0
    %2545 = vmatprep.subr.mxu0 0.0
    %2546 = vmatpush1.xpose.msra.mxu0 0.0
    %2547 = vmatprep.subr.mxu0 0.0
    %2548 = vmatpush1.xpose.msra.mxu0 0.0
    %2549 = vmatprep.subr.mxu0 0.0
    %2550 = vmatpush1.xpose.msra.mxu0 0.0
    %2551 = vmatprep.subr.mxu0 0.0
    %2552 = vmatpush1.xpose.msra.mxu0 0.0
    %2553 = vmatprep.subr.mxu0 0.0
    %2554 = vmatpush1.xpose.msra.mxu0 0.0
    %2555 = vmatprep.subr.mxu0 0.0
    %2556 = vmatpush1.xpose.msra.mxu0 0.0
    %2557 = vmatprep.subr.mxu0 0.0
    %2558 = vmatpush1.xpose.msra.mxu0 0.0
    %2559 = vmatprep.subr.mxu0 0.0
    %2560 = vmatpush1.xpose.msra.mxu0 0.0
    %2561 = vmatprep.subr.mxu0 0.0
    %2562 = vmatpush1.xpose.msra.mxu0 0.0
    %2563 = vmatprep.subr.mxu0 0.0
    %2564 = vmatpush1.xpose.msra.mxu0 0.0
    %2565 = vmatprep.subr.mxu0 0.0
    %2566 = vmatpush1.xpose.msra.mxu0 0.0
    %2567 = vmatprep.subr.mxu0 0.0
    %2568 = vmatpush1.xpose.msra.mxu0 0.0
    %2569 = vmatprep.subr.mxu0 0.0
    %2570 = vmatpush1.xpose.msra.mxu0 0.0
    %2571 = vmatprep.subr.mxu0 0.0
    %2572 = vmatpush1.xpose.msra.mxu0 0.0
    %2573 = vmatprep.subr.mxu0 0.0
    %2574 = vmatpush1.xpose.msra.mxu0 0.0
    %2575 = vmatprep.subr.mxu0 0.0
    %2576 = vmatpush1.xpose.msra.mxu0 0.0
    %2577 = vmatprep.mubr.f32.mxu0 0.0
    %2578 = vmatmul.mubr.f32.gmra.mrb[0].mxu0 %v2509
    %v2579 = vpop.f32.mrb[0].mxu0
    %v2580 = vadd.f32 0.0, %v2579
    %v2581 = vpop.f32.mrb[0].mxu0
    %2582 = vdwg.mxu0
    %2583 = vrot.lane.b32.xlu0 %v152, 80
    %v2584 = vpop.permute.xlu0 %2583
    %2585 = vrot.lane.b32.xlu0 %v152, 16
    %v2586 = vpop.permute.xlu0 %2585
    %v2587 = vsel %vm165, %v2584, 0
    %v2589 = vsel %vm165, %v2586, 0
    %2591 = vmatprep.subr.mxu0 0.0
    %2592 = vmatpush1.xpose.msra.mxu0 %v2589
    %2593 = vmatprep.subr.mxu0 0.0
    %2594 = vmatpush1.xpose.msra.mxu0 0.0
    %2595 = vmatprep.subr.mxu0 0.0
    %2596 = vmatpush1.xpose.msra.mxu0 0.0
    %2597 = vmatprep.subr.mxu0 0.0
    %2598 = vmatpush1.xpose.msra.mxu0 0.0
    %2599 = vmatprep.subr.mxu0 0.0
    %2600 = vmatpush1.xpose.msra.mxu0 0.0
    %2601 = vmatprep.subr.mxu0 0.0
    %2602 = vmatpush1.xpose.msra.mxu0 0.0
    %2603 = vmatprep.subr.mxu0 0.0
    %2604 = vmatpush1.xpose.msra.mxu0 0.0
    %2605 = vmatprep.subr.mxu0 0.0
    %2606 = vmatpush1.xpose.msra.mxu0 0.0
    %2607 = vmatprep.subr.mxu0 0.0
    %2608 = vmatpush1.xpose.msra.mxu0 0.0
    %2609 = vmatprep.subr.mxu0 0.0
    %2610 = vmatpush1.xpose.msra.mxu0 0.0
    %2611 = vmatprep.subr.mxu0 0.0
    %2612 = vmatpush1.xpose.msra.mxu0 0.0
    %2613 = vmatprep.subr.mxu0 0.0
    %2614 = vmatpush1.xpose.msra.mxu0 0.0
    %2615 = vmatprep.subr.mxu0 0.0
    %2616 = vmatpush1.xpose.msra.mxu0 0.0
    %2617 = vmatprep.subr.mxu0 0.0
    %2618 = vmatpush1.xpose.msra.mxu0 0.0
    %2619 = vmatprep.subr.mxu0 0.0
    %2620 = vmatpush1.xpose.msra.mxu0 0.0
    %2621 = vmatprep.subr.mxu0 0.0
    %2622 = vmatpush1.xpose.msra.mxu0 0.0
    %2623 = vmatprep.subr.mxu0 0.0
    %2624 = vmatpush1.xpose.msra.mxu0 0.0
    %2625 = vmatprep.subr.mxu0 0.0
    %2626 = vmatpush1.xpose.msra.mxu0 0.0
    %2627 = vmatprep.subr.mxu0 0.0
    %2628 = vmatpush1.xpose.msra.mxu0 0.0
    %2629 = vmatprep.subr.mxu0 0.0
    %2630 = vmatpush1.xpose.msra.mxu0 0.0
    %2631 = vmatprep.subr.mxu0 0.0
    %2632 = vmatpush1.xpose.msra.mxu0 0.0
    %2633 = vmatprep.subr.mxu0 0.0
    %2634 = vmatpush1.xpose.msra.mxu0 0.0
    %2635 = vmatprep.subr.mxu0 0.0
    %2636 = vmatpush1.xpose.msra.mxu0 0.0
    %2637 = vmatprep.subr.mxu0 0.0
    %2638 = vmatpush1.xpose.msra.mxu0 0.0
    %2639 = vmatprep.subr.mxu0 0.0
    %2640 = vmatpush1.xpose.msra.mxu0 0.0
    %2641 = vmatprep.subr.mxu0 0.0
    %2642 = vmatpush1.xpose.msra.mxu0 0.0
    %2643 = vmatprep.subr.mxu0 0.0
    %2644 = vmatpush1.xpose.msra.mxu0 0.0
    %2645 = vmatprep.subr.mxu0 0.0
    %2646 = vmatpush1.xpose.msra.mxu0 0.0
    %2647 = vmatprep.subr.mxu0 0.0
    %2648 = vmatpush1.xpose.msra.mxu0 0.0
    %2649 = vmatprep.subr.mxu0 0.0
    %2650 = vmatpush1.xpose.msra.mxu0 0.0
    %2651 = vmatprep.subr.mxu0 0.0
    %2652 = vmatpush1.xpose.msra.mxu0 0.0
    %2653 = vmatprep.subr.mxu0 0.0
    %2654 = vmatpush1.xpose.msra.mxu0 0.0
    %2655 = vmatprep.mubr.f32.mxu0 0.0
    %2656 = vmatmul.mubr.f32.gmra.mrb[0].mxu0 %v2587
    %v2657 = vpop.f32.mrb[0].mxu0
    %v2658 = vadd.f32 0.0, %v2657
    %v2659 = vpop.f32.mrb[0].mxu0
    %2660 = vdwg.mxu0
    %2661 = vrot.lane.b32.xlu0 %v158, 80
    %v2662 = vpop.permute.xlu0 %2661
    %2663 = vrot.lane.b32.xlu0 %v158, 16
    %v2664 = vpop.permute.xlu0 %2663
    %v2665 = vsel %vm165, %v2662, 0
    %v2667 = vsel %vm165, %v2664, 0
    %2669 = vmatprep.subr.mxu0 0.0
    %2670 = vmatpush1.xpose.msra.mxu0 %v2667
    %2671 = vmatprep.subr.mxu0 0.0
    %2672 = vmatpush1.xpose.msra.mxu0 0.0
    %2673 = vmatprep.subr.mxu0 0.0
    %2674 = vmatpush1.xpose.msra.mxu0 0.0
    %2675 = vmatprep.subr.mxu0 0.0
    %2676 = vmatpush1.xpose.msra.mxu0 0.0
    %2677 = vmatprep.subr.mxu0 0.0
    %2678 = vmatpush1.xpose.msra.mxu0 0.0
    %2679 = vmatprep.subr.mxu0 0.0
    %2680 = vmatpush1.xpose.msra.mxu0 0.0
    %2681 = vmatprep.subr.mxu0 0.0
    %2682 = vmatpush1.xpose.msra.mxu0 0.0
    %2683 = vmatprep.subr.mxu0 0.0
    %2684 = vmatpush1.xpose.msra.mxu0 0.0
    %2685 = vmatprep.subr.mxu0 0.0
    %2686 = vmatpush1.xpose.msra.mxu0 0.0
    %2687 = vmatprep.subr.mxu0 0.0
    %2688 = vmatpush1.xpose.msra.mxu0 0.0
    %2689 = vmatprep.subr.mxu0 0.0
    %2690 = vmatpush1.xpose.msra.mxu0 0.0
    %2691 = vmatprep.subr.mxu0 0.0
    %2692 = vmatpush1.xpose.msra.mxu0 0.0
    %2693 = vmatprep.subr.mxu0 0.0
    %2694 = vmatpush1.xpose.msra.mxu0 0.0
    %2695 = vmatprep.subr.mxu0 0.0
    %2696 = vmatpush1.xpose.msra.mxu0 0.0
    %2697 = vmatprep.subr.mxu0 0.0
    %2698 = vmatpush1.xpose.msra.mxu0 0.0
    %2699 = vmatprep.subr.mxu0 0.0
    %2700 = vmatpush1.xpose.msra.mxu0 0.0
    %2701 = vmatprep.subr.mxu0 0.0
    %2702 = vmatpush1.xpose.msra.mxu0 0.0
    %2703 = vmatprep.subr.mxu0 0.0
    %2704 = vmatpush1.xpose.msra.mxu0 0.0
    %2705 = vmatprep.subr.mxu0 0.0
    %2706 = vmatpush1.xpose.msra.mxu0 0.0
    %2707 = vmatprep.subr.mxu0 0.0
    %2708 = vmatpush1.xpose.msra.mxu0 0.0
    %2709 = vmatprep.subr.mxu0 0.0
    %2710 = vmatpush1.xpose.msra.mxu0 0.0
    %2711 = vmatprep.subr.mxu0 0.0
    %2712 = vmatpush1.xpose.msra.mxu0 0.0
    %2713 = vmatprep.subr.mxu0 0.0
    %2714 = vmatpush1.xpose.msra.mxu0 0.0
    %2715 = vmatprep.subr.mxu0 0.0
    %2716 = vmatpush1.xpose.msra.mxu0 0.0
    %2717 = vmatprep.subr.mxu0 0.0
    %2718 = vmatpush1.xpose.msra.mxu0 0.0
    %2719 = vmatprep.subr.mxu0 0.0
    %2720 = vmatpush1.xpose.msra.mxu0 0.0
    %2721 = vmatprep.subr.mxu0 0.0
    %2722 = vmatpush1.xpose.msra.mxu0 0.0
    %2723 = vmatprep.subr.mxu0 0.0
    %2724 = vmatpush1.xpose.msra.mxu0 0.0
    %2725 = vmatprep.subr.mxu0 0.0
    %2726 = vmatpush1.xpose.msra.mxu0 0.0
    %2727 = vmatprep.subr.mxu0 0.0
    %2728 = vmatpush1.xpose.msra.mxu0 0.0
    %2729 = vmatprep.subr.mxu0 0.0
    %2730 = vmatpush1.xpose.msra.mxu0 0.0
    %2731 = vmatprep.subr.mxu0 0.0
    %2732 = vmatpush1.xpose.msra.mxu0 0.0
    %2733 = vmatprep.mubr.f32.mxu0 0.0
    %2734 = vmatmul.mubr.f32.gmra.mrb[0].mxu0 %v2665
    %v2735 = vpop.f32.mrb[0].mxu0
    %v2736 = vadd.f32 0.0, %v2735
    %v2737 = vpop.f32.mrb[0].mxu0
    %2738 = vdwg.mxu0
    %v2739 = vsel %vm471, %v2502, -inf
    %2740 = vmax.xlane.f32.xlu0 %v2739
    %v2741 = vpop.xlane.xlu0 %2740
    %v2742 = vsel %vm471, %v2580, -inf
    %2743 = vmax.xlane.f32.xlu0 %v2742
    %v2744 = vpop.xlane.xlu0 %2743
    %v2745 = vsel %vm471, %v2658, -inf
    %2746 = vmax.xlane.f32.xlu0 %v2745
    %v2747 = vpop.xlane.xlu0 %2746
    %v2748 = vsel %vm471, %v2736, -inf
    %2749 = vmax.xlane.f32.xlu0 %v2748
    %v2750 = vpop.xlane.xlu0 %2749
    %v2751 = vsub.f32 %v2502, %v2741
    %v2752 = vsub.f32 %v2580, %v2744
    %v2753 = vsub.f32 %v2658, %v2747
    %v2754 = vsub.f32 %v2736, %v2750
    %v2755 = vmul.f32 %v2751, 1.442695
    %v2756 = vpow.pop %v2755
    %v2757 = vmul.f32 %v2752, 1.442695
    %v2758 = vpow.pop %v2757
    %v2759 = vmul.f32 %v2753, 1.442695
    %v2760 = vpow.pop %v2759
    %v2761 = vmul.f32 %v2754, 1.442695
    %v2762 = vpow.pop %v2761
    %v2763 = vsel %vm471, %v2756, 0.0
    %2764 = vadd.xlane.f32.xlu0 %v2763
    %v2765 = vpop.xlane.xlu0 %2764
    %v2766 = vsel %vm471, %v2758, 0.0
    %2767 = vadd.xlane.f32.xlu0 %v2766
    %v2768 = vpop.xlane.xlu0 %2767
    %v2769 = vsel %vm471, %v2760, 0.0
    %2770 = vadd.xlane.f32.xlu0 %v2769
    %v2771 = vpop.xlane.xlu0 %2770
    %v2772 = vsel %vm471, %v2762, 0.0
    %2773 = vadd.xlane.f32.xlu0 %v2772
    %v2774 = vpop.xlane.xlu0 %2773
    %v2775 = vrcp.pop %v2765
    %v2776 = vmul.f32 %v2756, %v2775
    %v2777 = vrcp.pop %v2768
    %v2778 = vmul.f32 %v2758, %v2777
    %v2779 = vrcp.pop %v2771
    %v2780 = vmul.f32 %v2760, %v2779
    %v2781 = vrcp.pop %v2774
    %v2782 = vmul.f32 %v2762, %v2781
    %2783 = vrot.lane.b32.xlu0 %v142, 80
    %v2784 = vpop.permute.xlu0 %2783
    %v2787 = vsel %vm471, %v2776, 0
    %2789 = vmatprep.subr.mxu0 0.0
    %2790 = vmatpush1.msra.mxu0 %v2784
    %2791 = vmatprep.subr.mxu0 0.0
    %2792 = vmatpush1.msra.mxu0 0.0
    %2793 = vmatprep.subr.mxu0 0.0
    %2794 = vmatpush1.msra.mxu0 0.0
    %2795 = vmatprep.subr.mxu0 0.0
    %2796 = vmatpush1.msra.mxu0 0.0
    %2797 = vmatprep.subr.mxu0 0.0
    %2798 = vmatpush1.msra.mxu0 0.0
    %2799 = vmatprep.subr.mxu0 0.0
    %2800 = vmatpush1.msra.mxu0 0.0
    %2801 = vmatprep.subr.mxu0 0.0
    %2802 = vmatpush1.msra.mxu0 0.0
    %2803 = vmatprep.subr.mxu0 0.0
    %2804 = vmatpush1.msra.mxu0 0.0
    %2805 = vmatprep.subr.mxu0 0.0
    %2806 = vmatpush1.msra.mxu0 0.0
    %2807 = vmatprep.subr.mxu0 0.0
    %2808 = vmatpush1.msra.mxu0 0.0
    %2809 = vmatprep.subr.mxu0 0.0
    %2810 = vmatpush1.msra.mxu0 0.0
    %2811 = vmatprep.subr.mxu0 0.0
    %2812 = vmatpush1.msra.mxu0 0.0
    %2813 = vmatprep.subr.mxu0 0.0
    %2814 = vmatpush1.msra.mxu0 0.0
    %2815 = vmatprep.subr.mxu0 0.0
    %2816 = vmatpush1.msra.mxu0 0.0
    %2817 = vmatprep.subr.mxu0 0.0
    %2818 = vmatpush1.msra.mxu0 0.0
    %2819 = vmatprep.subr.mxu0 0.0
    %2820 = vmatpush1.msra.mxu0 0.0
    %2821 = vmatprep.subr.mxu0 0.0
    %2822 = vmatpush1.msra.mxu0 0.0
    %2823 = vmatprep.subr.mxu0 0.0
    %2824 = vmatpush1.msra.mxu0 0.0
    %2825 = vmatprep.subr.mxu0 0.0
    %2826 = vmatpush1.msra.mxu0 0.0
    %2827 = vmatprep.subr.mxu0 0.0
    %2828 = vmatpush1.msra.mxu0 0.0
    %2829 = vmatprep.subr.mxu0 0.0
    %2830 = vmatpush1.msra.mxu0 0.0
    %2831 = vmatprep.subr.mxu0 0.0
    %2832 = vmatpush1.msra.mxu0 0.0
    %2833 = vmatprep.subr.mxu0 0.0
    %2834 = vmatpush1.msra.mxu0 0.0
    %2835 = vmatprep.subr.mxu0 0.0
    %2836 = vmatpush1.msra.mxu0 0.0
    %2837 = vmatprep.subr.mxu0 0.0
    %2838 = vmatpush1.msra.mxu0 0.0
    %2839 = vmatprep.subr.mxu0 0.0
    %2840 = vmatpush1.msra.mxu0 0.0
    %2841 = vmatprep.subr.mxu0 0.0
    %2842 = vmatpush1.msra.mxu0 0.0
    %2843 = vmatprep.subr.mxu0 0.0
    %2844 = vmatpush1.msra.mxu0 0.0
    %2845 = vmatprep.subr.mxu0 0.0
    %2846 = vmatpush1.msra.mxu0 0.0
    %2847 = vmatprep.subr.mxu0 0.0
    %2848 = vmatpush1.msra.mxu0 0.0
    %2849 = vmatprep.subr.mxu0 0.0
    %2850 = vmatpush1.msra.mxu0 0.0
    %2851 = vmatprep.subr.mxu0 0.0
    %2852 = vmatpush1.msra.mxu0 0.0
    %2853 = vmatprep.mubr.f32.mxu0 0.0
    %2854 = vmatmul.mubr.f32.gmra.mrb[0].mxu0 %v2787
    %v2855 = vpop.f32.mrb[0].mxu0
    %v2856 = vadd.f32 0.0, %v2855
    %v2857 = vpop.f32.mrb[0].mxu0
    %2858 = vdwg.mxu0
    %2859 = vrot.lane.b32.xlu0 %v148, 80
    %v2860 = vpop.permute.xlu0 %2859
    %v2863 = vsel %vm471, %v2778, 0
    %2865 = vmatprep.subr.mxu0 0.0
    %2866 = vmatpush1.msra.mxu0 %v2860
    %2867 = vmatprep.subr.mxu0 0.0
    %2868 = vmatpush1.msra.mxu0 0.0
    %2869 = vmatprep.subr.mxu0 0.0
    %2870 = vmatpush1.msra.mxu0 0.0
    %2871 = vmatprep.subr.mxu0 0.0
    %2872 = vmatpush1.msra.mxu0 0.0
    %2873 = vmatprep.subr.mxu0 0.0
    %2874 = vmatpush1.msra.mxu0 0.0
    %2875 = vmatprep.subr.mxu0 0.0
    %2876 = vmatpush1.msra.mxu0 0.0
    %2877 = vmatprep.subr.mxu0 0.0
    %2878 = vmatpush1.msra.mxu0 0.0
    %2879 = vmatprep.subr.mxu0 0.0
    %2880 = vmatpush1.msra.mxu0 0.0
    %2881 = vmatprep.subr.mxu0 0.0
    %2882 = vmatpush1.msra.mxu0 0.0
    %2883 = vmatprep.subr.mxu0 0.0
    %2884 = vmatpush1.msra.mxu0 0.0
    %2885 = vmatprep.subr.mxu0 0.0
    %2886 = vmatpush1.msra.mxu0 0.0
    %2887 = vmatprep.subr.mxu0 0.0
    %2888 = vmatpush1.msra.mxu0 0.0
    %2889 = vmatprep.subr.mxu0 0.0
    %2890 = vmatpush1.msra.mxu0 0.0
    %2891 = vmatprep.subr.mxu0 0.0
    %2892 = vmatpush1.msra.mxu0 0.0
    %2893 = vmatprep.subr.mxu0 0.0
    %2894 = vmatpush1.msra.mxu0 0.0
    %2895 = vmatprep.subr.mxu0 0.0
    %2896 = vmatpush1.msra.mxu0 0.0
    %2897 = vmatprep.subr.mxu0 0.0
    %2898 = vmatpush1.msra.mxu0 0.0
    %2899 = vmatprep.subr.mxu0 0.0
    %2900 = vmatpush1.msra.mxu0 0.0
    %2901 = vmatprep.subr.mxu0 0.0
    %2902 = vmatpush1.msra.mxu0 0.0
    %2903 = vmatprep.subr.mxu0 0.0
    %2904 = vmatpush1.msra.mxu0 0.0
    %2905 = vmatprep.subr.mxu0 0.0
    %2906 = vmatpush1.msra.mxu0 0.0
    %2907 = vmatprep.subr.mxu0 0.0
    %2908 = vmatpush1.msra.mxu0 0.0
    %2909 = vmatprep.subr.mxu0 0.0
    %2910 = vmatpush1.msra.mxu0 0.0
    %2911 = vmatprep.subr.mxu0 0.0
    %2912 = vmatpush1.msra.mxu0 0.0
    %2913 = vmatprep.subr.mxu0 0.0
    %2914 = vmatpush1.msra.mxu0 0.0
    %2915 = vmatprep.subr.mxu0 0.0
    %2916 = vmatpush1.msra.mxu0 0.0
    %2917 = vmatprep.subr.mxu0 0.0
    %2918 = vmatpush1.msra.mxu0 0.0
    %2919 = vmatprep.subr.mxu0 0.0
    %2920 = vmatpush1.msra.mxu0 0.0
    %2921 = vmatprep.subr.mxu0 0.0
    %2922 = vmatpush1.msra.mxu0 0.0
    %2923 = vmatprep.subr.mxu0 0.0
    %2924 = vmatpush1.msra.mxu0 0.0
    %2925 = vmatprep.subr.mxu0 0.0
    %2926 = vmatpush1.msra.mxu0 0.0
    %2927 = vmatprep.subr.mxu0 0.0
    %2928 = vmatpush1.msra.mxu0 0.0
    %2929 = vmatprep.mubr.f32.mxu0 0.0
    %2930 = vmatmul.mubr.f32.gmra.mrb[0].mxu0 %v2863
    %v2931 = vpop.f32.mrb[0].mxu0
    %v2932 = vadd.f32 0.0, %v2931
    %v2933 = vpop.f32.mrb[0].mxu0
    %2934 = vdwg.mxu0
    %2935 = vrot.lane.b32.xlu0 %v154, 80
    %v2936 = vpop.permute.xlu0 %2935
    %v2939 = vsel %vm471, %v2780, 0
    %2941 = vmatprep.subr.mxu0 0.0
    %2942 = vmatpush1.msra.mxu0 %v2936
    %2943 = vmatprep.subr.mxu0 0.0
    %2944 = vmatpush1.msra.mxu0 0.0
    %2945 = vmatprep.subr.mxu0 0.0
    %2946 = vmatpush1.msra.mxu0 0.0
    %2947 = vmatprep.subr.mxu0 0.0
    %2948 = vmatpush1.msra.mxu0 0.0
    %2949 = vmatprep.subr.mxu0 0.0
    %2950 = vmatpush1.msra.mxu0 0.0
    %2951 = vmatprep.subr.mxu0 0.0
    %2952 = vmatpush1.msra.mxu0 0.0
    %2953 = vmatprep.subr.mxu0 0.0
    %2954 = vmatpush1.msra.mxu0 0.0
    %2955 = vmatprep.subr.mxu0 0.0
    %2956 = vmatpush1.msra.mxu0 0.0
    %2957 = vmatprep.subr.mxu0 0.0
    %2958 = vmatpush1.msra.mxu0 0.0
    %2959 = vmatprep.subr.mxu0 0.0
    %2960 = vmatpush1.msra.mxu0 0.0
    %2961 = vmatprep.subr.mxu0 0.0
    %2962 = vmatpush1.msra.mxu0 0.0
    %2963 = vmatprep.subr.mxu0 0.0
    %2964 = vmatpush1.msra.mxu0 0.0
    %2965 = vmatprep.subr.mxu0 0.0
    %2966 = vmatpush1.msra.mxu0 0.0
    %2967 = vmatprep.subr.mxu0 0.0
    %2968 = vmatpush1.msra.mxu0 0.0
    %2969 = vmatprep.subr.mxu0 0.0
    %2970 = vmatpush1.msra.mxu0 0.0
    %2971 = vmatprep.subr.mxu0 0.0
    %2972 = vmatpush1.msra.mxu0 0.0
    %2973 = vmatprep.subr.mxu0 0.0
    %2974 = vmatpush1.msra.mxu0 0.0
    %2975 = vmatprep.subr.mxu0 0.0
    %2976 = vmatpush1.msra.mxu0 0.0
    %2977 = vmatprep.subr.mxu0 0.0
    %2978 = vmatpush1.msra.mxu0 0.0
    %2979 = vmatprep.subr.mxu0 0.0
    %2980 = vmatpush1.msra.mxu0 0.0
    %2981 = vmatprep.subr.mxu0 0.0
    %2982 = vmatpush1.msra.mxu0 0.0
    %2983 = vmatprep.subr.mxu0 0.0
    %2984 = vmatpush1.msra.mxu0 0.0
    %2985 = vmatprep.subr.mxu0 0.0
    %2986 = vmatpush1.msra.mxu0 0.0
    %2987 = vmatprep.subr.mxu0 0.0
    %2988 = vmatpush1.msra.mxu0 0.0
    %2989 = vmatprep.subr.mxu0 0.0
    %2990 = vmatpush1.msra.mxu0 0.0
    %2991 = vmatprep.subr.mxu0 0.0
    %2992 = vmatpush1.msra.mxu0 0.0
    %2993 = vmatprep.subr.mxu0 0.0
    %2994 = vmatpush1.msra.mxu0 0.0
    %2995 = vmatprep.subr.mxu0 0.0
    %2996 = vmatpush1.msra.mxu0 0.0
    %2997 = vmatprep.subr.mxu0 0.0
    %2998 = vmatpush1.msra.mxu0 0.0
    %2999 = vmatprep.subr.mxu0 0.0
    %3000 = vmatpush1.msra.mxu0 0.0
    %3001 = vmatprep.subr.mxu0 0.0
    %3002 = vmatpush1.msra.mxu0 0.0
    %3003 = vmatprep.subr.mxu0 0.0
    %3004 = vmatpush1.msra.mxu0 0.0
    %3005 = vmatprep.mubr.f32.mxu0 0.0
    %3006 = vmatmul.mubr.f32.gmra.mrb[0].mxu0 %v2939
    %v3007 = vpop.f32.mrb[0].mxu0
    %v3008 = vadd.f32 0.0, %v3007
    %v3009 = vpop.f32.mrb[0].mxu0
    %3010 = vdwg.mxu0
    %3011 = vrot.lane.b32.xlu0 %v160, 80
    %v3012 = vpop.permute.xlu0 %3011
    %v3015 = vsel %vm471, %v2782, 0
    %3017 = vmatprep.subr.mxu0 0.0
    %3018 = vmatpush1.msra.mxu0 %v3012
    %3019 = vmatprep.subr.mxu0 0.0
    %3020 = vmatpush1.msra.mxu0 0.0
    %3021 = vmatprep.subr.mxu0 0.0
    %3022 = vmatpush1.msra.mxu0 0.0
    %3023 = vmatprep.subr.mxu0 0.0
    %3024 = vmatpush1.msra.mxu0 0.0
    %3025 = vmatprep.subr.mxu0 0.0
    %3026 = vmatpush1.msra.mxu0 0.0
    %3027 = vmatprep.subr.mxu0 0.0
    %3028 = vmatpush1.msra.mxu0 0.0
    %3029 = vmatprep.subr.mxu0 0.0
    %3030 = vmatpush1.msra.mxu0 0.0
    %3031 = vmatprep.subr.mxu0 0.0
    %3032 = vmatpush1.msra.mxu0 0.0
    %3033 = vmatprep.subr.mxu0 0.0
    %3034 = vmatpush1.msra.mxu0 0.0
    %3035 = vmatprep.subr.mxu0 0.0
    %3036 = vmatpush1.msra.mxu0 0.0
    %3037 = vmatprep.subr.mxu0 0.0
    %3038 = vmatpush1.msra.mxu0 0.0
    %3039 = vmatprep.subr.mxu0 0.0
    %3040 = vmatpush1.msra.mxu0 0.0
    %3041 = vmatprep.subr.mxu0 0.0
    %3042 = vmatpush1.msra.mxu0 0.0
    %3043 = vmatprep.subr.mxu0 0.0
    %3044 = vmatpush1.msra.mxu0 0.0
    %3045 = vmatprep.subr.mxu0 0.0
    %3046 = vmatpush1.msra.mxu0 0.0
    %3047 = vmatprep.subr.mxu0 0.0
    %3048 = vmatpush1.msra.mxu0 0.0
    %3049 = vmatprep.subr.mxu0 0.0
    %3050 = vmatpush1.msra.mxu0 0.0
    %3051 = vmatprep.subr.mxu0 0.0
    %3052 = vmatpush1.msra.mxu0 0.0
    %3053 = vmatprep.subr.mxu0 0.0
    %3054 = vmatpush1.msra.mxu0 0.0
    %3055 = vmatprep.subr.mxu0 0.0
    %3056 = vmatpush1.msra.mxu0 0.0
    %3057 = vmatprep.subr.mxu0 0.0
    %3058 = vmatpush1.msra.mxu0 0.0
    %3059 = vmatprep.subr.mxu0 0.0
    %3060 = vmatpush1.msra.mxu0 0.0
    %3061 = vmatprep.subr.mxu0 0.0
    %3062 = vmatpush1.msra.mxu0 0.0
    %3063 = vmatprep.subr.mxu0 0.0
    %3064 = vmatpush1.msra.mxu0 0.0
    %3065 = vmatprep.subr.mxu0 0.0
    %3066 = vmatpush1.msra.mxu0 0.0
    %3067 = vmatprep.subr.mxu0 0.0
    %3068 = vmatpush1.msra.mxu0 0.0
    %3069 = vmatprep.subr.mxu0 0.0
    %3070 = vmatpush1.msra.mxu0 0.0
    %3071 = vmatprep.subr.mxu0 0.0
    %3072 = vmatpush1.msra.mxu0 0.0
    %3073 = vmatprep.subr.mxu0 0.0
    %3074 = vmatpush1.msra.mxu0 0.0
    %3075 = vmatprep.subr.mxu0 0.0
    %3076 = vmatpush1.msra.mxu0 0.0
    %3077 = vmatprep.subr.mxu0 0.0
    %3078 = vmatpush1.msra.mxu0 0.0
    %3079 = vmatprep.subr.mxu0 0.0
    %3080 = vmatpush1.msra.mxu0 0.0
    %3081 = vmatprep.mubr.f32.mxu0 0.0
    %3082 = vmatmul.mubr.f32.gmra.mrb[0].mxu0 %v3015
    %v3083 = vpop.f32.mrb[0].mxu0
    %v3084 = vadd.f32 0.0, %v3083
    %v3085 = vpop.f32.mrb[0].mxu0
    %3086 = vdwg.mxu0
    %v3088 = vsel %vm165, %v2856, 0
    %v3091 = vsel %vm165, %v2932, 0
    %v3094 = vsel %vm165, %v3008, 0
    %v3097 = vsel %vm165, %v3084, 0
    %3099 = vmatprep.subr.mxu0 0.0
    %3100 = vmatpush1.msra.mxu0 %v57
    %3101 = vmatprep.subr.mxu0 0.0
    %3102 = vmatpush1.msra.mxu0 %v58
    %3103 = vmatprep.subr.mxu0 0.0
    %3104 = vmatpush1.msra.mxu0 0.0
    %3105 = vmatprep.subr.mxu0 0.0
    %3106 = vmatpush1.msra.mxu0 0.0
    %3107 = vmatprep.subr.mxu0 0.0
    %3108 = vmatpush1.msra.mxu0 0.0
    %3109 = vmatprep.subr.mxu0 0.0
    %3110 = vmatpush1.msra.mxu0 0.0
    %3111 = vmatprep.subr.mxu0 0.0
    %3112 = vmatpush1.msra.mxu0 0.0
    %3113 = vmatprep.subr.mxu0 0.0
    %3114 = vmatpush1.msra.mxu0 0.0
    %3115 = vmatprep.subr.mxu0 0.0
    %3116 = vmatpush1.msra.mxu0 0.0
    %3117 = vmatprep.subr.mxu0 0.0
    %3118 = vmatpush1.msra.mxu0 0.0
    %3119 = vmatprep.subr.mxu0 0.0
    %3120 = vmatpush1.msra.mxu0 0.0
    %3121 = vmatprep.subr.mxu0 0.0
    %3122 = vmatpush1.msra.mxu0 0.0
    %3123 = vmatprep.subr.mxu0 0.0
    %3124 = vmatpush1.msra.mxu0 0.0
    %3125 = vmatprep.subr.mxu0 0.0
    %3126 = vmatpush1.msra.mxu0 0.0
    %3127 = vmatprep.subr.mxu0 0.0
    %3128 = vmatpush1.msra.mxu0 0.0
    %3129 = vmatprep.subr.mxu0 0.0
    %3130 = vmatpush1.msra.mxu0 0.0
    %3131 = vmatprep.subr.mxu0 0.0
    %3132 = vmatpush1.msra.mxu0 0.0
    %3133 = vmatprep.subr.mxu0 0.0
    %3134 = vmatpush1.msra.mxu0 0.0
    %3135 = vmatprep.subr.mxu0 0.0
    %3136 = vmatpush1.msra.mxu0 0.0
    %3137 = vmatprep.subr.mxu0 0.0
    %3138 = vmatpush1.msra.mxu0 0.0
    %3139 = vmatprep.subr.mxu0 0.0
    %3140 = vmatpush1.msra.mxu0 0.0
    %3141 = vmatprep.subr.mxu0 0.0
    %3142 = vmatpush1.msra.mxu0 0.0
    %3143 = vmatprep.subr.mxu0 0.0
    %3144 = vmatpush1.msra.mxu0 0.0
    %3145 = vmatprep.subr.mxu0 0.0
    %3146 = vmatpush1.msra.mxu0 0.0
    %3147 = vmatprep.subr.mxu0 0.0
    %3148 = vmatpush1.msra.mxu0 0.0
    %3149 = vmatprep.subr.mxu0 0.0
    %3150 = vmatpush1.msra.mxu0 0.0
    %3151 = vmatprep.subr.mxu0 0.0
    %3152 = vmatpush1.msra.mxu0 0.0
    %3153 = vmatprep.subr.mxu0 0.0
    %3154 = vmatpush1.msra.mxu0 0.0
    %3155 = vmatprep.subr.mxu0 0.0
    %3156 = vmatpush1.msra.mxu0 0.0
    %3157 = vmatprep.subr.mxu0 0.0
    %3158 = vmatpush1.msra.mxu0 0.0
    %3159 = vmatprep.subr.mxu0 0.0
    %3160 = vmatpush1.msra.mxu0 0.0
    %3161 = vmatprep.subr.mxu0 0.0
    %3162 = vmatpush1.msra.mxu0 0.0
    %3163 = vmatprep.mubr.f32.mxu0 0.0
    %3164 = vmatmul.mubr.f32.gmra.mrb[0].mxu0 %v3088
    %v3165 = vpop.f32.mrb[0].mxu0
    %v3166 = vadd.f32 0.0, %v3165
    %v3167 = vpop.f32.mrb[0].mxu0
    %3168 = vmatprep.mubr.f32.mxu0 0.0
    %3169 = vmatmul.mubr.f32.gmra.mrb[0].mxu0 %v3091
    %v3170 = vpop.f32.mrb[0].mxu0
    %v3171 = vadd.f32 0.0, %v3170
    %v3172 = vpop.f32.mrb[0].mxu0
    %3173 = vmatprep.mubr.f32.mxu0 0.0
    %3174 = vmatmul.mubr.f32.gmra.mrb[0].mxu0 %v3094
    %v3175 = vpop.f32.mrb[0].mxu0
    %v3176 = vadd.f32 0.0, %v3175
    %v3177 = vpop.f32.mrb[0].mxu0
    %3178 = vmatprep.mubr.f32.mxu0 0.0
    %3179 = vmatmul.mubr.f32.gmra.mrb[0].mxu0 %v3097
    %v3180 = vpop.f32.mrb[0].mxu0
    %v3181 = vadd.f32 0.0, %v3180
    %v3182 = vpop.f32.mrb[0].mxu0
    %3183 = vdwg.mxu0
    %v3184 = vadd.f32 %v2423, %v3166
    %v3185 = vadd.f32 %v2424, %v3171
    %v3186 = vadd.f32 %v2425, %v3176
    %v3187 = vadd.f32 %v2426, %v3181
    %v3188 = vlaneseq
    %v3189 = vshrl.u32 %v3188, 7
    %v3190 = vsub.s32 0, %v3189
    %v3191 = vrot.slane %v59, %v3190
    %v3192 = vadd.f32 %v3184, %v3191
    %v3193 = vadd.f32 %v3185, %v3191
    %v3194 = vadd.f32 %v3186, %v3191
    %v3195 = vadd.f32 %v3187, %v3191
    %v3196 = vadd.f32 %v3192, %v39
    %v3197 = vadd.f32 %v3193, %v40
    %v3198 = vadd.f32 %v3194, %v41
    %v3199 = vadd.f32 %v3195, %v42
    %v3200 = vsel %vm60, %v3196, 0.0
    %3201 = vadd.xlane.f32.xlu0 %v3200
    %v3202 = vpop.xlane.xlu0 %3201
    %v3203 = vsel %vm60, %v3197, 0.0
    %3204 = vadd.xlane.f32.xlu0 %v3203
    %v3205 = vpop.xlane.xlu0 %3204
    %v3206 = vsel %vm60, %v3198, 0.0
    %3207 = vadd.xlane.f32.xlu0 %v3206
    %v3208 = vpop.xlane.xlu0 %3207
    %v3209 = vsel %vm60, %v3199, 0.0
    %3210 = vadd.xlane.f32.xlu0 %v3209
    %v3211 = vpop.xlane.xlu0 %3210
    %v3212 = vrcp.pop 32.0
    %v3213 = vmul.f32 %v3202, %v3212
    %v3214 = vmul.f32 %v3205, %v3212
    %v3215 = vmul.f32 %v3208, %v3212
    %v3216 = vmul.f32 %v3211, %v3212
    %v3217 = vsub.f32 %v3196, %v3213
    %v3218 = vsub.f32 %v3197, %v3214
    %v3219 = vsub.f32 %v3198, %v3215
    %v3220 = vsub.f32 %v3199, %v3216
    %v3221 = vmul.f32 %v3217, %v3217
    %v3222 = vmul.f32 %v3218, %v3218
    %v3223 = vmul.f32 %v3219, %v3219
    %v3224 = vmul.f32 %v3220, %v3220
    %v3225 = vsel %vm60, %v3221, 0.0
    %3226 = vadd.xlane.f32.xlu0 %v3225
    %v3227 = vpop.xlane.xlu0 %3226
    %v3228 = vsel %vm60, %v3222, 0.0
    %3229 = vadd.xlane.f32.xlu0 %v3228
    %v3230 = vpop.xlane.xlu0 %3229
    %v3231 = vsel %vm60, %v3223, 0.0
    %3232 = vadd.xlane.f32.xlu0 %v3231
    %v3233 = vpop.xlane.xlu0 %3232
    %v3234 = vsel %vm60, %v3224, 0.0
    %3235 = vadd.xlane.f32.xlu0 %v3234
    %v3236 = vpop.xlane.xlu0 %3235
    %v3237 = vmul.f32 %v3227, 0.032258064
    %v3238 = vmul.f32 %v3230, 0.032258064
    %v3239 = vmul.f32 %v3233, 0.032258064
    %v3240 = vmul.f32 %v3236, 0.032258064
    %v3241 = vrsqrt.pop %v3237
    %v3242 = vmul.f32 %v3237, %v3241
    %vm3243 = vcmp.eq.f32.partialorder %v3237, inf
    %v3244 = vsel %vm3243, %v3237, %v3242
    %vm3245 = vcmp.eq.f32.partialorder %v3237, 0.0
    %v3246 = vand.u32 %v3237, 2147483648
    %v3247 = vsel %vm3245, %v3246, %v3244
    %v3248 = vrsqrt.pop %v3238
    %v3249 = vmul.f32 %v3238, %v3248
    %vm3250 = vcmp.eq.f32.partialorder %v3238, inf
    %v3251 = vsel %vm3250, %v3238, %v3249
    %vm3252 = vcmp.eq.f32.partialorder %v3238, 0.0
    %v3253 = vand.u32 %v3238, 2147483648
    %v3254 = vsel %vm3252, %v3253, %v3251
    %v3255 = vrsqrt.pop %v3239
    %v3256 = vmul.f32 %v3239, %v3255
    %vm3257 = vcmp.eq.f32.partialorder %v3239, inf
    %v3258 = vsel %vm3257, %v3239, %v3256
    %vm3259 = vcmp.eq.f32.partialorder %v3239, 0.0
    %v3260 = vand.u32 %v3239, 2147483648
    %v3261 = vsel %vm3259, %v3260, %v3258
    %v3262 = vrsqrt.pop %v3240
    %v3263 = vmul.f32 %v3240, %v3262
    %vm3264 = vcmp.eq.f32.partialorder %v3240, inf
    %v3265 = vsel %vm3264, %v3240, %v3263
    %vm3266 = vcmp.eq.f32.partialorder %v3240, 0.0
    %v3267 = vand.u32 %v3240, 2147483648
    %v3268 = vsel %vm3266, %v3267, %v3265
    %v3269 = vadd.f32 %v3247, 0.001
    %v3270 = vadd.f32 %v3254, 0.001
    %v3271 = vadd.f32 %v3261, 0.001
    %v3272 = vadd.f32 %v3268, 0.001
    %v3273 = vrcp.pop %v3269
    %v3274 = vmul.f32 %v3217, %v3273
    %v3275 = vrcp.pop %v3270
    %v3276 = vmul.f32 %v3218, %v3275
    %v3277 = vrcp.pop %v3271
    %v3278 = vmul.f32 %v3219, %v3277
    %v3279 = vrcp.pop %v3272
    %v3280 = vmul.f32 %v3220, %v3279
    %v3281 = vlaneseq
    %v3282 = vshrl.u32 %v3281, 7
    %v3283 = vsub.s32 3, %v3282
    %v3284 = vrot.slane %v59, %v3283
    %v3285 = vmul.f32 %v3274, %v3284
    %v3286 = vmul.f32 %v3276, %v3284
    %v3287 = vmul.f32 %v3278, %v3284
    %v3288 = vmul.f32 %v3280, %v3284
    %v3289 = vlaneseq
    %v3290 = vshrl.u32 %v3289, 7
    %v3291 = vsub.s32 4, %v3290
    %v3292 = vrot.slane %v59, %v3291
    %v3293 = vadd.f32 %v3285, %v3292
    %v3294 = vadd.f32 %v3286, %v3292
    %v3295 = vadd.f32 %v3287, %v3292
    %v3296 = vadd.f32 %v3288, %v3292
    %v3297 = vld [vmem:[%s3] sm:$0xff]
    %v3298 = vld [vmem:[%s3 + $0x8] sm:$0xff]
    %v3299 = vld [vmem:[%s3 + $0x10] sm:$0xff]
    %v3300 = vld [vmem:[%s3 + $0x18] sm:$0xff]
    %v3301 = vlaneseq
    %v3302 = vshrl.u32 %v3301, 7
    %v3303 = vsub.s32 1, %v3302
    %v3304 = vrot.slane %v59, %v3303
    %v3306 = vsel %vm60, %v3293, 0
    %v3309 = vsel %vm60, %v3294, 0
    %v3312 = vsel %vm60, %v3295, 0
    %v3315 = vsel %vm60, %v3296, 0
    %3317 = vmatprep.subr.mxu0 0.0
    %3318 = vmatpush1.msra.mxu0 %v3297
    %3319 = vmatprep.subr.mxu0 0.0
    %3320 = vmatpush1.msra.mxu0 %v3298
    %3321 = vmatprep.subr.mxu0 0.0
    %3322 = vmatpush1.msra.mxu0 %v3299
    %3323 = vmatprep.subr.mxu0 0.0
    %3324 = vmatpush1.msra.mxu0 %v3300
    %3325 = vmatprep.subr.mxu0 0.0
    %3326 = vmatpush1.msra.mxu0 0.0
    %3327 = vmatprep.subr.mxu0 0.0
    %3328 = vmatpush1.msra.mxu0 0.0
    %3329 = vmatprep.subr.mxu0 0.0
    %3330 = vmatpush1.msra.mxu0 0.0
    %3331 = vmatprep.subr.mxu0 0.0
    %3332 = vmatpush1.msra.mxu0 0.0
    %3333 = vmatprep.subr.mxu0 0.0
    %3334 = vmatpush1.msra.mxu0 0.0
    %3335 = vmatprep.subr.mxu0 0.0
    %3336 = vmatpush1.msra.mxu0 0.0
    %3337 = vmatprep.subr.mxu0 0.0
    %3338 = vmatpush1.msra.mxu0 0.0
    %3339 = vmatprep.subr.mxu0 0.0
    %3340 = vmatpush1.msra.mxu0 0.0
    %3341 = vmatprep.subr.mxu0 0.0
    %3342 = vmatpush1.msra.mxu0 0.0
    %3343 = vmatprep.subr.mxu0 0.0
    %3344 = vmatpush1.msra.mxu0 0.0
    %3345 = vmatprep.subr.mxu0 0.0
    %3346 = vmatpush1.msra.mxu0 0.0
    %3347 = vmatprep.subr.mxu0 0.0
    %3348 = vmatpush1.msra.mxu0 0.0
    %3349 = vmatprep.subr.mxu0 0.0
    %3350 = vmatpush1.msra.mxu0 0.0
    %3351 = vmatprep.subr.mxu0 0.0
    %3352 = vmatpush1.msra.mxu0 0.0
    %3353 = vmatprep.subr.mxu0 0.0
    %3354 = vmatpush1.msra.mxu0 0.0
    %3355 = vmatprep.subr.mxu0 0.0
    %3356 = vmatpush1.msra.mxu0 0.0
    %3357 = vmatprep.subr.mxu0 0.0
    %3358 = vmatpush1.msra.mxu0 0.0
    %3359 = vmatprep.subr.mxu0 0.0
    %3360 = vmatpush1.msra.mxu0 0.0
    %3361 = vmatprep.subr.mxu0 0.0
    %3362 = vmatpush1.msra.mxu0 0.0
    %3363 = vmatprep.subr.mxu0 0.0
    %3364 = vmatpush1.msra.mxu0 0.0
    %3365 = vmatprep.subr.mxu0 0.0
    %3366 = vmatpush1.msra.mxu0 0.0
    %3367 = vmatprep.subr.mxu0 0.0
    %3368 = vmatpush1.msra.mxu0 0.0
    %3369 = vmatprep.subr.mxu0 0.0
    %3370 = vmatpush1.msra.mxu0 0.0
    %3371 = vmatprep.subr.mxu0 0.0
    %3372 = vmatpush1.msra.mxu0 0.0
    %3373 = vmatprep.subr.mxu0 0.0
    %3374 = vmatpush1.msra.mxu0 0.0
    %3375 = vmatprep.subr.mxu0 0.0
    %3376 = vmatpush1.msra.mxu0 0.0
    %3377 = vmatprep.subr.mxu0 0.0
    %3378 = vmatpush1.msra.mxu0 0.0
    %3379 = vmatprep.subr.mxu0 0.0
    %3380 = vmatpush1.msra.mxu0 0.0
    %3381 = vmatprep.mubr.f32.mxu0 0.0
    %3382 = vmatmul.mubr.f32.gmra.mrb[0].mxu0 %v3306
    %v3383 = vpop.f32.mrb[0].mxu0
    %v3384 = vadd.f32 %v3304, %v3383
    %v3385 = vpop.f32.mrb[0].mxu0
    %3386 = vmatprep.mubr.f32.mxu0 0.0
    %3387 = vmatmul.mubr.f32.gmra.mrb[0].mxu0 %v3309
    %v3388 = vpop.f32.mrb[0].mxu0
    %v3389 = vadd.f32 %v3304, %v3388
    %v3390 = vpop.f32.mrb[0].mxu0
    %3391 = vmatprep.mubr.f32.mxu0 0.0
    %3392 = vmatmul.mubr.f32.gmra.mrb[0].mxu0 %v3312
    %v3393 = vpop.f32.mrb[0].mxu0
    %v3394 = vadd.f32 %v3304, %v3393
    %v3395 = vpop.f32.mrb[0].mxu0
    %3396 = vmatprep.mubr.f32.mxu0 0.0
    %3397 = vmatmul.mubr.f32.gmra.mrb[0].mxu0 %v3315
    %v3398 = vpop.f32.mrb[0].mxu0
    %v3399 = vadd.f32 %v3304, %v3398
    %v3400 = vpop.f32.mrb[0].mxu0
    %3401 = vdwg.mxu0
    %v3402 = vmax.f32 %v3384, 0.0
    %v3403 = vmax.f32 %v3389, 0.0
    %v3404 = vmax.f32 %v3394, 0.0
    %v3405 = vmax.f32 %v3399, 0.0
    %v3406 = vld [vmem:[%s4] sm:$0xff]
    %v3407 = vld [vmem:[%s4 + $0x8] sm:$0xff]
    %v3408 = vld [vmem:[%s4 + $0x10] sm:$0xff]
    %v3409 = vld [vmem:[%s4 + $0x18] sm:$0xff]
    %v3410 = vld [vmem:[%s4 + $0x20] sm:$0xff]
    %v3411 = vld [vmem:[%s4 + $0x28] sm:$0xff]
    %v3412 = vld [vmem:[%s4 + $0x30] sm:$0xff]
    %v3413 = vld [vmem:[%s4 + $0x38] sm:$0xff]
    %v3414 = vlaneseq
    %v3415 = vshrl.u32 %v3414, 7
    %v3416 = vsub.s32 2, %v3415
    %v3417 = vrot.slane %v59, %v3416
    %vm3418 = vcmask 523264
    %v3420 = vsel %vm3418, %v3402, 0
    %v3423 = vsel %vm3418, %v3403, 0
    %v3426 = vsel %vm3418, %v3404, 0
    %v3429 = vsel %vm3418, %v3405, 0
    %3431 = vmatprep.subr.mxu0 0.0
    %3432 = vmatpush1.msra.mxu0 %v3406
    %3433 = vmatprep.subr.mxu0 0.0
    %3434 = vmatpush1.msra.mxu0 %v3407
    %3435 = vmatprep.subr.mxu0 0.0
    %3436 = vmatpush1.msra.mxu0 %v3408
    %3437 = vmatprep.subr.mxu0 0.0
    %3438 = vmatpush1.msra.mxu0 %v3409
    %3439 = vmatprep.subr.mxu0 0.0
    %3440 = vmatpush1.msra.mxu0 %v3410
    %3441 = vmatprep.subr.mxu0 0.0
    %3442 = vmatpush1.msra.mxu0 %v3411
    %3443 = vmatprep.subr.mxu0 0.0
    %3444 = vmatpush1.msra.mxu0 %v3412
    %3445 = vmatprep.subr.mxu0 0.0
    %3446 = vmatpush1.msra.mxu0 %v3413
    %3447 = vmatprep.subr.mxu0 0.0
    %3448 = vmatpush1.msra.mxu0 0.0
    %3449 = vmatprep.subr.mxu0 0.0
    %3450 = vmatpush1.msra.mxu0 0.0
    %3451 = vmatprep.subr.mxu0 0.0
    %3452 = vmatpush1.msra.mxu0 0.0
    %3453 = vmatprep.subr.mxu0 0.0
    %3454 = vmatpush1.msra.mxu0 0.0
    %3455 = vmatprep.subr.mxu0 0.0
    %3456 = vmatpush1.msra.mxu0 0.0
    %3457 = vmatprep.subr.mxu0 0.0
    %3458 = vmatpush1.msra.mxu0 0.0
    %3459 = vmatprep.subr.mxu0 0.0
    %3460 = vmatpush1.msra.mxu0 0.0
    %3461 = vmatprep.subr.mxu0 0.0
    %3462 = vmatpush1.msra.mxu0 0.0
    %3463 = vmatprep.subr.mxu0 0.0
    %3464 = vmatpush1.msra.mxu0 0.0
    %3465 = vmatprep.subr.mxu0 0.0
    %3466 = vmatpush1.msra.mxu0 0.0
    %3467 = vmatprep.subr.mxu0 0.0
    %3468 = vmatpush1.msra.mxu0 0.0
    %3469 = vmatprep.subr.mxu0 0.0
    %3470 = vmatpush1.msra.mxu0 0.0
    %3471 = vmatprep.subr.mxu0 0.0
    %3472 = vmatpush1.msra.mxu0 0.0
    %3473 = vmatprep.subr.mxu0 0.0
    %3474 = vmatpush1.msra.mxu0 0.0
    %3475 = vmatprep.subr.mxu0 0.0
    %3476 = vmatpush1.msra.mxu0 0.0
    %3477 = vmatprep.subr.mxu0 0.0
    %3478 = vmatpush1.msra.mxu0 0.0
    %3479 = vmatprep.subr.mxu0 0.0
    %3480 = vmatpush1.msra.mxu0 0.0
    %3481 = vmatprep.subr.mxu0 0.0
    %3482 = vmatpush1.msra.mxu0 0.0
    %3483 = vmatprep.subr.mxu0 0.0
    %3484 = vmatpush1.msra.mxu0 0.0
    %3485 = vmatprep.subr.mxu0 0.0
    %3486 = vmatpush1.msra.mxu0 0.0
    %3487 = vmatprep.subr.mxu0 0.0
    %3488 = vmatpush1.msra.mxu0 0.0
    %3489 = vmatprep.subr.mxu0 0.0
    %3490 = vmatpush1.msra.mxu0 0.0
    %3491 = vmatprep.subr.mxu0 0.0
    %3492 = vmatpush1.msra.mxu0 0.0
    %3493 = vmatprep.subr.mxu0 0.0
    %3494 = vmatpush1.msra.mxu0 0.0
    %3495 = vmatprep.mubr.f32.mxu0 0.0
    %3496 = vmatmul.mubr.f32.gmra.mrb[0].mxu0 %v3420
    %v3497 = vpop.f32.mrb[0].mxu0
    %v3498 = vadd.f32 %v3417, %v3497
    %v3499 = vpop.f32.mrb[0].mxu0
    %3500 = vmatprep.mubr.f32.mxu0 0.0
    %3501 = vmatmul.mubr.f32.gmra.mrb[0].mxu0 %v3423
    %v3502 = vpop.f32.mrb[0].mxu0
    %v3503 = vadd.f32 %v3417, %v3502
    %v3504 = vpop.f32.mrb[0].mxu0
    %3505 = vmatprep.mubr.f32.mxu0 0.0
    %3506 = vmatmul.mubr.f32.gmra.mrb[0].mxu0 %v3426
    %v3507 = vpop.f32.mrb[0].mxu0
    %v3508 = vadd.f32 %v3417, %v3507
    %v3509 = vpop.f32.mrb[0].mxu0
    %3510 = vmatprep.mubr.f32.mxu0 0.0
    %3511 = vmatmul.mubr.f32.gmra.mrb[0].mxu0 %v3429
    %v3512 = vpop.f32.mrb[0].mxu0
    %v3513 = vadd.f32 %v3417, %v3512
    %v3514 = vpop.f32.mrb[0].mxu0
    %3515 = vdwg.mxu0
    %v3516 = vadd.f32 %v3498, %v3293
    %v3517 = vadd.f32 %v3503, %v3294
    %v3518 = vadd.f32 %v3508, %v3295
    %v3519 = vadd.f32 %v3513, %v3296
    %v3520 = vsel %vm60, %v3516, 0.0
    %3521 = vadd.xlane.f32.xlu0 %v3520
    %v3522 = vpop.xlane.xlu0 %3521
    %v3523 = vsel %vm60, %v3517, 0.0
    %3524 = vadd.xlane.f32.xlu0 %v3523
    %v3525 = vpop.xlane.xlu0 %3524
    %v3526 = vsel %vm60, %v3518, 0.0
    %3527 = vadd.xlane.f32.xlu0 %v3526
    %v3528 = vpop.xlane.xlu0 %3527
    %v3529 = vsel %vm60, %v3519, 0.0
    %3530 = vadd.xlane.f32.xlu0 %v3529
    %v3531 = vpop.xlane.xlu0 %3530
    %v3532 = vmul.f32 %v3522, %v3212
    %v3533 = vmul.f32 %v3525, %v3212
    %v3534 = vmul.f32 %v3528, %v3212
    %v3535 = vmul.f32 %v3531, %v3212
    %v3536 = vsub.f32 %v3516, %v3532
    %v3537 = vsub.f32 %v3517, %v3533
    %v3538 = vsub.f32 %v3518, %v3534
    %v3539 = vsub.f32 %v3519, %v3535
    %v3540 = vmul.f32 %v3536, %v3536
    %v3541 = vmul.f32 %v3537, %v3537
    %v3542 = vmul.f32 %v3538, %v3538
    %v3543 = vmul.f32 %v3539, %v3539
    %v3544 = vsel %vm60, %v3540, 0.0
    %3545 = vadd.xlane.f32.xlu0 %v3544
    %v3546 = vpop.xlane.xlu0 %3545
    %v3547 = vsel %vm60, %v3541, 0.0
    %3548 = vadd.xlane.f32.xlu0 %v3547
    %v3549 = vpop.xlane.xlu0 %3548
    %v3550 = vsel %vm60, %v3542, 0.0
    %3551 = vadd.xlane.f32.xlu0 %v3550
    %v3552 = vpop.xlane.xlu0 %3551
    %v3553 = vsel %vm60, %v3543, 0.0
    %3554 = vadd.xlane.f32.xlu0 %v3553
    %v3555 = vpop.xlane.xlu0 %3554
    %v3556 = vmul.f32 %v3546, 0.032258064
    %v3557 = vmul.f32 %v3549, 0.032258064
    %v3558 = vmul.f32 %v3552, 0.032258064
    %v3559 = vmul.f32 %v3555, 0.032258064
    %v3560 = vrsqrt.pop %v3556
    %v3561 = vmul.f32 %v3556, %v3560
    %vm3562 = vcmp.eq.f32.partialorder %v3556, inf
    %v3563 = vsel %vm3562, %v3556, %v3561
    %vm3564 = vcmp.eq.f32.partialorder %v3556, 0.0
    %v3565 = vand.u32 %v3556, 2147483648
    %v3566 = vsel %vm3564, %v3565, %v3563
    %v3567 = vrsqrt.pop %v3557
    %v3568 = vmul.f32 %v3557, %v3567
    %vm3569 = vcmp.eq.f32.partialorder %v3557, inf
    %v3570 = vsel %vm3569, %v3557, %v3568
    %vm3571 = vcmp.eq.f32.partialorder %v3557, 0.0
    %v3572 = vand.u32 %v3557, 2147483648
    %v3573 = vsel %vm3571, %v3572, %v3570
    %v3574 = vrsqrt.pop %v3558
    %v3575 = vmul.f32 %v3558, %v3574
    %vm3576 = vcmp.eq.f32.partialorder %v3558, inf
    %v3577 = vsel %vm3576, %v3558, %v3575
    %vm3578 = vcmp.eq.f32.partialorder %v3558, 0.0
    %v3579 = vand.u32 %v3558, 2147483648
    %v3580 = vsel %vm3578, %v3579, %v3577
    %v3581 = vrsqrt.pop %v3559
    %v3582 = vmul.f32 %v3559, %v3581
    %vm3583 = vcmp.eq.f32.partialorder %v3559, inf
    %v3584 = vsel %vm3583, %v3559, %v3582
    %vm3585 = vcmp.eq.f32.partialorder %v3559, 0.0
    %v3586 = vand.u32 %v3559, 2147483648
    %v3587 = vsel %vm3585, %v3586, %v3584
    %v3588 = vadd.f32 %v3566, 0.001
    %v3589 = vadd.f32 %v3573, 0.001
    %v3590 = vadd.f32 %v3580, 0.001
    %v3591 = vadd.f32 %v3587, 0.001
    %v3592 = vrcp.pop %v3588
    %v3593 = vmul.f32 %v3536, %v3592
    %v3594 = vrcp.pop %v3589
    %v3595 = vmul.f32 %v3537, %v3594
    %v3596 = vrcp.pop %v3590
    %v3597 = vmul.f32 %v3538, %v3596
    %v3598 = vrcp.pop %v3591
    %v3599 = vmul.f32 %v3539, %v3598
    %v3600 = vlaneseq
    %v3601 = vshrl.u32 %v3600, 7
    %v3602 = vsub.s32 5, %v3601
    %v3603 = vrot.slane %v59, %v3602
    %v3604 = vmul.f32 %v3593, %v3603
    %v3605 = vmul.f32 %v3595, %v3603
    %v3606 = vmul.f32 %v3597, %v3603
    %v3607 = vmul.f32 %v3599, %v3603
    %v3608 = vlaneseq
    %v3609 = vshrl.u32 %v3608, 7
    %v3610 = vsub.s32 6, %v3609
    %v3611 = vrot.slane %v59, %v3610
    %v3612 = vadd.f32 %v3604, %v3611
    %v3613 = vadd.f32 %v3605, %v3611
    %v3614 = vadd.f32 %v3606, %v3611
    %v3615 = vadd.f32 %v3607, %v3611
    %s3616 = scalar_lea.vmem %s1, 64
    %v3617 = vld [vmem:[%s3616] sm:$0xff]
    %v3618 = vld [vmem:[%s3616 + $0x8] sm:$0xff]
    %v3619 = vld [vmem:[%s3616 + $0x10] sm:$0xff]
    %v3620 = vld [vmem:[%s3616 + $0x18] sm:$0xff]
    %v3621 = vld [vmem:[%s3616 + $0x20] sm:$0xff]
    %v3622 = vld [vmem:[%s3616 + $0x28] sm:$0xff]
    %v3623 = vld [vmem:[%s3616 + $0x30] sm:$0xff]
    %v3624 = vld [vmem:[%s3616 + $0x38] sm:$0xff]
    %s3625 = scalar_lea.vmem %s2, 64
    %v3626 = vld [vmem:[%s3625] sm:$0xff]
    %v3627 = vld [vmem:[%s3625 + $0x8] sm:$0xff]
    %v3628 = vld [vmem:[%s3625 + $0x10] sm:$0xff]
    %v3629 = vld [vmem:[%s3625 + $0x18] sm:$0xff]
    %v3630 = vld [vmem:[%s3625 + $0x20] sm:$0xff]
    %v3631 = vld [vmem:[%s3625 + $0x28] sm:$0xff]
    %v3632 = vld [vmem:[%s3625 + $0x30] sm:$0xff]
    %v3633 = vld [vmem:[%s3625 + $0x38] sm:$0xff]
    %s3634 = scalar_lea.vmem %s5, 8
    %v3635 = vld [vmem:[%s3634] sm:$0xff]
    %v3637 = vsel %vm60, %v3612, 0
    %v3640 = vsel %vm60, %v3613, 0
    %v3643 = vsel %vm60, %v3614, 0
    %v3646 = vsel %vm60, %v3615, 0
    %3648 = vmatprep.subr.mxu0 %v3618
    %3649 = vmatpush1.msra.mxu0 %v3617
    %3650 = vmatprep.subr.mxu0 %v3620
    %3651 = vmatpush1.msra.mxu0 %v3619
    %3652 = vmatprep.subr.mxu0 %v3622
    %3653 = vmatpush1.msra.mxu0 %v3621
    %3654 = vmatprep.subr.mxu0 %v3624
    %3655 = vmatpush1.msra.mxu0 %v3623
    %3656 = vmatprep.subr.mxu0 0.0
    %3657 = vmatpush1.msra.mxu0 0.0
    %3658 = vmatprep.subr.mxu0 0.0
    %3659 = vmatpush1.msra.mxu0 0.0
    %3660 = vmatprep.subr.mxu0 0.0
    %3661 = vmatpush1.msra.mxu0 0.0
    %3662 = vmatprep.subr.mxu0 0.0
    %3663 = vmatpush1.msra.mxu0 0.0
    %3664 = vmatprep.subr.mxu0 0.0
    %3665 = vmatpush1.msra.mxu0 0.0
    %3666 = vmatprep.subr.mxu0 0.0
    %3667 = vmatpush1.msra.mxu0 0.0
    %3668 = vmatprep.subr.mxu0 0.0
    %3669 = vmatpush1.msra.mxu0 0.0
    %3670 = vmatprep.subr.mxu0 0.0
    %3671 = vmatpush1.msra.mxu0 0.0
    %3672 = vmatprep.subr.mxu0 0.0
    %3673 = vmatpush1.msra.mxu0 0.0
    %3674 = vmatprep.subr.mxu0 0.0
    %3675 = vmatpush1.msra.mxu0 0.0
    %3676 = vmatprep.subr.mxu0 0.0
    %3677 = vmatpush1.msra.mxu0 0.0
    %3678 = vmatprep.subr.mxu0 0.0
    %3679 = vmatpush1.msra.mxu0 0.0
    %3680 = vmatprep.subr.mxu0 0.0
    %3681 = vmatpush1.msra.mxu0 0.0
    %3682 = vmatprep.subr.mxu0 0.0
    %3683 = vmatpush1.msra.mxu0 0.0
    %3684 = vmatprep.subr.mxu0 0.0
    %3685 = vmatpush1.msra.mxu0 0.0
    %3686 = vmatprep.subr.mxu0 0.0
    %3687 = vmatpush1.msra.mxu0 0.0
    %3688 = vmatprep.subr.mxu0 0.0
    %3689 = vmatpush1.msra.mxu0 0.0
    %3690 = vmatprep.subr.mxu0 0.0
    %3691 = vmatpush1.msra.mxu0 0.0
    %3692 = vmatprep.subr.mxu0 0.0
    %3693 = vmatpush1.msra.mxu0 0.0
    %3694 = vmatprep.subr.mxu0 0.0
    %3695 = vmatpush1.msra.mxu0 0.0
    %3696 = vmatprep.subr.mxu0 0.0
    %3697 = vmatpush1.msra.mxu0 0.0
    %3698 = vmatprep.subr.mxu0 0.0
    %3699 = vmatpush1.msra.mxu0 0.0
    %3700 = vmatprep.subr.mxu0 0.0
    %3701 = vmatpush1.msra.mxu0 0.0
    %3702 = vmatprep.subr.mxu0 0.0
    %3703 = vmatpush1.msra.mxu0 0.0
    %3704 = vmatprep.subr.mxu0 0.0
    %3705 = vmatpush1.msra.mxu0 0.0
    %3706 = vmatprep.subr.mxu0 0.0
    %3707 = vmatpush1.msra.mxu0 0.0
    %3708 = vmatprep.subr.mxu0 0.0
    %3709 = vmatpush1.msra.mxu0 0.0
    %3710 = vmatprep.subr.mxu0 0.0
    %3711 = vmatpush1.msra.mxu0 0.0
    %3712 = vmatprep.mubr.f32.mxu0 0.0
    %3713 = vmatmul.mubr.f32.gmra.mrb[0].mxu0 %v3637
    %v3714 = vpop.f32.mrb[0].mxu0
    %v3715 = vadd.f32 0.0, %v3714
    %v3716 = vpop.f32.mrb[0].mxu0
    %v3717 = vadd.f32 0.0, %v3716
    %3718 = vmatprep.mubr.f32.mxu0 0.0
    %3719 = vmatmul.mubr.f32.gmra.mrb[0].mxu0 %v3640
    %v3720 = vpop.f32.mrb[0].mxu0
    %v3721 = vadd.f32 0.0, %v3720
    %v3722 = vpop.f32.mrb[0].mxu0
    %v3723 = vadd.f32 0.0, %v3722
    %3724 = vmatprep.mubr.f32.mxu0 0.0
    %3725 = vmatmul.mubr.f32.gmra.mrb[0].mxu0 %v3643
    %v3726 = vpop.f32.mrb[0].mxu0
    %v3727 = vadd.f32 0.0, %v3726
    %v3728 = vpop.f32.mrb[0].mxu0
    %v3729 = vadd.f32 0.0, %v3728
    %3730 = vmatprep.mubr.f32.mxu0 0.0
    %3731 = vmatmul.mubr.f32.gmra.mrb[0].mxu0 %v3646
    %v3732 = vpop.f32.mrb[0].mxu0
    %v3733 = vadd.f32 0.0, %v3732
    %v3734 = vpop.f32.mrb[0].mxu0
    %v3735 = vadd.f32 0.0, %v3734
    %3736 = vdwg.mxu0
    %3738 = vrot.lane.b32.xlu0 %v3715, 64
    %v3739 = vpop.permute.xlu0 %3738
    %v3740 = vsel %vm165, %v3715, 0
    %v3742 = vsel %vm165, %v3739, 0
    %3744 = vmatprep.subr.mxu0 0.0
    %3745 = vmatpush1.xpose.msra.mxu0 %v3742
    %3746 = vmatprep.subr.mxu0 0.0
    %3747 = vmatpush1.xpose.msra.mxu0 0.0
    %3748 = vmatprep.subr.mxu0 0.0
    %3749 = vmatpush1.xpose.msra.mxu0 0.0
    %3750 = vmatprep.subr.mxu0 0.0
    %3751 = vmatpush1.xpose.msra.mxu0 0.0
    %3752 = vmatprep.subr.mxu0 0.0
    %3753 = vmatpush1.xpose.msra.mxu0 0.0
    %3754 = vmatprep.subr.mxu0 0.0
    %3755 = vmatpush1.xpose.msra.mxu0 0.0
    %3756 = vmatprep.subr.mxu0 0.0
    %3757 = vmatpush1.xpose.msra.mxu0 0.0
    %3758 = vmatprep.subr.mxu0 0.0
    %3759 = vmatpush1.xpose.msra.mxu0 0.0
    %3760 = vmatprep.subr.mxu0 0.0
    %3761 = vmatpush1.xpose.msra.mxu0 0.0
    %3762 = vmatprep.subr.mxu0 0.0
    %3763 = vmatpush1.xpose.msra.mxu0 0.0
    %3764 = vmatprep.subr.mxu0 0.0
    %3765 = vmatpush1.xpose.msra.mxu0 0.0
    %3766 = vmatprep.subr.mxu0 0.0
    %3767 = vmatpush1.xpose.msra.mxu0 0.0
    %3768 = vmatprep.subr.mxu0 0.0
    %3769 = vmatpush1.xpose.msra.mxu0 0.0
    %3770 = vmatprep.subr.mxu0 0.0
    %3771 = vmatpush1.xpose.msra.mxu0 0.0
    %3772 = vmatprep.subr.mxu0 0.0
    %3773 = vmatpush1.xpose.msra.mxu0 0.0
    %3774 = vmatprep.subr.mxu0 0.0
    %3775 = vmatpush1.xpose.msra.mxu0 0.0
    %3776 = vmatprep.subr.mxu0 0.0
    %3777 = vmatpush1.xpose.msra.mxu0 0.0
    %3778 = vmatprep.subr.mxu0 0.0
    %3779 = vmatpush1.xpose.msra.mxu0 0.0
    %3780 = vmatprep.subr.mxu0 0.0
    %3781 = vmatpush1.xpose.msra.mxu0 0.0
    %3782 = vmatprep.subr.mxu0 0.0
    %3783 = vmatpush1.xpose.msra.mxu0 0.0
    %3784 = vmatprep.subr.mxu0 0.0
    %3785 = vmatpush1.xpose.msra.mxu0 0.0
    %3786 = vmatprep.subr.mxu0 0.0
    %3787 = vmatpush1.xpose.msra.mxu0 0.0
    %3788 = vmatprep.subr.mxu0 0.0
    %3789 = vmatpush1.xpose.msra.mxu0 0.0
    %3790 = vmatprep.subr.mxu0 0.0
    %3791 = vmatpush1.xpose.msra.mxu0 0.0
    %3792 = vmatprep.subr.mxu0 0.0
    %3793 = vmatpush1.xpose.msra.mxu0 0.0
    %3794 = vmatprep.subr.mxu0 0.0
    %3795 = vmatpush1.xpose.msra.mxu0 0.0
    %3796 = vmatprep.subr.mxu0 0.0
    %3797 = vmatpush1.xpose.msra.mxu0 0.0
    %3798 = vmatprep.subr.mxu0 0.0
    %3799 = vmatpush1.xpose.msra.mxu0 0.0
    %3800 = vmatprep.subr.mxu0 0.0
    %3801 = vmatpush1.xpose.msra.mxu0 0.0
    %3802 = vmatprep.subr.mxu0 0.0
    %3803 = vmatpush1.xpose.msra.mxu0 0.0
    %3804 = vmatprep.subr.mxu0 0.0
    %3805 = vmatpush1.xpose.msra.mxu0 0.0
    %3806 = vmatprep.subr.mxu0 0.0
    %3807 = vmatpush1.xpose.msra.mxu0 0.0
    %3808 = vmatprep.mubr.f32.mxu0 0.0
    %3809 = vmatmul.mubr.f32.gmra.mrb[0].mxu0 %v3740
    %v3810 = vpop.f32.mrb[0].mxu0
    %v3811 = vadd.f32 0.0, %v3810
    %v3812 = vpop.f32.mrb[0].mxu0
    %3813 = vdwg.mxu0
    %3815 = vrot.lane.b32.xlu0 %v3721, 64
    %v3816 = vpop.permute.xlu0 %3815
    %v3817 = vsel %vm165, %v3721, 0
    %v3819 = vsel %vm165, %v3816, 0
    %3821 = vmatprep.subr.mxu0 0.0
    %3822 = vmatpush1.xpose.msra.mxu0 %v3819
    %3823 = vmatprep.subr.mxu0 0.0
    %3824 = vmatpush1.xpose.msra.mxu0 0.0
    %3825 = vmatprep.subr.mxu0 0.0
    %3826 = vmatpush1.xpose.msra.mxu0 0.0
    %3827 = vmatprep.subr.mxu0 0.0
    %3828 = vmatpush1.xpose.msra.mxu0 0.0
    %3829 = vmatprep.subr.mxu0 0.0
    %3830 = vmatpush1.xpose.msra.mxu0 0.0
    %3831 = vmatprep.subr.mxu0 0.0
    %3832 = vmatpush1.xpose.msra.mxu0 0.0
    %3833 = vmatprep.subr.mxu0 0.0
    %3834 = vmatpush1.xpose.msra.mxu0 0.0
    %3835 = vmatprep.subr.mxu0 0.0
    %3836 = vmatpush1.xpose.msra.mxu0 0.0
    %3837 = vmatprep.subr.mxu0 0.0
    %3838 = vmatpush1.xpose.msra.mxu0 0.0
    %3839 = vmatprep.subr.mxu0 0.0
    %3840 = vmatpush1.xpose.msra.mxu0 0.0
    %3841 = vmatprep.subr.mxu0 0.0
    %3842 = vmatpush1.xpose.msra.mxu0 0.0
    %3843 = vmatprep.subr.mxu0 0.0
    %3844 = vmatpush1.xpose.msra.mxu0 0.0
    %3845 = vmatprep.subr.mxu0 0.0
    %3846 = vmatpush1.xpose.msra.mxu0 0.0
    %3847 = vmatprep.subr.mxu0 0.0
    %3848 = vmatpush1.xpose.msra.mxu0 0.0
    %3849 = vmatprep.subr.mxu0 0.0
    %3850 = vmatpush1.xpose.msra.mxu0 0.0
    %3851 = vmatprep.subr.mxu0 0.0
    %3852 = vmatpush1.xpose.msra.mxu0 0.0
    %3853 = vmatprep.subr.mxu0 0.0
    %3854 = vmatpush1.xpose.msra.mxu0 0.0
    %3855 = vmatprep.subr.mxu0 0.0
    %3856 = vmatpush1.xpose.msra.mxu0 0.0
    %3857 = vmatprep.subr.mxu0 0.0
    %3858 = vmatpush1.xpose.msra.mxu0 0.0
    %3859 = vmatprep.subr.mxu0 0.0
    %3860 = vmatpush1.xpose.msra.mxu0 0.0
    %3861 = vmatprep.subr.mxu0 0.0
    %3862 = vmatpush1.xpose.msra.mxu0 0.0
    %3863 = vmatprep.subr.mxu0 0.0
    %3864 = vmatpush1.xpose.msra.mxu0 0.0
    %3865 = vmatprep.subr.mxu0 0.0
    %3866 = vmatpush1.xpose.msra.mxu0 0.0
    %3867 = vmatprep.subr.mxu0 0.0
    %3868 = vmatpush1.xpose.msra.mxu0 0.0
    %3869 = vmatprep.subr.mxu0 0.0
    %3870 = vmatpush1.xpose.msra.mxu0 0.0
    %3871 = vmatprep.subr.mxu0 0.0
    %3872 = vmatpush1.xpose.msra.mxu0 0.0
    %3873 = vmatprep.subr.mxu0 0.0
    %3874 = vmatpush1.xpose.msra.mxu0 0.0
    %3875 = vmatprep.subr.mxu0 0.0
    %3876 = vmatpush1.xpose.msra.mxu0 0.0
    %3877 = vmatprep.subr.mxu0 0.0
    %3878 = vmatpush1.xpose.msra.mxu0 0.0
    %3879 = vmatprep.subr.mxu0 0.0
    %3880 = vmatpush1.xpose.msra.mxu0 0.0
    %3881 = vmatprep.subr.mxu0 0.0
    %3882 = vmatpush1.xpose.msra.mxu0 0.0
    %3883 = vmatprep.subr.mxu0 0.0
    %3884 = vmatpush1.xpose.msra.mxu0 0.0
    %3885 = vmatprep.mubr.f32.mxu0 0.0
    %3886 = vmatmul.mubr.f32.gmra.mrb[0].mxu0 %v3817
    %v3887 = vpop.f32.mrb[0].mxu0
    %v3888 = vadd.f32 0.0, %v3887
    %v3889 = vpop.f32.mrb[0].mxu0
    %3890 = vdwg.mxu0
    %3892 = vrot.lane.b32.xlu0 %v3727, 64
    %v3893 = vpop.permute.xlu0 %3892
    %v3894 = vsel %vm165, %v3727, 0
    %v3896 = vsel %vm165, %v3893, 0
    %3898 = vmatprep.subr.mxu0 0.0
    %3899 = vmatpush1.xpose.msra.mxu0 %v3896
    %3900 = vmatprep.subr.mxu0 0.0
    %3901 = vmatpush1.xpose.msra.mxu0 0.0
    %3902 = vmatprep.subr.mxu0 0.0
    %3903 = vmatpush1.xpose.msra.mxu0 0.0
    %3904 = vmatprep.subr.mxu0 0.0
    %3905 = vmatpush1.xpose.msra.mxu0 0.0
    %3906 = vmatprep.subr.mxu0 0.0
    %3907 = vmatpush1.xpose.msra.mxu0 0.0
    %3908 = vmatprep.subr.mxu0 0.0
    %3909 = vmatpush1.xpose.msra.mxu0 0.0
    %3910 = vmatprep.subr.mxu0 0.0
    %3911 = vmatpush1.xpose.msra.mxu0 0.0
    %3912 = vmatprep.subr.mxu0 0.0
    %3913 = vmatpush1.xpose.msra.mxu0 0.0
    %3914 = vmatprep.subr.mxu0 0.0
    %3915 = vmatpush1.xpose.msra.mxu0 0.0
    %3916 = vmatprep.subr.mxu0 0.0
    %3917 = vmatpush1.xpose.msra.mxu0 0.0
    %3918 = vmatprep.subr.mxu0 0.0
    %3919 = vmatpush1.xpose.msra.mxu0 0.0
    %3920 = vmatprep.subr.mxu0 0.0
    %3921 = vmatpush1.xpose.msra.mxu0 0.0
    %3922 = vmatprep.subr.mxu0 0.0
    %3923 = vmatpush1.xpose.msra.mxu0 0.0
    %3924 = vmatprep.subr.mxu0 0.0
    %3925 = vmatpush1.xpose.msra.mxu0 0.0
    %3926 = vmatprep.subr.mxu0 0.0
    %3927 = vmatpush1.xpose.msra.mxu0 0.0
    %3928 = vmatprep.subr.mxu0 0.0
    %3929 = vmatpush1.xpose.msra.mxu0 0.0
    %3930 = vmatprep.subr.mxu0 0.0
    %3931 = vmatpush1.xpose.msra.mxu0 0.0
    %3932 = vmatprep.subr.mxu0 0.0
    %3933 = vmatpush1.xpose.msra.mxu0 0.0
    %3934 = vmatprep.subr.mxu0 0.0
    %3935 = vmatpush1.xpose.msra.mxu0 0.0
    %3936 = vmatprep.subr.mxu0 0.0
    %3937 = vmatpush1.xpose.msra.mxu0 0.0
    %3938 = vmatprep.subr.mxu0 0.0
    %3939 = vmatpush1.xpose.msra.mxu0 0.0
    %3940 = vmatprep.subr.mxu0 0.0
    %3941 = vmatpush1.xpose.msra.mxu0 0.0
    %3942 = vmatprep.subr.mxu0 0.0
    %3943 = vmatpush1.xpose.msra.mxu0 0.0
    %3944 = vmatprep.subr.mxu0 0.0
    %3945 = vmatpush1.xpose.msra.mxu0 0.0
    %3946 = vmatprep.subr.mxu0 0.0
    %3947 = vmatpush1.xpose.msra.mxu0 0.0
    %3948 = vmatprep.subr.mxu0 0.0
    %3949 = vmatpush1.xpose.msra.mxu0 0.0
    %3950 = vmatprep.subr.mxu0 0.0
    %3951 = vmatpush1.xpose.msra.mxu0 0.0
    %3952 = vmatprep.subr.mxu0 0.0
    %3953 = vmatpush1.xpose.msra.mxu0 0.0
    %3954 = vmatprep.subr.mxu0 0.0
    %3955 = vmatpush1.xpose.msra.mxu0 0.0
    %3956 = vmatprep.subr.mxu0 0.0
    %3957 = vmatpush1.xpose.msra.mxu0 0.0
    %3958 = vmatprep.subr.mxu0 0.0
    %3959 = vmatpush1.xpose.msra.mxu0 0.0
    %3960 = vmatprep.subr.mxu0 0.0
    %3961 = vmatpush1.xpose.msra.mxu0 0.0
    %3962 = vmatprep.mubr.f32.mxu0 0.0
    %3963 = vmatmul.mubr.f32.gmra.mrb[0].mxu0 %v3894
    %v3964 = vpop.f32.mrb[0].mxu0
    %v3965 = vadd.f32 0.0, %v3964
    %v3966 = vpop.f32.mrb[0].mxu0
    %3967 = vdwg.mxu0
    %3969 = vrot.lane.b32.xlu0 %v3733, 64
    %v3970 = vpop.permute.xlu0 %3969
    %v3971 = vsel %vm165, %v3733, 0
    %v3973 = vsel %vm165, %v3970, 0
    %3975 = vmatprep.subr.mxu0 0.0
    %3976 = vmatpush1.xpose.msra.mxu0 %v3973
    %3977 = vmatprep.subr.mxu0 0.0
    %3978 = vmatpush1.xpose.msra.mxu0 0.0
    %3979 = vmatprep.subr.mxu0 0.0
    %3980 = vmatpush1.xpose.msra.mxu0 0.0
    %3981 = vmatprep.subr.mxu0 0.0
    %3982 = vmatpush1.xpose.msra.mxu0 0.0
    %3983 = vmatprep.subr.mxu0 0.0
    %3984 = vmatpush1.xpose.msra.mxu0 0.0
    %3985 = vmatprep.subr.mxu0 0.0
    %3986 = vmatpush1.xpose.msra.mxu0 0.0
    %3987 = vmatprep.subr.mxu0 0.0
    %3988 = vmatpush1.xpose.msra.mxu0 0.0
    %3989 = vmatprep.subr.mxu0 0.0
    %3990 = vmatpush1.xpose.msra.mxu0 0.0
    %3991 = vmatprep.subr.mxu0 0.0
    %3992 = vmatpush1.xpose.msra.mxu0 0.0
    %3993 = vmatprep.subr.mxu0 0.0
    %3994 = vmatpush1.xpose.msra.mxu0 0.0
    %3995 = vmatprep.subr.mxu0 0.0
    %3996 = vmatpush1.xpose.msra.mxu0 0.0
    %3997 = vmatprep.subr.mxu0 0.0
    %3998 = vmatpush1.xpose.msra.mxu0 0.0
    %3999 = vmatprep.subr.mxu0 0.0
    %4000 = vmatpush1.xpose.msra.mxu0 0.0
    %4001 = vmatprep.subr.mxu0 0.0
    %4002 = vmatpush1.xpose.msra.mxu0 0.0
    %4003 = vmatprep.subr.mxu0 0.0
    %4004 = vmatpush1.xpose.msra.mxu0 0.0
    %4005 = vmatprep.subr.mxu0 0.0
    %4006 = vmatpush1.xpose.msra.mxu0 0.0
    %4007 = vmatprep.subr.mxu0 0.0
    %4008 = vmatpush1.xpose.msra.mxu0 0.0
    %4009 = vmatprep.subr.mxu0 0.0
    %4010 = vmatpush1.xpose.msra.mxu0 0.0
    %4011 = vmatprep.subr.mxu0 0.0
    %4012 = vmatpush1.xpose.msra.mxu0 0.0
    %4013 = vmatprep.subr.mxu0 0.0
    %4014 = vmatpush1.xpose.msra.mxu0 0.0
    %4015 = vmatprep.subr.mxu0 0.0
    %4016 = vmatpush1.xpose.msra.mxu0 0.0
    %4017 = vmatprep.subr.mxu0 0.0
    %4018 = vmatpush1.xpose.msra.mxu0 0.0
    %4019 = vmatprep.subr.mxu0 0.0
    %4020 = vmatpush1.xpose.msra.mxu0 0.0
    %4021 = vmatprep.subr.mxu0 0.0
    %4022 = vmatpush1.xpose.msra.mxu0 0.0
    %4023 = vmatprep.subr.mxu0 0.0
    %4024 = vmatpush1.xpose.msra.mxu0 0.0
    %4025 = vmatprep.subr.mxu0 0.0
    %4026 = vmatpush1.xpose.msra.mxu0 0.0
    %4027 = vmatprep.subr.mxu0 0.0
    %4028 = vmatpush1.xpose.msra.mxu0 0.0
    %4029 = vmatprep.subr.mxu0 0.0
    %4030 = vmatpush1.xpose.msra.mxu0 0.0
    %4031 = vmatprep.subr.mxu0 0.0
    %4032 = vmatpush1.xpose.msra.mxu0 0.0
    %4033 = vmatprep.subr.mxu0 0.0
    %4034 = vmatpush1.xpose.msra.mxu0 0.0
    %4035 = vmatprep.subr.mxu0 0.0
    %4036 = vmatpush1.xpose.msra.mxu0 0.0
    %4037 = vmatprep.subr.mxu0 0.0
    %4038 = vmatpush1.xpose.msra.mxu0 0.0
    %4039 = vmatprep.mubr.f32.mxu0 0.0
    %4040 = vmatmul.mubr.f32.gmra.mrb[0].mxu0 %v3971
    %v4041 = vpop.f32.mrb[0].mxu0
    %v4042 = vadd.f32 0.0, %v4041
    %v4043 = vpop.f32.mrb[0].mxu0
    %4044 = vdwg.mxu0
    %v4045 = vsel %vm471, %v3811, -inf
    %4046 = vmax.xlane.f32.xlu0 %v4045
    %v4047 = vpop.xlane.xlu0 %4046
    %v4048 = vsel %vm471, %v3888, -inf
    %4049 = vmax.xlane.f32.xlu0 %v4048
    %v4050 = vpop.xlane.xlu0 %4049
    %v4051 = vsel %vm471, %v3965, -inf
    %4052 = vmax.xlane.f32.xlu0 %v4051
    %v4053 = vpop.xlane.xlu0 %4052
    %v4054 = vsel %vm471, %v4042, -inf
    %4055 = vmax.xlane.f32.xlu0 %v4054
    %v4056 = vpop.xlane.xlu0 %4055
    %v4057 = vsub.f32 %v3811, %v4047
    %v4058 = vsub.f32 %v3888, %v4050
    %v4059 = vsub.f32 %v3965, %v4053
    %v4060 = vsub.f32 %v4042, %v4056
    %v4061 = vmul.f32 %v4057, 1.442695
    %v4062 = vpow.pop %v4061
    %v4063 = vmul.f32 %v4058, 1.442695
    %v4064 = vpow.pop %v4063
    %v4065 = vmul.f32 %v4059, 1.442695
    %v4066 = vpow.pop %v4065
    %v4067 = vmul.f32 %v4060, 1.442695
    %v4068 = vpow.pop %v4067
    %v4069 = vsel %vm471, %v4062, 0.0
    %4070 = vadd.xlane.f32.xlu0 %v4069
    %v4071 = vpop.xlane.xlu0 %4070
    %v4072 = vsel %vm471, %v4064, 0.0
    %4073 = vadd.xlane.f32.xlu0 %v4072
    %v4074 = vpop.xlane.xlu0 %4073
    %v4075 = vsel %vm471, %v4066, 0.0
    %4076 = vadd.xlane.f32.xlu0 %v4075
    %v4077 = vpop.xlane.xlu0 %4076
    %v4078 = vsel %vm471, %v4068, 0.0
    %4079 = vadd.xlane.f32.xlu0 %v4078
    %v4080 = vpop.xlane.xlu0 %4079
    %v4081 = vrcp.pop %v4071
    %v4082 = vmul.f32 %v4062, %v4081
    %v4083 = vrcp.pop %v4074
    %v4084 = vmul.f32 %v4064, %v4083
    %v4085 = vrcp.pop %v4077
    %v4086 = vmul.f32 %v4066, %v4085
    %v4087 = vrcp.pop %v4080
    %v4088 = vmul.f32 %v4068, %v4087
    %v4090 = vsel %vm471, %v4082, 0
    %4092 = vmatprep.subr.mxu0 0.0
    %4093 = vmatpush1.msra.mxu0 %v3717
    %4094 = vmatprep.subr.mxu0 0.0
    %4095 = vmatpush1.msra.mxu0 0.0
    %4096 = vmatprep.subr.mxu0 0.0
    %4097 = vmatpush1.msra.mxu0 0.0
    %4098 = vmatprep.subr.mxu0 0.0
    %4099 = vmatpush1.msra.mxu0 0.0
    %4100 = vmatprep.subr.mxu0 0.0
    %4101 = vmatpush1.msra.mxu0 0.0
    %4102 = vmatprep.subr.mxu0 0.0
    %4103 = vmatpush1.msra.mxu0 0.0
    %4104 = vmatprep.subr.mxu0 0.0
    %4105 = vmatpush1.msra.mxu0 0.0
    %4106 = vmatprep.subr.mxu0 0.0
    %4107 = vmatpush1.msra.mxu0 0.0
    %4108 = vmatprep.subr.mxu0 0.0
    %4109 = vmatpush1.msra.mxu0 0.0
    %4110 = vmatprep.subr.mxu0 0.0
    %4111 = vmatpush1.msra.mxu0 0.0
    %4112 = vmatprep.subr.mxu0 0.0
    %4113 = vmatpush1.msra.mxu0 0.0
    %4114 = vmatprep.subr.mxu0 0.0
    %4115 = vmatpush1.msra.mxu0 0.0
    %4116 = vmatprep.subr.mxu0 0.0
    %4117 = vmatpush1.msra.mxu0 0.0
    %4118 = vmatprep.subr.mxu0 0.0
    %4119 = vmatpush1.msra.mxu0 0.0
    %4120 = vmatprep.subr.mxu0 0.0
    %4121 = vmatpush1.msra.mxu0 0.0
    %4122 = vmatprep.subr.mxu0 0.0
    %4123 = vmatpush1.msra.mxu0 0.0
    %4124 = vmatprep.subr.mxu0 0.0
    %4125 = vmatpush1.msra.mxu0 0.0
    %4126 = vmatprep.subr.mxu0 0.0
    %4127 = vmatpush1.msra.mxu0 0.0
    %4128 = vmatprep.subr.mxu0 0.0
    %4129 = vmatpush1.msra.mxu0 0.0
    %4130 = vmatprep.subr.mxu0 0.0
    %4131 = vmatpush1.msra.mxu0 0.0
    %4132 = vmatprep.subr.mxu0 0.0
    %4133 = vmatpush1.msra.mxu0 0.0
    %4134 = vmatprep.subr.mxu0 0.0
    %4135 = vmatpush1.msra.mxu0 0.0
    %4136 = vmatprep.subr.mxu0 0.0
    %4137 = vmatpush1.msra.mxu0 0.0
    %4138 = vmatprep.subr.mxu0 0.0
    %4139 = vmatpush1.msra.mxu0 0.0
    %4140 = vmatprep.subr.mxu0 0.0
    %4141 = vmatpush1.msra.mxu0 0.0
    %4142 = vmatprep.subr.mxu0 0.0
    %4143 = vmatpush1.msra.mxu0 0.0
    %4144 = vmatprep.subr.mxu0 0.0
    %4145 = vmatpush1.msra.mxu0 0.0
    %4146 = vmatprep.subr.mxu0 0.0
    %4147 = vmatpush1.msra.mxu0 0.0
    %4148 = vmatprep.subr.mxu0 0.0
    %4149 = vmatpush1.msra.mxu0 0.0
    %4150 = vmatprep.subr.mxu0 0.0
    %4151 = vmatpush1.msra.mxu0 0.0
    %4152 = vmatprep.subr.mxu0 0.0
    %4153 = vmatpush1.msra.mxu0 0.0
    %4154 = vmatprep.subr.mxu0 0.0
    %4155 = vmatpush1.msra.mxu0 0.0
    %4156 = vmatprep.mubr.f32.mxu0 0.0
    %4157 = vmatmul.mubr.f32.gmra.mrb[0].mxu0 %v4090
    %v4158 = vpop.f32.mrb[0].mxu0
    %v4159 = vadd.f32 0.0, %v4158
    %v4160 = vpop.f32.mrb[0].mxu0
    %4161 = vdwg.mxu0
    %v4163 = vsel %vm471, %v4084, 0
    %4165 = vmatprep.subr.mxu0 0.0
    %4166 = vmatpush1.msra.mxu0 %v3723
    %4167 = vmatprep.subr.mxu0 0.0
    %4168 = vmatpush1.msra.mxu0 0.0
    %4169 = vmatprep.subr.mxu0 0.0
    %4170 = vmatpush1.msra.mxu0 0.0
    %4171 = vmatprep.subr.mxu0 0.0
    %4172 = vmatpush1.msra.mxu0 0.0
    %4173 = vmatprep.subr.mxu0 0.0
    %4174 = vmatpush1.msra.mxu0 0.0
    %4175 = vmatprep.subr.mxu0 0.0
    %4176 = vmatpush1.msra.mxu0 0.0
    %4177 = vmatprep.subr.mxu0 0.0
    %4178 = vmatpush1.msra.mxu0 0.0
    %4179 = vmatprep.subr.mxu0 0.0
    %4180 = vmatpush1.msra.mxu0 0.0
    %4181 = vmatprep.subr.mxu0 0.0
    %4182 = vmatpush1.msra.mxu0 0.0
    %4183 = vmatprep.subr.mxu0 0.0
    %4184 = vmatpush1.msra.mxu0 0.0
    %4185 = vmatprep.subr.mxu0 0.0
    %4186 = vmatpush1.msra.mxu0 0.0
    %4187 = vmatprep.subr.mxu0 0.0
    %4188 = vmatpush1.msra.mxu0 0.0
    %4189 = vmatprep.subr.mxu0 0.0
    %4190 = vmatpush1.msra.mxu0 0.0
    %4191 = vmatprep.subr.mxu0 0.0
    %4192 = vmatpush1.msra.mxu0 0.0
    %4193 = vmatprep.subr.mxu0 0.0
    %4194 = vmatpush1.msra.mxu0 0.0
    %4195 = vmatprep.subr.mxu0 0.0
    %4196 = vmatpush1.msra.mxu0 0.0
    %4197 = vmatprep.subr.mxu0 0.0
    %4198 = vmatpush1.msra.mxu0 0.0
    %4199 = vmatprep.subr.mxu0 0.0
    %4200 = vmatpush1.msra.mxu0 0.0
    %4201 = vmatprep.subr.mxu0 0.0
    %4202 = vmatpush1.msra.mxu0 0.0
    %4203 = vmatprep.subr.mxu0 0.0
    %4204 = vmatpush1.msra.mxu0 0.0
    %4205 = vmatprep.subr.mxu0 0.0
    %4206 = vmatpush1.msra.mxu0 0.0
    %4207 = vmatprep.subr.mxu0 0.0
    %4208 = vmatpush1.msra.mxu0 0.0
    %4209 = vmatprep.subr.mxu0 0.0
    %4210 = vmatpush1.msra.mxu0 0.0
    %4211 = vmatprep.subr.mxu0 0.0
    %4212 = vmatpush1.msra.mxu0 0.0
    %4213 = vmatprep.subr.mxu0 0.0
    %4214 = vmatpush1.msra.mxu0 0.0
    %4215 = vmatprep.subr.mxu0 0.0
    %4216 = vmatpush1.msra.mxu0 0.0
    %4217 = vmatprep.subr.mxu0 0.0
    %4218 = vmatpush1.msra.mxu0 0.0
    %4219 = vmatprep.subr.mxu0 0.0
    %4220 = vmatpush1.msra.mxu0 0.0
    %4221 = vmatprep.subr.mxu0 0.0
    %4222 = vmatpush1.msra.mxu0 0.0
    %4223 = vmatprep.subr.mxu0 0.0
    %4224 = vmatpush1.msra.mxu0 0.0
    %4225 = vmatprep.subr.mxu0 0.0
    %4226 = vmatpush1.msra.mxu0 0.0
    %4227 = vmatprep.subr.mxu0 0.0
    %4228 = vmatpush1.msra.mxu0 0.0
    %4229 = vmatprep.mubr.f32.mxu0 0.0
    %4230 = vmatmul.mubr.f32.gmra.mrb[0].mxu0 %v4163
    %v4231 = vpop.f32.mrb[0].mxu0
    %v4232 = vadd.f32 0.0, %v4231
    %v4233 = vpop.f32.mrb[0].mxu0
    %4234 = vdwg.mxu0
    %v4236 = vsel %vm471, %v4086, 0
    %4238 = vmatprep.subr.mxu0 0.0
    %4239 = vmatpush1.msra.mxu0 %v3729
    %4240 = vmatprep.subr.mxu0 0.0
    %4241 = vmatpush1.msra.mxu0 0.0
    %4242 = vmatprep.subr.mxu0 0.0
    %4243 = vmatpush1.msra.mxu0 0.0
    %4244 = vmatprep.subr.mxu0 0.0
    %4245 = vmatpush1.msra.mxu0 0.0
    %4246 = vmatprep.subr.mxu0 0.0
    %4247 = vmatpush1.msra.mxu0 0.0
    %4248 = vmatprep.subr.mxu0 0.0
    %4249 = vmatpush1.msra.mxu0 0.0
    %4250 = vmatprep.subr.mxu0 0.0
    %4251 = vmatpush1.msra.mxu0 0.0
    %4252 = vmatprep.subr.mxu0 0.0
    %4253 = vmatpush1.msra.mxu0 0.0
    %4254 = vmatprep.subr.mxu0 0.0
    %4255 = vmatpush1.msra.mxu0 0.0
    %4256 = vmatprep.subr.mxu0 0.0
    %4257 = vmatpush1.msra.mxu0 0.0
    %4258 = vmatprep.subr.mxu0 0.0
    %4259 = vmatpush1.msra.mxu0 0.0
    %4260 = vmatprep.subr.mxu0 0.0
    %4261 = vmatpush1.msra.mxu0 0.0
    %4262 = vmatprep.subr.mxu0 0.0
    %4263 = vmatpush1.msra.mxu0 0.0
    %4264 = vmatprep.subr.mxu0 0.0
    %4265 = vmatpush1.msra.mxu0 0.0
    %4266 = vmatprep.subr.mxu0 0.0
    %4267 = vmatpush1.msra.mxu0 0.0
    %4268 = vmatprep.subr.mxu0 0.0
    %4269 = vmatpush1.msra.mxu0 0.0
    %4270 = vmatprep.subr.mxu0 0.0
    %4271 = vmatpush1.msra.mxu0 0.0
    %4272 = vmatprep.subr.mxu0 0.0
    %4273 = vmatpush1.msra.mxu0 0.0
    %4274 = vmatprep.subr.mxu0 0.0
    %4275 = vmatpush1.msra.mxu0 0.0
    %4276 = vmatprep.subr.mxu0 0.0
    %4277 = vmatpush1.msra.mxu0 0.0
    %4278 = vmatprep.subr.mxu0 0.0
    %4279 = vmatpush1.msra.mxu0 0.0
    %4280 = vmatprep.subr.mxu0 0.0
    %4281 = vmatpush1.msra.mxu0 0.0
    %4282 = vmatprep.subr.mxu0 0.0
    %4283 = vmatpush1.msra.mxu0 0.0
    %4284 = vmatprep.subr.mxu0 0.0
    %4285 = vmatpush1.msra.mxu0 0.0
    %4286 = vmatprep.subr.mxu0 0.0
    %4287 = vmatpush1.msra.mxu0 0.0
    %4288 = vmatprep.subr.mxu0 0.0
    %4289 = vmatpush1.msra.mxu0 0.0
    %4290 = vmatprep.subr.mxu0 0.0
    %4291 = vmatpush1.msra.mxu0 0.0
    %4292 = vmatprep.subr.mxu0 0.0
    %4293 = vmatpush1.msra.mxu0 0.0
    %4294 = vmatprep.subr.mxu0 0.0
    %4295 = vmatpush1.msra.mxu0 0.0
    %4296 = vmatprep.subr.mxu0 0.0
    %4297 = vmatpush1.msra.mxu0 0.0
    %4298 = vmatprep.subr.mxu0 0.0
    %4299 = vmatpush1.msra.mxu0 0.0
    %4300 = vmatprep.subr.mxu0 0.0
    %4301 = vmatpush1.msra.mxu0 0.0
    %4302 = vmatprep.mubr.f32.mxu0 0.0
    %4303 = vmatmul.mubr.f32.gmra.mrb[0].mxu0 %v4236
    %v4304 = vpop.f32.mrb[0].mxu0
    %v4305 = vadd.f32 0.0, %v4304
    %v4306 = vpop.f32.mrb[0].mxu0
    %4307 = vdwg.mxu0
    %v4309 = vsel %vm471, %v4088, 0
    %4311 = vmatprep.subr.mxu0 0.0
    %4312 = vmatpush1.msra.mxu0 %v3735
    %4313 = vmatprep.subr.mxu0 0.0
    %4314 = vmatpush1.msra.mxu0 0.0
    %4315 = vmatprep.subr.mxu0 0.0
    %4316 = vmatpush1.msra.mxu0 0.0
    %4317 = vmatprep.subr.mxu0 0.0
    %4318 = vmatpush1.msra.mxu0 0.0
    %4319 = vmatprep.subr.mxu0 0.0
    %4320 = vmatpush1.msra.mxu0 0.0
    %4321 = vmatprep.subr.mxu0 0.0
    %4322 = vmatpush1.msra.mxu0 0.0
    %4323 = vmatprep.subr.mxu0 0.0
    %4324 = vmatpush1.msra.mxu0 0.0
    %4325 = vmatprep.subr.mxu0 0.0
    %4326 = vmatpush1.msra.mxu0 0.0
    %4327 = vmatprep.subr.mxu0 0.0
    %4328 = vmatpush1.msra.mxu0 0.0
    %4329 = vmatprep.subr.mxu0 0.0
    %4330 = vmatpush1.msra.mxu0 0.0
    %4331 = vmatprep.subr.mxu0 0.0
    %4332 = vmatpush1.msra.mxu0 0.0
    %4333 = vmatprep.subr.mxu0 0.0
    %4334 = vmatpush1.msra.mxu0 0.0
    %4335 = vmatprep.subr.mxu0 0.0
    %4336 = vmatpush1.msra.mxu0 0.0
    %4337 = vmatprep.subr.mxu0 0.0
    %4338 = vmatpush1.msra.mxu0 0.0
    %4339 = vmatprep.subr.mxu0 0.0
    %4340 = vmatpush1.msra.mxu0 0.0
    %4341 = vmatprep.subr.mxu0 0.0
    %4342 = vmatpush1.msra.mxu0 0.0
    %4343 = vmatprep.subr.mxu0 0.0
    %4344 = vmatpush1.msra.mxu0 0.0
    %4345 = vmatprep.subr.mxu0 0.0
    %4346 = vmatpush1.msra.mxu0 0.0
    %4347 = vmatprep.subr.mxu0 0.0
    %4348 = vmatpush1.msra.mxu0 0.0
    %4349 = vmatprep.subr.mxu0 0.0
    %4350 = vmatpush1.msra.mxu0 0.0
    %4351 = vmatprep.subr.mxu0 0.0
    %4352 = vmatpush1.msra.mxu0 0.0
    %4353 = vmatprep.subr.mxu0 0.0
    %4354 = vmatpush1.msra.mxu0 0.0
    %4355 = vmatprep.subr.mxu0 0.0
    %4356 = vmatpush1.msra.mxu0 0.0
    %4357 = vmatprep.subr.mxu0 0.0
    %4358 = vmatpush1.msra.mxu0 0.0
    %4359 = vmatprep.subr.mxu0 0.0
    %4360 = vmatpush1.msra.mxu0 0.0
    %4361 = vmatprep.subr.mxu0 0.0
    %4362 = vmatpush1.msra.mxu0 0.0
    %4363 = vmatprep.subr.mxu0 0.0
    %4364 = vmatpush1.msra.mxu0 0.0
    %4365 = vmatprep.subr.mxu0 0.0
    %4366 = vmatpush1.msra.mxu0 0.0
    %4367 = vmatprep.subr.mxu0 0.0
    %4368 = vmatpush1.msra.mxu0 0.0
    %4369 = vmatprep.subr.mxu0 0.0
    %4370 = vmatpush1.msra.mxu0 0.0
    %4371 = vmatprep.subr.mxu0 0.0
    %4372 = vmatpush1.msra.mxu0 0.0
    %4373 = vmatprep.subr.mxu0 0.0
    %4374 = vmatpush1.msra.mxu0 0.0
    %4375 = vmatprep.mubr.f32.mxu0 0.0
    %4376 = vmatmul.mubr.f32.gmra.mrb[0].mxu0 %v4309
    %v4377 = vpop.f32.mrb[0].mxu0
    %v4378 = vadd.f32 0.0, %v4377
    %v4379 = vpop.f32.mrb[0].mxu0
    %4380 = vdwg.mxu0
    %4381 = vrot.lane.b32.xlu0 %v3715, 112
    %v4382 = vpop.permute.xlu0 %4381
    %4383 = vrot.lane.b32.xlu0 %v3715, 48
    %v4384 = vpop.permute.xlu0 %4383
    %v4385 = vsel %vm165, %v4382, 0
    %v4387 = vsel %vm165, %v4384, 0
    %4389 = vmatprep.subr.mxu0 0.0
    %4390 = vmatpush1.xpose.msra.mxu0 %v4387
    %4391 = vmatprep.subr.mxu0 0.0
    %4392 = vmatpush1.xpose.msra.mxu0 0.0
    %4393 = vmatprep.subr.mxu0 0.0
    %4394 = vmatpush1.xpose.msra.mxu0 0.0
    %4395 = vmatprep.subr.mxu0 0.0
    %4396 = vmatpush1.xpose.msra.mxu0 0.0
    %4397 = vmatprep.subr.mxu0 0.0
    %4398 = vmatpush1.xpose.msra.mxu0 0.0
    %4399 = vmatprep.subr.mxu0 0.0
    %4400 = vmatpush1.xpose.msra.mxu0 0.0
    %4401 = vmatprep.subr.mxu0 0.0
    %4402 = vmatpush1.xpose.msra.mxu0 0.0
    %4403 = vmatprep.subr.mxu0 0.0
    %4404 = vmatpush1.xpose.msra.mxu0 0.0
    %4405 = vmatprep.subr.mxu0 0.0
    %4406 = vmatpush1.xpose.msra.mxu0 0.0
    %4407 = vmatprep.subr.mxu0 0.0
    %4408 = vmatpush1.xpose.msra.mxu0 0.0
    %4409 = vmatprep.subr.mxu0 0.0
    %4410 = vmatpush1.xpose.msra.mxu0 0.0
    %4411 = vmatprep.subr.mxu0 0.0
    %4412 = vmatpush1.xpose.msra.mxu0 0.0
    %4413 = vmatprep.subr.mxu0 0.0
    %4414 = vmatpush1.xpose.msra.mxu0 0.0
    %4415 = vmatprep.subr.mxu0 0.0
    %4416 = vmatpush1.xpose.msra.mxu0 0.0
    %4417 = vmatprep.subr.mxu0 0.0
    %4418 = vmatpush1.xpose.msra.mxu0 0.0
    %4419 = vmatprep.subr.mxu0 0.0
    %4420 = vmatpush1.xpose.msra.mxu0 0.0
    %4421 = vmatprep.subr.mxu0 0.0
    %4422 = vmatpush1.xpose.msra.mxu0 0.0
    %4423 = vmatprep.subr.mxu0 0.0
    %4424 = vmatpush1.xpose.msra.mxu0 0.0
    %4425 = vmatprep.subr.mxu0 0.0
    %4426 = vmatpush1.xpose.msra.mxu0 0.0
    %4427 = vmatprep.subr.mxu0 0.0
    %4428 = vmatpush1.xpose.msra.mxu0 0.0
    %4429 = vmatprep.subr.mxu0 0.0
    %4430 = vmatpush1.xpose.msra.mxu0 0.0
    %4431 = vmatprep.subr.mxu0 0.0
    %4432 = vmatpush1.xpose.msra.mxu0 0.0
    %4433 = vmatprep.subr.mxu0 0.0
    %4434 = vmatpush1.xpose.msra.mxu0 0.0
    %4435 = vmatprep.subr.mxu0 0.0
    %4436 = vmatpush1.xpose.msra.mxu0 0.0
    %4437 = vmatprep.subr.mxu0 0.0
    %4438 = vmatpush1.xpose.msra.mxu0 0.0
    %4439 = vmatprep.subr.mxu0 0.0
    %4440 = vmatpush1.xpose.msra.mxu0 0.0
    %4441 = vmatprep.subr.mxu0 0.0
    %4442 = vmatpush1.xpose.msra.mxu0 0.0
    %4443 = vmatprep.subr.mxu0 0.0
    %4444 = vmatpush1.xpose.msra.mxu0 0.0
    %4445 = vmatprep.subr.mxu0 0.0
    %4446 = vmatpush1.xpose.msra.mxu0 0.0
    %4447 = vmatprep.subr.mxu0 0.0
    %4448 = vmatpush1.xpose.msra.mxu0 0.0
    %4449 = vmatprep.subr.mxu0 0.0
    %4450 = vmatpush1.xpose.msra.mxu0 0.0
    %4451 = vmatprep.subr.mxu0 0.0
    %4452 = vmatpush1.xpose.msra.mxu0 0.0
    %4453 = vmatprep.mubr.f32.mxu0 0.0
    %4454 = vmatmul.mubr.f32.gmra.mrb[0].mxu0 %v4385
    %v4455 = vpop.f32.mrb[0].mxu0
    %v4456 = vadd.f32 0.0, %v4455
    %v4457 = vpop.f32.mrb[0].mxu0
    %4458 = vdwg.mxu0
    %4459 = vrot.lane.b32.xlu0 %v3721, 112
    %v4460 = vpop.permute.xlu0 %4459
    %4461 = vrot.lane.b32.xlu0 %v3721, 48
    %v4462 = vpop.permute.xlu0 %4461
    %v4463 = vsel %vm165, %v4460, 0
    %v4465 = vsel %vm165, %v4462, 0
    %4467 = vmatprep.subr.mxu0 0.0
    %4468 = vmatpush1.xpose.msra.mxu0 %v4465
    %4469 = vmatprep.subr.mxu0 0.0
    %4470 = vmatpush1.xpose.msra.mxu0 0.0
    %4471 = vmatprep.subr.mxu0 0.0
    %4472 = vmatpush1.xpose.msra.mxu0 0.0
    %4473 = vmatprep.subr.mxu0 0.0
    %4474 = vmatpush1.xpose.msra.mxu0 0.0
    %4475 = vmatprep.subr.mxu0 0.0
    %4476 = vmatpush1.xpose.msra.mxu0 0.0
    %4477 = vmatprep.subr.mxu0 0.0
    %4478 = vmatpush1.xpose.msra.mxu0 0.0
    %4479 = vmatprep.subr.mxu0 0.0
    %4480 = vmatpush1.xpose.msra.mxu0 0.0
    %4481 = vmatprep.subr.mxu0 0.0
    %4482 = vmatpush1.xpose.msra.mxu0 0.0
    %4483 = vmatprep.subr.mxu0 0.0
    %4484 = vmatpush1.xpose.msra.mxu0 0.0
    %4485 = vmatprep.subr.mxu0 0.0
    %4486 = vmatpush1.xpose.msra.mxu0 0.0
    %4487 = vmatprep.subr.mxu0 0.0
    %4488 = vmatpush1.xpose.msra.mxu0 0.0
    %4489 = vmatprep.subr.mxu0 0.0
    %4490 = vmatpush1.xpose.msra.mxu0 0.0
    %4491 = vmatprep.subr.mxu0 0.0
    %4492 = vmatpush1.xpose.msra.mxu0 0.0
    %4493 = vmatprep.subr.mxu0 0.0
    %4494 = vmatpush1.xpose.msra.mxu0 0.0
    %4495 = vmatprep.subr.mxu0 0.0
    %4496 = vmatpush1.xpose.msra.mxu0 0.0
    %4497 = vmatprep.subr.mxu0 0.0
    %4498 = vmatpush1.xpose.msra.mxu0 0.0
    %4499 = vmatprep.subr.mxu0 0.0
    %4500 = vmatpush1.xpose.msra.mxu0 0.0
    %4501 = vmatprep.subr.mxu0 0.0
    %4502 = vmatpush1.xpose.msra.mxu0 0.0
    %4503 = vmatprep.subr.mxu0 0.0
    %4504 = vmatpush1.xpose.msra.mxu0 0.0
    %4505 = vmatprep.subr.mxu0 0.0
    %4506 = vmatpush1.xpose.msra.mxu0 0.0
    %4507 = vmatprep.subr.mxu0 0.0
    %4508 = vmatpush1.xpose.msra.mxu0 0.0
    %4509 = vmatprep.subr.mxu0 0.0
    %4510 = vmatpush1.xpose.msra.mxu0 0.0
    %4511 = vmatprep.subr.mxu0 0.0
    %4512 = vmatpush1.xpose.msra.mxu0 0.0
    %4513 = vmatprep.subr.mxu0 0.0
    %4514 = vmatpush1.xpose.msra.mxu0 0.0
    %4515 = vmatprep.subr.mxu0 0.0
    %4516 = vmatpush1.xpose.msra.mxu0 0.0
    %4517 = vmatprep.subr.mxu0 0.0
    %4518 = vmatpush1.xpose.msra.mxu0 0.0
    %4519 = vmatprep.subr.mxu0 0.0
    %4520 = vmatpush1.xpose.msra.mxu0 0.0
    %4521 = vmatprep.subr.mxu0 0.0
    %4522 = vmatpush1.xpose.msra.mxu0 0.0
    %4523 = vmatprep.subr.mxu0 0.0
    %4524 = vmatpush1.xpose.msra.mxu0 0.0
    %4525 = vmatprep.subr.mxu0 0.0
    %4526 = vmatpush1.xpose.msra.mxu0 0.0
    %4527 = vmatprep.subr.mxu0 0.0
    %4528 = vmatpush1.xpose.msra.mxu0 0.0
    %4529 = vmatprep.subr.mxu0 0.0
    %4530 = vmatpush1.xpose.msra.mxu0 0.0
    %4531 = vmatprep.mubr.f32.mxu0 0.0
    %4532 = vmatmul.mubr.f32.gmra.mrb[0].mxu0 %v4463
    %v4533 = vpop.f32.mrb[0].mxu0
    %v4534 = vadd.f32 0.0, %v4533
    %v4535 = vpop.f32.mrb[0].mxu0
    %4536 = vdwg.mxu0
    %4537 = vrot.lane.b32.xlu0 %v3727, 112
    %v4538 = vpop.permute.xlu0 %4537
    %4539 = vrot.lane.b32.xlu0 %v3727, 48
    %v4540 = vpop.permute.xlu0 %4539
    %v4541 = vsel %vm165, %v4538, 0
    %v4543 = vsel %vm165, %v4540, 0
    %4545 = vmatprep.subr.mxu0 0.0
    %4546 = vmatpush1.xpose.msra.mxu0 %v4543
    %4547 = vmatprep.subr.mxu0 0.0
    %4548 = vmatpush1.xpose.msra.mxu0 0.0
    %4549 = vmatprep.subr.mxu0 0.0
    %4550 = vmatpush1.xpose.msra.mxu0 0.0
    %4551 = vmatprep.subr.mxu0 0.0
    %4552 = vmatpush1.xpose.msra.mxu0 0.0
    %4553 = vmatprep.subr.mxu0 0.0
    %4554 = vmatpush1.xpose.msra.mxu0 0.0
    %4555 = vmatprep.subr.mxu0 0.0
    %4556 = vmatpush1.xpose.msra.mxu0 0.0
    %4557 = vmatprep.subr.mxu0 0.0
    %4558 = vmatpush1.xpose.msra.mxu0 0.0
    %4559 = vmatprep.subr.mxu0 0.0
    %4560 = vmatpush1.xpose.msra.mxu0 0.0
    %4561 = vmatprep.subr.mxu0 0.0
    %4562 = vmatpush1.xpose.msra.mxu0 0.0
    %4563 = vmatprep.subr.mxu0 0.0
    %4564 = vmatpush1.xpose.msra.mxu0 0.0
    %4565 = vmatprep.subr.mxu0 0.0
    %4566 = vmatpush1.xpose.msra.mxu0 0.0
    %4567 = vmatprep.subr.mxu0 0.0
    %4568 = vmatpush1.xpose.msra.mxu0 0.0
    %4569 = vmatprep.subr.mxu0 0.0
    %4570 = vmatpush1.xpose.msra.mxu0 0.0
    %4571 = vmatprep.subr.mxu0 0.0
    %4572 = vmatpush1.xpose.msra.mxu0 0.0
    %4573 = vmatprep.subr.mxu0 0.0
    %4574 = vmatpush1.xpose.msra.mxu0 0.0
    %4575 = vmatprep.subr.mxu0 0.0
    %4576 = vmatpush1.xpose.msra.mxu0 0.0
    %4577 = vmatprep.subr.mxu0 0.0
    %4578 = vmatpush1.xpose.msra.mxu0 0.0
    %4579 = vmatprep.subr.mxu0 0.0
    %4580 = vmatpush1.xpose.msra.mxu0 0.0
    %4581 = vmatprep.subr.mxu0 0.0
    %4582 = vmatpush1.xpose.msra.mxu0 0.0
    %4583 = vmatprep.subr.mxu0 0.0
    %4584 = vmatpush1.xpose.msra.mxu0 0.0
    %4585 = vmatprep.subr.mxu0 0.0
    %4586 = vmatpush1.xpose.msra.mxu0 0.0
    %4587 = vmatprep.subr.mxu0 0.0
    %4588 = vmatpush1.xpose.msra.mxu0 0.0
    %4589 = vmatprep.subr.mxu0 0.0
    %4590 = vmatpush1.xpose.msra.mxu0 0.0
    %4591 = vmatprep.subr.mxu0 0.0
    %4592 = vmatpush1.xpose.msra.mxu0 0.0
    %4593 = vmatprep.subr.mxu0 0.0
    %4594 = vmatpush1.xpose.msra.mxu0 0.0
    %4595 = vmatprep.subr.mxu0 0.0
    %4596 = vmatpush1.xpose.msra.mxu0 0.0
    %4597 = vmatprep.subr.mxu0 0.0
    %4598 = vmatpush1.xpose.msra.mxu0 0.0
    %4599 = vmatprep.subr.mxu0 0.0
    %4600 = vmatpush1.xpose.msra.mxu0 0.0
    %4601 = vmatprep.subr.mxu0 0.0
    %4602 = vmatpush1.xpose.msra.mxu0 0.0
    %4603 = vmatprep.subr.mxu0 0.0
    %4604 = vmatpush1.xpose.msra.mxu0 0.0
    %4605 = vmatprep.subr.mxu0 0.0
    %4606 = vmatpush1.xpose.msra.mxu0 0.0
    %4607 = vmatprep.subr.mxu0 0.0
    %4608 = vmatpush1.xpose.msra.mxu0 0.0
    %4609 = vmatprep.mubr.f32.mxu0 0.0
    %4610 = vmatmul.mubr.f32.gmra.mrb[0].mxu0 %v4541
    %v4611 = vpop.f32.mrb[0].mxu0
    %v4612 = vadd.f32 0.0, %v4611
    %v4613 = vpop.f32.mrb[0].mxu0
    %4614 = vdwg.mxu0
    %4615 = vrot.lane.b32.xlu0 %v3733, 112
    %v4616 = vpop.permute.xlu0 %4615
    %4617 = vrot.lane.b32.xlu0 %v3733, 48
    %v4618 = vpop.permute.xlu0 %4617
    %v4619 = vsel %vm165, %v4616, 0
    %v4621 = vsel %vm165, %v4618, 0
    %4623 = vmatprep.subr.mxu0 0.0
    %4624 = vmatpush1.xpose.msra.mxu0 %v4621
    %4625 = vmatprep.subr.mxu0 0.0
    %4626 = vmatpush1.xpose.msra.mxu0 0.0
    %4627 = vmatprep.subr.mxu0 0.0
    %4628 = vmatpush1.xpose.msra.mxu0 0.0
    %4629 = vmatprep.subr.mxu0 0.0
    %4630 = vmatpush1.xpose.msra.mxu0 0.0
    %4631 = vmatprep.subr.mxu0 0.0
    %4632 = vmatpush1.xpose.msra.mxu0 0.0
    %4633 = vmatprep.subr.mxu0 0.0
    %4634 = vmatpush1.xpose.msra.mxu0 0.0
    %4635 = vmatprep.subr.mxu0 0.0
    %4636 = vmatpush1.xpose.msra.mxu0 0.0
    %4637 = vmatprep.subr.mxu0 0.0
    %4638 = vmatpush1.xpose.msra.mxu0 0.0
    %4639 = vmatprep.subr.mxu0 0.0
    %4640 = vmatpush1.xpose.msra.mxu0 0.0
    %4641 = vmatprep.subr.mxu0 0.0
    %4642 = vmatpush1.xpose.msra.mxu0 0.0
    %4643 = vmatprep.subr.mxu0 0.0
    %4644 = vmatpush1.xpose.msra.mxu0 0.0
    %4645 = vmatprep.subr.mxu0 0.0
    %4646 = vmatpush1.xpose.msra.mxu0 0.0
    %4647 = vmatprep.subr.mxu0 0.0
    %4648 = vmatpush1.xpose.msra.mxu0 0.0
    %4649 = vmatprep.subr.mxu0 0.0
    %4650 = vmatpush1.xpose.msra.mxu0 0.0
    %4651 = vmatprep.subr.mxu0 0.0
    %4652 = vmatpush1.xpose.msra.mxu0 0.0
    %4653 = vmatprep.subr.mxu0 0.0
    %4654 = vmatpush1.xpose.msra.mxu0 0.0
    %4655 = vmatprep.subr.mxu0 0.0
    %4656 = vmatpush1.xpose.msra.mxu0 0.0
    %4657 = vmatprep.subr.mxu0 0.0
    %4658 = vmatpush1.xpose.msra.mxu0 0.0
    %4659 = vmatprep.subr.mxu0 0.0
    %4660 = vmatpush1.xpose.msra.mxu0 0.0
    %4661 = vmatprep.subr.mxu0 0.0
    %4662 = vmatpush1.xpose.msra.mxu0 0.0
    %4663 = vmatprep.subr.mxu0 0.0
    %4664 = vmatpush1.xpose.msra.mxu0 0.0
    %4665 = vmatprep.subr.mxu0 0.0
    %4666 = vmatpush1.xpose.msra.mxu0 0.0
    %4667 = vmatprep.subr.mxu0 0.0
    %4668 = vmatpush1.xpose.msra.mxu0 0.0
    %4669 = vmatprep.subr.mxu0 0.0
    %4670 = vmatpush1.xpose.msra.mxu0 0.0
    %4671 = vmatprep.subr.mxu0 0.0
    %4672 = vmatpush1.xpose.msra.mxu0 0.0
    %4673 = vmatprep.subr.mxu0 0.0
    %4674 = vmatpush1.xpose.msra.mxu0 0.0
    %4675 = vmatprep.subr.mxu0 0.0
    %4676 = vmatpush1.xpose.msra.mxu0 0.0
    %4677 = vmatprep.subr.mxu0 0.0
    %4678 = vmatpush1.xpose.msra.mxu0 0.0
    %4679 = vmatprep.subr.mxu0 0.0
    %4680 = vmatpush1.xpose.msra.mxu0 0.0
    %4681 = vmatprep.subr.mxu0 0.0
    %4682 = vmatpush1.xpose.msra.mxu0 0.0
    %4683 = vmatprep.subr.mxu0 0.0
    %4684 = vmatpush1.xpose.msra.mxu0 0.0
    %4685 = vmatprep.subr.mxu0 0.0
    %4686 = vmatpush1.xpose.msra.mxu0 0.0
    %4687 = vmatprep.mubr.f32.mxu0 0.0
    %4688 = vmatmul.mubr.f32.gmra.mrb[0].mxu0 %v4619
    %v4689 = vpop.f32.mrb[0].mxu0
    %v4690 = vadd.f32 0.0, %v4689
    %v4691 = vpop.f32.mrb[0].mxu0
    %4692 = vdwg.mxu0
    %v4693 = vsel %vm471, %v4456, -inf
    %4694 = vmax.xlane.f32.xlu0 %v4693
    %v4695 = vpop.xlane.xlu0 %4694
    %v4696 = vsel %vm471, %v4534, -inf
    %4697 = vmax.xlane.f32.xlu0 %v4696
    %v4698 = vpop.xlane.xlu0 %4697
    %v4699 = vsel %vm471, %v4612, -inf
    %4700 = vmax.xlane.f32.xlu0 %v4699
    %v4701 = vpop.xlane.xlu0 %4700
    %v4702 = vsel %vm471, %v4690, -inf
    %4703 = vmax.xlane.f32.xlu0 %v4702
    %v4704 = vpop.xlane.xlu0 %4703
    %v4705 = vsub.f32 %v4456, %v4695
    %v4706 = vsub.f32 %v4534, %v4698
    %v4707 = vsub.f32 %v4612, %v4701
    %v4708 = vsub.f32 %v4690, %v4704
    %v4709 = vmul.f32 %v4705, 1.442695
    %v4710 = vpow.pop %v4709
    %v4711 = vmul.f32 %v4706, 1.442695
    %v4712 = vpow.pop %v4711
    %v4713 = vmul.f32 %v4707, 1.442695
    %v4714 = vpow.pop %v4713
    %v4715 = vmul.f32 %v4708, 1.442695
    %v4716 = vpow.pop %v4715
    %v4717 = vsel %vm471, %v4710, 0.0
    %4718 = vadd.xlane.f32.xlu0 %v4717
    %v4719 = vpop.xlane.xlu0 %4718
    %v4720 = vsel %vm471, %v4712, 0.0
    %4721 = vadd.xlane.f32.xlu0 %v4720
    %v4722 = vpop.xlane.xlu0 %4721
    %v4723 = vsel %vm471, %v4714, 0.0
    %4724 = vadd.xlane.f32.xlu0 %v4723
    %v4725 = vpop.xlane.xlu0 %4724
    %v4726 = vsel %vm471, %v4716, 0.0
    %4727 = vadd.xlane.f32.xlu0 %v4726
    %v4728 = vpop.xlane.xlu0 %4727
    %v4729 = vrcp.pop %v4719
    %v4730 = vmul.f32 %v4710, %v4729
    %v4731 = vrcp.pop %v4722
    %v4732 = vmul.f32 %v4712, %v4731
    %v4733 = vrcp.pop %v4725
    %v4734 = vmul.f32 %v4714, %v4733
    %v4735 = vrcp.pop %v4728
    %v4736 = vmul.f32 %v4716, %v4735
    %4738 = vrot.lane.b32.xlu0 %v3717, 112
    %v4739 = vpop.permute.xlu0 %4738
    %v4742 = vsel %vm471, %v4730, 0
    %4744 = vmatprep.subr.mxu0 0.0
    %4745 = vmatpush1.msra.mxu0 %v4739
    %4746 = vmatprep.subr.mxu0 0.0
    %4747 = vmatpush1.msra.mxu0 0.0
    %4748 = vmatprep.subr.mxu0 0.0
    %4749 = vmatpush1.msra.mxu0 0.0
    %4750 = vmatprep.subr.mxu0 0.0
    %4751 = vmatpush1.msra.mxu0 0.0
    %4752 = vmatprep.subr.mxu0 0.0
    %4753 = vmatpush1.msra.mxu0 0.0
    %4754 = vmatprep.subr.mxu0 0.0
    %4755 = vmatpush1.msra.mxu0 0.0
    %4756 = vmatprep.subr.mxu0 0.0
    %4757 = vmatpush1.msra.mxu0 0.0
    %4758 = vmatprep.subr.mxu0 0.0
    %4759 = vmatpush1.msra.mxu0 0.0
    %4760 = vmatprep.subr.mxu0 0.0
    %4761 = vmatpush1.msra.mxu0 0.0
    %4762 = vmatprep.subr.mxu0 0.0
    %4763 = vmatpush1.msra.mxu0 0.0
    %4764 = vmatprep.subr.mxu0 0.0
    %4765 = vmatpush1.msra.mxu0 0.0
    %4766 = vmatprep.subr.mxu0 0.0
    %4767 = vmatpush1.msra.mxu0 0.0
    %4768 = vmatprep.subr.mxu0 0.0
    %4769 = vmatpush1.msra.mxu0 0.0
    %4770 = vmatprep.subr.mxu0 0.0
    %4771 = vmatpush1.msra.mxu0 0.0
    %4772 = vmatprep.subr.mxu0 0.0
    %4773 = vmatpush1.msra.mxu0 0.0
    %4774 = vmatprep.subr.mxu0 0.0
    %4775 = vmatpush1.msra.mxu0 0.0
    %4776 = vmatprep.subr.mxu0 0.0
    %4777 = vmatpush1.msra.mxu0 0.0
    %4778 = vmatprep.subr.mxu0 0.0
    %4779 = vmatpush1.msra.mxu0 0.0
    %4780 = vmatprep.subr.mxu0 0.0
    %4781 = vmatpush1.msra.mxu0 0.0
    %4782 = vmatprep.subr.mxu0 0.0
    %4783 = vmatpush1.msra.mxu0 0.0
    %4784 = vmatprep.subr.mxu0 0.0
    %4785 = vmatpush1.msra.mxu0 0.0
    %4786 = vmatprep.subr.mxu0 0.0
    %4787 = vmatpush1.msra.mxu0 0.0
    %4788 = vmatprep.subr.mxu0 0.0
    %4789 = vmatpush1.msra.mxu0 0.0
    %4790 = vmatprep.subr.mxu0 0.0
    %4791 = vmatpush1.msra.mxu0 0.0
    %4792 = vmatprep.subr.mxu0 0.0
    %4793 = vmatpush1.msra.mxu0 0.0
    %4794 = vmatprep.subr.mxu0 0.0
    %4795 = vmatpush1.msra.mxu0 0.0
    %4796 = vmatprep.subr.mxu0 0.0
    %4797 = vmatpush1.msra.mxu0 0.0
    %4798 = vmatprep.subr.mxu0 0.0
    %4799 = vmatpush1.msra.mxu0 0.0
    %4800 = vmatprep.subr.mxu0 0.0
    %4801 = vmatpush1.msra.mxu0 0.0
    %4802 = vmatprep.subr.mxu0 0.0
    %4803 = vmatpush1.msra.mxu0 0.0
    %4804 = vmatprep.subr.mxu0 0.0
    %4805 = vmatpush1.msra.mxu0 0.0
    %4806 = vmatprep.subr.mxu0 0.0
    %4807 = vmatpush1.msra.mxu0 0.0
    %4808 = vmatprep.mubr.f32.mxu0 0.0
    %4809 = vmatmul.mubr.f32.gmra.mrb[0].mxu0 %v4742
    %v4810 = vpop.f32.mrb[0].mxu0
    %v4811 = vadd.f32 0.0, %v4810
    %v4812 = vpop.f32.mrb[0].mxu0
    %4813 = vdwg.mxu0
    %4815 = vrot.lane.b32.xlu0 %v3723, 112
    %v4816 = vpop.permute.xlu0 %4815
    %v4819 = vsel %vm471, %v4732, 0
    %4821 = vmatprep.subr.mxu0 0.0
    %4822 = vmatpush1.msra.mxu0 %v4816
    %4823 = vmatprep.subr.mxu0 0.0
    %4824 = vmatpush1.msra.mxu0 0.0
    %4825 = vmatprep.subr.mxu0 0.0
    %4826 = vmatpush1.msra.mxu0 0.0
    %4827 = vmatprep.subr.mxu0 0.0
    %4828 = vmatpush1.msra.mxu0 0.0
    %4829 = vmatprep.subr.mxu0 0.0
    %4830 = vmatpush1.msra.mxu0 0.0
    %4831 = vmatprep.subr.mxu0 0.0
    %4832 = vmatpush1.msra.mxu0 0.0
    %4833 = vmatprep.subr.mxu0 0.0
    %4834 = vmatpush1.msra.mxu0 0.0
    %4835 = vmatprep.subr.mxu0 0.0
    %4836 = vmatpush1.msra.mxu0 0.0
    %4837 = vmatprep.subr.mxu0 0.0
    %4838 = vmatpush1.msra.mxu0 0.0
    %4839 = vmatprep.subr.mxu0 0.0
    %4840 = vmatpush1.msra.mxu0 0.0
    %4841 = vmatprep.subr.mxu0 0.0
    %4842 = vmatpush1.msra.mxu0 0.0
    %4843 = vmatprep.subr.mxu0 0.0
    %4844 = vmatpush1.msra.mxu0 0.0
    %4845 = vmatprep.subr.mxu0 0.0
    %4846 = vmatpush1.msra.mxu0 0.0
    %4847 = vmatprep.subr.mxu0 0.0
    %4848 = vmatpush1.msra.mxu0 0.0
    %4849 = vmatprep.subr.mxu0 0.0
    %4850 = vmatpush1.msra.mxu0 0.0
    %4851 = vmatprep.subr.mxu0 0.0
    %4852 = vmatpush1.msra.mxu0 0.0
    %4853 = vmatprep.subr.mxu0 0.0
    %4854 = vmatpush1.msra.mxu0 0.0
    %4855 = vmatprep.subr.mxu0 0.0
    %4856 = vmatpush1.msra.mxu0 0.0
    %4857 = vmatprep.subr.mxu0 0.0
    %4858 = vmatpush1.msra.mxu0 0.0
    %4859 = vmatprep.subr.mxu0 0.0
    %4860 = vmatpush1.msra.mxu0 0.0
    %4861 = vmatprep.subr.mxu0 0.0
    %4862 = vmatpush1.msra.mxu0 0.0
    %4863 = vmatprep.subr.mxu0 0.0
    %4864 = vmatpush1.msra.mxu0 0.0
    %4865 = vmatprep.subr.mxu0 0.0
    %4866 = vmatpush1.msra.mxu0 0.0
    %4867 = vmatprep.subr.mxu0 0.0
    %4868 = vmatpush1.msra.mxu0 0.0
    %4869 = vmatprep.subr.mxu0 0.0
    %4870 = vmatpush1.msra.mxu0 0.0
    %4871 = vmatprep.subr.mxu0 0.0
    %4872 = vmatpush1.msra.mxu0 0.0
    %4873 = vmatprep.subr.mxu0 0.0
    %4874 = vmatpush1.msra.mxu0 0.0
    %4875 = vmatprep.subr.mxu0 0.0
    %4876 = vmatpush1.msra.mxu0 0.0
    %4877 = vmatprep.subr.mxu0 0.0
    %4878 = vmatpush1.msra.mxu0 0.0
    %4879 = vmatprep.subr.mxu0 0.0
    %4880 = vmatpush1.msra.mxu0 0.0
    %4881 = vmatprep.subr.mxu0 0.0
    %4882 = vmatpush1.msra.mxu0 0.0
    %4883 = vmatprep.subr.mxu0 0.0
    %4884 = vmatpush1.msra.mxu0 0.0
    %4885 = vmatprep.mubr.f32.mxu0 0.0
    %4886 = vmatmul.mubr.f32.gmra.mrb[0].mxu0 %v4819
    %v4887 = vpop.f32.mrb[0].mxu0
    %v4888 = vadd.f32 0.0, %v4887
    %v4889 = vpop.f32.mrb[0].mxu0
    %4890 = vdwg.mxu0
    %4892 = vrot.lane.b32.xlu0 %v3729, 112
    %v4893 = vpop.permute.xlu0 %4892
    %v4896 = vsel %vm471, %v4734, 0
    %4898 = vmatprep.subr.mxu0 0.0
    %4899 = vmatpush1.msra.mxu0 %v4893
    %4900 = vmatprep.subr.mxu0 0.0
    %4901 = vmatpush1.msra.mxu0 0.0
    %4902 = vmatprep.subr.mxu0 0.0
    %4903 = vmatpush1.msra.mxu0 0.0
    %4904 = vmatprep.subr.mxu0 0.0
    %4905 = vmatpush1.msra.mxu0 0.0
    %4906 = vmatprep.subr.mxu0 0.0
    %4907 = vmatpush1.msra.mxu0 0.0
    %4908 = vmatprep.subr.mxu0 0.0
    %4909 = vmatpush1.msra.mxu0 0.0
    %4910 = vmatprep.subr.mxu0 0.0
    %4911 = vmatpush1.msra.mxu0 0.0
    %4912 = vmatprep.subr.mxu0 0.0
    %4913 = vmatpush1.msra.mxu0 0.0
    %4914 = vmatprep.subr.mxu0 0.0
    %4915 = vmatpush1.msra.mxu0 0.0
    %4916 = vmatprep.subr.mxu0 0.0
    %4917 = vmatpush1.msra.mxu0 0.0
    %4918 = vmatprep.subr.mxu0 0.0
    %4919 = vmatpush1.msra.mxu0 0.0
    %4920 = vmatprep.subr.mxu0 0.0
    %4921 = vmatpush1.msra.mxu0 0.0
    %4922 = vmatprep.subr.mxu0 0.0
    %4923 = vmatpush1.msra.mxu0 0.0
    %4924 = vmatprep.subr.mxu0 0.0
    %4925 = vmatpush1.msra.mxu0 0.0
    %4926 = vmatprep.subr.mxu0 0.0
    %4927 = vmatpush1.msra.mxu0 0.0
    %4928 = vmatprep.subr.mxu0 0.0
    %4929 = vmatpush1.msra.mxu0 0.0
    %4930 = vmatprep.subr.mxu0 0.0
    %4931 = vmatpush1.msra.mxu0 0.0
    %4932 = vmatprep.subr.mxu0 0.0
    %4933 = vmatpush1.msra.mxu0 0.0
    %4934 = vmatprep.subr.mxu0 0.0
    %4935 = vmatpush1.msra.mxu0 0.0
    %4936 = vmatprep.subr.mxu0 0.0
    %4937 = vmatpush1.msra.mxu0 0.0
    %4938 = vmatprep.subr.mxu0 0.0
    %4939 = vmatpush1.msra.mxu0 0.0
    %4940 = vmatprep.subr.mxu0 0.0
    %4941 = vmatpush1.msra.mxu0 0.0
    %4942 = vmatprep.subr.mxu0 0.0
    %4943 = vmatpush1.msra.mxu0 0.0
    %4944 = vmatprep.subr.mxu0 0.0
    %4945 = vmatpush1.msra.mxu0 0.0
    %4946 = vmatprep.subr.mxu0 0.0
    %4947 = vmatpush1.msra.mxu0 0.0
    %4948 = vmatprep.subr.mxu0 0.0
    %4949 = vmatpush1.msra.mxu0 0.0
    %4950 = vmatprep.subr.mxu0 0.0
    %4951 = vmatpush1.msra.mxu0 0.0
    %4952 = vmatprep.subr.mxu0 0.0
    %4953 = vmatpush1.msra.mxu0 0.0
    %4954 = vmatprep.subr.mxu0 0.0
    %4955 = vmatpush1.msra.mxu0 0.0
    %4956 = vmatprep.subr.mxu0 0.0
    %4957 = vmatpush1.msra.mxu0 0.0
    %4958 = vmatprep.subr.mxu0 0.0
    %4959 = vmatpush1.msra.mxu0 0.0
    %4960 = vmatprep.subr.mxu0 0.0
    %4961 = vmatpush1.msra.mxu0 0.0
    %4962 = vmatprep.mubr.f32.mxu0 0.0
    %4963 = vmatmul.mubr.f32.gmra.mrb[0].mxu0 %v4896
    %v4964 = vpop.f32.mrb[0].mxu0
    %v4965 = vadd.f32 0.0, %v4964
    %v4966 = vpop.f32.mrb[0].mxu0
    %4967 = vdwg.mxu0
    %4969 = vrot.lane.b32.xlu0 %v3735, 112
    %v4970 = vpop.permute.xlu0 %4969
    %v4973 = vsel %vm471, %v4736, 0
    %4975 = vmatprep.subr.mxu0 0.0
    %4976 = vmatpush1.msra.mxu0 %v4970
    %4977 = vmatprep.subr.mxu0 0.0
    %4978 = vmatpush1.msra.mxu0 0.0
    %4979 = vmatprep.subr.mxu0 0.0
    %4980 = vmatpush1.msra.mxu0 0.0
    %4981 = vmatprep.subr.mxu0 0.0
    %4982 = vmatpush1.msra.mxu0 0.0
    %4983 = vmatprep.subr.mxu0 0.0
    %4984 = vmatpush1.msra.mxu0 0.0
    %4985 = vmatprep.subr.mxu0 0.0
    %4986 = vmatpush1.msra.mxu0 0.0
    %4987 = vmatprep.subr.mxu0 0.0
    %4988 = vmatpush1.msra.mxu0 0.0
    %4989 = vmatprep.subr.mxu0 0.0
    %4990 = vmatpush1.msra.mxu0 0.0
    %4991 = vmatprep.subr.mxu0 0.0
    %4992 = vmatpush1.msra.mxu0 0.0
    %4993 = vmatprep.subr.mxu0 0.0
    %4994 = vmatpush1.msra.mxu0 0.0
    %4995 = vmatprep.subr.mxu0 0.0
    %4996 = vmatpush1.msra.mxu0 0.0
    %4997 = vmatprep.subr.mxu0 0.0
    %4998 = vmatpush1.msra.mxu0 0.0
    %4999 = vmatprep.subr.mxu0 0.0
    %5000 = vmatpush1.msra.mxu0 0.0
    %5001 = vmatprep.subr.mxu0 0.0
    %5002 = vmatpush1.msra.mxu0 0.0
    %5003 = vmatprep.subr.mxu0 0.0
    %5004 = vmatpush1.msra.mxu0 0.0
    %5005 = vmatprep.subr.mxu0 0.0
    %5006 = vmatpush1.msra.mxu0 0.0
    %5007 = vmatprep.subr.mxu0 0.0
    %5008 = vmatpush1.msra.mxu0 0.0
    %5009 = vmatprep.subr.mxu0 0.0
    %5010 = vmatpush1.msra.mxu0 0.0
    %5011 = vmatprep.subr.mxu0 0.0
    %5012 = vmatpush1.msra.mxu0 0.0
    %5013 = vmatprep.subr.mxu0 0.0
    %5014 = vmatpush1.msra.mxu0 0.0
    %5015 = vmatprep.subr.mxu0 0.0
    %5016 = vmatpush1.msra.mxu0 0.0
    %5017 = vmatprep.subr.mxu0 0.0
    %5018 = vmatpush1.msra.mxu0 0.0
    %5019 = vmatprep.subr.mxu0 0.0
    %5020 = vmatpush1.msra.mxu0 0.0
    %5021 = vmatprep.subr.mxu0 0.0
    %5022 = vmatpush1.msra.mxu0 0.0
    %5023 = vmatprep.subr.mxu0 0.0
    %5024 = vmatpush1.msra.mxu0 0.0
    %5025 = vmatprep.subr.mxu0 0.0
    %5026 = vmatpush1.msra.mxu0 0.0
    %5027 = vmatprep.subr.mxu0 0.0
    %5028 = vmatpush1.msra.mxu0 0.0
    %5029 = vmatprep.subr.mxu0 0.0
    %5030 = vmatpush1.msra.mxu0 0.0
    %5031 = vmatprep.subr.mxu0 0.0
    %5032 = vmatpush1.msra.mxu0 0.0
    %5033 = vmatprep.subr.mxu0 0.0
    %5034 = vmatpush1.msra.mxu0 0.0
    %5035 = vmatprep.subr.mxu0 0.0
    %5036 = vmatpush1.msra.mxu0 0.0
    %5037 = vmatprep.subr.mxu0 0.0
    %5038 = vmatpush1.msra.mxu0 0.0
    %5039 = vmatprep.mubr.f32.mxu0 0.0
    %5040 = vmatmul.mubr.f32.gmra.mrb[0].mxu0 %v4973
    %v5041 = vpop.f32.mrb[0].mxu0
    %v5042 = vadd.f32 0.0, %v5041
    %v5043 = vpop.f32.mrb[0].mxu0
    %5044 = vdwg.mxu0
    %v5046 = vsel %vm165, %v4811, 0
    %v5049 = vsel %vm165, %v4888, 0
    %v5052 = vsel %vm165, %v4965, 0
    %v5055 = vsel %vm165, %v5042, 0
    %5057 = vmatprep.subr.mxu0 0.0
    %5058 = vmatpush1.msra.mxu0 %v3628
    %5059 = vmatprep.subr.mxu0 0.0
    %5060 = vmatpush1.msra.mxu0 %v3629
    %5061 = vmatprep.subr.mxu0 0.0
    %5062 = vmatpush1.msra.mxu0 0.0
    %5063 = vmatprep.subr.mxu0 0.0
    %5064 = vmatpush1.msra.mxu0 0.0
    %5065 = vmatprep.subr.mxu0 0.0
    %5066 = vmatpush1.msra.mxu0 0.0
    %5067 = vmatprep.subr.mxu0 0.0
    %5068 = vmatpush1.msra.mxu0 0.0
    %5069 = vmatprep.subr.mxu0 0.0
    %5070 = vmatpush1.msra.mxu0 0.0
    %5071 = vmatprep.subr.mxu0 0.0
    %5072 = vmatpush1.msra.mxu0 0.0
    %5073 = vmatprep.subr.mxu0 0.0
    %5074 = vmatpush1.msra.mxu0 0.0
    %5075 = vmatprep.subr.mxu0 0.0
    %5076 = vmatpush1.msra.mxu0 0.0
    %5077 = vmatprep.subr.mxu0 0.0
    %5078 = vmatpush1.msra.mxu0 0.0
    %5079 = vmatprep.subr.mxu0 0.0
    %5080 = vmatpush1.msra.mxu0 0.0
    %5081 = vmatprep.subr.mxu0 0.0
    %5082 = vmatpush1.msra.mxu0 0.0
    %5083 = vmatprep.subr.mxu0 0.0
    %5084 = vmatpush1.msra.mxu0 0.0
    %5085 = vmatprep.subr.mxu0 0.0
    %5086 = vmatpush1.msra.mxu0 0.0
    %5087 = vmatprep.subr.mxu0 0.0
    %5088 = vmatpush1.msra.mxu0 0.0
    %5089 = vmatprep.subr.mxu0 0.0
    %5090 = vmatpush1.msra.mxu0 0.0
    %5091 = vmatprep.subr.mxu0 0.0
    %5092 = vmatpush1.msra.mxu0 0.0
    %5093 = vmatprep.subr.mxu0 0.0
    %5094 = vmatpush1.msra.mxu0 0.0
    %5095 = vmatprep.subr.mxu0 0.0
    %5096 = vmatpush1.msra.mxu0 0.0
    %5097 = vmatprep.subr.mxu0 0.0
    %5098 = vmatpush1.msra.mxu0 0.0
    %5099 = vmatprep.subr.mxu0 0.0
    %5100 = vmatpush1.msra.mxu0 0.0
    %5101 = vmatprep.subr.mxu0 0.0
    %5102 = vmatpush1.msra.mxu0 0.0
    %5103 = vmatprep.subr.mxu0 0.0
    %5104 = vmatpush1.msra.mxu0 0.0
    %5105 = vmatprep.subr.mxu0 0.0
    %5106 = vmatpush1.msra.mxu0 0.0
    %5107 = vmatprep.subr.mxu0 0.0
    %5108 = vmatpush1.msra.mxu0 0.0
    %5109 = vmatprep.subr.mxu0 0.0
    %5110 = vmatpush1.msra.mxu0 0.0
    %5111 = vmatprep.subr.mxu0 0.0
    %5112 = vmatpush1.msra.mxu0 0.0
    %5113 = vmatprep.subr.mxu0 0.0
    %5114 = vmatpush1.msra.mxu0 0.0
    %5115 = vmatprep.subr.mxu0 0.0
    %5116 = vmatpush1.msra.mxu0 0.0
    %5117 = vmatprep.subr.mxu0 0.0
    %5118 = vmatpush1.msra.mxu0 0.0
    %5119 = vmatprep.subr.mxu0 0.0
    %5120 = vmatpush1.msra.mxu0 0.0
    %5121 = vmatprep.mubr.f32.mxu0 0.0
    %5122 = vmatmul.mubr.f32.gmra.mrb[0].mxu0 %v5046
    %v5123 = vpop.f32.mrb[0].mxu0
    %v5124 = vadd.f32 0.0, %v5123
    %v5125 = vpop.f32.mrb[0].mxu0
    %5126 = vmatprep.mubr.f32.mxu0 0.0
    %5127 = vmatmul.mubr.f32.gmra.mrb[0].mxu0 %v5049
    %v5128 = vpop.f32.mrb[0].mxu0
    %v5129 = vadd.f32 0.0, %v5128
    %v5130 = vpop.f32.mrb[0].mxu0
    %5131 = vmatprep.mubr.f32.mxu0 0.0
    %5132 = vmatmul.mubr.f32.gmra.mrb[0].mxu0 %v5052
    %v5133 = vpop.f32.mrb[0].mxu0
    %v5134 = vadd.f32 0.0, %v5133
    %v5135 = vpop.f32.mrb[0].mxu0
    %5136 = vmatprep.mubr.f32.mxu0 0.0
    %5137 = vmatmul.mubr.f32.gmra.mrb[0].mxu0 %v5055
    %v5138 = vpop.f32.mrb[0].mxu0
    %v5139 = vadd.f32 0.0, %v5138
    %v5140 = vpop.f32.mrb[0].mxu0
    %5141 = vdwg.mxu0
    %v5143 = vsel %vm165, %v4159, 0
    %v5146 = vsel %vm165, %v4232, 0
    %v5149 = vsel %vm165, %v4305, 0
    %v5152 = vsel %vm165, %v4378, 0
    %5154 = vmatprep.subr.mxu0 0.0
    %5155 = vmatpush1.msra.mxu0 %v3626
    %5156 = vmatprep.subr.mxu0 0.0
    %5157 = vmatpush1.msra.mxu0 %v3627
    %5158 = vmatprep.subr.mxu0 0.0
    %5159 = vmatpush1.msra.mxu0 0.0
    %5160 = vmatprep.subr.mxu0 0.0
    %5161 = vmatpush1.msra.mxu0 0.0
    %5162 = vmatprep.subr.mxu0 0.0
    %5163 = vmatpush1.msra.mxu0 0.0
    %5164 = vmatprep.subr.mxu0 0.0
    %5165 = vmatpush1.msra.mxu0 0.0
    %5166 = vmatprep.subr.mxu0 0.0
    %5167 = vmatpush1.msra.mxu0 0.0
    %5168 = vmatprep.subr.mxu0 0.0
    %5169 = vmatpush1.msra.mxu0 0.0
    %5170 = vmatprep.subr.mxu0 0.0
    %5171 = vmatpush1.msra.mxu0 0.0
    %5172 = vmatprep.subr.mxu0 0.0
    %5173 = vmatpush1.msra.mxu0 0.0
    %5174 = vmatprep.subr.mxu0 0.0
    %5175 = vmatpush1.msra.mxu0 0.0
    %5176 = vmatprep.subr.mxu0 0.0
    %5177 = vmatpush1.msra.mxu0 0.0
    %5178 = vmatprep.subr.mxu0 0.0
    %5179 = vmatpush1.msra.mxu0 0.0
    %5180 = vmatprep.subr.mxu0 0.0
    %5181 = vmatpush1.msra.mxu0 0.0
    %5182 = vmatprep.subr.mxu0 0.0
    %5183 = vmatpush1.msra.mxu0 0.0
    %5184 = vmatprep.subr.mxu0 0.0
    %5185 = vmatpush1.msra.mxu0 0.0
    %5186 = vmatprep.subr.mxu0 0.0
    %5187 = vmatpush1.msra.mxu0 0.0
    %5188 = vmatprep.subr.mxu0 0.0
    %5189 = vmatpush1.msra.mxu0 0.0
    %5190 = vmatprep.subr.mxu0 0.0
    %5191 = vmatpush1.msra.mxu0 0.0
    %5192 = vmatprep.subr.mxu0 0.0
    %5193 = vmatpush1.msra.mxu0 0.0
    %5194 = vmatprep.subr.mxu0 0.0
    %5195 = vmatpush1.msra.mxu0 0.0
    %5196 = vmatprep.subr.mxu0 0.0
    %5197 = vmatpush1.msra.mxu0 0.0
    %5198 = vmatprep.subr.mxu0 0.0
    %5199 = vmatpush1.msra.mxu0 0.0
    %5200 = vmatprep.subr.mxu0 0.0
    %5201 = vmatpush1.msra.mxu0 0.0
    %5202 = vmatprep.subr.mxu0 0.0
    %5203 = vmatpush1.msra.mxu0 0.0
    %5204 = vmatprep.subr.mxu0 0.0
    %5205 = vmatpush1.msra.mxu0 0.0
    %5206 = vmatprep.subr.mxu0 0.0
    %5207 = vmatpush1.msra.mxu0 0.0
    %5208 = vmatprep.subr.mxu0 0.0
    %5209 = vmatpush1.msra.mxu0 0.0
    %5210 = vmatprep.subr.mxu0 0.0
    %5211 = vmatpush1.msra.mxu0 0.0
    %5212 = vmatprep.subr.mxu0 0.0
    %5213 = vmatpush1.msra.mxu0 0.0
    %5214 = vmatprep.subr.mxu0 0.0
    %5215 = vmatpush1.msra.mxu0 0.0
    %5216 = vmatprep.subr.mxu0 0.0
    %5217 = vmatpush1.msra.mxu0 0.0
    %5218 = vmatprep.mubr.f32.mxu0 0.0
    %5219 = vmatmul.mubr.f32.gmra.mrb[0].mxu0 %v5143
    %v5220 = vpop.f32.mrb[0].mxu0
    %v5221 = vadd.f32 %v5124, %v5220
    %v5222 = vpop.f32.mrb[0].mxu0
    %5223 = vmatprep.mubr.f32.mxu0 0.0
    %5224 = vmatmul.mubr.f32.gmra.mrb[0].mxu0 %v5146
    %v5225 = vpop.f32.mrb[0].mxu0
    %v5226 = vadd.f32 %v5129, %v5225
    %v5227 = vpop.f32.mrb[0].mxu0
    %5228 = vmatprep.mubr.f32.mxu0 0.0
    %5229 = vmatmul.mubr.f32.gmra.mrb[0].mxu0 %v5149
    %v5230 = vpop.f32.mrb[0].mxu0
    %v5231 = vadd.f32 %v5134, %v5230
    %v5232 = vpop.f32.mrb[0].mxu0
    %5233 = vmatprep.mubr.f32.mxu0 0.0
    %5234 = vmatmul.mubr.f32.gmra.mrb[0].mxu0 %v5152
    %v5235 = vpop.f32.mrb[0].mxu0
    %v5236 = vadd.f32 %v5139, %v5235
    %v5237 = vpop.f32.mrb[0].mxu0
    %5238 = vdwg.mxu0
    %5239 = vrot.lane.b32.xlu0 %v3715, 96
    %v5240 = vpop.permute.xlu0 %5239
    %5241 = vrot.lane.b32.xlu0 %v3715, 32
    %v5242 = vpop.permute.xlu0 %5241
    %v5243 = vsel %vm165, %v5240, 0
    %v5245 = vsel %vm165, %v5242, 0
    %5247 = vmatprep.subr.mxu0 0.0
    %5248 = vmatpush1.xpose.msra.mxu0 %v5245
    %5249 = vmatprep.subr.mxu0 0.0
    %5250 = vmatpush1.xpose.msra.mxu0 0.0
    %5251 = vmatprep.subr.mxu0 0.0
    %5252 = vmatpush1.xpose.msra.mxu0 0.0
    %5253 = vmatprep.subr.mxu0 0.0
    %5254 = vmatpush1.xpose.msra.mxu0 0.0
    %5255 = vmatprep.subr.mxu0 0.0
    %5256 = vmatpush1.xpose.msra.mxu0 0.0
    %5257 = vmatprep.subr.mxu0 0.0
    %5258 = vmatpush1.xpose.msra.mxu0 0.0
    %5259 = vmatprep.subr.mxu0 0.0
    %5260 = vmatpush1.xpose.msra.mxu0 0.0
    %5261 = vmatprep.subr.mxu0 0.0
    %5262 = vmatpush1.xpose.msra.mxu0 0.0
    %5263 = vmatprep.subr.mxu0 0.0
    %5264 = vmatpush1.xpose.msra.mxu0 0.0
    %5265 = vmatprep.subr.mxu0 0.0
    %5266 = vmatpush1.xpose.msra.mxu0 0.0
    %5267 = vmatprep.subr.mxu0 0.0
    %5268 = vmatpush1.xpose.msra.mxu0 0.0
    %5269 = vmatprep.subr.mxu0 0.0
    %5270 = vmatpush1.xpose.msra.mxu0 0.0
    %5271 = vmatprep.subr.mxu0 0.0
    %5272 = vmatpush1.xpose.msra.mxu0 0.0
    %5273 = vmatprep.subr.mxu0 0.0
    %5274 = vmatpush1.xpose.msra.mxu0 0.0
    %5275 = vmatprep.subr.mxu0 0.0
    %5276 = vmatpush1.xpose.msra.mxu0 0.0
    %5277 = vmatprep.subr.mxu0 0.0
    %5278 = vmatpush1.xpose.msra.mxu0 0.0
    %5279 = vmatprep.subr.mxu0 0.0
    %5280 = vmatpush1.xpose.msra.mxu0 0.0
    %5281 = vmatprep.subr.mxu0 0.0
    %5282 = vmatpush1.xpose.msra.mxu0 0.0
    %5283 = vmatprep.subr.mxu0 0.0
    %5284 = vmatpush1.xpose.msra.mxu0 0.0
    %5285 = vmatprep.subr.mxu0 0.0
    %5286 = vmatpush1.xpose.msra.mxu0 0.0
    %5287 = vmatprep.subr.mxu0 0.0
    %5288 = vmatpush1.xpose.msra.mxu0 0.0
    %5289 = vmatprep.subr.mxu0 0.0
    %5290 = vmatpush1.xpose.msra.mxu0 0.0
    %5291 = vmatprep.subr.mxu0 0.0
    %5292 = vmatpush1.xpose.msra.mxu0 0.0
    %5293 = vmatprep.subr.mxu0 0.0
    %5294 = vmatpush1.xpose.msra.mxu0 0.0
    %5295 = vmatprep.subr.mxu0 0.0
    %5296 = vmatpush1.xpose.msra.mxu0 0.0
    %5297 = vmatprep.subr.mxu0 0.0
    %5298 = vmatpush1.xpose.msra.mxu0 0.0
    %5299 = vmatprep.subr.mxu0 0.0
    %5300 = vmatpush1.xpose.msra.mxu0 0.0
    %5301 = vmatprep.subr.mxu0 0.0
    %5302 = vmatpush1.xpose.msra.mxu0 0.0
    %5303 = vmatprep.subr.mxu0 0.0
    %5304 = vmatpush1.xpose.msra.mxu0 0.0
    %5305 = vmatprep.subr.mxu0 0.0
    %5306 = vmatpush1.xpose.msra.mxu0 0.0
    %5307 = vmatprep.subr.mxu0 0.0
    %5308 = vmatpush1.xpose.msra.mxu0 0.0
    %5309 = vmatprep.subr.mxu0 0.0
    %5310 = vmatpush1.xpose.msra.mxu0 0.0
    %5311 = vmatprep.mubr.f32.mxu0 0.0
    %5312 = vmatmul.mubr.f32.gmra.mrb[0].mxu0 %v5243
    %v5313 = vpop.f32.mrb[0].mxu0
    %v5314 = vadd.f32 0.0, %v5313
    %v5315 = vpop.f32.mrb[0].mxu0
    %5316 = vdwg.mxu0
    %5317 = vrot.lane.b32.xlu0 %v3721, 96
    %v5318 = vpop.permute.xlu0 %5317
    %5319 = vrot.lane.b32.xlu0 %v3721, 32
    %v5320 = vpop.permute.xlu0 %5319
    %v5321 = vsel %vm165, %v5318, 0
    %v5323 = vsel %vm165, %v5320, 0
    %5325 = vmatprep.subr.mxu0 0.0
    %5326 = vmatpush1.xpose.msra.mxu0 %v5323
    %5327 = vmatprep.subr.mxu0 0.0
    %5328 = vmatpush1.xpose.msra.mxu0 0.0
    %5329 = vmatprep.subr.mxu0 0.0
    %5330 = vmatpush1.xpose.msra.mxu0 0.0
    %5331 = vmatprep.subr.mxu0 0.0
    %5332 = vmatpush1.xpose.msra.mxu0 0.0
    %5333 = vmatprep.subr.mxu0 0.0
    %5334 = vmatpush1.xpose.msra.mxu0 0.0
    %5335 = vmatprep.subr.mxu0 0.0
    %5336 = vmatpush1.xpose.msra.mxu0 0.0
    %5337 = vmatprep.subr.mxu0 0.0
    %5338 = vmatpush1.xpose.msra.mxu0 0.0
    %5339 = vmatprep.subr.mxu0 0.0
    %5340 = vmatpush1.xpose.msra.mxu0 0.0
    %5341 = vmatprep.subr.mxu0 0.0
    %5342 = vmatpush1.xpose.msra.mxu0 0.0
    %5343 = vmatprep.subr.mxu0 0.0
    %5344 = vmatpush1.xpose.msra.mxu0 0.0
    %5345 = vmatprep.subr.mxu0 0.0
    %5346 = vmatpush1.xpose.msra.mxu0 0.0
    %5347 = vmatprep.subr.mxu0 0.0
    %5348 = vmatpush1.xpose.msra.mxu0 0.0
    %5349 = vmatprep.subr.mxu0 0.0
    %5350 = vmatpush1.xpose.msra.mxu0 0.0
    %5351 = vmatprep.subr.mxu0 0.0
    %5352 = vmatpush1.xpose.msra.mxu0 0.0
    %5353 = vmatprep.subr.mxu0 0.0
    %5354 = vmatpush1.xpose.msra.mxu0 0.0
    %5355 = vmatprep.subr.mxu0 0.0
    %5356 = vmatpush1.xpose.msra.mxu0 0.0
    %5357 = vmatprep.subr.mxu0 0.0
    %5358 = vmatpush1.xpose.msra.mxu0 0.0
    %5359 = vmatprep.subr.mxu0 0.0
    %5360 = vmatpush1.xpose.msra.mxu0 0.0
    %5361 = vmatprep.subr.mxu0 0.0
    %5362 = vmatpush1.xpose.msra.mxu0 0.0
    %5363 = vmatprep.subr.mxu0 0.0
    %5364 = vmatpush1.xpose.msra.mxu0 0.0
    %5365 = vmatprep.subr.mxu0 0.0
    %5366 = vmatpush1.xpose.msra.mxu0 0.0
    %5367 = vmatprep.subr.mxu0 0.0
    %5368 = vmatpush1.xpose.msra.mxu0 0.0
    %5369 = vmatprep.subr.mxu0 0.0
    %5370 = vmatpush1.xpose.msra.mxu0 0.0
    %5371 = vmatprep.subr.mxu0 0.0
    %5372 = vmatpush1.xpose.msra.mxu0 0.0
    %5373 = vmatprep.subr.mxu0 0.0
    %5374 = vmatpush1.xpose.msra.mxu0 0.0
    %5375 = vmatprep.subr.mxu0 0.0
    %5376 = vmatpush1.xpose.msra.mxu0 0.0
    %5377 = vmatprep.subr.mxu0 0.0
    %5378 = vmatpush1.xpose.msra.mxu0 0.0
    %5379 = vmatprep.subr.mxu0 0.0
    %5380 = vmatpush1.xpose.msra.mxu0 0.0
    %5381 = vmatprep.subr.mxu0 0.0
    %5382 = vmatpush1.xpose.msra.mxu0 0.0
    %5383 = vmatprep.subr.mxu0 0.0
    %5384 = vmatpush1.xpose.msra.mxu0 0.0
    %5385 = vmatprep.subr.mxu0 0.0
    %5386 = vmatpush1.xpose.msra.mxu0 0.0
    %5387 = vmatprep.subr.mxu0 0.0
    %5388 = vmatpush1.xpose.msra.mxu0 0.0
    %5389 = vmatprep.mubr.f32.mxu0 0.0
    %5390 = vmatmul.mubr.f32.gmra.mrb[0].mxu0 %v5321
    %v5391 = vpop.f32.mrb[0].mxu0
    %v5392 = vadd.f32 0.0, %v5391
    %v5393 = vpop.f32.mrb[0].mxu0
    %5394 = vdwg.mxu0
    %5395 = vrot.lane.b32.xlu0 %v3727, 96
    %v5396 = vpop.permute.xlu0 %5395
    %5397 = vrot.lane.b32.xlu0 %v3727, 32
    %v5398 = vpop.permute.xlu0 %5397
    %v5399 = vsel %vm165, %v5396, 0
    %v5401 = vsel %vm165, %v5398, 0
    %5403 = vmatprep.subr.mxu0 0.0
    %5404 = vmatpush1.xpose.msra.mxu0 %v5401
    %5405 = vmatprep.subr.mxu0 0.0
    %5406 = vmatpush1.xpose.msra.mxu0 0.0
    %5407 = vmatprep.subr.mxu0 0.0
    %5408 = vmatpush1.xpose.msra.mxu0 0.0
    %5409 = vmatprep.subr.mxu0 0.0
    %5410 = vmatpush1.xpose.msra.mxu0 0.0
    %5411 = vmatprep.subr.mxu0 0.0
    %5412 = vmatpush1.xpose.msra.mxu0 0.0
    %5413 = vmatprep.subr.mxu0 0.0
    %5414 = vmatpush1.xpose.msra.mxu0 0.0
    %5415 = vmatprep.subr.mxu0 0.0
    %5416 = vmatpush1.xpose.msra.mxu0 0.0
    %5417 = vmatprep.subr.mxu0 0.0
    %5418 = vmatpush1.xpose.msra.mxu0 0.0
    %5419 = vmatprep.subr.mxu0 0.0
    %5420 = vmatpush1.xpose.msra.mxu0 0.0
    %5421 = vmatprep.subr.mxu0 0.0
    %5422 = vmatpush1.xpose.msra.mxu0 0.0
    %5423 = vmatprep.subr.mxu0 0.0
    %5424 = vmatpush1.xpose.msra.mxu0 0.0
    %5425 = vmatprep.subr.mxu0 0.0
    %5426 = vmatpush1.xpose.msra.mxu0 0.0
    %5427 = vmatprep.subr.mxu0 0.0
    %5428 = vmatpush1.xpose.msra.mxu0 0.0
    %5429 = vmatprep.subr.mxu0 0.0
    %5430 = vmatpush1.xpose.msra.mxu0 0.0
    %5431 = vmatprep.subr.mxu0 0.0
    %5432 = vmatpush1.xpose.msra.mxu0 0.0
    %5433 = vmatprep.subr.mxu0 0.0
    %5434 = vmatpush1.xpose.msra.mxu0 0.0
    %5435 = vmatprep.subr.mxu0 0.0
    %5436 = vmatpush1.xpose.msra.mxu0 0.0
    %5437 = vmatprep.subr.mxu0 0.0
    %5438 = vmatpush1.xpose.msra.mxu0 0.0
    %5439 = vmatprep.subr.mxu0 0.0
    %5440 = vmatpush1.xpose.msra.mxu0 0.0
    %5441 = vmatprep.subr.mxu0 0.0
    %5442 = vmatpush1.xpose.msra.mxu0 0.0
    %5443 = vmatprep.subr.mxu0 0.0
    %5444 = vmatpush1.xpose.msra.mxu0 0.0
    %5445 = vmatprep.subr.mxu0 0.0
    %5446 = vmatpush1.xpose.msra.mxu0 0.0
    %5447 = vmatprep.subr.mxu0 0.0
    %5448 = vmatpush1.xpose.msra.mxu0 0.0
    %5449 = vmatprep.subr.mxu0 0.0
    %5450 = vmatpush1.xpose.msra.mxu0 0.0
    %5451 = vmatprep.subr.mxu0 0.0
    %5452 = vmatpush1.xpose.msra.mxu0 0.0
    %5453 = vmatprep.subr.mxu0 0.0
    %5454 = vmatpush1.xpose.msra.mxu0 0.0
    %5455 = vmatprep.subr.mxu0 0.0
    %5456 = vmatpush1.xpose.msra.mxu0 0.0
    %5457 = vmatprep.subr.mxu0 0.0
    %5458 = vmatpush1.xpose.msra.mxu0 0.0
    %5459 = vmatprep.subr.mxu0 0.0
    %5460 = vmatpush1.xpose.msra.mxu0 0.0
    %5461 = vmatprep.subr.mxu0 0.0
    %5462 = vmatpush1.xpose.msra.mxu0 0.0
    %5463 = vmatprep.subr.mxu0 0.0
    %5464 = vmatpush1.xpose.msra.mxu0 0.0
    %5465 = vmatprep.subr.mxu0 0.0
    %5466 = vmatpush1.xpose.msra.mxu0 0.0
    %5467 = vmatprep.mubr.f32.mxu0 0.0
    %5468 = vmatmul.mubr.f32.gmra.mrb[0].mxu0 %v5399
    %v5469 = vpop.f32.mrb[0].mxu0
    %v5470 = vadd.f32 0.0, %v5469
    %v5471 = vpop.f32.mrb[0].mxu0
    %5472 = vdwg.mxu0
    %5473 = vrot.lane.b32.xlu0 %v3733, 96
    %v5474 = vpop.permute.xlu0 %5473
    %5475 = vrot.lane.b32.xlu0 %v3733, 32
    %v5476 = vpop.permute.xlu0 %5475
    %v5477 = vsel %vm165, %v5474, 0
    %v5479 = vsel %vm165, %v5476, 0
    %5481 = vmatprep.subr.mxu0 0.0
    %5482 = vmatpush1.xpose.msra.mxu0 %v5479
    %5483 = vmatprep.subr.mxu0 0.0
    %5484 = vmatpush1.xpose.msra.mxu0 0.0
    %5485 = vmatprep.subr.mxu0 0.0
    %5486 = vmatpush1.xpose.msra.mxu0 0.0
    %5487 = vmatprep.subr.mxu0 0.0
    %5488 = vmatpush1.xpose.msra.mxu0 0.0
    %5489 = vmatprep.subr.mxu0 0.0
    %5490 = vmatpush1.xpose.msra.mxu0 0.0
    %5491 = vmatprep.subr.mxu0 0.0
    %5492 = vmatpush1.xpose.msra.mxu0 0.0
    %5493 = vmatprep.subr.mxu0 0.0
    %5494 = vmatpush1.xpose.msra.mxu0 0.0
    %5495 = vmatprep.subr.mxu0 0.0
    %5496 = vmatpush1.xpose.msra.mxu0 0.0
    %5497 = vmatprep.subr.mxu0 0.0
    %5498 = vmatpush1.xpose.msra.mxu0 0.0
    %5499 = vmatprep.subr.mxu0 0.0
    %5500 = vmatpush1.xpose.msra.mxu0 0.0
    %5501 = vmatprep.subr.mxu0 0.0
    %5502 = vmatpush1.xpose.msra.mxu0 0.0
    %5503 = vmatprep.subr.mxu0 0.0
    %5504 = vmatpush1.xpose.msra.mxu0 0.0
    %5505 = vmatprep.subr.mxu0 0.0
    %5506 = vmatpush1.xpose.msra.mxu0 0.0
    %5507 = vmatprep.subr.mxu0 0.0
    %5508 = vmatpush1.xpose.msra.mxu0 0.0
    %5509 = vmatprep.subr.mxu0 0.0
    %5510 = vmatpush1.xpose.msra.mxu0 0.0
    %5511 = vmatprep.subr.mxu0 0.0
    %5512 = vmatpush1.xpose.msra.mxu0 0.0
    %5513 = vmatprep.subr.mxu0 0.0
    %5514 = vmatpush1.xpose.msra.mxu0 0.0
    %5515 = vmatprep.subr.mxu0 0.0
    %5516 = vmatpush1.xpose.msra.mxu0 0.0
    %5517 = vmatprep.subr.mxu0 0.0
    %5518 = vmatpush1.xpose.msra.mxu0 0.0
    %5519 = vmatprep.subr.mxu0 0.0
    %5520 = vmatpush1.xpose.msra.mxu0 0.0
    %5521 = vmatprep.subr.mxu0 0.0
    %5522 = vmatpush1.xpose.msra.mxu0 0.0
    %5523 = vmatprep.subr.mxu0 0.0
    %5524 = vmatpush1.xpose.msra.mxu0 0.0
    %5525 = vmatprep.subr.mxu0 0.0
    %5526 = vmatpush1.xpose.msra.mxu0 0.0
    %5527 = vmatprep.subr.mxu0 0.0
    %5528 = vmatpush1.xpose.msra.mxu0 0.0
    %5529 = vmatprep.subr.mxu0 0.0
    %5530 = vmatpush1.xpose.msra.mxu0 0.0
    %5531 = vmatprep.subr.mxu0 0.0
    %5532 = vmatpush1.xpose.msra.mxu0 0.0
    %5533 = vmatprep.subr.mxu0 0.0
    %5534 = vmatpush1.xpose.msra.mxu0 0.0
    %5535 = vmatprep.subr.mxu0 0.0
    %5536 = vmatpush1.xpose.msra.mxu0 0.0
    %5537 = vmatprep.subr.mxu0 0.0
    %5538 = vmatpush1.xpose.msra.mxu0 0.0
    %5539 = vmatprep.subr.mxu0 0.0
    %5540 = vmatpush1.xpose.msra.mxu0 0.0
    %5541 = vmatprep.subr.mxu0 0.0
    %5542 = vmatpush1.xpose.msra.mxu0 0.0
    %5543 = vmatprep.subr.mxu0 0.0
    %5544 = vmatpush1.xpose.msra.mxu0 0.0
    %5545 = vmatprep.mubr.f32.mxu0 0.0
    %5546 = vmatmul.mubr.f32.gmra.mrb[0].mxu0 %v5477
    %v5547 = vpop.f32.mrb[0].mxu0
    %v5548 = vadd.f32 0.0, %v5547
    %v5549 = vpop.f32.mrb[0].mxu0
    %5550 = vdwg.mxu0
    %v5551 = vsel %vm471, %v5314, -inf
    %5552 = vmax.xlane.f32.xlu0 %v5551
    %v5553 = vpop.xlane.xlu0 %5552
    %v5554 = vsel %vm471, %v5392, -inf
    %5555 = vmax.xlane.f32.xlu0 %v5554
    %v5556 = vpop.xlane.xlu0 %5555
    %v5557 = vsel %vm471, %v5470, -inf
    %5558 = vmax.xlane.f32.xlu0 %v5557
    %v5559 = vpop.xlane.xlu0 %5558
    %v5560 = vsel %vm471, %v5548, -inf
    %5561 = vmax.xlane.f32.xlu0 %v5560
    %v5562 = vpop.xlane.xlu0 %5561
    %v5563 = vsub.f32 %v5314, %v5553
    %v5564 = vsub.f32 %v5392, %v5556
    %v5565 = vsub.f32 %v5470, %v5559
    %v5566 = vsub.f32 %v5548, %v5562
    %v5567 = vmul.f32 %v5563, 1.442695
    %v5568 = vpow.pop %v5567
    %v5569 = vmul.f32 %v5564, 1.442695
    %v5570 = vpow.pop %v5569
    %v5571 = vmul.f32 %v5565, 1.442695
    %v5572 = vpow.pop %v5571
    %v5573 = vmul.f32 %v5566, 1.442695
    %v5574 = vpow.pop %v5573
    %v5575 = vsel %vm471, %v5568, 0.0
    %5576 = vadd.xlane.f32.xlu0 %v5575
    %v5577 = vpop.xlane.xlu0 %5576
    %v5578 = vsel %vm471, %v5570, 0.0
    %5579 = vadd.xlane.f32.xlu0 %v5578
    %v5580 = vpop.xlane.xlu0 %5579
    %v5581 = vsel %vm471, %v5572, 0.0
    %5582 = vadd.xlane.f32.xlu0 %v5581
    %v5583 = vpop.xlane.xlu0 %5582
    %v5584 = vsel %vm471, %v5574, 0.0
    %5585 = vadd.xlane.f32.xlu0 %v5584
    %v5586 = vpop.xlane.xlu0 %5585
    %v5587 = vrcp.pop %v5577
    %v5588 = vmul.f32 %v5568, %v5587
    %v5589 = vrcp.pop %v5580
    %v5590 = vmul.f32 %v5570, %v5589
    %v5591 = vrcp.pop %v5583
    %v5592 = vmul.f32 %v5572, %v5591
    %v5593 = vrcp.pop %v5586
    %v5594 = vmul.f32 %v5574, %v5593
    %5595 = vrot.lane.b32.xlu0 %v3717, 96
    %v5596 = vpop.permute.xlu0 %5595
    %v5599 = vsel %vm471, %v5588, 0
    %5601 = vmatprep.subr.mxu0 0.0
    %5602 = vmatpush1.msra.mxu0 %v5596
    %5603 = vmatprep.subr.mxu0 0.0
    %5604 = vmatpush1.msra.mxu0 0.0
    %5605 = vmatprep.subr.mxu0 0.0
    %5606 = vmatpush1.msra.mxu0 0.0
    %5607 = vmatprep.subr.mxu0 0.0
    %5608 = vmatpush1.msra.mxu0 0.0
    %5609 = vmatprep.subr.mxu0 0.0
    %5610 = vmatpush1.msra.mxu0 0.0
    %5611 = vmatprep.subr.mxu0 0.0
    %5612 = vmatpush1.msra.mxu0 0.0
    %5613 = vmatprep.subr.mxu0 0.0
    %5614 = vmatpush1.msra.mxu0 0.0
    %5615 = vmatprep.subr.mxu0 0.0
    %5616 = vmatpush1.msra.mxu0 0.0
    %5617 = vmatprep.subr.mxu0 0.0
    %5618 = vmatpush1.msra.mxu0 0.0
    %5619 = vmatprep.subr.mxu0 0.0
    %5620 = vmatpush1.msra.mxu0 0.0
    %5621 = vmatprep.subr.mxu0 0.0
    %5622 = vmatpush1.msra.mxu0 0.0
    %5623 = vmatprep.subr.mxu0 0.0
    %5624 = vmatpush1.msra.mxu0 0.0
    %5625 = vmatprep.subr.mxu0 0.0
    %5626 = vmatpush1.msra.mxu0 0.0
    %5627 = vmatprep.subr.mxu0 0.0
    %5628 = vmatpush1.msra.mxu0 0.0
    %5629 = vmatprep.subr.mxu0 0.0
    %5630 = vmatpush1.msra.mxu0 0.0
    %5631 = vmatprep.subr.mxu0 0.0
    %5632 = vmatpush1.msra.mxu0 0.0
    %5633 = vmatprep.subr.mxu0 0.0
    %5634 = vmatpush1.msra.mxu0 0.0
    %5635 = vmatprep.subr.mxu0 0.0
    %5636 = vmatpush1.msra.mxu0 0.0
    %5637 = vmatprep.subr.mxu0 0.0
    %5638 = vmatpush1.msra.mxu0 0.0
    %5639 = vmatprep.subr.mxu0 0.0
    %5640 = vmatpush1.msra.mxu0 0.0
    %5641 = vmatprep.subr.mxu0 0.0
    %5642 = vmatpush1.msra.mxu0 0.0
    %5643 = vmatprep.subr.mxu0 0.0
    %5644 = vmatpush1.msra.mxu0 0.0
    %5645 = vmatprep.subr.mxu0 0.0
    %5646 = vmatpush1.msra.mxu0 0.0
    %5647 = vmatprep.subr.mxu0 0.0
    %5648 = vmatpush1.msra.mxu0 0.0
    %5649 = vmatprep.subr.mxu0 0.0
    %5650 = vmatpush1.msra.mxu0 0.0
    %5651 = vmatprep.subr.mxu0 0.0
    %5652 = vmatpush1.msra.mxu0 0.0
    %5653 = vmatprep.subr.mxu0 0.0
    %5654 = vmatpush1.msra.mxu0 0.0
    %5655 = vmatprep.subr.mxu0 0.0
    %5656 = vmatpush1.msra.mxu0 0.0
    %5657 = vmatprep.subr.mxu0 0.0
    %5658 = vmatpush1.msra.mxu0 0.0
    %5659 = vmatprep.subr.mxu0 0.0
    %5660 = vmatpush1.msra.mxu0 0.0
    %5661 = vmatprep.subr.mxu0 0.0
    %5662 = vmatpush1.msra.mxu0 0.0
    %5663 = vmatprep.subr.mxu0 0.0
    %5664 = vmatpush1.msra.mxu0 0.0
    %5665 = vmatprep.mubr.f32.mxu0 0.0
    %5666 = vmatmul.mubr.f32.gmra.mrb[0].mxu0 %v5599
    %v5667 = vpop.f32.mrb[0].mxu0
    %v5668 = vadd.f32 0.0, %v5667
    %v5669 = vpop.f32.mrb[0].mxu0
    %5670 = vdwg.mxu0
    %5671 = vrot.lane.b32.xlu0 %v3723, 96
    %v5672 = vpop.permute.xlu0 %5671
    %v5675 = vsel %vm471, %v5590, 0
    %5677 = vmatprep.subr.mxu0 0.0
    %5678 = vmatpush1.msra.mxu0 %v5672
    %5679 = vmatprep.subr.mxu0 0.0
    %5680 = vmatpush1.msra.mxu0 0.0
    %5681 = vmatprep.subr.mxu0 0.0
    %5682 = vmatpush1.msra.mxu0 0.0
    %5683 = vmatprep.subr.mxu0 0.0
    %5684 = vmatpush1.msra.mxu0 0.0
    %5685 = vmatprep.subr.mxu0 0.0
    %5686 = vmatpush1.msra.mxu0 0.0
    %5687 = vmatprep.subr.mxu0 0.0
    %5688 = vmatpush1.msra.mxu0 0.0
    %5689 = vmatprep.subr.mxu0 0.0
    %5690 = vmatpush1.msra.mxu0 0.0
    %5691 = vmatprep.subr.mxu0 0.0
    %5692 = vmatpush1.msra.mxu0 0.0
    %5693 = vmatprep.subr.mxu0 0.0
    %5694 = vmatpush1.msra.mxu0 0.0
    %5695 = vmatprep.subr.mxu0 0.0
    %5696 = vmatpush1.msra.mxu0 0.0
    %5697 = vmatprep.subr.mxu0 0.0
    %5698 = vmatpush1.msra.mxu0 0.0
    %5699 = vmatprep.subr.mxu0 0.0
    %5700 = vmatpush1.msra.mxu0 0.0
    %5701 = vmatprep.subr.mxu0 0.0
    %5702 = vmatpush1.msra.mxu0 0.0
    %5703 = vmatprep.subr.mxu0 0.0
    %5704 = vmatpush1.msra.mxu0 0.0
    %5705 = vmatprep.subr.mxu0 0.0
    %5706 = vmatpush1.msra.mxu0 0.0
    %5707 = vmatprep.subr.mxu0 0.0
    %5708 = vmatpush1.msra.mxu0 0.0
    %5709 = vmatprep.subr.mxu0 0.0
    %5710 = vmatpush1.msra.mxu0 0.0
    %5711 = vmatprep.subr.mxu0 0.0
    %5712 = vmatpush1.msra.mxu0 0.0
    %5713 = vmatprep.subr.mxu0 0.0
    %5714 = vmatpush1.msra.mxu0 0.0
    %5715 = vmatprep.subr.mxu0 0.0
    %5716 = vmatpush1.msra.mxu0 0.0
    %5717 = vmatprep.subr.mxu0 0.0
    %5718 = vmatpush1.msra.mxu0 0.0
    %5719 = vmatprep.subr.mxu0 0.0
    %5720 = vmatpush1.msra.mxu0 0.0
    %5721 = vmatprep.subr.mxu0 0.0
    %5722 = vmatpush1.msra.mxu0 0.0
    %5723 = vmatprep.subr.mxu0 0.0
    %5724 = vmatpush1.msra.mxu0 0.0
    %5725 = vmatprep.subr.mxu0 0.0
    %5726 = vmatpush1.msra.mxu0 0.0
    %5727 = vmatprep.subr.mxu0 0.0
    %5728 = vmatpush1.msra.mxu0 0.0
    %5729 = vmatprep.subr.mxu0 0.0
    %5730 = vmatpush1.msra.mxu0 0.0
    %5731 = vmatprep.subr.mxu0 0.0
    %5732 = vmatpush1.msra.mxu0 0.0
    %5733 = vmatprep.subr.mxu0 0.0
    %5734 = vmatpush1.msra.mxu0 0.0
    %5735 = vmatprep.subr.mxu0 0.0
    %5736 = vmatpush1.msra.mxu0 0.0
    %5737 = vmatprep.subr.mxu0 0.0
    %5738 = vmatpush1.msra.mxu0 0.0
    %5739 = vmatprep.subr.mxu0 0.0
    %5740 = vmatpush1.msra.mxu0 0.0
    %5741 = vmatprep.mubr.f32.mxu0 0.0
    %5742 = vmatmul.mubr.f32.gmra.mrb[0].mxu0 %v5675
    %v5743 = vpop.f32.mrb[0].mxu0
    %v5744 = vadd.f32 0.0, %v5743
    %v5745 = vpop.f32.mrb[0].mxu0
    %5746 = vdwg.mxu0
    %5747 = vrot.lane.b32.xlu0 %v3729, 96
    %v5748 = vpop.permute.xlu0 %5747
    %v5751 = vsel %vm471, %v5592, 0
    %5753 = vmatprep.subr.mxu0 0.0
    %5754 = vmatpush1.msra.mxu0 %v5748
    %5755 = vmatprep.subr.mxu0 0.0
    %5756 = vmatpush1.msra.mxu0 0.0
    %5757 = vmatprep.subr.mxu0 0.0
    %5758 = vmatpush1.msra.mxu0 0.0
    %5759 = vmatprep.subr.mxu0 0.0
    %5760 = vmatpush1.msra.mxu0 0.0
    %5761 = vmatprep.subr.mxu0 0.0
    %5762 = vmatpush1.msra.mxu0 0.0
    %5763 = vmatprep.subr.mxu0 0.0
    %5764 = vmatpush1.msra.mxu0 0.0
    %5765 = vmatprep.subr.mxu0 0.0
    %5766 = vmatpush1.msra.mxu0 0.0
    %5767 = vmatprep.subr.mxu0 0.0
    %5768 = vmatpush1.msra.mxu0 0.0
    %5769 = vmatprep.subr.mxu0 0.0
    %5770 = vmatpush1.msra.mxu0 0.0
    %5771 = vmatprep.subr.mxu0 0.0
    %5772 = vmatpush1.msra.mxu0 0.0
    %5773 = vmatprep.subr.mxu0 0.0
    %5774 = vmatpush1.msra.mxu0 0.0
    %5775 = vmatprep.subr.mxu0 0.0
    %5776 = vmatpush1.msra.mxu0 0.0
    %5777 = vmatprep.subr.mxu0 0.0
    %5778 = vmatpush1.msra.mxu0 0.0
    %5779 = vmatprep.subr.mxu0 0.0
    %5780 = vmatpush1.msra.mxu0 0.0
    %5781 = vmatprep.subr.mxu0 0.0
    %5782 = vmatpush1.msra.mxu0 0.0
    %5783 = vmatprep.subr.mxu0 0.0
    %5784 = vmatpush1.msra.mxu0 0.0
    %5785 = vmatprep.subr.mxu0 0.0
    %5786 = vmatpush1.msra.mxu0 0.0
    %5787 = vmatprep.subr.mxu0 0.0
    %5788 = vmatpush1.msra.mxu0 0.0
    %5789 = vmatprep.subr.mxu0 0.0
    %5790 = vmatpush1.msra.mxu0 0.0
    %5791 = vmatprep.subr.mxu0 0.0
    %5792 = vmatpush1.msra.mxu0 0.0
    %5793 = vmatprep.subr.mxu0 0.0
    %5794 = vmatpush1.msra.mxu0 0.0
    %5795 = vmatprep.subr.mxu0 0.0
    %5796 = vmatpush1.msra.mxu0 0.0
    %5797 = vmatprep.subr.mxu0 0.0
    %5798 = vmatpush1.msra.mxu0 0.0
    %5799 = vmatprep.subr.mxu0 0.0
    %5800 = vmatpush1.msra.mxu0 0.0
    %5801 = vmatprep.subr.mxu0 0.0
    %5802 = vmatpush1.msra.mxu0 0.0
    %5803 = vmatprep.subr.mxu0 0.0
    %5804 = vmatpush1.msra.mxu0 0.0
    %5805 = vmatprep.subr.mxu0 0.0
    %5806 = vmatpush1.msra.mxu0 0.0
    %5807 = vmatprep.subr.mxu0 0.0
    %5808 = vmatpush1.msra.mxu0 0.0
    %5809 = vmatprep.subr.mxu0 0.0
    %5810 = vmatpush1.msra.mxu0 0.0
    %5811 = vmatprep.subr.mxu0 0.0
    %5812 = vmatpush1.msra.mxu0 0.0
    %5813 = vmatprep.subr.mxu0 0.0
    %5814 = vmatpush1.msra.mxu0 0.0
    %5815 = vmatprep.subr.mxu0 0.0
    %5816 = vmatpush1.msra.mxu0 0.0
    %5817 = vmatprep.mubr.f32.mxu0 0.0
    %5818 = vmatmul.mubr.f32.gmra.mrb[0].mxu0 %v5751
    %v5819 = vpop.f32.mrb[0].mxu0
    %v5820 = vadd.f32 0.0, %v5819
    %v5821 = vpop.f32.mrb[0].mxu0
    %5822 = vdwg.mxu0
    %5823 = vrot.lane.b32.xlu0 %v3735, 96
    %v5824 = vpop.permute.xlu0 %5823
    %v5827 = vsel %vm471, %v5594, 0
    %5829 = vmatprep.subr.mxu0 0.0
    %5830 = vmatpush1.msra.mxu0 %v5824
    %5831 = vmatprep.subr.mxu0 0.0
    %5832 = vmatpush1.msra.mxu0 0.0
    %5833 = vmatprep.subr.mxu0 0.0
    %5834 = vmatpush1.msra.mxu0 0.0
    %5835 = vmatprep.subr.mxu0 0.0
    %5836 = vmatpush1.msra.mxu0 0.0
    %5837 = vmatprep.subr.mxu0 0.0
    %5838 = vmatpush1.msra.mxu0 0.0
    %5839 = vmatprep.subr.mxu0 0.0
    %5840 = vmatpush1.msra.mxu0 0.0
    %5841 = vmatprep.subr.mxu0 0.0
    %5842 = vmatpush1.msra.mxu0 0.0
    %5843 = vmatprep.subr.mxu0 0.0
    %5844 = vmatpush1.msra.mxu0 0.0
    %5845 = vmatprep.subr.mxu0 0.0
    %5846 = vmatpush1.msra.mxu0 0.0
    %5847 = vmatprep.subr.mxu0 0.0
    %5848 = vmatpush1.msra.mxu0 0.0
    %5849 = vmatprep.subr.mxu0 0.0
    %5850 = vmatpush1.msra.mxu0 0.0
    %5851 = vmatprep.subr.mxu0 0.0
    %5852 = vmatpush1.msra.mxu0 0.0
    %5853 = vmatprep.subr.mxu0 0.0
    %5854 = vmatpush1.msra.mxu0 0.0
    %5855 = vmatprep.subr.mxu0 0.0
    %5856 = vmatpush1.msra.mxu0 0.0
    %5857 = vmatprep.subr.mxu0 0.0
    %5858 = vmatpush1.msra.mxu0 0.0
    %5859 = vmatprep.subr.mxu0 0.0
    %5860 = vmatpush1.msra.mxu0 0.0
    %5861 = vmatprep.subr.mxu0 0.0
    %5862 = vmatpush1.msra.mxu0 0.0
    %5863 = vmatprep.subr.mxu0 0.0
    %5864 = vmatpush1.msra.mxu0 0.0
    %5865 = vmatprep.subr.mxu0 0.0
    %5866 = vmatpush1.msra.mxu0 0.0
    %5867 = vmatprep.subr.mxu0 0.0
    %5868 = vmatpush1.msra.mxu0 0.0
    %5869 = vmatprep.subr.mxu0 0.0
    %5870 = vmatpush1.msra.mxu0 0.0
    %5871 = vmatprep.subr.mxu0 0.0
    %5872 = vmatpush1.msra.mxu0 0.0
    %5873 = vmatprep.subr.mxu0 0.0
    %5874 = vmatpush1.msra.mxu0 0.0
    %5875 = vmatprep.subr.mxu0 0.0
    %5876 = vmatpush1.msra.mxu0 0.0
    %5877 = vmatprep.subr.mxu0 0.0
    %5878 = vmatpush1.msra.mxu0 0.0
    %5879 = vmatprep.subr.mxu0 0.0
    %5880 = vmatpush1.msra.mxu0 0.0
    %5881 = vmatprep.subr.mxu0 0.0
    %5882 = vmatpush1.msra.mxu0 0.0
    %5883 = vmatprep.subr.mxu0 0.0
    %5884 = vmatpush1.msra.mxu0 0.0
    %5885 = vmatprep.subr.mxu0 0.0
    %5886 = vmatpush1.msra.mxu0 0.0
    %5887 = vmatprep.subr.mxu0 0.0
    %5888 = vmatpush1.msra.mxu0 0.0
    %5889 = vmatprep.subr.mxu0 0.0
    %5890 = vmatpush1.msra.mxu0 0.0
    %5891 = vmatprep.subr.mxu0 0.0
    %5892 = vmatpush1.msra.mxu0 0.0
    %5893 = vmatprep.mubr.f32.mxu0 0.0
    %5894 = vmatmul.mubr.f32.gmra.mrb[0].mxu0 %v5827
    %v5895 = vpop.f32.mrb[0].mxu0
    %v5896 = vadd.f32 0.0, %v5895
    %v5897 = vpop.f32.mrb[0].mxu0
    %5898 = vdwg.mxu0
    %v5900 = vsel %vm165, %v5668, 0
    %v5903 = vsel %vm165, %v5744, 0
    %v5906 = vsel %vm165, %v5820, 0
    %v5909 = vsel %vm165, %v5896, 0
    %5911 = vmatprep.subr.mxu0 0.0
    %5912 = vmatpush1.msra.mxu0 %v3630
    %5913 = vmatprep.subr.mxu0 0.0
    %5914 = vmatpush1.msra.mxu0 %v3631
    %5915 = vmatprep.subr.mxu0 0.0
    %5916 = vmatpush1.msra.mxu0 0.0
    %5917 = vmatprep.subr.mxu0 0.0
    %5918 = vmatpush1.msra.mxu0 0.0
    %5919 = vmatprep.subr.mxu0 0.0
    %5920 = vmatpush1.msra.mxu0 0.0
    %5921 = vmatprep.subr.mxu0 0.0
    %5922 = vmatpush1.msra.mxu0 0.0
    %5923 = vmatprep.subr.mxu0 0.0
    %5924 = vmatpush1.msra.mxu0 0.0
    %5925 = vmatprep.subr.mxu0 0.0
    %5926 = vmatpush1.msra.mxu0 0.0
    %5927 = vmatprep.subr.mxu0 0.0
    %5928 = vmatpush1.msra.mxu0 0.0
    %5929 = vmatprep.subr.mxu0 0.0
    %5930 = vmatpush1.msra.mxu0 0.0
    %5931 = vmatprep.subr.mxu0 0.0
    %5932 = vmatpush1.msra.mxu0 0.0
    %5933 = vmatprep.subr.mxu0 0.0
    %5934 = vmatpush1.msra.mxu0 0.0
    %5935 = vmatprep.subr.mxu0 0.0
    %5936 = vmatpush1.msra.mxu0 0.0
    %5937 = vmatprep.subr.mxu0 0.0
    %5938 = vmatpush1.msra.mxu0 0.0
    %5939 = vmatprep.subr.mxu0 0.0
    %5940 = vmatpush1.msra.mxu0 0.0
    %5941 = vmatprep.subr.mxu0 0.0
    %5942 = vmatpush1.msra.mxu0 0.0
    %5943 = vmatprep.subr.mxu0 0.0
    %5944 = vmatpush1.msra.mxu0 0.0
    %5945 = vmatprep.subr.mxu0 0.0
    %5946 = vmatpush1.msra.mxu0 0.0
    %5947 = vmatprep.subr.mxu0 0.0
    %5948 = vmatpush1.msra.mxu0 0.0
    %5949 = vmatprep.subr.mxu0 0.0
    %5950 = vmatpush1.msra.mxu0 0.0
    %5951 = vmatprep.subr.mxu0 0.0
    %5952 = vmatpush1.msra.mxu0 0.0
    %5953 = vmatprep.subr.mxu0 0.0
    %5954 = vmatpush1.msra.mxu0 0.0
    %5955 = vmatprep.subr.mxu0 0.0
    %5956 = vmatpush1.msra.mxu0 0.0
    %5957 = vmatprep.subr.mxu0 0.0
    %5958 = vmatpush1.msra.mxu0 0.0
    %5959 = vmatprep.subr.mxu0 0.0
    %5960 = vmatpush1.msra.mxu0 0.0
    %5961 = vmatprep.subr.mxu0 0.0
    %5962 = vmatpush1.msra.mxu0 0.0
    %5963 = vmatprep.subr.mxu0 0.0
    %5964 = vmatpush1.msra.mxu0 0.0
    %5965 = vmatprep.subr.mxu0 0.0
    %5966 = vmatpush1.msra.mxu0 0.0
    %5967 = vmatprep.subr.mxu0 0.0
    %5968 = vmatpush1.msra.mxu0 0.0
    %5969 = vmatprep.subr.mxu0 0.0
    %5970 = vmatpush1.msra.mxu0 0.0
    %5971 = vmatprep.subr.mxu0 0.0
    %5972 = vmatpush1.msra.mxu0 0.0
    %5973 = vmatprep.subr.mxu0 0.0
    %5974 = vmatpush1.msra.mxu0 0.0
    %5975 = vmatprep.mubr.f32.mxu0 0.0
    %5976 = vmatmul.mubr.f32.gmra.mrb[0].mxu0 %v5900
    %v5977 = vpop.f32.mrb[0].mxu0
    %v5978 = vadd.f32 0.0, %v5977
    %v5979 = vpop.f32.mrb[0].mxu0
    %5980 = vmatprep.mubr.f32.mxu0 0.0
    %5981 = vmatmul.mubr.f32.gmra.mrb[0].mxu0 %v5903
    %v5982 = vpop.f32.mrb[0].mxu0
    %v5983 = vadd.f32 0.0, %v5982
    %v5984 = vpop.f32.mrb[0].mxu0
    %5985 = vmatprep.mubr.f32.mxu0 0.0
    %5986 = vmatmul.mubr.f32.gmra.mrb[0].mxu0 %v5906
    %v5987 = vpop.f32.mrb[0].mxu0
    %v5988 = vadd.f32 0.0, %v5987
    %v5989 = vpop.f32.mrb[0].mxu0
    %5990 = vmatprep.mubr.f32.mxu0 0.0
    %5991 = vmatmul.mubr.f32.gmra.mrb[0].mxu0 %v5909
    %v5992 = vpop.f32.mrb[0].mxu0
    %v5993 = vadd.f32 0.0, %v5992
    %v5994 = vpop.f32.mrb[0].mxu0
    %5995 = vdwg.mxu0
    %v5996 = vadd.f32 %v5221, %v5978
    %v5997 = vadd.f32 %v5226, %v5983
    %v5998 = vadd.f32 %v5231, %v5988
    %v5999 = vadd.f32 %v5236, %v5993
    %6000 = vrot.lane.b32.xlu0 %v3715, 80
    %v6001 = vpop.permute.xlu0 %6000
    %6002 = vrot.lane.b32.xlu0 %v3715, 16
    %v6003 = vpop.permute.xlu0 %6002
    %v6004 = vsel %vm165, %v6001, 0
    %v6006 = vsel %vm165, %v6003, 0
    %6008 = vmatprep.subr.mxu0 0.0
    %6009 = vmatpush1.xpose.msra.mxu0 %v6006
    %6010 = vmatprep.subr.mxu0 0.0
    %6011 = vmatpush1.xpose.msra.mxu0 0.0
    %6012 = vmatprep.subr.mxu0 0.0
    %6013 = vmatpush1.xpose.msra.mxu0 0.0
    %6014 = vmatprep.subr.mxu0 0.0
    %6015 = vmatpush1.xpose.msra.mxu0 0.0
    %6016 = vmatprep.subr.mxu0 0.0
    %6017 = vmatpush1.xpose.msra.mxu0 0.0
    %6018 = vmatprep.subr.mxu0 0.0
    %6019 = vmatpush1.xpose.msra.mxu0 0.0
    %6020 = vmatprep.subr.mxu0 0.0
    %6021 = vmatpush1.xpose.msra.mxu0 0.0
    %6022 = vmatprep.subr.mxu0 0.0
    %6023 = vmatpush1.xpose.msra.mxu0 0.0
    %6024 = vmatprep.subr.mxu0 0.0
    %6025 = vmatpush1.xpose.msra.mxu0 0.0
    %6026 = vmatprep.subr.mxu0 0.0
    %6027 = vmatpush1.xpose.msra.mxu0 0.0
    %6028 = vmatprep.subr.mxu0 0.0
    %6029 = vmatpush1.xpose.msra.mxu0 0.0
    %6030 = vmatprep.subr.mxu0 0.0
    %6031 = vmatpush1.xpose.msra.mxu0 0.0
    %6032 = vmatprep.subr.mxu0 0.0
    %6033 = vmatpush1.xpose.msra.mxu0 0.0
    %6034 = vmatprep.subr.mxu0 0.0
    %6035 = vmatpush1.xpose.msra.mxu0 0.0
    %6036 = vmatprep.subr.mxu0 0.0
    %6037 = vmatpush1.xpose.msra.mxu0 0.0
    %6038 = vmatprep.subr.mxu0 0.0
    %6039 = vmatpush1.xpose.msra.mxu0 0.0
    %6040 = vmatprep.subr.mxu0 0.0
    %6041 = vmatpush1.xpose.msra.mxu0 0.0
    %6042 = vmatprep.subr.mxu0 0.0
    %6043 = vmatpush1.xpose.msra.mxu0 0.0
    %6044 = vmatprep.subr.mxu0 0.0
    %6045 = vmatpush1.xpose.msra.mxu0 0.0
    %6046 = vmatprep.subr.mxu0 0.0
    %6047 = vmatpush1.xpose.msra.mxu0 0.0
    %6048 = vmatprep.subr.mxu0 0.0
    %6049 = vmatpush1.xpose.msra.mxu0 0.0
    %6050 = vmatprep.subr.mxu0 0.0
    %6051 = vmatpush1.xpose.msra.mxu0 0.0
    %6052 = vmatprep.subr.mxu0 0.0
    %6053 = vmatpush1.xpose.msra.mxu0 0.0
    %6054 = vmatprep.subr.mxu0 0.0
    %6055 = vmatpush1.xpose.msra.mxu0 0.0
    %6056 = vmatprep.subr.mxu0 0.0
    %6057 = vmatpush1.xpose.msra.mxu0 0.0
    %6058 = vmatprep.subr.mxu0 0.0
    %6059 = vmatpush1.xpose.msra.mxu0 0.0
    %6060 = vmatprep.subr.mxu0 0.0
    %6061 = vmatpush1.xpose.msra.mxu0 0.0
    %6062 = vmatprep.subr.mxu0 0.0
    %6063 = vmatpush1.xpose.msra.mxu0 0.0
    %6064 = vmatprep.subr.mxu0 0.0
    %6065 = vmatpush1.xpose.msra.mxu0 0.0
    %6066 = vmatprep.subr.mxu0 0.0
    %6067 = vmatpush1.xpose.msra.mxu0 0.0
    %6068 = vmatprep.subr.mxu0 0.0
    %6069 = vmatpush1.xpose.msra.mxu0 0.0
    %6070 = vmatprep.subr.mxu0 0.0
    %6071 = vmatpush1.xpose.msra.mxu0 0.0
    %6072 = vmatprep.mubr.f32.mxu0 0.0
    %6073 = vmatmul.mubr.f32.gmra.mrb[0].mxu0 %v6004
    %v6074 = vpop.f32.mrb[0].mxu0
    %v6075 = vadd.f32 0.0, %v6074
    %v6076 = vpop.f32.mrb[0].mxu0
    %6077 = vdwg.mxu0
    %6078 = vrot.lane.b32.xlu0 %v3721, 80
    %v6079 = vpop.permute.xlu0 %6078
    %6080 = vrot.lane.b32.xlu0 %v3721, 16
    %v6081 = vpop.permute.xlu0 %6080
    %v6082 = vsel %vm165, %v6079, 0
    %v6084 = vsel %vm165, %v6081, 0
    %6086 = vmatprep.subr.mxu0 0.0
    %6087 = vmatpush1.xpose.msra.mxu0 %v6084
    %6088 = vmatprep.subr.mxu0 0.0
    %6089 = vmatpush1.xpose.msra.mxu0 0.0
    %6090 = vmatprep.subr.mxu0 0.0
    %6091 = vmatpush1.xpose.msra.mxu0 0.0
    %6092 = vmatprep.subr.mxu0 0.0
    %6093 = vmatpush1.xpose.msra.mxu0 0.0
    %6094 = vmatprep.subr.mxu0 0.0
    %6095 = vmatpush1.xpose.msra.mxu0 0.0
    %6096 = vmatprep.subr.mxu0 0.0
    %6097 = vmatpush1.xpose.msra.mxu0 0.0
    %6098 = vmatprep.subr.mxu0 0.0
    %6099 = vmatpush1.xpose.msra.mxu0 0.0
    %6100 = vmatprep.subr.mxu0 0.0
    %6101 = vmatpush1.xpose.msra.mxu0 0.0
    %6102 = vmatprep.subr.mxu0 0.0
    %6103 = vmatpush1.xpose.msra.mxu0 0.0
    %6104 = vmatprep.subr.mxu0 0.0
    %6105 = vmatpush1.xpose.msra.mxu0 0.0
    %6106 = vmatprep.subr.mxu0 0.0
    %6107 = vmatpush1.xpose.msra.mxu0 0.0
    %6108 = vmatprep.subr.mxu0 0.0
    %6109 = vmatpush1.xpose.msra.mxu0 0.0
    %6110 = vmatprep.subr.mxu0 0.0
    %6111 = vmatpush1.xpose.msra.mxu0 0.0
    %6112 = vmatprep.subr.mxu0 0.0
    %6113 = vmatpush1.xpose.msra.mxu0 0.0
    %6114 = vmatprep.subr.mxu0 0.0
    %6115 = vmatpush1.xpose.msra.mxu0 0.0
    %6116 = vmatprep.subr.mxu0 0.0
    %6117 = vmatpush1.xpose.msra.mxu0 0.0
    %6118 = vmatprep.subr.mxu0 0.0
    %6119 = vmatpush1.xpose.msra.mxu0 0.0
    %6120 = vmatprep.subr.mxu0 0.0
    %6121 = vmatpush1.xpose.msra.mxu0 0.0
    %6122 = vmatprep.subr.mxu0 0.0
    %6123 = vmatpush1.xpose.msra.mxu0 0.0
    %6124 = vmatprep.subr.mxu0 0.0
    %6125 = vmatpush1.xpose.msra.mxu0 0.0
    %6126 = vmatprep.subr.mxu0 0.0
    %6127 = vmatpush1.xpose.msra.mxu0 0.0
    %6128 = vmatprep.subr.mxu0 0.0
    %6129 = vmatpush1.xpose.msra.mxu0 0.0
    %6130 = vmatprep.subr.mxu0 0.0
    %6131 = vmatpush1.xpose.msra.mxu0 0.0
    %6132 = vmatprep.subr.mxu0 0.0
    %6133 = vmatpush1.xpose.msra.mxu0 0.0
    %6134 = vmatprep.subr.mxu0 0.0
    %6135 = vmatpush1.xpose.msra.mxu0 0.0
    %6136 = vmatprep.subr.mxu0 0.0
    %6137 = vmatpush1.xpose.msra.mxu0 0.0
    %6138 = vmatprep.subr.mxu0 0.0
    %6139 = vmatpush1.xpose.msra.mxu0 0.0
    %6140 = vmatprep.subr.mxu0 0.0
    %6141 = vmatpush1.xpose.msra.mxu0 0.0
    %6142 = vmatprep.subr.mxu0 0.0
    %6143 = vmatpush1.xpose.msra.mxu0 0.0
    %6144 = vmatprep.subr.mxu0 0.0
    %6145 = vmatpush1.xpose.msra.mxu0 0.0
    %6146 = vmatprep.subr.mxu0 0.0
    %6147 = vmatpush1.xpose.msra.mxu0 0.0
    %6148 = vmatprep.subr.mxu0 0.0
    %6149 = vmatpush1.xpose.msra.mxu0 0.0
    %6150 = vmatprep.mubr.f32.mxu0 0.0
    %6151 = vmatmul.mubr.f32.gmra.mrb[0].mxu0 %v6082
    %v6152 = vpop.f32.mrb[0].mxu0
    %v6153 = vadd.f32 0.0, %v6152
    %v6154 = vpop.f32.mrb[0].mxu0
    %6155 = vdwg.mxu0
    %6156 = vrot.lane.b32.xlu0 %v3727, 80
    %v6157 = vpop.permute.xlu0 %6156
    %6158 = vrot.lane.b32.xlu0 %v3727, 16
    %v6159 = vpop.permute.xlu0 %6158
    %v6160 = vsel %vm165, %v6157, 0
    %v6162 = vsel %vm165, %v6159, 0
    %6164 = vmatprep.subr.mxu0 0.0
    %6165 = vmatpush1.xpose.msra.mxu0 %v6162
    %6166 = vmatprep.subr.mxu0 0.0
    %6167 = vmatpush1.xpose.msra.mxu0 0.0
    %6168 = vmatprep.subr.mxu0 0.0
    %6169 = vmatpush1.xpose.msra.mxu0 0.0
    %6170 = vmatprep.subr.mxu0 0.0
    %6171 = vmatpush1.xpose.msra.mxu0 0.0
    %6172 = vmatprep.subr.mxu0 0.0
    %6173 = vmatpush1.xpose.msra.mxu0 0.0
    %6174 = vmatprep.subr.mxu0 0.0
    %6175 = vmatpush1.xpose.msra.mxu0 0.0
    %6176 = vmatprep.subr.mxu0 0.0
    %6177 = vmatpush1.xpose.msra.mxu0 0.0
    %6178 = vmatprep.subr.mxu0 0.0
    %6179 = vmatpush1.xpose.msra.mxu0 0.0
    %6180 = vmatprep.subr.mxu0 0.0
    %6181 = vmatpush1.xpose.msra.mxu0 0.0
    %6182 = vmatprep.subr.mxu0 0.0
    %6183 = vmatpush1.xpose.msra.mxu0 0.0
    %6184 = vmatprep.subr.mxu0 0.0
    %6185 = vmatpush1.xpose.msra.mxu0 0.0
    %6186 = vmatprep.subr.mxu0 0.0
    %6187 = vmatpush1.xpose.msra.mxu0 0.0
    %6188 = vmatprep.subr.mxu0 0.0
    %6189 = vmatpush1.xpose.msra.mxu0 0.0
    %6190 = vmatprep.subr.mxu0 0.0
    %6191 = vmatpush1.xpose.msra.mxu0 0.0
    %6192 = vmatprep.subr.mxu0 0.0
    %6193 = vmatpush1.xpose.msra.mxu0 0.0
    %6194 = vmatprep.subr.mxu0 0.0
    %6195 = vmatpush1.xpose.msra.mxu0 0.0
    %6196 = vmatprep.subr.mxu0 0.0
    %6197 = vmatpush1.xpose.msra.mxu0 0.0
    %6198 = vmatprep.subr.mxu0 0.0
    %6199 = vmatpush1.xpose.msra.mxu0 0.0
    %6200 = vmatprep.subr.mxu0 0.0
    %6201 = vmatpush1.xpose.msra.mxu0 0.0
    %6202 = vmatprep.subr.mxu0 0.0
    %6203 = vmatpush1.xpose.msra.mxu0 0.0
    %6204 = vmatprep.subr.mxu0 0.0
    %6205 = vmatpush1.xpose.msra.mxu0 0.0
    %6206 = vmatprep.subr.mxu0 0.0
    %6207 = vmatpush1.xpose.msra.mxu0 0.0
    %6208 = vmatprep.subr.mxu0 0.0
    %6209 = vmatpush1.xpose.msra.mxu0 0.0
    %6210 = vmatprep.subr.mxu0 0.0
    %6211 = vmatpush1.xpose.msra.mxu0 0.0
    %6212 = vmatprep.subr.mxu0 0.0
    %6213 = vmatpush1.xpose.msra.mxu0 0.0
    %6214 = vmatprep.subr.mxu0 0.0
    %6215 = vmatpush1.xpose.msra.mxu0 0.0
    %6216 = vmatprep.subr.mxu0 0.0
    %6217 = vmatpush1.xpose.msra.mxu0 0.0
    %6218 = vmatprep.subr.mxu0 0.0
    %6219 = vmatpush1.xpose.msra.mxu0 0.0
    %6220 = vmatprep.subr.mxu0 0.0
    %6221 = vmatpush1.xpose.msra.mxu0 0.0
    %6222 = vmatprep.subr.mxu0 0.0
    %6223 = vmatpush1.xpose.msra.mxu0 0.0
    %6224 = vmatprep.subr.mxu0 0.0
    %6225 = vmatpush1.xpose.msra.mxu0 0.0
    %6226 = vmatprep.subr.mxu0 0.0
    %6227 = vmatpush1.xpose.msra.mxu0 0.0
    %6228 = vmatprep.mubr.f32.mxu0 0.0
    %6229 = vmatmul.mubr.f32.gmra.mrb[0].mxu0 %v6160
    %v6230 = vpop.f32.mrb[0].mxu0
    %v6231 = vadd.f32 0.0, %v6230
    %v6232 = vpop.f32.mrb[0].mxu0
    %6233 = vdwg.mxu0
    %6234 = vrot.lane.b32.xlu0 %v3733, 80
    %v6235 = vpop.permute.xlu0 %6234
    %6236 = vrot.lane.b32.xlu0 %v3733, 16
    %v6237 = vpop.permute.xlu0 %6236
    %v6238 = vsel %vm165, %v6235, 0
    %v6240 = vsel %vm165, %v6237, 0
    %6242 = vmatprep.subr.mxu0 0.0
    %6243 = vmatpush1.xpose.msra.mxu0 %v6240
    %6244 = vmatprep.subr.mxu0 0.0
    %6245 = vmatpush1.xpose.msra.mxu0 0.0
    %6246 = vmatprep.subr.mxu0 0.0
    %6247 = vmatpush1.xpose.msra.mxu0 0.0
    %6248 = vmatprep.subr.mxu0 0.0
    %6249 = vmatpush1.xpose.msra.mxu0 0.0
    %6250 = vmatprep.subr.mxu0 0.0
    %6251 = vmatpush1.xpose.msra.mxu0 0.0
    %6252 = vmatprep.subr.mxu0 0.0
    %6253 = vmatpush1.xpose.msra.mxu0 0.0
    %6254 = vmatprep.subr.mxu0 0.0
    %6255 = vmatpush1.xpose.msra.mxu0 0.0
    %6256 = vmatprep.subr.mxu0 0.0
    %6257 = vmatpush1.xpose.msra.mxu0 0.0
    %6258 = vmatprep.subr.mxu0 0.0
    %6259 = vmatpush1.xpose.msra.mxu0 0.0
    %6260 = vmatprep.subr.mxu0 0.0
    %6261 = vmatpush1.xpose.msra.mxu0 0.0
    %6262 = vmatprep.subr.mxu0 0.0
    %6263 = vmatpush1.xpose.msra.mxu0 0.0
    %6264 = vmatprep.subr.mxu0 0.0
    %6265 = vmatpush1.xpose.msra.mxu0 0.0
    %6266 = vmatprep.subr.mxu0 0.0
    %6267 = vmatpush1.xpose.msra.mxu0 0.0
    %6268 = vmatprep.subr.mxu0 0.0
    %6269 = vmatpush1.xpose.msra.mxu0 0.0
    %6270 = vmatprep.subr.mxu0 0.0
    %6271 = vmatpush1.xpose.msra.mxu0 0.0
    %6272 = vmatprep.subr.mxu0 0.0
    %6273 = vmatpush1.xpose.msra.mxu0 0.0
    %6274 = vmatprep.subr.mxu0 0.0
    %6275 = vmatpush1.xpose.msra.mxu0 0.0
    %6276 = vmatprep.subr.mxu0 0.0
    %6277 = vmatpush1.xpose.msra.mxu0 0.0
    %6278 = vmatprep.subr.mxu0 0.0
    %6279 = vmatpush1.xpose.msra.mxu0 0.0
    %6280 = vmatprep.subr.mxu0 0.0
    %6281 = vmatpush1.xpose.msra.mxu0 0.0
    %6282 = vmatprep.subr.mxu0 0.0
    %6283 = vmatpush1.xpose.msra.mxu0 0.0
    %6284 = vmatprep.subr.mxu0 0.0
    %6285 = vmatpush1.xpose.msra.mxu0 0.0
    %6286 = vmatprep.subr.mxu0 0.0
    %6287 = vmatpush1.xpose.msra.mxu0 0.0
    %6288 = vmatprep.subr.mxu0 0.0
    %6289 = vmatpush1.xpose.msra.mxu0 0.0
    %6290 = vmatprep.subr.mxu0 0.0
    %6291 = vmatpush1.xpose.msra.mxu0 0.0
    %6292 = vmatprep.subr.mxu0 0.0
    %6293 = vmatpush1.xpose.msra.mxu0 0.0
    %6294 = vmatprep.subr.mxu0 0.0
    %6295 = vmatpush1.xpose.msra.mxu0 0.0
    %6296 = vmatprep.subr.mxu0 0.0
    %6297 = vmatpush1.xpose.msra.mxu0 0.0
    %6298 = vmatprep.subr.mxu0 0.0
    %6299 = vmatpush1.xpose.msra.mxu0 0.0
    %6300 = vmatprep.subr.mxu0 0.0
    %6301 = vmatpush1.xpose.msra.mxu0 0.0
    %6302 = vmatprep.subr.mxu0 0.0
    %6303 = vmatpush1.xpose.msra.mxu0 0.0
    %6304 = vmatprep.subr.mxu0 0.0
    %6305 = vmatpush1.xpose.msra.mxu0 0.0
    %6306 = vmatprep.mubr.f32.mxu0 0.0
    %6307 = vmatmul.mubr.f32.gmra.mrb[0].mxu0 %v6238
    %v6308 = vpop.f32.mrb[0].mxu0
    %v6309 = vadd.f32 0.0, %v6308
    %v6310 = vpop.f32.mrb[0].mxu0
    %6311 = vdwg.mxu0
    %v6312 = vsel %vm471, %v6075, -inf
    %6313 = vmax.xlane.f32.xlu0 %v6312
    %v6314 = vpop.xlane.xlu0 %6313
    %v6315 = vsel %vm471, %v6153, -inf
    %6316 = vmax.xlane.f32.xlu0 %v6315
    %v6317 = vpop.xlane.xlu0 %6316
    %v6318 = vsel %vm471, %v6231, -inf
    %6319 = vmax.xlane.f32.xlu0 %v6318
    %v6320 = vpop.xlane.xlu0 %6319
    %v6321 = vsel %vm471, %v6309, -inf
    %6322 = vmax.xlane.f32.xlu0 %v6321
    %v6323 = vpop.xlane.xlu0 %6322
    %v6324 = vsub.f32 %v6075, %v6314
    %v6325 = vsub.f32 %v6153, %v6317
    %v6326 = vsub.f32 %v6231, %v6320
    %v6327 = vsub.f32 %v6309, %v6323
    %v6328 = vmul.f32 %v6324, 1.442695
    %v6329 = vpow.pop %v6328
    %v6330 = vmul.f32 %v6325, 1.442695
    %v6331 = vpow.pop %v6330
    %v6332 = vmul.f32 %v6326, 1.442695
    %v6333 = vpow.pop %v6332
    %v6334 = vmul.f32 %v6327, 1.442695
    %v6335 = vpow.pop %v6334
    %v6336 = vsel %vm471, %v6329, 0.0
    %6337 = vadd.xlane.f32.xlu0 %v6336
    %v6338 = vpop.xlane.xlu0 %6337
    %v6339 = vsel %vm471, %v6331, 0.0
    %6340 = vadd.xlane.f32.xlu0 %v6339
    %v6341 = vpop.xlane.xlu0 %6340
    %v6342 = vsel %vm471, %v6333, 0.0
    %6343 = vadd.xlane.f32.xlu0 %v6342
    %v6344 = vpop.xlane.xlu0 %6343
    %v6345 = vsel %vm471, %v6335, 0.0
    %6346 = vadd.xlane.f32.xlu0 %v6345
    %v6347 = vpop.xlane.xlu0 %6346
    %v6348 = vrcp.pop %v6338
    %v6349 = vmul.f32 %v6329, %v6348
    %v6350 = vrcp.pop %v6341
    %v6351 = vmul.f32 %v6331, %v6350
    %v6352 = vrcp.pop %v6344
    %v6353 = vmul.f32 %v6333, %v6352
    %v6354 = vrcp.pop %v6347
    %v6355 = vmul.f32 %v6335, %v6354
    %6356 = vrot.lane.b32.xlu0 %v3717, 80
    %v6357 = vpop.permute.xlu0 %6356
    %v6360 = vsel %vm471, %v6349, 0
    %6362 = vmatprep.subr.mxu0 0.0
    %6363 = vmatpush1.msra.mxu0 %v6357
    %6364 = vmatprep.subr.mxu0 0.0
    %6365 = vmatpush1.msra.mxu0 0.0
    %6366 = vmatprep.subr.mxu0 0.0
    %6367 = vmatpush1.msra.mxu0 0.0
    %6368 = vmatprep.subr.mxu0 0.0
    %6369 = vmatpush1.msra.mxu0 0.0
    %6370 = vmatprep.subr.mxu0 0.0
    %6371 = vmatpush1.msra.mxu0 0.0
    %6372 = vmatprep.subr.mxu0 0.0
    %6373 = vmatpush1.msra.mxu0 0.0
    %6374 = vmatprep.subr.mxu0 0.0
    %6375 = vmatpush1.msra.mxu0 0.0
    %6376 = vmatprep.subr.mxu0 0.0
    %6377 = vmatpush1.msra.mxu0 0.0
    %6378 = vmatprep.subr.mxu0 0.0
    %6379 = vmatpush1.msra.mxu0 0.0
    %6380 = vmatprep.subr.mxu0 0.0
    %6381 = vmatpush1.msra.mxu0 0.0
    %6382 = vmatprep.subr.mxu0 0.0
    %6383 = vmatpush1.msra.mxu0 0.0
    %6384 = vmatprep.subr.mxu0 0.0
    %6385 = vmatpush1.msra.mxu0 0.0
    %6386 = vmatprep.subr.mxu0 0.0
    %6387 = vmatpush1.msra.mxu0 0.0
    %6388 = vmatprep.subr.mxu0 0.0
    %6389 = vmatpush1.msra.mxu0 0.0
    %6390 = vmatprep.subr.mxu0 0.0
    %6391 = vmatpush1.msra.mxu0 0.0
    %6392 = vmatprep.subr.mxu0 0.0
    %6393 = vmatpush1.msra.mxu0 0.0
    %6394 = vmatprep.subr.mxu0 0.0
    %6395 = vmatpush1.msra.mxu0 0.0
    %6396 = vmatprep.subr.mxu0 0.0
    %6397 = vmatpush1.msra.mxu0 0.0
    %6398 = vmatprep.subr.mxu0 0.0
    %6399 = vmatpush1.msra.mxu0 0.0
    %6400 = vmatprep.subr.mxu0 0.0
    %6401 = vmatpush1.msra.mxu0 0.0
    %6402 = vmatprep.subr.mxu0 0.0
    %6403 = vmatpush1.msra.mxu0 0.0
    %6404 = vmatprep.subr.mxu0 0.0
    %6405 = vmatpush1.msra.mxu0 0.0
    %6406 = vmatprep.subr.mxu0 0.0
    %6407 = vmatpush1.msra.mxu0 0.0
    %6408 = vmatprep.subr.mxu0 0.0
    %6409 = vmatpush1.msra.mxu0 0.0
    %6410 = vmatprep.subr.mxu0 0.0
    %6411 = vmatpush1.msra.mxu0 0.0
    %6412 = vmatprep.subr.mxu0 0.0
    %6413 = vmatpush1.msra.mxu0 0.0
    %6414 = vmatprep.subr.mxu0 0.0
    %6415 = vmatpush1.msra.mxu0 0.0
    %6416 = vmatprep.subr.mxu0 0.0
    %6417 = vmatpush1.msra.mxu0 0.0
    %6418 = vmatprep.subr.mxu0 0.0
    %6419 = vmatpush1.msra.mxu0 0.0
    %6420 = vmatprep.subr.mxu0 0.0
    %6421 = vmatpush1.msra.mxu0 0.0
    %6422 = vmatprep.subr.mxu0 0.0
    %6423 = vmatpush1.msra.mxu0 0.0
    %6424 = vmatprep.subr.mxu0 0.0
    %6425 = vmatpush1.msra.mxu0 0.0
    %6426 = vmatprep.mubr.f32.mxu0 0.0
    %6427 = vmatmul.mubr.f32.gmra.mrb[0].mxu0 %v6360
    %v6428 = vpop.f32.mrb[0].mxu0
    %v6429 = vadd.f32 0.0, %v6428
    %v6430 = vpop.f32.mrb[0].mxu0
    %6431 = vdwg.mxu0
    %6432 = vrot.lane.b32.xlu0 %v3723, 80
    %v6433 = vpop.permute.xlu0 %6432
    %v6436 = vsel %vm471, %v6351, 0
    %6438 = vmatprep.subr.mxu0 0.0
    %6439 = vmatpush1.msra.mxu0 %v6433
    %6440 = vmatprep.subr.mxu0 0.0
    %6441 = vmatpush1.msra.mxu0 0.0
    %6442 = vmatprep.subr.mxu0 0.0
    %6443 = vmatpush1.msra.mxu0 0.0
    %6444 = vmatprep.subr.mxu0 0.0
    %6445 = vmatpush1.msra.mxu0 0.0
    %6446 = vmatprep.subr.mxu0 0.0
    %6447 = vmatpush1.msra.mxu0 0.0
    %6448 = vmatprep.subr.mxu0 0.0
    %6449 = vmatpush1.msra.mxu0 0.0
    %6450 = vmatprep.subr.mxu0 0.0
    %6451 = vmatpush1.msra.mxu0 0.0
    %6452 = vmatprep.subr.mxu0 0.0
    %6453 = vmatpush1.msra.mxu0 0.0
    %6454 = vmatprep.subr.mxu0 0.0
    %6455 = vmatpush1.msra.mxu0 0.0
    %6456 = vmatprep.subr.mxu0 0.0
    %6457 = vmatpush1.msra.mxu0 0.0
    %6458 = vmatprep.subr.mxu0 0.0
    %6459 = vmatpush1.msra.mxu0 0.0
    %6460 = vmatprep.subr.mxu0 0.0
    %6461 = vmatpush1.msra.mxu0 0.0
    %6462 = vmatprep.subr.mxu0 0.0
    %6463 = vmatpush1.msra.mxu0 0.0
    %6464 = vmatprep.subr.mxu0 0.0
    %6465 = vmatpush1.msra.mxu0 0.0
    %6466 = vmatprep.subr.mxu0 0.0
    %6467 = vmatpush1.msra.mxu0 0.0
    %6468 = vmatprep.subr.mxu0 0.0
    %6469 = vmatpush1.msra.mxu0 0.0
    %6470 = vmatprep.subr.mxu0 0.0
    %6471 = vmatpush1.msra.mxu0 0.0
    %6472 = vmatprep.subr.mxu0 0.0
    %6473 = vmatpush1.msra.mxu0 0.0
    %6474 = vmatprep.subr.mxu0 0.0
    %6475 = vmatpush1.msra.mxu0 0.0
    %6476 = vmatprep.subr.mxu0 0.0
    %6477 = vmatpush1.msra.mxu0 0.0
    %6478 = vmatprep.subr.mxu0 0.0
    %6479 = vmatpush1.msra.mxu0 0.0
    %6480 = vmatprep.subr.mxu0 0.0
    %6481 = vmatpush1.msra.mxu0 0.0
    %6482 = vmatprep.subr.mxu0 0.0
    %6483 = vmatpush1.msra.mxu0 0.0
    %6484 = vmatprep.subr.mxu0 0.0
    %6485 = vmatpush1.msra.mxu0 0.0
    %6486 = vmatprep.subr.mxu0 0.0
    %6487 = vmatpush1.msra.mxu0 0.0
    %6488 = vmatprep.subr.mxu0 0.0
    %6489 = vmatpush1.msra.mxu0 0.0
    %6490 = vmatprep.subr.mxu0 0.0
    %6491 = vmatpush1.msra.mxu0 0.0
    %6492 = vmatprep.subr.mxu0 0.0
    %6493 = vmatpush1.msra.mxu0 0.0
    %6494 = vmatprep.subr.mxu0 0.0
    %6495 = vmatpush1.msra.mxu0 0.0
    %6496 = vmatprep.subr.mxu0 0.0
    %6497 = vmatpush1.msra.mxu0 0.0
    %6498 = vmatprep.subr.mxu0 0.0
    %6499 = vmatpush1.msra.mxu0 0.0
    %6500 = vmatprep.subr.mxu0 0.0
    %6501 = vmatpush1.msra.mxu0 0.0
    %6502 = vmatprep.mubr.f32.mxu0 0.0
    %6503 = vmatmul.mubr.f32.gmra.mrb[0].mxu0 %v6436
    %v6504 = vpop.f32.mrb[0].mxu0
    %v6505 = vadd.f32 0.0, %v6504
    %v6506 = vpop.f32.mrb[0].mxu0
    %6507 = vdwg.mxu0
    %6508 = vrot.lane.b32.xlu0 %v3729, 80
    %v6509 = vpop.permute.xlu0 %6508
    %v6512 = vsel %vm471, %v6353, 0
    %6514 = vmatprep.subr.mxu0 0.0
    %6515 = vmatpush1.msra.mxu0 %v6509
    %6516 = vmatprep.subr.mxu0 0.0
    %6517 = vmatpush1.msra.mxu0 0.0
    %6518 = vmatprep.subr.mxu0 0.0
    %6519 = vmatpush1.msra.mxu0 0.0
    %6520 = vmatprep.subr.mxu0 0.0
    %6521 = vmatpush1.msra.mxu0 0.0
    %6522 = vmatprep.subr.mxu0 0.0
    %6523 = vmatpush1.msra.mxu0 0.0
    %6524 = vmatprep.subr.mxu0 0.0
    %6525 = vmatpush1.msra.mxu0 0.0
    %6526 = vmatprep.subr.mxu0 0.0
    %6527 = vmatpush1.msra.mxu0 0.0
    %6528 = vmatprep.subr.mxu0 0.0
    %6529 = vmatpush1.msra.mxu0 0.0
    %6530 = vmatprep.subr.mxu0 0.0
    %6531 = vmatpush1.msra.mxu0 0.0
    %6532 = vmatprep.subr.mxu0 0.0
    %6533 = vmatpush1.msra.mxu0 0.0
    %6534 = vmatprep.subr.mxu0 0.0
    %6535 = vmatpush1.msra.mxu0 0.0
    %6536 = vmatprep.subr.mxu0 0.0
    %6537 = vmatpush1.msra.mxu0 0.0
    %6538 = vmatprep.subr.mxu0 0.0
    %6539 = vmatpush1.msra.mxu0 0.0
    %6540 = vmatprep.subr.mxu0 0.0
    %6541 = vmatpush1.msra.mxu0 0.0
    %6542 = vmatprep.subr.mxu0 0.0
    %6543 = vmatpush1.msra.mxu0 0.0
    %6544 = vmatprep.subr.mxu0 0.0
    %6545 = vmatpush1.msra.mxu0 0.0
    %6546 = vmatprep.subr.mxu0 0.0
    %6547 = vmatpush1.msra.mxu0 0.0
    %6548 = vmatprep.subr.mxu0 0.0
    %6549 = vmatpush1.msra.mxu0 0.0
    %6550 = vmatprep.subr.mxu0 0.0
    %6551 = vmatpush1.msra.mxu0 0.0
    %6552 = vmatprep.subr.mxu0 0.0
    %6553 = vmatpush1.msra.mxu0 0.0
    %6554 = vmatprep.subr.mxu0 0.0
    %6555 = vmatpush1.msra.mxu0 0.0
    %6556 = vmatprep.subr.mxu0 0.0
    %6557 = vmatpush1.msra.mxu0 0.0
    %6558 = vmatprep.subr.mxu0 0.0
    %6559 = vmatpush1.msra.mxu0 0.0
    %6560 = vmatprep.subr.mxu0 0.0
    %6561 = vmatpush1.msra.mxu0 0.0
    %6562 = vmatprep.subr.mxu0 0.0
    %6563 = vmatpush1.msra.mxu0 0.0
    %6564 = vmatprep.subr.mxu0 0.0
    %6565 = vmatpush1.msra.mxu0 0.0
    %6566 = vmatprep.subr.mxu0 0.0
    %6567 = vmatpush1.msra.mxu0 0.0
    %6568 = vmatprep.subr.mxu0 0.0
    %6569 = vmatpush1.msra.mxu0 0.0
    %6570 = vmatprep.subr.mxu0 0.0
    %6571 = vmatpush1.msra.mxu0 0.0
    %6572 = vmatprep.subr.mxu0 0.0
    %6573 = vmatpush1.msra.mxu0 0.0
    %6574 = vmatprep.subr.mxu0 0.0
    %6575 = vmatpush1.msra.mxu0 0.0
    %6576 = vmatprep.subr.mxu0 0.0
    %6577 = vmatpush1.msra.mxu0 0.0
    %6578 = vmatprep.mubr.f32.mxu0 0.0
    %6579 = vmatmul.mubr.f32.gmra.mrb[0].mxu0 %v6512
    %v6580 = vpop.f32.mrb[0].mxu0
    %v6581 = vadd.f32 0.0, %v6580
    %v6582 = vpop.f32.mrb[0].mxu0
    %6583 = vdwg.mxu0
    %6584 = vrot.lane.b32.xlu0 %v3735, 80
    %v6585 = vpop.permute.xlu0 %6584
    %v6588 = vsel %vm471, %v6355, 0
    %6590 = vmatprep.subr.mxu0 0.0
    %6591 = vmatpush1.msra.mxu0 %v6585
    %6592 = vmatprep.subr.mxu0 0.0
    %6593 = vmatpush1.msra.mxu0 0.0
    %6594 = vmatprep.subr.mxu0 0.0
    %6595 = vmatpush1.msra.mxu0 0.0
    %6596 = vmatprep.subr.mxu0 0.0
    %6597 = vmatpush1.msra.mxu0 0.0
    %6598 = vmatprep.subr.mxu0 0.0
    %6599 = vmatpush1.msra.mxu0 0.0
    %6600 = vmatprep.subr.mxu0 0.0
    %6601 = vmatpush1.msra.mxu0 0.0
    %6602 = vmatprep.subr.mxu0 0.0
    %6603 = vmatpush1.msra.mxu0 0.0
    %6604 = vmatprep.subr.mxu0 0.0
    %6605 = vmatpush1.msra.mxu0 0.0
    %6606 = vmatprep.subr.mxu0 0.0
    %6607 = vmatpush1.msra.mxu0 0.0
    %6608 = vmatprep.subr.mxu0 0.0
    %6609 = vmatpush1.msra.mxu0 0.0
    %6610 = vmatprep.subr.mxu0 0.0
    %6611 = vmatpush1.msra.mxu0 0.0
    %6612 = vmatprep.subr.mxu0 0.0
    %6613 = vmatpush1.msra.mxu0 0.0
    %6614 = vmatprep.subr.mxu0 0.0
    %6615 = vmatpush1.msra.mxu0 0.0
    %6616 = vmatprep.subr.mxu0 0.0
    %6617 = vmatpush1.msra.mxu0 0.0
    %6618 = vmatprep.subr.mxu0 0.0
    %6619 = vmatpush1.msra.mxu0 0.0
    %6620 = vmatprep.subr.mxu0 0.0
    %6621 = vmatpush1.msra.mxu0 0.0
    %6622 = vmatprep.subr.mxu0 0.0
    %6623 = vmatpush1.msra.mxu0 0.0
    %6624 = vmatprep.subr.mxu0 0.0
    %6625 = vmatpush1.msra.mxu0 0.0
    %6626 = vmatprep.subr.mxu0 0.0
    %6627 = vmatpush1.msra.mxu0 0.0
    %6628 = vmatprep.subr.mxu0 0.0
    %6629 = vmatpush1.msra.mxu0 0.0
    %6630 = vmatprep.subr.mxu0 0.0
    %6631 = vmatpush1.msra.mxu0 0.0
    %6632 = vmatprep.subr.mxu0 0.0
    %6633 = vmatpush1.msra.mxu0 0.0
    %6634 = vmatprep.subr.mxu0 0.0
    %6635 = vmatpush1.msra.mxu0 0.0
    %6636 = vmatprep.subr.mxu0 0.0
    %6637 = vmatpush1.msra.mxu0 0.0
    %6638 = vmatprep.subr.mxu0 0.0
    %6639 = vmatpush1.msra.mxu0 0.0
    %6640 = vmatprep.subr.mxu0 0.0
    %6641 = vmatpush1.msra.mxu0 0.0
    %6642 = vmatprep.subr.mxu0 0.0
    %6643 = vmatpush1.msra.mxu0 0.0
    %6644 = vmatprep.subr.mxu0 0.0
    %6645 = vmatpush1.msra.mxu0 0.0
    %6646 = vmatprep.subr.mxu0 0.0
    %6647 = vmatpush1.msra.mxu0 0.0
    %6648 = vmatprep.subr.mxu0 0.0
    %6649 = vmatpush1.msra.mxu0 0.0
    %6650 = vmatprep.subr.mxu0 0.0
    %6651 = vmatpush1.msra.mxu0 0.0
    %6652 = vmatprep.subr.mxu0 0.0
    %6653 = vmatpush1.msra.mxu0 0.0
    %6654 = vmatprep.mubr.f32.mxu0 0.0
    %6655 = vmatmul.mubr.f32.gmra.mrb[0].mxu0 %v6588
    %v6656 = vpop.f32.mrb[0].mxu0
    %v6657 = vadd.f32 0.0, %v6656
    %v6658 = vpop.f32.mrb[0].mxu0
    %6659 = vdwg.mxu0
    %v6661 = vsel %vm165, %v6429, 0
    %v6664 = vsel %vm165, %v6505, 0
    %v6667 = vsel %vm165, %v6581, 0
    %v6670 = vsel %vm165, %v6657, 0
    %6672 = vmatprep.subr.mxu0 0.0
    %6673 = vmatpush1.msra.mxu0 %v3632
    %6674 = vmatprep.subr.mxu0 0.0
    %6675 = vmatpush1.msra.mxu0 %v3633
    %6676 = vmatprep.subr.mxu0 0.0
    %6677 = vmatpush1.msra.mxu0 0.0
    %6678 = vmatprep.subr.mxu0 0.0
    %6679 = vmatpush1.msra.mxu0 0.0
    %6680 = vmatprep.subr.mxu0 0.0
    %6681 = vmatpush1.msra.mxu0 0.0
    %6682 = vmatprep.subr.mxu0 0.0
    %6683 = vmatpush1.msra.mxu0 0.0
    %6684 = vmatprep.subr.mxu0 0.0
    %6685 = vmatpush1.msra.mxu0 0.0
    %6686 = vmatprep.subr.mxu0 0.0
    %6687 = vmatpush1.msra.mxu0 0.0
    %6688 = vmatprep.subr.mxu0 0.0
    %6689 = vmatpush1.msra.mxu0 0.0
    %6690 = vmatprep.subr.mxu0 0.0
    %6691 = vmatpush1.msra.mxu0 0.0
    %6692 = vmatprep.subr.mxu0 0.0
    %6693 = vmatpush1.msra.mxu0 0.0
    %6694 = vmatprep.subr.mxu0 0.0
    %6695 = vmatpush1.msra.mxu0 0.0
    %6696 = vmatprep.subr.mxu0 0.0
    %6697 = vmatpush1.msra.mxu0 0.0
    %6698 = vmatprep.subr.mxu0 0.0
    %6699 = vmatpush1.msra.mxu0 0.0
    %6700 = vmatprep.subr.mxu0 0.0
    %6701 = vmatpush1.msra.mxu0 0.0
    %6702 = vmatprep.subr.mxu0 0.0
    %6703 = vmatpush1.msra.mxu0 0.0
    %6704 = vmatprep.subr.mxu0 0.0
    %6705 = vmatpush1.msra.mxu0 0.0
    %6706 = vmatprep.subr.mxu0 0.0
    %6707 = vmatpush1.msra.mxu0 0.0
    %6708 = vmatprep.subr.mxu0 0.0
    %6709 = vmatpush1.msra.mxu0 0.0
    %6710 = vmatprep.subr.mxu0 0.0
    %6711 = vmatpush1.msra.mxu0 0.0
    %6712 = vmatprep.subr.mxu0 0.0
    %6713 = vmatpush1.msra.mxu0 0.0
    %6714 = vmatprep.subr.mxu0 0.0
    %6715 = vmatpush1.msra.mxu0 0.0
    %6716 = vmatprep.subr.mxu0 0.0
    %6717 = vmatpush1.msra.mxu0 0.0
    %6718 = vmatprep.subr.mxu0 0.0
    %6719 = vmatpush1.msra.mxu0 0.0
    %6720 = vmatprep.subr.mxu0 0.0
    %6721 = vmatpush1.msra.mxu0 0.0
    %6722 = vmatprep.subr.mxu0 0.0
    %6723 = vmatpush1.msra.mxu0 0.0
    %6724 = vmatprep.subr.mxu0 0.0
    %6725 = vmatpush1.msra.mxu0 0.0
    %6726 = vmatprep.subr.mxu0 0.0
    %6727 = vmatpush1.msra.mxu0 0.0
    %6728 = vmatprep.subr.mxu0 0.0
    %6729 = vmatpush1.msra.mxu0 0.0
    %6730 = vmatprep.subr.mxu0 0.0
    %6731 = vmatpush1.msra.mxu0 0.0
    %6732 = vmatprep.subr.mxu0 0.0
    %6733 = vmatpush1.msra.mxu0 0.0
    %6734 = vmatprep.subr.mxu0 0.0
    %6735 = vmatpush1.msra.mxu0 0.0
    %6736 = vmatprep.mubr.f32.mxu0 0.0
    %6737 = vmatmul.mubr.f32.gmra.mrb[0].mxu0 %v6661
    %v6738 = vpop.f32.mrb[0].mxu0
    %v6739 = vadd.f32 0.0, %v6738
    %v6740 = vpop.f32.mrb[0].mxu0
    %6741 = vmatprep.mubr.f32.mxu0 0.0
    %6742 = vmatmul.mubr.f32.gmra.mrb[0].mxu0 %v6664
    %v6743 = vpop.f32.mrb[0].mxu0
    %v6744 = vadd.f32 0.0, %v6743
    %v6745 = vpop.f32.mrb[0].mxu0
    %6746 = vmatprep.mubr.f32.mxu0 0.0
    %6747 = vmatmul.mubr.f32.gmra.mrb[0].mxu0 %v6667
    %v6748 = vpop.f32.mrb[0].mxu0
    %v6749 = vadd.f32 0.0, %v6748
    %v6750 = vpop.f32.mrb[0].mxu0
    %6751 = vmatprep.mubr.f32.mxu0 0.0
    %6752 = vmatmul.mubr.f32.gmra.mrb[0].mxu0 %v6670
    %v6753 = vpop.f32.mrb[0].mxu0
    %v6754 = vadd.f32 0.0, %v6753
    %v6755 = vpop.f32.mrb[0].mxu0
    %6756 = vdwg.mxu0
    %v6757 = vadd.f32 %v5996, %v6739
    %v6758 = vadd.f32 %v5997, %v6744
    %v6759 = vadd.f32 %v5998, %v6749
    %v6760 = vadd.f32 %v5999, %v6754
    %v6761 = vlaneseq
    %v6762 = vshrl.u32 %v6761, 7
    %v6763 = vsub.s32 0, %v6762
    %v6764 = vrot.slane %v3635, %v6763
    %v6765 = vadd.f32 %v6757, %v6764
    %v6766 = vadd.f32 %v6758, %v6764
    %v6767 = vadd.f32 %v6759, %v6764
    %v6768 = vadd.f32 %v6760, %v6764
    %v6769 = vadd.f32 %v6765, %v3612
    %v6770 = vadd.f32 %v6766, %v3613
    %v6771 = vadd.f32 %v6767, %v3614
    %v6772 = vadd.f32 %v6768, %v3615
    %v6773 = vsel %vm60, %v6769, 0.0
    %6774 = vadd.xlane.f32.xlu0 %v6773
    %v6775 = vpop.xlane.xlu0 %6774
    %v6776 = vsel %vm60, %v6770, 0.0
    %6777 = vadd.xlane.f32.xlu0 %v6776
    %v6778 = vpop.xlane.xlu0 %6777
    %v6779 = vsel %vm60, %v6771, 0.0
    %6780 = vadd.xlane.f32.xlu0 %v6779
    %v6781 = vpop.xlane.xlu0 %6780
    %v6782 = vsel %vm60, %v6772, 0.0
    %6783 = vadd.xlane.f32.xlu0 %v6782
    %v6784 = vpop.xlane.xlu0 %6783
    %v6785 = vmul.f32 %v6775, %v3212
    %v6786 = vmul.f32 %v6778, %v3212
    %v6787 = vmul.f32 %v6781, %v3212
    %v6788 = vmul.f32 %v6784, %v3212
    %v6789 = vsub.f32 %v6769, %v6785
    %v6790 = vsub.f32 %v6770, %v6786
    %v6791 = vsub.f32 %v6771, %v6787
    %v6792 = vsub.f32 %v6772, %v6788
    %v6793 = vmul.f32 %v6789, %v6789
    %v6794 = vmul.f32 %v6790, %v6790
    %v6795 = vmul.f32 %v6791, %v6791
    %v6796 = vmul.f32 %v6792, %v6792
    %v6797 = vsel %vm60, %v6793, 0.0
    %6798 = vadd.xlane.f32.xlu0 %v6797
    %v6799 = vpop.xlane.xlu0 %6798
    %v6800 = vsel %vm60, %v6794, 0.0
    %6801 = vadd.xlane.f32.xlu0 %v6800
    %v6802 = vpop.xlane.xlu0 %6801
    %v6803 = vsel %vm60, %v6795, 0.0
    %6804 = vadd.xlane.f32.xlu0 %v6803
    %v6805 = vpop.xlane.xlu0 %6804
    %v6806 = vsel %vm60, %v6796, 0.0
    %6807 = vadd.xlane.f32.xlu0 %v6806
    %v6808 = vpop.xlane.xlu0 %6807
    %v6809 = vmul.f32 %v6799, 0.032258064
    %v6810 = vmul.f32 %v6802, 0.032258064
    %v6811 = vmul.f32 %v6805, 0.032258064
    %v6812 = vmul.f32 %v6808, 0.032258064
    %v6813 = vrsqrt.pop %v6809
    %v6814 = vmul.f32 %v6809, %v6813
    %vm6815 = vcmp.eq.f32.partialorder %v6809, inf
    %v6816 = vsel %vm6815, %v6809, %v6814
    %vm6817 = vcmp.eq.f32.partialorder %v6809, 0.0
    %v6818 = vand.u32 %v6809, 2147483648
    %v6819 = vsel %vm6817, %v6818, %v6816
    %v6820 = vrsqrt.pop %v6810
    %v6821 = vmul.f32 %v6810, %v6820
    %vm6822 = vcmp.eq.f32.partialorder %v6810, inf
    %v6823 = vsel %vm6822, %v6810, %v6821
    %vm6824 = vcmp.eq.f32.partialorder %v6810, 0.0
    %v6825 = vand.u32 %v6810, 2147483648
    %v6826 = vsel %vm6824, %v6825, %v6823
    %v6827 = vrsqrt.pop %v6811
    %v6828 = vmul.f32 %v6811, %v6827
    %vm6829 = vcmp.eq.f32.partialorder %v6811, inf
    %v6830 = vsel %vm6829, %v6811, %v6828
    %vm6831 = vcmp.eq.f32.partialorder %v6811, 0.0
    %v6832 = vand.u32 %v6811, 2147483648
    %v6833 = vsel %vm6831, %v6832, %v6830
    %v6834 = vrsqrt.pop %v6812
    %v6835 = vmul.f32 %v6812, %v6834
    %vm6836 = vcmp.eq.f32.partialorder %v6812, inf
    %v6837 = vsel %vm6836, %v6812, %v6835
    %vm6838 = vcmp.eq.f32.partialorder %v6812, 0.0
    %v6839 = vand.u32 %v6812, 2147483648
    %v6840 = vsel %vm6838, %v6839, %v6837
    %v6841 = vadd.f32 %v6819, 0.001
    %v6842 = vadd.f32 %v6826, 0.001
    %v6843 = vadd.f32 %v6833, 0.001
    %v6844 = vadd.f32 %v6840, 0.001
    %v6845 = vrcp.pop %v6841
    %v6846 = vmul.f32 %v6789, %v6845
    %v6847 = vrcp.pop %v6842
    %v6848 = vmul.f32 %v6790, %v6847
    %v6849 = vrcp.pop %v6843
    %v6850 = vmul.f32 %v6791, %v6849
    %v6851 = vrcp.pop %v6844
    %v6852 = vmul.f32 %v6792, %v6851
    %v6853 = vlaneseq
    %v6854 = vshrl.u32 %v6853, 7
    %v6855 = vsub.s32 3, %v6854
    %v6856 = vrot.slane %v3635, %v6855
    %v6857 = vmul.f32 %v6846, %v6856
    %v6858 = vmul.f32 %v6848, %v6856
    %v6859 = vmul.f32 %v6850, %v6856
    %v6860 = vmul.f32 %v6852, %v6856
    %v6861 = vlaneseq
    %v6862 = vshrl.u32 %v6861, 7
    %v6863 = vsub.s32 4, %v6862
    %v6864 = vrot.slane %v3635, %v6863
    %v6865 = vadd.f32 %v6857, %v6864
    %v6866 = vadd.f32 %v6858, %v6864
    %v6867 = vadd.f32 %v6859, %v6864
    %v6868 = vadd.f32 %v6860, %v6864
    %s6869 = scalar_lea.vmem %s3, 32
    %v6870 = vld [vmem:[%s6869] sm:$0xff]
    %v6871 = vld [vmem:[%s6869 + $0x8] sm:$0xff]
    %v6872 = vld [vmem:[%s6869 + $0x10] sm:$0xff]
    %v6873 = vld [vmem:[%s6869 + $0x18] sm:$0xff]
    %v6874 = vlaneseq
    %v6875 = vshrl.u32 %v6874, 7
    %v6876 = vsub.s32 1, %v6875
    %v6877 = vrot.slane %v3635, %v6876
    %v6879 = vsel %vm60, %v6865, 0
    %v6882 = vsel %vm60, %v6866, 0
    %v6885 = vsel %vm60, %v6867, 0
    %v6888 = vsel %vm60, %v6868, 0
    %6890 = vmatprep.subr.mxu0 0.0
    %6891 = vmatpush1.msra.mxu0 %v6870
    %6892 = vmatprep.subr.mxu0 0.0
    %6893 = vmatpush1.msra.mxu0 %v6871
    %6894 = vmatprep.subr.mxu0 0.0
    %6895 = vmatpush1.msra.mxu0 %v6872
    %6896 = vmatprep.subr.mxu0 0.0
    %6897 = vmatpush1.msra.mxu0 %v6873
    %6898 = vmatprep.subr.mxu0 0.0
    %6899 = vmatpush1.msra.mxu0 0.0
    %6900 = vmatprep.subr.mxu0 0.0
    %6901 = vmatpush1.msra.mxu0 0.0
    %6902 = vmatprep.subr.mxu0 0.0
    %6903 = vmatpush1.msra.mxu0 0.0
    %6904 = vmatprep.subr.mxu0 0.0
    %6905 = vmatpush1.msra.mxu0 0.0
    %6906 = vmatprep.subr.mxu0 0.0
    %6907 = vmatpush1.msra.mxu0 0.0
    %6908 = vmatprep.subr.mxu0 0.0
    %6909 = vmatpush1.msra.mxu0 0.0
    %6910 = vmatprep.subr.mxu0 0.0
    %6911 = vmatpush1.msra.mxu0 0.0
    %6912 = vmatprep.subr.mxu0 0.0
    %6913 = vmatpush1.msra.mxu0 0.0
    %6914 = vmatprep.subr.mxu0 0.0
    %6915 = vmatpush1.msra.mxu0 0.0
    %6916 = vmatprep.subr.mxu0 0.0
    %6917 = vmatpush1.msra.mxu0 0.0
    %6918 = vmatprep.subr.mxu0 0.0
    %6919 = vmatpush1.msra.mxu0 0.0
    %6920 = vmatprep.subr.mxu0 0.0
    %6921 = vmatpush1.msra.mxu0 0.0
    %6922 = vmatprep.subr.mxu0 0.0
    %6923 = vmatpush1.msra.mxu0 0.0
    %6924 = vmatprep.subr.mxu0 0.0
    %6925 = vmatpush1.msra.mxu0 0.0
    %6926 = vmatprep.subr.mxu0 0.0
    %6927 = vmatpush1.msra.mxu0 0.0
    %6928 = vmatprep.subr.mxu0 0.0
    %6929 = vmatpush1.msra.mxu0 0.0
    %6930 = vmatprep.subr.mxu0 0.0
    %6931 = vmatpush1.msra.mxu0 0.0
    %6932 = vmatprep.subr.mxu0 0.0
    %6933 = vmatpush1.msra.mxu0 0.0
    %6934 = vmatprep.subr.mxu0 0.0
    %6935 = vmatpush1.msra.mxu0 0.0
    %6936 = vmatprep.subr.mxu0 0.0
    %6937 = vmatpush1.msra.mxu0 0.0
    %6938 = vmatprep.subr.mxu0 0.0
    %6939 = vmatpush1.msra.mxu0 0.0
    %6940 = vmatprep.subr.mxu0 0.0
    %6941 = vmatpush1.msra.mxu0 0.0
    %6942 = vmatprep.subr.mxu0 0.0
    %6943 = vmatpush1.msra.mxu0 0.0
    %6944 = vmatprep.subr.mxu0 0.0
    %6945 = vmatpush1.msra.mxu0 0.0
    %6946 = vmatprep.subr.mxu0 0.0
    %6947 = vmatpush1.msra.mxu0 0.0
    %6948 = vmatprep.subr.mxu0 0.0
    %6949 = vmatpush1.msra.mxu0 0.0
    %6950 = vmatprep.subr.mxu0 0.0
    %6951 = vmatpush1.msra.mxu0 0.0
    %6952 = vmatprep.subr.mxu0 0.0
    %6953 = vmatpush1.msra.mxu0 0.0
    %6954 = vmatprep.mubr.f32.mxu0 0.0
    %6955 = vmatmul.mubr.f32.gmra.mrb[0].mxu0 %v6879
    %v6956 = vpop.f32.mrb[0].mxu0
    %v6957 = vadd.f32 %v6877, %v6956
    %v6958 = vpop.f32.mrb[0].mxu0
    %6959 = vmatprep.mubr.f32.mxu0 0.0
    %6960 = vmatmul.mubr.f32.gmra.mrb[0].mxu0 %v6882
    %v6961 = vpop.f32.mrb[0].mxu0
    %v6962 = vadd.f32 %v6877, %v6961
    %v6963 = vpop.f32.mrb[0].mxu0
    %6964 = vmatprep.mubr.f32.mxu0 0.0
    %6965 = vmatmul.mubr.f32.gmra.mrb[0].mxu0 %v6885
    %v6966 = vpop.f32.mrb[0].mxu0
    %v6967 = vadd.f32 %v6877, %v6966
    %v6968 = vpop.f32.mrb[0].mxu0
    %6969 = vmatprep.mubr.f32.mxu0 0.0
    %6970 = vmatmul.mubr.f32.gmra.mrb[0].mxu0 %v6888
    %v6971 = vpop.f32.mrb[0].mxu0
    %v6972 = vadd.f32 %v6877, %v6971
    %v6973 = vpop.f32.mrb[0].mxu0
    %6974 = vdwg.mxu0
    %v6975 = vmax.f32 %v6957, 0.0
    %v6976 = vmax.f32 %v6962, 0.0
    %v6977 = vmax.f32 %v6967, 0.0
    %v6978 = vmax.f32 %v6972, 0.0
    %s6979 = scalar_lea.vmem %s4, 64
    %v6980 = vld [vmem:[%s6979] sm:$0xff]
    %v6981 = vld [vmem:[%s6979 + $0x8] sm:$0xff]
    %v6982 = vld [vmem:[%s6979 + $0x10] sm:$0xff]
    %v6983 = vld [vmem:[%s6979 + $0x18] sm:$0xff]
    %v6984 = vld [vmem:[%s6979 + $0x20] sm:$0xff]
    %v6985 = vld [vmem:[%s6979 + $0x28] sm:$0xff]
    %v6986 = vld [vmem:[%s6979 + $0x30] sm:$0xff]
    %v6987 = vld [vmem:[%s6979 + $0x38] sm:$0xff]
    %v6988 = vlaneseq
    %v6989 = vshrl.u32 %v6988, 7
    %v6990 = vsub.s32 2, %v6989
    %v6991 = vrot.slane %v3635, %v6990
    %v6993 = vsel %vm3418, %v6975, 0
    %v6996 = vsel %vm3418, %v6976, 0
    %v6999 = vsel %vm3418, %v6977, 0
    %v7002 = vsel %vm3418, %v6978, 0
    %7004 = vmatprep.subr.mxu0 0.0
    %7005 = vmatpush1.msra.mxu0 %v6980
    %7006 = vmatprep.subr.mxu0 0.0
    %7007 = vmatpush1.msra.mxu0 %v6981
    %7008 = vmatprep.subr.mxu0 0.0
    %7009 = vmatpush1.msra.mxu0 %v6982
    %7010 = vmatprep.subr.mxu0 0.0
    %7011 = vmatpush1.msra.mxu0 %v6983
    %7012 = vmatprep.subr.mxu0 0.0
    %7013 = vmatpush1.msra.mxu0 %v6984
    %7014 = vmatprep.subr.mxu0 0.0
    %7015 = vmatpush1.msra.mxu0 %v6985
    %7016 = vmatprep.subr.mxu0 0.0
    %7017 = vmatpush1.msra.mxu0 %v6986
    %7018 = vmatprep.subr.mxu0 0.0
    %7019 = vmatpush1.msra.mxu0 %v6987
    %7020 = vmatprep.subr.mxu0 0.0
    %7021 = vmatpush1.msra.mxu0 0.0
    %7022 = vmatprep.subr.mxu0 0.0
    %7023 = vmatpush1.msra.mxu0 0.0
    %7024 = vmatprep.subr.mxu0 0.0
    %7025 = vmatpush1.msra.mxu0 0.0
    %7026 = vmatprep.subr.mxu0 0.0
    %7027 = vmatpush1.msra.mxu0 0.0
    %7028 = vmatprep.subr.mxu0 0.0
    %7029 = vmatpush1.msra.mxu0 0.0
    %7030 = vmatprep.subr.mxu0 0.0
    %7031 = vmatpush1.msra.mxu0 0.0
    %7032 = vmatprep.subr.mxu0 0.0
    %7033 = vmatpush1.msra.mxu0 0.0
    %7034 = vmatprep.subr.mxu0 0.0
    %7035 = vmatpush1.msra.mxu0 0.0
    %7036 = vmatprep.subr.mxu0 0.0
    %7037 = vmatpush1.msra.mxu0 0.0
    %7038 = vmatprep.subr.mxu0 0.0
    %7039 = vmatpush1.msra.mxu0 0.0
    %7040 = vmatprep.subr.mxu0 0.0
    %7041 = vmatpush1.msra.mxu0 0.0
    %7042 = vmatprep.subr.mxu0 0.0
    %7043 = vmatpush1.msra.mxu0 0.0
    %7044 = vmatprep.subr.mxu0 0.0
    %7045 = vmatpush1.msra.mxu0 0.0
    %7046 = vmatprep.subr.mxu0 0.0
    %7047 = vmatpush1.msra.mxu0 0.0
    %7048 = vmatprep.subr.mxu0 0.0
    %7049 = vmatpush1.msra.mxu0 0.0
    %7050 = vmatprep.subr.mxu0 0.0
    %7051 = vmatpush1.msra.mxu0 0.0
    %7052 = vmatprep.subr.mxu0 0.0
    %7053 = vmatpush1.msra.mxu0 0.0
    %7054 = vmatprep.subr.mxu0 0.0
    %7055 = vmatpush1.msra.mxu0 0.0
    %7056 = vmatprep.subr.mxu0 0.0
    %7057 = vmatpush1.msra.mxu0 0.0
    %7058 = vmatprep.subr.mxu0 0.0
    %7059 = vmatpush1.msra.mxu0 0.0
    %7060 = vmatprep.subr.mxu0 0.0
    %7061 = vmatpush1.msra.mxu0 0.0
    %7062 = vmatprep.subr.mxu0 0.0
    %7063 = vmatpush1.msra.mxu0 0.0
    %7064 = vmatprep.subr.mxu0 0.0
    %7065 = vmatpush1.msra.mxu0 0.0
    %7066 = vmatprep.subr.mxu0 0.0
    %7067 = vmatpush1.msra.mxu0 0.0
    %7068 = vmatprep.mubr.f32.mxu0 0.0
    %7069 = vmatmul.mubr.f32.gmra.mrb[0].mxu0 %v6993
    %v7070 = vpop.f32.mrb[0].mxu0
    %v7071 = vadd.f32 %v6991, %v7070
    %v7072 = vpop.f32.mrb[0].mxu0
    %7073 = vmatprep.mubr.f32.mxu0 0.0
    %7074 = vmatmul.mubr.f32.gmra.mrb[0].mxu0 %v6996
    %v7075 = vpop.f32.mrb[0].mxu0
    %v7076 = vadd.f32 %v6991, %v7075
    %v7077 = vpop.f32.mrb[0].mxu0
    %7078 = vmatprep.mubr.f32.mxu0 0.0
    %7079 = vmatmul.mubr.f32.gmra.mrb[0].mxu0 %v6999
    %v7080 = vpop.f32.mrb[0].mxu0
    %v7081 = vadd.f32 %v6991, %v7080
    %v7082 = vpop.f32.mrb[0].mxu0
    %7083 = vmatprep.mubr.f32.mxu0 0.0
    %7084 = vmatmul.mubr.f32.gmra.mrb[0].mxu0 %v7002
    %v7085 = vpop.f32.mrb[0].mxu0
    %v7086 = vadd.f32 %v6991, %v7085
    %v7087 = vpop.f32.mrb[0].mxu0
    %7088 = vdwg.mxu0
    %v7089 = vadd.f32 %v7071, %v6865
    %v7090 = vadd.f32 %v7076, %v6866
    %v7091 = vadd.f32 %v7081, %v6867
    %v7092 = vadd.f32 %v7086, %v6868
    %v7093 = vsel %vm60, %v7089, 0.0
    %7094 = vadd.xlane.f32.xlu0 %v7093
    %v7095 = vpop.xlane.xlu0 %7094
    %v7096 = vsel %vm60, %v7090, 0.0
    %7097 = vadd.xlane.f32.xlu0 %v7096
    %v7098 = vpop.xlane.xlu0 %7097
    %v7099 = vsel %vm60, %v7091, 0.0
    %7100 = vadd.xlane.f32.xlu0 %v7099
    %v7101 = vpop.xlane.xlu0 %7100
    %v7102 = vsel %vm60, %v7092, 0.0
    %7103 = vadd.xlane.f32.xlu0 %v7102
    %v7104 = vpop.xlane.xlu0 %7103
    %v7105 = vmul.f32 %v7095, %v3212
    %v7106 = vmul.f32 %v7098, %v3212
    %v7107 = vmul.f32 %v7101, %v3212
    %v7108 = vmul.f32 %v7104, %v3212
    %v7109 = vsub.f32 %v7089, %v7105
    %v7110 = vsub.f32 %v7090, %v7106
    %v7111 = vsub.f32 %v7091, %v7107
    %v7112 = vsub.f32 %v7092, %v7108
    %v7113 = vmul.f32 %v7109, %v7109
    %v7114 = vmul.f32 %v7110, %v7110
    %v7115 = vmul.f32 %v7111, %v7111
    %v7116 = vmul.f32 %v7112, %v7112
    %v7117 = vsel %vm60, %v7113, 0.0
    %7118 = vadd.xlane.f32.xlu0 %v7117
    %v7119 = vpop.xlane.xlu0 %7118
    %v7120 = vsel %vm60, %v7114, 0.0
    %7121 = vadd.xlane.f32.xlu0 %v7120
    %v7122 = vpop.xlane.xlu0 %7121
    %v7123 = vsel %vm60, %v7115, 0.0
    %7124 = vadd.xlane.f32.xlu0 %v7123
    %v7125 = vpop.xlane.xlu0 %7124
    %v7126 = vsel %vm60, %v7116, 0.0
    %7127 = vadd.xlane.f32.xlu0 %v7126
    %v7128 = vpop.xlane.xlu0 %7127
    %v7129 = vmul.f32 %v7119, 0.032258064
    %v7130 = vmul.f32 %v7122, 0.032258064
    %v7131 = vmul.f32 %v7125, 0.032258064
    %v7132 = vmul.f32 %v7128, 0.032258064
    %v7133 = vrsqrt.pop %v7129
    %v7134 = vmul.f32 %v7129, %v7133
    %vm7135 = vcmp.eq.f32.partialorder %v7129, inf
    %v7136 = vsel %vm7135, %v7129, %v7134
    %vm7137 = vcmp.eq.f32.partialorder %v7129, 0.0
    %v7138 = vand.u32 %v7129, 2147483648
    %v7139 = vsel %vm7137, %v7138, %v7136
    %v7140 = vrsqrt.pop %v7130
    %v7141 = vmul.f32 %v7130, %v7140
    %vm7142 = vcmp.eq.f32.partialorder %v7130, inf
    %v7143 = vsel %vm7142, %v7130, %v7141
    %vm7144 = vcmp.eq.f32.partialorder %v7130, 0.0
    %v7145 = vand.u32 %v7130, 2147483648
    %v7146 = vsel %vm7144, %v7145, %v7143
    %v7147 = vrsqrt.pop %v7131
    %v7148 = vmul.f32 %v7131, %v7147
    %vm7149 = vcmp.eq.f32.partialorder %v7131, inf
    %v7150 = vsel %vm7149, %v7131, %v7148
    %vm7151 = vcmp.eq.f32.partialorder %v7131, 0.0
    %v7152 = vand.u32 %v7131, 2147483648
    %v7153 = vsel %vm7151, %v7152, %v7150
    %v7154 = vrsqrt.pop %v7132
    %v7155 = vmul.f32 %v7132, %v7154
    %vm7156 = vcmp.eq.f32.partialorder %v7132, inf
    %v7157 = vsel %vm7156, %v7132, %v7155
    %vm7158 = vcmp.eq.f32.partialorder %v7132, 0.0
    %v7159 = vand.u32 %v7132, 2147483648
    %v7160 = vsel %vm7158, %v7159, %v7157
    %v7161 = vadd.f32 %v7139, 0.001
    %v7162 = vadd.f32 %v7146, 0.001
    %v7163 = vadd.f32 %v7153, 0.001
    %v7164 = vadd.f32 %v7160, 0.001
    %v7165 = vrcp.pop %v7161
    %v7166 = vmul.f32 %v7109, %v7165
    %v7167 = vrcp.pop %v7162
    %v7168 = vmul.f32 %v7110, %v7167
    %v7169 = vrcp.pop %v7163
    %v7170 = vmul.f32 %v7111, %v7169
    %v7171 = vrcp.pop %v7164
    %v7172 = vmul.f32 %v7112, %v7171
    %v7173 = vlaneseq
    %v7174 = vshrl.u32 %v7173, 7
    %v7175 = vsub.s32 5, %v7174
    %v7176 = vrot.slane %v3635, %v7175
    %v7177 = vmul.f32 %v7166, %v7176
    %v7178 = vmul.f32 %v7168, %v7176
    %v7179 = vmul.f32 %v7170, %v7176
    %v7180 = vmul.f32 %v7172, %v7176
    %v7181 = vlaneseq
    %v7182 = vshrl.u32 %v7181, 7
    %v7183 = vsub.s32 6, %v7182
    %v7184 = vrot.slane %v3635, %v7183
    %v7185 = vadd.f32 %v7177, %v7184
    %v7186 = vadd.f32 %v7178, %v7184
    %v7187 = vadd.f32 %v7179, %v7184
    %v7188 = vadd.f32 %v7180, %v7184
    %v7189 = vld [vmem:[%s6] sm:$0xff]
    %v7190 = vld [vmem:[%s6 + $0x8] sm:$0xff]
    %v7191 = vld [vmem:[%s6 + $0x10] sm:$0xff]
    %v7192 = vld [vmem:[%s6 + $0x18] sm:$0xff]
    %v7194 = vsel %vm60, %v7185, 0
    %v7197 = vsel %vm60, %v7186, 0
    %v7200 = vsel %vm60, %v7187, 0
    %v7203 = vsel %vm60, %v7188, 0
    %7205 = vmatprep.subr.mxu0 0.0
    %7206 = vmatpush1.msra.mxu0 %v7189
    %7207 = vmatprep.subr.mxu0 0.0
    %7208 = vmatpush1.msra.mxu0 %v7190
    %7209 = vmatprep.subr.mxu0 0.0
    %7210 = vmatpush1.msra.mxu0 %v7191
    %7211 = vmatprep.subr.mxu0 0.0
    %7212 = vmatpush1.msra.mxu0 %v7192
    %7213 = vmatprep.subr.mxu0 0.0
    %7214 = vmatpush1.msra.mxu0 0.0
    %7215 = vmatprep.subr.mxu0 0.0
    %7216 = vmatpush1.msra.mxu0 0.0
    %7217 = vmatprep.subr.mxu0 0.0
    %7218 = vmatpush1.msra.mxu0 0.0
    %7219 = vmatprep.subr.mxu0 0.0
    %7220 = vmatpush1.msra.mxu0 0.0
    %7221 = vmatprep.subr.mxu0 0.0
    %7222 = vmatpush1.msra.mxu0 0.0
    %7223 = vmatprep.subr.mxu0 0.0
    %7224 = vmatpush1.msra.mxu0 0.0
    %7225 = vmatprep.subr.mxu0 0.0
    %7226 = vmatpush1.msra.mxu0 0.0
    %7227 = vmatprep.subr.mxu0 0.0
    %7228 = vmatpush1.msra.mxu0 0.0
    %7229 = vmatprep.subr.mxu0 0.0
    %7230 = vmatpush1.msra.mxu0 0.0
    %7231 = vmatprep.subr.mxu0 0.0
    %7232 = vmatpush1.msra.mxu0 0.0
    %7233 = vmatprep.subr.mxu0 0.0
    %7234 = vmatpush1.msra.mxu0 0.0
    %7235 = vmatprep.subr.mxu0 0.0
    %7236 = vmatpush1.msra.mxu0 0.0
    %7237 = vmatprep.subr.mxu0 0.0
    %7238 = vmatpush1.msra.mxu0 0.0
    %7239 = vmatprep.subr.mxu0 0.0
    %7240 = vmatpush1.msra.mxu0 0.0
    %7241 = vmatprep.subr.mxu0 0.0
    %7242 = vmatpush1.msra.mxu0 0.0
    %7243 = vmatprep.subr.mxu0 0.0
    %7244 = vmatpush1.msra.mxu0 0.0
    %7245 = vmatprep.subr.mxu0 0.0
    %7246 = vmatpush1.msra.mxu0 0.0
    %7247 = vmatprep.subr.mxu0 0.0
    %7248 = vmatpush1.msra.mxu0 0.0
    %7249 = vmatprep.subr.mxu0 0.0
    %7250 = vmatpush1.msra.mxu0 0.0
    %7251 = vmatprep.subr.mxu0 0.0
    %7252 = vmatpush1.msra.mxu0 0.0
    %7253 = vmatprep.subr.mxu0 0.0
    %7254 = vmatpush1.msra.mxu0 0.0
    %7255 = vmatprep.subr.mxu0 0.0
    %7256 = vmatpush1.msra.mxu0 0.0
    %7257 = vmatprep.subr.mxu0 0.0
    %7258 = vmatpush1.msra.mxu0 0.0
    %7259 = vmatprep.subr.mxu0 0.0
    %7260 = vmatpush1.msra.mxu0 0.0
    %7261 = vmatprep.subr.mxu0 0.0
    %7262 = vmatpush1.msra.mxu0 0.0
    %7263 = vmatprep.subr.mxu0 0.0
    %7264 = vmatpush1.msra.mxu0 0.0
    %7265 = vmatprep.subr.mxu0 0.0
    %7266 = vmatpush1.msra.mxu0 0.0
    %7267 = vmatprep.subr.mxu0 0.0
    %7268 = vmatpush1.msra.mxu0 0.0
    %7269 = vmatprep.mubr.f32.mxu0 0.0
    %7270 = vmatmul.mubr.f32.gmra.mrb[0].mxu0 %v7194
    %v7271 = vpop.f32.mrb[0].mxu0
    %v7272 = vadd.f32 0.0, %v7271
    %v7273 = vpop.f32.mrb[0].mxu0
    %7274 = vmatprep.mubr.f32.mxu0 0.0
    %7275 = vmatmul.mubr.f32.gmra.mrb[0].mxu0 %v7197
    %v7276 = vpop.f32.mrb[0].mxu0
    %v7277 = vadd.f32 0.0, %v7276
    %v7278 = vpop.f32.mrb[0].mxu0
    %7279 = vmatprep.mubr.f32.mxu0 0.0
    %7280 = vmatmul.mubr.f32.gmra.mrb[0].mxu0 %v7200
    %v7281 = vpop.f32.mrb[0].mxu0
    %v7282 = vadd.f32 0.0, %v7281
    %v7283 = vpop.f32.mrb[0].mxu0
    %7284 = vmatprep.mubr.f32.mxu0 0.0
    %7285 = vmatmul.mubr.f32.gmra.mrb[0].mxu0 %v7203
    %v7286 = vpop.f32.mrb[0].mxu0
    %v7287 = vadd.f32 0.0, %v7286
    %v7288 = vpop.f32.mrb[0].mxu0
    %7289 = vdwg.mxu0
    %v7290 = vld [vmem:[%s7] sm:$0xff]
    %v7291 = vld [vmem:[%s7 + $0x8] sm:$0xff]
    %v7292 = vld [vmem:[%s7 + $0x10] sm:$0xff]
    %v7293 = vld [vmem:[%s7 + $0x18] sm:$0xff]
    %v7294 = vmul.f32 %v7272, %v7290
    %v7295 = vmul.f32 %v7277, %v7291
    %v7296 = vmul.f32 %v7282, %v7292
    %v7297 = vmul.f32 %v7287, %v7293
    %v7298 = vld [vmem:[%s8] sm:$0xff]
    %v7299 = vld [vmem:[%s8 + $0x8] sm:$0xff]
    %v7300 = vld [vmem:[%s8 + $0x10] sm:$0xff]
    %vm7301 = vcmask 195584
    %v7303 = vsel %vm7301, %v7294, 0
    %v7306 = vsel %vm7301, %v7295, 0
    %v7309 = vsel %vm7301, %v7296, 0
    %v7312 = vsel %vm7301, %v7297, 0
    %7314 = vmatprep.subr.mxu0 0.0
    %7315 = vmatpush1.msra.mxu0 %v7298
    %7316 = vmatprep.subr.mxu0 0.0
    %7317 = vmatpush1.msra.mxu0 %v7299
    %7318 = vmatprep.subr.mxu0 0.0
    %7319 = vmatpush1.msra.mxu0 %v7300
    %7320 = vmatprep.subr.mxu0 0.0
    %7321 = vmatpush1.msra.mxu0 0.0
    %7322 = vmatprep.subr.mxu0 0.0
    %7323 = vmatpush1.msra.mxu0 0.0
    %7324 = vmatprep.subr.mxu0 0.0
    %7325 = vmatpush1.msra.mxu0 0.0
    %7326 = vmatprep.subr.mxu0 0.0
    %7327 = vmatpush1.msra.mxu0 0.0
    %7328 = vmatprep.subr.mxu0 0.0
    %7329 = vmatpush1.msra.mxu0 0.0
    %7330 = vmatprep.subr.mxu0 0.0
    %7331 = vmatpush1.msra.mxu0 0.0
    %7332 = vmatprep.subr.mxu0 0.0
    %7333 = vmatpush1.msra.mxu0 0.0
    %7334 = vmatprep.subr.mxu0 0.0
    %7335 = vmatpush1.msra.mxu0 0.0
    %7336 = vmatprep.subr.mxu0 0.0
    %7337 = vmatpush1.msra.mxu0 0.0
    %7338 = vmatprep.subr.mxu0 0.0
    %7339 = vmatpush1.msra.mxu0 0.0
    %7340 = vmatprep.subr.mxu0 0.0
    %7341 = vmatpush1.msra.mxu0 0.0
    %7342 = vmatprep.subr.mxu0 0.0
    %7343 = vmatpush1.msra.mxu0 0.0
    %7344 = vmatprep.subr.mxu0 0.0
    %7345 = vmatpush1.msra.mxu0 0.0
    %7346 = vmatprep.subr.mxu0 0.0
    %7347 = vmatpush1.msra.mxu0 0.0
    %7348 = vmatprep.subr.mxu0 0.0
    %7349 = vmatpush1.msra.mxu0 0.0
    %7350 = vmatprep.subr.mxu0 0.0
    %7351 = vmatpush1.msra.mxu0 0.0
    %7352 = vmatprep.subr.mxu0 0.0
    %7353 = vmatpush1.msra.mxu0 0.0
    %7354 = vmatprep.subr.mxu0 0.0
    %7355 = vmatpush1.msra.mxu0 0.0
    %7356 = vmatprep.subr.mxu0 0.0
    %7357 = vmatpush1.msra.mxu0 0.0
    %7358 = vmatprep.subr.mxu0 0.0
    %7359 = vmatpush1.msra.mxu0 0.0
    %7360 = vmatprep.subr.mxu0 0.0
    %7361 = vmatpush1.msra.mxu0 0.0
    %7362 = vmatprep.subr.mxu0 0.0
    %7363 = vmatpush1.msra.mxu0 0.0
    %7364 = vmatprep.subr.mxu0 0.0
    %7365 = vmatpush1.msra.mxu0 0.0
    %7366 = vmatprep.subr.mxu0 0.0
    %7367 = vmatpush1.msra.mxu0 0.0
    %7368 = vmatprep.subr.mxu0 0.0
    %7369 = vmatpush1.msra.mxu0 0.0
    %7370 = vmatprep.subr.mxu0 0.0
    %7371 = vmatpush1.msra.mxu0 0.0
    %7372 = vmatprep.subr.mxu0 0.0
    %7373 = vmatpush1.msra.mxu0 0.0
    %7374 = vmatprep.subr.mxu0 0.0
    %7375 = vmatpush1.msra.mxu0 0.0
    %7376 = vmatprep.subr.mxu0 0.0
    %7377 = vmatpush1.msra.mxu0 0.0
    %7378 = vmatprep.mubr.f32.mxu0 0.0
    %7379 = vmatmul.mubr.f32.gmra.mrb[0].mxu0 %v7303
    %v7380 = vpop.f32.mrb[0].mxu0
    %v7381 = vadd.f32 0.0, %v7380
    %v7382 = vpop.f32.mrb[0].mxu0
    %7383 = vmatprep.mubr.f32.mxu0 0.0
    %7384 = vmatmul.mubr.f32.gmra.mrb[0].mxu0 %v7306
    %v7385 = vpop.f32.mrb[0].mxu0
    %v7386 = vadd.f32 0.0, %v7385
    %v7387 = vpop.f32.mrb[0].mxu0
    %7388 = vmatprep.mubr.f32.mxu0 0.0
    %7389 = vmatmul.mubr.f32.gmra.mrb[0].mxu0 %v7309
    %v7390 = vpop.f32.mrb[0].mxu0
    %v7391 = vadd.f32 0.0, %v7390
    %v7392 = vpop.f32.mrb[0].mxu0
    %7393 = vmatprep.mubr.f32.mxu0 0.0
    %7394 = vmatmul.mubr.f32.gmra.mrb[0].mxu0 %v7312
    %v7395 = vpop.f32.mrb[0].mxu0
    %v7396 = vadd.f32 0.0, %v7395
    %v7397 = vpop.f32.mrb[0].mxu0
    %7398 = vdwg.mxu0
    %v7399 = vld [vmem:[%s9] sm:$0xf]
    %v7400 = vld [vmem:[%s10] sm:$0x1]
    %v7402 = vlaneseq
    %v7403 = vshrl.u32 %v7402, 7
    %v7404 = vsub.s32 0, %v7403
    %v7405 = vrot.slane %v7400, %v7404
    %v7408 = vsel %vm60, %v7399, 0
    %7410 = vmatprep.subr.mxu0 0.0
    %7411 = vmatpush1.msra.mxu0 %v7381
    %7412 = vmatprep.subr.mxu0 0.0
    %7413 = vmatpush1.msra.mxu0 %v7386
    %7414 = vmatprep.subr.mxu0 0.0
    %7415 = vmatpush1.msra.mxu0 %v7391
    %7416 = vmatprep.subr.mxu0 0.0
    %7417 = vmatpush1.msra.mxu0 %v7396
    %7418 = vmatprep.subr.mxu0 0.0
    %7419 = vmatpush1.msra.mxu0 0.0
    %7420 = vmatprep.subr.mxu0 0.0
    %7421 = vmatpush1.msra.mxu0 0.0
    %7422 = vmatprep.subr.mxu0 0.0
    %7423 = vmatpush1.msra.mxu0 0.0
    %7424 = vmatprep.subr.mxu0 0.0
    %7425 = vmatpush1.msra.mxu0 0.0
    %7426 = vmatprep.subr.mxu0 0.0
    %7427 = vmatpush1.msra.mxu0 0.0
    %7428 = vmatprep.subr.mxu0 0.0
    %7429 = vmatpush1.msra.mxu0 0.0
    %7430 = vmatprep.subr.mxu0 0.0
    %7431 = vmatpush1.msra.mxu0 0.0
    %7432 = vmatprep.subr.mxu0 0.0
    %7433 = vmatpush1.msra.mxu0 0.0
    %7434 = vmatprep.subr.mxu0 0.0
    %7435 = vmatpush1.msra.mxu0 0.0
    %7436 = vmatprep.subr.mxu0 0.0
    %7437 = vmatpush1.msra.mxu0 0.0
    %7438 = vmatprep.subr.mxu0 0.0
    %7439 = vmatpush1.msra.mxu0 0.0
    %7440 = vmatprep.subr.mxu0 0.0
    %7441 = vmatpush1.msra.mxu0 0.0
    %7442 = vmatprep.subr.mxu0 0.0
    %7443 = vmatpush1.msra.mxu0 0.0
    %7444 = vmatprep.subr.mxu0 0.0
    %7445 = vmatpush1.msra.mxu0 0.0
    %7446 = vmatprep.subr.mxu0 0.0
    %7447 = vmatpush1.msra.mxu0 0.0
    %7448 = vmatprep.subr.mxu0 0.0
    %7449 = vmatpush1.msra.mxu0 0.0
    %7450 = vmatprep.subr.mxu0 0.0
    %7451 = vmatpush1.msra.mxu0 0.0
    %7452 = vmatprep.subr.mxu0 0.0
    %7453 = vmatpush1.msra.mxu0 0.0
    %7454 = vmatprep.subr.mxu0 0.0
    %7455 = vmatpush1.msra.mxu0 0.0
    %7456 = vmatprep.subr.mxu0 0.0
    %7457 = vmatpush1.msra.mxu0 0.0
    %7458 = vmatprep.subr.mxu0 0.0
    %7459 = vmatpush1.msra.mxu0 0.0
    %7460 = vmatprep.subr.mxu0 0.0
    %7461 = vmatpush1.msra.mxu0 0.0
    %7462 = vmatprep.subr.mxu0 0.0
    %7463 = vmatpush1.msra.mxu0 0.0
    %7464 = vmatprep.subr.mxu0 0.0
    %7465 = vmatpush1.msra.mxu0 0.0
    %7466 = vmatprep.subr.mxu0 0.0
    %7467 = vmatpush1.msra.mxu0 0.0
    %7468 = vmatprep.subr.mxu0 0.0
    %7469 = vmatpush1.msra.mxu0 0.0
    %7470 = vmatprep.subr.mxu0 0.0
    %7471 = vmatpush1.msra.mxu0 0.0
    %7472 = vmatprep.subr.mxu0 0.0
    %7473 = vmatpush1.msra.mxu0 0.0
    %7474 = vmatprep.mubr.f32.mxu0 0.0
    %7475 = vmatmul.mubr.f32.gmra.mrb[0].mxu0 %v7408
    %v7476 = vpop.f32.mrb[0].mxu0
    %v7477 = vadd.f32 %v7405, %v7476
    %v7478 = vpop.f32.mrb[0].mxu0
    %7479 = vdwg.mxu0
    %vm7480 = vcmask 19456
    %7481 = vst.msk [vmem:[#allocation2] sm:$0xf] %vm7480, %v7477
    // Predicated region
    $region46: #{tpu_custom_call.1} parent=1 // pred_check
      _
    $region47: #{tpu_custom_call.1} parent=1 // pred_check_branch
      %7483 = sbr.rel (0) target = $region49
    $region48: #{tpu_custom_call.1} parent=1 // pred_region
      %s7485 = ssub.s32 64, 64
      %7486 = vsyncadd [#allocation3], %s7485
      %s7488 = sshll.u32 [#allocation2], 4
      %s7489 = int_to_ptr.vmem [resolvable:$true] %s7488
      %7491 = dma.vmem_to_hbm [thread:$0]  %s7489, 64, %s11, [#allocation3]
    $region49: #{tpu_custom_call.1} parent=1 // pred_fallthru
      _
    // Predicated region
    $region50: #{tpu_custom_call.1} parent=1 // pred_check
      _
    $region51: #{tpu_custom_call.1} parent=1 // pred_check_branch
      %7493 = sbr.rel (0) target = $region53
    $region52: #{tpu_custom_call.1} parent=1 // pred_region
      %7494 = dma.done [#allocation3], 64
    $region53: #{tpu_custom_call.1} parent=1 // pred_fallthru
      _
    %7495 = vsyncpa [#allocation3], 1

</llo_original>
